<compile_context>
chip_gen: v6e
topology: v6e:2x2x1
jax: 0.10.0
libtpu: 0.0.40
codegen_flags: <defaults>
</compile_context>

<pallas_src>
import functools

import jax
import jax.numpy as jnp
from jax import lax
from jax.experimental import pallas as pl
from jax.experimental.pallas import tpu as pltpu


# ---------------------------------------------------------------------------
# Pallas kernel: one full ResnetBlock forward for a single batch element
# ---------------------------------------------------------------------------
def _resnet_block_kernel(x_ref, w1_ref, w2_ref, o_ref, slab_ref, *,
                         H, W, dilation, eps=1e-5):
    """x_ref   : (1, H, W, Cp)  raw input block (original dtype, e.g. f32)
       w*_ref  : (3, 3*Cp, Cp)  weights, (kh, kw*Cin, Cout) -- kw folded in K
       o_ref   : (1, H, W, Cp)
       slab_ref: VMEM scratch (H + 2*dilation, W, 3*Cp), MXU operand dtype.
                 im2col slab: lane block kw, row p, column j holds the
                 reflection-padded input at (p, j + kw*d).
    """
    d = dilation
    Cp = o_ref.shape[-1]
    cdt = slab_ref.dtype                      # MXU operand dtype (bf16 for f32 in)
    inv_n = 1.0 / float(H * W)

    def conv3x3(src, dd, w_ref):
        # src: (H, W, Cp) value in MXU dtype  ->  (H*W, Cp) f32 accumulator.
        # ---- build the im2col slab once (3 big copies, small fix-ups) ----
        # centre tap (kw=1): fully aligned copy.
        slab_ref[dd:dd + H, :, Cp:2 * Cp] = src
        # left tap (kw=0): output column j <- source column j - dd.
        slab_ref[dd:dd + H, dd:W, 0:Cp] = src[:, 0:W - dd, :]
        # right tap (kw=2): output column j <- source column j + dd.
        slab_ref[dd:dd + H, 0:W - dd, 2 * Cp:3 * Cp] = src[:, dd:W, :]
        # W-reflection fix-up columns (2*dd single-column stores).
        for j in range(dd):                       # left edge: refl(j - dd)
            s = dd - j
            slab_ref[dd:dd + H, j:j + 1, 0:Cp] = src[:, s:s + 1, :]
        for j in range(W - dd, W):                # right edge: refl(j + dd)
            s = 2 * W - 2 - dd - j
            slab_ref[dd:dd + H, j:j + 1, 2 * Cp:3 * Cp] = src[:, s:s + 1, :]
        # H-reflection rows: copy already-built interior slab rows (all three
        # tap blocks at once) -> the W handling above is inherited for free.
        for p in range(dd):                       # top pad rows
            q = 2 * dd - p
            slab_ref[p:p + 1, :, :] = slab_ref[q:q + 1, :, :]
        for p in range(H + dd, H + 2 * dd):       # bottom pad rows
            q = 2 * H - 2 + 2 * dd - p
            slab_ref[p:p + 1, :, :] = slab_ref[q:q + 1, :, :]
        # ---- three K = 3*Cp matmuls over the kh taps ----------------------
        acc = jnp.zeros((H * W, Cp), jnp.float32)
        for kh in range(3):
            stacked = slab_ref[kh * dd:kh * dd + H, :, :].reshape(H * W, 3 * Cp)
            acc = acc + jnp.dot(stacked, w_ref[kh],
                                preferred_element_type=jnp.float32)
        return acc

    def instance_norm(y):
        # Two-pass stats (matches the PyTorch reference, avoids cancellation).
        # Zero-padded channels: mean = var = 0 -> output stays exactly 0.
        mean = jnp.sum(y, axis=0, keepdims=True) * inv_n
        yc = y - mean
        var = jnp.sum(yc * yc, axis=0, keepdims=True) * inv_n
        return yc * lax.rsqrt(var + eps)

    # Conv biases intentionally omitted: affine=False InstanceNorm cancels any
    # per-channel constant added by the preceding conv.

    # ReflectionPad(d) -> Conv3x3(dilation=d) -> InstanceNorm -> ReLU
    y = conv3x3(x_ref[0].astype(cdt), d, w1_ref)
    y = jnp.maximum(instance_norm(y), 0.0)

    # ReflectionPad(1) -> Conv3x3(dilation=1) -> InstanceNorm
    z = conv3x3(y.astype(cdt).reshape(H, W, Cp), 1, w2_ref)
    z = instance_norm(z).reshape(H, W, Cp)

    # Residual in f32; the raw input block is read back aligned (no pad offset).
    o_ref[0] = (x_ref[0].astype(jnp.float32) + z).astype(o_ref.dtype)


def _vmem_limit_bytes(default=64 * 1024 * 1024):
    # 7/8 of physical VMEM: ~112 MiB on v5e/v6e (128 MiB), ~56 MiB on v7x
    # (64 MiB) -- leaves headroom for compiler-internal scratch.
    try:
        cap = int(pltpu.get_tpu_info().vmem_capacity_bytes)
        if cap > 0:
            return (cap * 7) // 8
    except Exception:
        pass
    return default


# ---------------------------------------------------------------------------
# wrapper: NCHW in / NCHW out, PyTorch-layout (OIHW) conv weights
# ---------------------------------------------------------------------------
def resnet_block(x_nchw, w1_oihw, b1, w2_oihw, b2, dilation=1, mxu_dtype=None):
    """ResnetBlock forward.  b1/b2 are accepted for API parity but unused:
    a per-channel bias is exactly cancelled by the affine=False InstanceNorm
    that follows each convolution (see NOTE at top of file)."""
    del b1, b2
    N, C, H, W = x_nchw.shape
    d = int(dilation)
    assert 1 <= d < min(H, W), "reflection pad must be smaller than H and W"
    dt = x_nchw.dtype
    if mxu_dtype is None:
        # MXU is bf16-native; keep f32 accumulation, bf16 operands.
        mxu_dtype = jnp.bfloat16 if dt == jnp.float32 else dt
    Cp = ((C + 127) // 128) * 128          # dense lane axis (zero-pad channels)

    # NCHW -> NHWC; channel zero-pad only.  Reflection padding happens inside
    # the kernel while building the im2col slab.  (W % 8 keeps the
    # (H,W,Cp)<->(H*W,Cp) reshapes layout-free; the test shapes satisfy it.)
    x_nhwc = jnp.transpose(x_nchw, (0, 2, 3, 1))
    if Cp != C:
        x_nhwc = jnp.pad(x_nhwc, ((0, 0), (0, 0), (0, 0), (0, Cp - C)))

    def prep_w(w_oihw):
        w = jnp.transpose(w_oihw, (2, 3, 1, 0)).astype(mxu_dtype)  # (3,3,Ci,Co)
        if Cp != C:
            w = jnp.pad(w, ((0, 0), (0, 0), (0, Cp - C), (0, Cp - C)))
        return w.reshape(3, 3 * Cp, Cp)            # kw folded into the K axis

    w1k = prep_w(w1_oihw)
    w2k = prep_w(w2_oihw)

    kernel = functools.partial(_resnet_block_kernel, H=H, W=W, dilation=d)

    x_item = jnp.dtype(dt).itemsize
    w_item = jnp.dtype(mxu_dtype).itemsize
    cost = pl.CostEstimate(
        flops=2 * 2 * 9 * N * H * W * Cp * Cp,
        transcendentals=2 * N * Cp,
        bytes_accessed=(N * H * W * Cp * 2 * x_item          # input + output
                        + 2 * 3 * 3 * Cp * Cp * w_item),     # both weights
    )

    out = pl.pallas_call(
        kernel,
        out_shape=jax.ShapeDtypeStruct((N, H, W, Cp), dt),
        grid_spec=pltpu.PrefetchScalarGridSpec(
            num_scalar_prefetch=0,
            grid=(N,),
            in_specs=[
                pl.BlockSpec((1, H, W, Cp), lambda n: (n, 0, 0, 0)),
                pl.BlockSpec((3, 3 * Cp, Cp), lambda n: (0, 0, 0)),
                pl.BlockSpec((3, 3 * Cp, Cp), lambda n: (0, 0, 0)),
            ],
            out_specs=pl.BlockSpec((1, H, W, Cp), lambda n: (n, 0, 0, 0)),
            # One shared im2col slab, reused by both convs.
            scratch_shapes=[pltpu.VMEM((H + 2 * d, W, 3 * Cp), mxu_dtype)],
        ),
        compiler_params=pltpu.CompilerParams(
            dimension_semantics=("parallel",),
            vmem_limit_bytes=_vmem_limit_bytes(),
        ),
        cost_estimate=cost,
    )(x_nhwc, w1k, w2k)

    # drop channel padding, NHWC -> NCHW
    return jnp.transpose(out[..., :C], (0, 3, 1, 2))


# ---------------------------------------------------------------------------
# pure-JAX reference (for correctness check) — includes the conv biases.
# conv_dtype lets us mirror the kernel's bf16 MXU-operand treatment.
# ---------------------------------------------------------------------------
def _ref_forward(x, w1, b1, w2, b2, dilation=1, conv_dtype=None):
    def conv(inp, w, b, d):
        p = jnp.pad(inp, ((0, 0), (0, 0), (d, d), (d, d)), mode="reflect")
        if conv_dtype is not None:
            p = p.astype(conv_dtype)
            w = w.astype(conv_dtype)
        o = lax.conv_general_dilated(
            p, w, window_strides=(1, 1), padding="VALID",
            rhs_dilation=(d, d),
            dimension_numbers=("NCHW", "OIHW", "NCHW"),
            preferred_element_type=jnp.float32)
        return o + b[None, :, None, None]

    def inorm(y, eps=1e-5):
        m = jnp.mean(y, axis=(2, 3), keepdims=True)
        v = jnp.mean((y - m) ** 2, axis=(2, 3), keepdims=True)
        return (y - m) * lax.rsqrt(v + eps)

    h = conv(x, w1, b1, dilation)
    h = jnp.maximum(inorm(h), 0.0)
    h = conv(h, w2, b2, 1)
    h = inorm(h)
    return x + h


# ---------------------------------------------------------------------------
if __name__ == "__main__":
    N, dim, H, W = 2, 4, 16, 16
    dilation = 1

    key = jax.random.PRNGKey(0)
    kx, kw1, kb1, kw2, kb2 = jax.random.split(key, 5)

    x = jax.random.normal(kx, (N, dim, H, W), jnp.float32)
    # PyTorch Conv2d weight layout: (out_ch, in_ch, kh, kw)
    w1 = jax.random.normal(kw1, (dim, dim, 3, 3), jnp.float32) * 0.1
    b1 = jax.random.normal(kb1, (dim,), jnp.float32) * 0.1
    w2 = jax.random.normal(kw2, (dim, dim, 3, 3), jnp.float32) * 0.1
    b2 = jax.random.normal(kb2, (dim,), jnp.float32) * 0.1

    out = resnet_block(x, w1, b1, w2, b2, dilation=dilation)
    jax.block_until_ready(out)

    assert out.shape == x.shape and out.dtype == x.dtype

    # Tight check against a reference with the same bf16 MXU-operand numerics.
    ref_mxu = _ref_forward(x, w1, b1, w2, b2, dilation, conv_dtype=jnp.bfloat16)
    err_mxu = float(jnp.max(jnp.abs(out - ref_mxu)))
    assert jnp.allclose(out, ref_mxu, atol=2e-3, rtol=2e-3), err_mxu

    # Loose sanity check against the full-f32 reference (the kernel uses bf16
    # MXU operands by design, so only a coarse agreement is expected).
    ref_f32 = _ref_forward(x, w1, b1, w2, b2, dilation)
    err_f32 = float(jnp.max(jnp.abs(out - ref_f32)))
    assert jnp.allclose(out, ref_f32, atol=6e-2, rtol=6e-2), err_f32

    print("KERNEL_OK")
</pallas_src>

<mosaic_0001>
module attributes {stable_mosaic.version = 11 : i64} {
  func.func @_resnet_block_kernel(%arg0: i32, %arg1: memref<1x16x16x128xf32, #tpu.memory_space<vmem>>, %arg2: memref<3x384x128xbf16, #tpu.memory_space<vmem>>, %arg3: memref<3x384x128xbf16, #tpu.memory_space<vmem>>, %arg4: memref<1x16x16x128xf32, #tpu.memory_space<vmem>>, %arg5: memref<18x16x384xbf16, #tpu.memory_space<vmem>>) attributes {dimension_semantics = [#tpu.dimension_semantics<parallel>], iteration_bounds = array<i64: 2>, scalar_prefetch = 0 : i64, scratch_operands = 1 : i64, tpu.core_type = #tpu.core_type<tc>, window_params = [{transform_indices = @transform_0, window_bounds = array<i64: 1, 16, 16, 128>}, {pipeline_mode = #tpu.pipeline_mode<synchronous>, transform_indices = @transform_1, window_bounds = array<i64: 3, 384, 128>}, {pipeline_mode = #tpu.pipeline_mode<synchronous>, transform_indices = @transform_2, window_bounds = array<i64: 3, 384, 128>}, {transform_indices = @transform_3, window_bounds = array<i64: 1, 16, 16, 128>}]} {
    %c0 = arith.constant 0 : index
    %c0_0 = arith.constant 0 : index
    %c0_1 = arith.constant 0 : index
    %c0_2 = arith.constant 0 : index
    %0 = vector.load %arg1[%c0, %c0_0, %c0_1, %c0_2] : memref<1x16x16x128xf32, #tpu.memory_space<vmem>>, vector<1x16x16x128xf32>
    %1 = vector.shape_cast %0 : vector<1x16x16x128xf32> to vector<16x16x128xf32>
    %2 = arith.truncf %1 : vector<16x16x128xf32> to vector<16x16x128xbf16>
    %c1 = arith.constant 1 : index
    %c0_3 = arith.constant 0 : index
    %c128 = arith.constant 128 : index
    %3 = vector.load %arg5[%c1, %c0_3, %c128] : memref<18x16x384xbf16, #tpu.memory_space<vmem>>, vector<16x16x128xbf16>
    tpu.vector_store %arg5[%c1, %c0_3, %c128], %2 {strides = array<i32>} : memref<18x16x384xbf16, #tpu.memory_space<vmem>>, vector<16x16x128xbf16>,
    %4 = vector.extract_strided_slice %2 {offsets = [0, 0, 0], sizes = [16, 15, 128], strides = [1, 1, 1]} : vector<16x16x128xbf16> to vector<16x15x128xbf16>
    %c1_4 = arith.constant 1 : index
    %c1_5 = arith.constant 1 : index
    %c0_6 = arith.constant 0 : index
    %5 = vector.load %arg5[%c1_4, %c1_5, %c0_6] : memref<18x16x384xbf16, #tpu.memory_space<vmem>>, vector<16x15x128xbf16>
    tpu.vector_store %arg5[%c1_4, %c1_5, %c0_6], %4 {strides = array<i32>} : memref<18x16x384xbf16, #tpu.memory_space<vmem>>, vector<16x15x128xbf16>,
    %6 = vector.extract_strided_slice %2 {offsets = [0, 1, 0], sizes = [16, 15, 128], strides = [1, 1, 1]} : vector<16x16x128xbf16> to vector<16x15x128xbf16>
    %c1_7 = arith.constant 1 : index
    %c0_8 = arith.constant 0 : index
    %c256 = arith.constant 256 : index
    %7 = vector.load %arg5[%c1_7, %c0_8, %c256] : memref<18x16x384xbf16, #tpu.memory_space<vmem>>, vector<16x15x128xbf16>
    tpu.vector_store %arg5[%c1_7, %c0_8, %c256], %6 {strides = array<i32>} : memref<18x16x384xbf16, #tpu.memory_space<vmem>>, vector<16x15x128xbf16>,
    %8 = vector.extract_strided_slice %2 {offsets = [0, 1, 0], sizes = [16, 1, 128], strides = [1, 1, 1]} : vector<16x16x128xbf16> to vector<16x1x128xbf16>
    %c1_9 = arith.constant 1 : index
    %c0_10 = arith.constant 0 : index
    %c0_11 = arith.constant 0 : index
    %9 = vector.load %arg5[%c1_9, %c0_10, %c0_11] : memref<18x16x384xbf16, #tpu.memory_space<vmem>>, vector<16x1x128xbf16>
    tpu.vector_store %arg5[%c1_9, %c0_10, %c0_11], %8 {strides = array<i32>} : memref<18x16x384xbf16, #tpu.memory_space<vmem>>, vector<16x1x128xbf16>,
    %10 = vector.extract_strided_slice %2 {offsets = [0, 14, 0], sizes = [16, 1, 128], strides = [1, 1, 1]} : vector<16x16x128xbf16> to vector<16x1x128xbf16>
    %c1_12 = arith.constant 1 : index
    %c15 = arith.constant 15 : index
    %c256_13 = arith.constant 256 : index
    %11 = vector.load %arg5[%c1_12, %c15, %c256_13] : memref<18x16x384xbf16, #tpu.memory_space<vmem>>, vector<16x1x128xbf16>
    tpu.vector_store %arg5[%c1_12, %c15, %c256_13], %10 {strides = array<i32>} : memref<18x16x384xbf16, #tpu.memory_space<vmem>>, vector<16x1x128xbf16>,
    %c2 = arith.constant 2 : index
    %c0_14 = arith.constant 0 : index
    %c0_15 = arith.constant 0 : index
    %12 = vector.load %arg5[%c2, %c0_14, %c0_15] : memref<18x16x384xbf16, #tpu.memory_space<vmem>>, vector<1x16x384xbf16>
    %c0_16 = arith.constant 0 : index
    %c0_17 = arith.constant 0 : index
    %c0_18 = arith.constant 0 : index
    %13 = vector.load %arg5[%c0_16, %c0_17, %c0_18] : memref<18x16x384xbf16, #tpu.memory_space<vmem>>, vector<1x16x384xbf16>
    tpu.vector_store %arg5[%c0_16, %c0_17, %c0_18], %12 {strides = array<i32>} : memref<18x16x384xbf16, #tpu.memory_space<vmem>>, vector<1x16x384xbf16>,
    %c15_19 = arith.constant 15 : index
    %c0_20 = arith.constant 0 : index
    %c0_21 = arith.constant 0 : index
    %14 = vector.load %arg5[%c15_19, %c0_20, %c0_21] : memref<18x16x384xbf16, #tpu.memory_space<vmem>>, vector<1x16x384xbf16>
    %c17 = arith.constant 17 : index
    %c0_22 = arith.constant 0 : index
    %c0_23 = arith.constant 0 : index
    %15 = vector.load %arg5[%c17, %c0_22, %c0_23] : memref<18x16x384xbf16, #tpu.memory_space<vmem>>, vector<1x16x384xbf16>
    tpu.vector_store %arg5[%c17, %c0_22, %c0_23], %14 {strides = array<i32>} : memref<18x16x384xbf16, #tpu.memory_space<vmem>>, vector<1x16x384xbf16>,
    %cst = arith.constant 0.000000e+00 : f32
    %16 = vector.broadcast %cst : f32 to vector<256x128xf32>
    %c0_24 = arith.constant 0 : index
    %c0_25 = arith.constant 0 : index
    %c0_26 = arith.constant 0 : index
    %17 = vector.load %arg5[%c0_24, %c0_25, %c0_26] : memref<18x16x384xbf16, #tpu.memory_space<vmem>>, vector<16x16x384xbf16>
    %18 = vector.shape_cast %17 : vector<16x16x384xbf16> to vector<256x384xbf16>
    %c0_27 = arith.constant 0 : index
    %c0_28 = arith.constant 0 : index
    %c0_29 = arith.constant 0 : index
    %19 = vector.load %arg2[%c0_27, %c0_28, %c0_29] : memref<3x384x128xbf16, #tpu.memory_space<vmem>>, vector<1x384x128xbf16>
    %20 = vector.shape_cast %19 : vector<1x384x128xbf16> to vector<384x128xbf16>
    %cst_30 = arith.constant dense<0.000000e+00> : vector<256x128xf32>
    %21 = tpu.matmul %18, %20, %cst_30 {dimension_numbers = #tpu.dot_dimension_numbers<[1], [0], [0], [1], [0, 0, 1, 1], [], []>} : vector<256x384xbf16>, vector<384x128xbf16>, vector<256x128xf32> -> vector<256x128xf32>
    %22 = arith.addf %16, %21 : vector<256x128xf32>
    %c1_31 = arith.constant 1 : index
    %c0_32 = arith.constant 0 : index
    %c0_33 = arith.constant 0 : index
    %23 = vector.load %arg5[%c1_31, %c0_32, %c0_33] : memref<18x16x384xbf16, #tpu.memory_space<vmem>>, vector<16x16x384xbf16>
    %24 = vector.shape_cast %23 : vector<16x16x384xbf16> to vector<256x384xbf16>
    %c1_34 = arith.constant 1 : index
    %c0_35 = arith.constant 0 : index
    %c0_36 = arith.constant 0 : index
    %25 = vector.load %arg2[%c1_34, %c0_35, %c0_36] : memref<3x384x128xbf16, #tpu.memory_space<vmem>>, vector<1x384x128xbf16>
    %26 = vector.shape_cast %25 : vector<1x384x128xbf16> to vector<384x128xbf16>
    %cst_37 = arith.constant dense<0.000000e+00> : vector<256x128xf32>
    %27 = tpu.matmul %24, %26, %cst_37 {dimension_numbers = #tpu.dot_dimension_numbers<[1], [0], [0], [1], [0, 0, 1, 1], [], []>} : vector<256x384xbf16>, vector<384x128xbf16>, vector<256x128xf32> -> vector<256x128xf32>
    %28 = arith.addf %22, %27 : vector<256x128xf32>
    %c2_38 = arith.constant 2 : index
    %c0_39 = arith.constant 0 : index
    %c0_40 = arith.constant 0 : index
    %29 = vector.load %arg5[%c2_38, %c0_39, %c0_40] : memref<18x16x384xbf16, #tpu.memory_space<vmem>>, vector<16x16x384xbf16>
    %30 = vector.shape_cast %29 : vector<16x16x384xbf16> to vector<256x384xbf16>
    %c2_41 = arith.constant 2 : index
    %c0_42 = arith.constant 0 : index
    %c0_43 = arith.constant 0 : index
    %31 = vector.load %arg2[%c2_41, %c0_42, %c0_43] : memref<3x384x128xbf16, #tpu.memory_space<vmem>>, vector<1x384x128xbf16>
    %32 = vector.shape_cast %31 : vector<1x384x128xbf16> to vector<384x128xbf16>
    %cst_44 = arith.constant dense<0.000000e+00> : vector<256x128xf32>
    %33 = tpu.matmul %30, %32, %cst_44 {dimension_numbers = #tpu.dot_dimension_numbers<[1], [0], [0], [1], [0, 0, 1, 1], [], []>} : vector<256x384xbf16>, vector<384x128xbf16>, vector<256x128xf32> -> vector<256x128xf32>
    %34 = arith.addf %28, %33 : vector<256x128xf32>
    %cst_45 = arith.constant dense<0.000000e+00> : vector<128xf32>
    %35 = vector.multi_reduction <add>, %34, %cst_45 [0] : vector<256x128xf32> to vector<128xf32>
    %36 = vector.shape_cast %35 : vector<128xf32> to vector<1x128xf32>
    %cst_46 = arith.constant 3.906250e-03 : f32
    %37 = vector.broadcast %cst_46 : f32 to vector<1x128xf32>
    %38 = arith.mulf %36, %37 : vector<1x128xf32>
    %39 = vector.broadcast %38 : vector<1x128xf32> to vector<256x128xf32>
    %40 = arith.subf %34, %39 : vector<256x128xf32>
    %41 = arith.mulf %40, %40 : vector<256x128xf32>
    %cst_47 = arith.constant dense<0.000000e+00> : vector<128xf32>
    %42 = vector.multi_reduction <add>, %41, %cst_47 [0] : vector<256x128xf32> to vector<128xf32>
    %43 = vector.shape_cast %42 : vector<128xf32> to vector<1x128xf32>
    %cst_48 = arith.constant 3.906250e-03 : f32
    %44 = vector.broadcast %cst_48 : f32 to vector<1x128xf32>
    %45 = arith.mulf %43, %44 : vector<1x128xf32>
    %cst_49 = arith.constant 9.99999974E-6 : f32
    %46 = vector.broadcast %cst_49 : f32 to vector<1x128xf32>
    %47 = arith.addf %45, %46 : vector<1x128xf32>
    %48 = math.rsqrt %47 : vector<1x128xf32>
    %49 = vector.broadcast %48 : vector<1x128xf32> to vector<256x128xf32>
    %50 = arith.mulf %40, %49 : vector<256x128xf32>
    %cst_50 = arith.constant 0.000000e+00 : f32
    %51 = vector.broadcast %cst_50 : f32 to vector<256x128xf32>
    %52 = arith.maximumf %50, %51 : vector<256x128xf32>
    %53 = arith.truncf %52 : vector<256x128xf32> to vector<256x128xbf16>
    %54 = vector.shape_cast %53 : vector<256x128xbf16> to vector<16x16x128xbf16>
    %c1_51 = arith.constant 1 : index
    %c0_52 = arith.constant 0 : index
    %c128_53 = arith.constant 128 : index
    %55 = vector.load %arg5[%c1_51, %c0_52, %c128_53] : memref<18x16x384xbf16, #tpu.memory_space<vmem>>, vector<16x16x128xbf16>
    tpu.vector_store %arg5[%c1_51, %c0_52, %c128_53], %54 {strides = array<i32>} : memref<18x16x384xbf16, #tpu.memory_space<vmem>>, vector<16x16x128xbf16>,
    %56 = vector.extract_strided_slice %54 {offsets = [0, 0, 0], sizes = [16, 15, 128], strides = [1, 1, 1]} : vector<16x16x128xbf16> to vector<16x15x128xbf16>
    %c1_54 = arith.constant 1 : index
    %c1_55 = arith.constant 1 : index
    %c0_56 = arith.constant 0 : index
    %57 = vector.load %arg5[%c1_54, %c1_55, %c0_56] : memref<18x16x384xbf16, #tpu.memory_space<vmem>>, vector<16x15x128xbf16>
    tpu.vector_store %arg5[%c1_54, %c1_55, %c0_56], %56 {strides = array<i32>} : memref<18x16x384xbf16, #tpu.memory_space<vmem>>, vector<16x15x128xbf16>,
    %58 = vector.extract_strided_slice %54 {offsets = [0, 1, 0], sizes = [16, 15, 128], strides = [1, 1, 1]} : vector<16x16x128xbf16> to vector<16x15x128xbf16>
    %c1_57 = arith.constant 1 : index
    %c0_58 = arith.constant 0 : index
    %c256_59 = arith.constant 256 : index
    %59 = vector.load %arg5[%c1_57, %c0_58, %c256_59] : memref<18x16x384xbf16, #tpu.memory_space<vmem>>, vector<16x15x128xbf16>
    tpu.vector_store %arg5[%c1_57, %c0_58, %c256_59], %58 {strides = array<i32>} : memref<18x16x384xbf16, #tpu.memory_space<vmem>>, vector<16x15x128xbf16>,
    %60 = vector.extract_strided_slice %54 {offsets = [0, 1, 0], sizes = [16, 1, 128], strides = [1, 1, 1]} : vector<16x16x128xbf16> to vector<16x1x128xbf16>
    %c1_60 = arith.constant 1 : index
    %c0_61 = arith.constant 0 : index
    %c0_62 = arith.constant 0 : index
    %61 = vector.load %arg5[%c1_60, %c0_61, %c0_62] : memref<18x16x384xbf16, #tpu.memory_space<vmem>>, vector<16x1x128xbf16>
    tpu.vector_store %arg5[%c1_60, %c0_61, %c0_62], %60 {strides = array<i32>} : memref<18x16x384xbf16, #tpu.memory_space<vmem>>, vector<16x1x128xbf16>,
    %62 = vector.extract_strided_slice %54 {offsets = [0, 14, 0], sizes = [16, 1, 128], strides = [1, 1, 1]} : vector<16x16x128xbf16> to vector<16x1x128xbf16>
    %c1_63 = arith.constant 1 : index
    %c15_64 = arith.constant 15 : index
    %c256_65 = arith.constant 256 : index
    %63 = vector.load %arg5[%c1_63, %c15_64, %c256_65] : memref<18x16x384xbf16, #tpu.memory_space<vmem>>, vector<16x1x128xbf16>
    tpu.vector_store %arg5[%c1_63, %c15_64, %c256_65], %62 {strides = array<i32>} : memref<18x16x384xbf16, #tpu.memory_space<vmem>>, vector<16x1x128xbf16>,
    %c2_66 = arith.constant 2 : index
    %c0_67 = arith.constant 0 : index
    %c0_68 = arith.constant 0 : index
    %64 = vector.load %arg5[%c2_66, %c0_67, %c0_68] : memref<18x16x384xbf16, #tpu.memory_space<vmem>>, vector<1x16x384xbf16>
    %c0_69 = arith.constant 0 : index
    %c0_70 = arith.constant 0 : index
    %c0_71 = arith.constant 0 : index
    %65 = vector.load %arg5[%c0_69, %c0_70, %c0_71] : memref<18x16x384xbf16, #tpu.memory_space<vmem>>, vector<1x16x384xbf16>
    tpu.vector_store %arg5[%c0_69, %c0_70, %c0_71], %64 {strides = array<i32>} : memref<18x16x384xbf16, #tpu.memory_space<vmem>>, vector<1x16x384xbf16>,
    %c15_72 = arith.constant 15 : index
    %c0_73 = arith.constant 0 : index
    %c0_74 = arith.constant 0 : index
    %66 = vector.load %arg5[%c15_72, %c0_73, %c0_74] : memref<18x16x384xbf16, #tpu.memory_space<vmem>>, vector<1x16x384xbf16>
    %c17_75 = arith.constant 17 : index
    %c0_76 = arith.constant 0 : index
    %c0_77 = arith.constant 0 : index
    %67 = vector.load %arg5[%c17_75, %c0_76, %c0_77] : memref<18x16x384xbf16, #tpu.memory_space<vmem>>, vector<1x16x384xbf16>
    tpu.vector_store %arg5[%c17_75, %c0_76, %c0_77], %66 {strides = array<i32>} : memref<18x16x384xbf16, #tpu.memory_space<vmem>>, vector<1x16x384xbf16>,
    %cst_78 = arith.constant 0.000000e+00 : f32
    %68 = vector.broadcast %cst_78 : f32 to vector<256x128xf32>
    %c0_79 = arith.constant 0 : index
    %c0_80 = arith.constant 0 : index
    %c0_81 = arith.constant 0 : index
    %69 = vector.load %arg5[%c0_79, %c0_80, %c0_81] : memref<18x16x384xbf16, #tpu.memory_space<vmem>>, vector<16x16x384xbf16>
    %70 = vector.shape_cast %69 : vector<16x16x384xbf16> to vector<256x384xbf16>
    %c0_82 = arith.constant 0 : index
    %c0_83 = arith.constant 0 : index
    %c0_84 = arith.constant 0 : index
    %71 = vector.load %arg3[%c0_82, %c0_83, %c0_84] : memref<3x384x128xbf16, #tpu.memory_space<vmem>>, vector<1x384x128xbf16>
    %72 = vector.shape_cast %71 : vector<1x384x128xbf16> to vector<384x128xbf16>
    %cst_85 = arith.constant dense<0.000000e+00> : vector<256x128xf32>
    %73 = tpu.matmul %70, %72, %cst_85 {dimension_numbers = #tpu.dot_dimension_numbers<[1], [0], [0], [1], [0, 0, 1, 1], [], []>} : vector<256x384xbf16>, vector<384x128xbf16>, vector<256x128xf32> -> vector<256x128xf32>
    %74 = arith.addf %68, %73 : vector<256x128xf32>
    %c1_86 = arith.constant 1 : index
    %c0_87 = arith.constant 0 : index
    %c0_88 = arith.constant 0 : index
    %75 = vector.load %arg5[%c1_86, %c0_87, %c0_88] : memref<18x16x384xbf16, #tpu.memory_space<vmem>>, vector<16x16x384xbf16>
    %76 = vector.shape_cast %75 : vector<16x16x384xbf16> to vector<256x384xbf16>
    %c1_89 = arith.constant 1 : index
    %c0_90 = arith.constant 0 : index
    %c0_91 = arith.constant 0 : index
    %77 = vector.load %arg3[%c1_89, %c0_90, %c0_91] : memref<3x384x128xbf16, #tpu.memory_space<vmem>>, vector<1x384x128xbf16>
    %78 = vector.shape_cast %77 : vector<1x384x128xbf16> to vector<384x128xbf16>
    %cst_92 = arith.constant dense<0.000000e+00> : vector<256x128xf32>
    %79 = tpu.matmul %76, %78, %cst_92 {dimension_numbers = #tpu.dot_dimension_numbers<[1], [0], [0], [1], [0, 0, 1, 1], [], []>} : vector<256x384xbf16>, vector<384x128xbf16>, vector<256x128xf32> -> vector<256x128xf32>
    %80 = arith.addf %74, %79 : vector<256x128xf32>
    %c2_93 = arith.constant 2 : index
    %c0_94 = arith.constant 0 : index
    %c0_95 = arith.constant 0 : index
    %81 = vector.load %arg5[%c2_93, %c0_94, %c0_95] : memref<18x16x384xbf16, #tpu.memory_space<vmem>>, vector<16x16x384xbf16>
    %82 = vector.shape_cast %81 : vector<16x16x384xbf16> to vector<256x384xbf16>
    %c2_96 = arith.constant 2 : index
    %c0_97 = arith.constant 0 : index
    %c0_98 = arith.constant 0 : index
    %83 = vector.load %arg3[%c2_96, %c0_97, %c0_98] : memref<3x384x128xbf16, #tpu.memory_space<vmem>>, vector<1x384x128xbf16>
    %84 = vector.shape_cast %83 : vector<1x384x128xbf16> to vector<384x128xbf16>
    %cst_99 = arith.constant dense<0.000000e+00> : vector<256x128xf32>
    %85 = tpu.matmul %82, %84, %cst_99 {dimension_numbers = #tpu.dot_dimension_numbers<[1], [0], [0], [1], [0, 0, 1, 1], [], []>} : vector<256x384xbf16>, vector<384x128xbf16>, vector<256x128xf32> -> vector<256x128xf32>
    %86 = arith.addf %80, %85 : vector<256x128xf32>
    %cst_100 = arith.constant dense<0.000000e+00> : vector<128xf32>
    %87 = vector.multi_reduction <add>, %86, %cst_100 [0] : vector<256x128xf32> to vector<128xf32>
    %88 = vector.shape_cast %87 : vector<128xf32> to vector<1x128xf32>
    %cst_101 = arith.constant 3.906250e-03 : f32
    %89 = vector.broadcast %cst_101 : f32 to vector<1x128xf32>
    %90 = arith.mulf %88, %89 : vector<1x128xf32>
    %91 = vector.broadcast %90 : vector<1x128xf32> to vector<256x128xf32>
    %92 = arith.subf %86, %91 : vector<256x128xf32>
    %93 = arith.mulf %92, %92 : vector<256x128xf32>
    %cst_102 = arith.constant dense<0.000000e+00> : vector<128xf32>
    %94 = vector.multi_reduction <add>, %93, %cst_102 [0] : vector<256x128xf32> to vector<128xf32>
    %95 = vector.shape_cast %94 : vector<128xf32> to vector<1x128xf32>
    %cst_103 = arith.constant 3.906250e-03 : f32
    %96 = vector.broadcast %cst_103 : f32 to vector<1x128xf32>
    %97 = arith.mulf %95, %96 : vector<1x128xf32>
    %cst_104 = arith.constant 9.99999974E-6 : f32
    %98 = vector.broadcast %cst_104 : f32 to vector<1x128xf32>
    %99 = arith.addf %97, %98 : vector<1x128xf32>
    %100 = math.rsqrt %99 : vector<1x128xf32>
    %101 = vector.broadcast %100 : vector<1x128xf32> to vector<256x128xf32>
    %102 = arith.mulf %92, %101 : vector<256x128xf32>
    %103 = vector.shape_cast %102 : vector<256x128xf32> to vector<16x16x128xf32>
    %c0_105 = arith.constant 0 : index
    %c0_106 = arith.constant 0 : index
    %c0_107 = arith.constant 0 : index
    %c0_108 = arith.constant 0 : index
    %104 = vector.load %arg1[%c0_105, %c0_106, %c0_107, %c0_108] : memref<1x16x16x128xf32, #tpu.memory_space<vmem>>, vector<1x16x16x128xf32>
    %105 = vector.shape_cast %104 : vector<1x16x16x128xf32> to vector<16x16x128xf32>
    %106 = arith.addf %105, %103 : vector<16x16x128xf32>
    %c0_109 = arith.constant 0 : index
    %c0_110 = arith.constant 0 : index
    %c0_111 = arith.constant 0 : index
    %c0_112 = arith.constant 0 : index
    %107 = vector.load %arg4[%c0_109, %c0_110, %c0_111, %c0_112] : memref<1x16x16x128xf32, #tpu.memory_space<vmem>>, vector<1x16x16x128xf32>
    %108 = vector.shape_cast %107 : vector<1x16x16x128xf32> to vector<16x16x128xf32>
    %109 = vector.shape_cast %106 : vector<16x16x128xf32> to vector<1x16x16x128xf32>
    tpu.vector_store %arg4[%c0_109, %c0_110, %c0_111, %c0_112], %109 {strides = array<i32>} : memref<1x16x16x128xf32, #tpu.memory_space<vmem>>, vector<1x16x16x128xf32>,
    return
  }
  func.func @transform_0(%arg0: i32) -> (i32, i32, i32, i32) {
    %c0_i32 = arith.constant 0 : i32
    %c0_i32_0 = arith.constant 0 : i32
    %c0_i32_1 = arith.constant 0 : i32
    %c0_i32_2 = arith.constant 0 : i32
    return %arg0, %c0_i32, %c0_i32_0, %c0_i32_1 : i32, i32, i32, i32
  }
  func.func @transform_1(%arg0: i32) -> (i32, i32, i32) {
    %c0_i32 = arith.constant 0 : i32
    %c0_i32_0 = arith.constant 0 : i32
    %c0_i32_1 = arith.constant 0 : i32
    %c0_i32_2 = arith.constant 0 : i32
    return %c0_i32, %c0_i32_0, %c0_i32_1 : i32, i32, i32
  }
  func.func @transform_2(%arg0: i32) -> (i32, i32, i32) {
    %c0_i32 = arith.constant 0 : i32
    %c0_i32_0 = arith.constant 0 : i32
    %c0_i32_1 = arith.constant 0 : i32
    %c0_i32_2 = arith.constant 0 : i32
    return %c0_i32, %c0_i32_0, %c0_i32_1 : i32, i32, i32
  }
  func.func @transform_3(%arg0: i32) -> (i32, i32, i32, i32) {
    %c0_i32 = arith.constant 0 : i32
    %c0_i32_0 = arith.constant 0 : i32
    %c0_i32_1 = arith.constant 0 : i32
    %c0_i32_2 = arith.constant 0 : i32
    return %arg0, %c0_i32, %c0_i32_0, %c0_i32_1 : i32, i32, i32, i32
  }
}

</mosaic_0001>

<llo_original>
// kernel: tpu_custom_call.1
$region0: #{tpu_custom_call.1}
  #allocation0 [shape = 'u32[]', space=smem, size = 0x4, offset = 0x4, fixed_abs, tag = 'smem constant byte address 0x4 - core index']
  #allocation1 [shape = 'u32[144,128]{1,0:T(1,128)}', space=vmem, size = 0x12000, scoped, tag = 'internal scratch']
  #allocation2 [shape = 'bf16[18,16,384]{2,1,0:T(8,128)(2,1)}', space=vmem, size = 0x36000, scoped, tag = 'scratch operand']
  %s0 = inlined_call_operand.hbm [shape: f32[2,16,16,128], index: 0, kind: input, shape index: {}]
  %s1 = inlined_call_operand.hbm [shape: bf16[3,384,128], index: 1, kind: input, shape index: {}]
  %s2 = inlined_call_operand.hbm [shape: bf16[3,384,128], index: 2, kind: input, shape index: {}]
  %s3 = inlined_call_operand.hbm [shape: f32[2,16,16,128], index: 3, kind: output, shape index: {}]
  %s4 = sld [smem:[#allocation0]]
  $region57: #{tpu_custom_call.1} parent=0
    _
  %s6 = ssub.s32 1, %s4
  %s7 = scalar_select 0, %s6, %s4
  $region1: #{tpu_custom_call.1} parent=0
    #allocation3 [shape = 'u8[262144]{0}', space=vmem, size = 0x40000, scoped, tag = 'input window, operand 0']
    #allocation4 [shape = 's32[2]{0}', space=sflag, size = 0x8, scoped, tag = 'scoped memory for tpu_custom_call.1']
    #allocation5 [shape = 's32[2]{0}', space=sflag, size = 0x8, scoped, tag = 'scoped memory for tpu_custom_call.1']
    #allocation6 [shape = 'u8[294912]{0}', space=vmem, size = 0x48000, scoped, tag = 'input window, operand 1, single buffered']
    #allocation7 [shape = 's32[1]{0}', space=sflag, size = 0x4, scoped, tag = 'scoped memory for tpu_custom_call.1']
    #allocation8 [shape = 'u8[294912]{0}', space=vmem, size = 0x48000, scoped, tag = 'input window, operand 2, single buffered']
    #allocation9 [shape = 'u8[262144]{0}', space=vmem, size = 0x40000, scoped, tag = 'output window, operand 0']
    %8 = vsyncpa [#allocation4], 0
    %s9 = scalar_lea.sflag [#allocation4], 1
    %10 = vsyncpa %s9, 0
    %11 = vsyncpa [#allocation7], 0
    %12 = vsyncpa [#allocation5], 0
    %s13 = scalar_lea.sflag [#allocation5], 1
    %14 = vsyncpa %s13, 0
    loop: start=0, step=1, limit=4
    $region2: #{tpu_custom_call.1} parent=1 // loop_pre_header
      _
    $region3: #{tpu_custom_call.1} parent=1 // loop_header
      %s16 = sphi 0, %s20
      %p17 = scmp.ge.s32.totalorder %s16, 4
      %s26 = sphi 0, %s28
      %s29 = sphi 0, %s26
      %s30 = sphi 0, %s29
      %s46 = sphi 0, %s30
      %s50 = sphi 0, %s50
      %s52 = sphi 0, %s50
      %s53 = sphi 0, %s52
      %s67 = sphi 0, %s53
      %s71 = sphi 0, %s71
      %s73 = sphi 0, %s71
      %s74 = sphi 0, %s73
      %s88 = sphi 0, %s74
      %s94 = sphi 0, %s96
      %s97 = sphi 0, %s94
      %s98 = sphi 0, %s97
      %s114 = sphi 0, %s98
    $region4: #{tpu_custom_call.1} parent=1 // loop_header_branch
      %19 = sbr.rel (%p17) target = $region8
    $region5: #{tpu_custom_call.1} parent=1 // loop_body
      %s21 = ssub.s32 %s16, 1
      %s22 = ssub.s32 %s16, 2
      %s23 = sadd.s32 %s16, 1
      %s24 = ssub.s32 %s16, %s23
      %p25 = scmp.eq.s32.totalorder %s24, 0
      %s27 = sadd.s32 %s26, 1
      %s28 = scalar_select %p25, %s26, %s27
      %p31 = pneg %p25
      %p32 = scmp.eq.s32.totalorder %s16, 1
      %p33 = por %p31, %p32
      %p34 = scmp.ne.s32.totalorder %s26, %s29
      %p35 = scmp.eq.s32.totalorder %s16, 0
      %p36 = por %p34, %p35
      %p37 = scmp.ne.s32.totalorder %s26, %s29
      %p38 = scmp.eq.s32.totalorder %s21, 1
      %p39 = por %p37, %p38
      %p40 = scmp.ne.s32.totalorder %s29, %s30
      %p41 = scmp.eq.s32.totalorder %s21, 0
      %p42 = por %p40, %p41
      %p43 = scmp.ne.s32.totalorder %s29, %s30
      %p44 = scmp.eq.s32.totalorder %s22, 1
      %p45 = por %p43, %p44
      %p47 = scmp.ne.s32.totalorder %s30, %s46
      %p48 = scmp.eq.s32.totalorder %s22, 0
      %p49 = por %p47, %p48
      %s51 = sadd.s32 %s50, 1
      %p54 = scmp.eq.s32.totalorder %s16, 1
      %p55 = scmp.ne.s32.totalorder %s50, %s52
      %p56 = scmp.eq.s32.totalorder %s16, 0
      %p57 = por %p55, %p56
      %p58 = scmp.ne.s32.totalorder %s50, %s52
      %p59 = scmp.eq.s32.totalorder %s21, 1
      %p60 = por %p58, %p59
      %p61 = scmp.ne.s32.totalorder %s52, %s53
      %p62 = scmp.eq.s32.totalorder %s21, 0
      %p63 = por %p61, %p62
      %p64 = scmp.ne.s32.totalorder %s52, %s53
      %p65 = scmp.eq.s32.totalorder %s22, 1
      %p66 = por %p64, %p65
      %p68 = scmp.ne.s32.totalorder %s53, %s67
      %p69 = scmp.eq.s32.totalorder %s22, 0
      %p70 = por %p68, %p69
      %s72 = sadd.s32 %s71, 1
      %p75 = scmp.eq.s32.totalorder %s16, 1
      %p76 = scmp.ne.s32.totalorder %s71, %s73
      %p77 = scmp.eq.s32.totalorder %s16, 0
      %p78 = por %p76, %p77
      %p79 = scmp.ne.s32.totalorder %s71, %s73
      %p80 = scmp.eq.s32.totalorder %s21, 1
      %p81 = por %p79, %p80
      %p82 = scmp.ne.s32.totalorder %s73, %s74
      %p83 = scmp.eq.s32.totalorder %s21, 0
      %p84 = por %p82, %p83
      %p85 = scmp.ne.s32.totalorder %s73, %s74
      %p86 = scmp.eq.s32.totalorder %s22, 1
      %p87 = por %p85, %p86
      %p89 = scmp.ne.s32.totalorder %s74, %s88
      %p90 = scmp.eq.s32.totalorder %s22, 0
      %p91 = por %p89, %p90
      %s92 = ssub.s32 %s16, %s23
      %p93 = scmp.eq.s32.totalorder %s92, 0
      %s95 = sadd.s32 %s94, 1
      %s96 = scalar_select %p93, %s94, %s95
      %p99 = pneg %p93
      %p100 = scmp.eq.s32.totalorder %s16, 1
      %p101 = por %p99, %p100
      %p102 = scmp.ne.s32.totalorder %s94, %s97
      %p103 = scmp.eq.s32.totalorder %s16, 0
      %p104 = por %p102, %p103
      %p105 = scmp.ne.s32.totalorder %s94, %s97
      %p106 = scmp.eq.s32.totalorder %s21, 1
      %p107 = por %p105, %p106
      %p108 = scmp.ne.s32.totalorder %s97, %s98
      %p109 = scmp.eq.s32.totalorder %s21, 0
      %p110 = por %p108, %p109
      %p111 = scmp.ne.s32.totalorder %s97, %s98
      %p112 = scmp.eq.s32.totalorder %s22, 1
      %p113 = por %p111, %p112
      %p115 = scmp.ne.s32.totalorder %s98, %s114
      %p116 = scmp.eq.s32.totalorder %s22, 0
      %p117 = por %p115, %p116
      %p118 = scmp.le.s32.totalorder 1, %s16
      %p119 = scmp.lt.s32.totalorder %s16, 3
      %p120 = pnand %p118, %p119
      %p121 = pneg %p120
      // Predicated region
      $region9: #{tpu_custom_call.1} parent=5 // pred_check
        _
      $region10: #{tpu_custom_call.1} parent=5 // pred_check_branch
        %123 = sbr.rel (%p120) target = $region12
      $region11: #{tpu_custom_call.1} parent=5 // pred_region
        %s124 = ssub.s32 %s16, 1
        // Predicated region
        $region13: #{tpu_custom_call.1} parent=11 // pred_check
          %p125 = pneg %p63
        $region14: #{tpu_custom_call.1} parent=11 // pred_check_branch
          %127 = sbr.rel (%p125) target = $region16
        $region15: #{tpu_custom_call.1} parent=11 // pred_region
          %s129 = ssub.s32 9216, 9216
          %130 = vsyncadd [#allocation7], %s129
          %s131 = sshll.u32 [#allocation6], 4
          %s132 = int_to_ptr.vmem [resolvable:$true] %s131
          %137 = dma.hbm_to_vmem [thread:$0]  %s1, 9216, %s132, [#allocation7], 64, 64, 4
        $region16: #{tpu_custom_call.1} parent=11 // pred_fallthru
          _
        // Predicated region
        $region17: #{tpu_custom_call.1} parent=11 // pred_check
          %p138 = pneg %p84
        $region18: #{tpu_custom_call.1} parent=11 // pred_check_branch
          %140 = sbr.rel (%p138) target = $region20
        $region19: #{tpu_custom_call.1} parent=11 // pred_region
          %s142 = ssub.s32 9216, 9216
          %143 = vsyncadd [#allocation7], %s142
          %s144 = sshll.u32 [#allocation8], 4
          %s145 = int_to_ptr.vmem [resolvable:$true] %s144
          %150 = dma.hbm_to_vmem [thread:$0]  %s2, 9216, %s145, [#allocation7], 64, 64, 4
        $region20: #{tpu_custom_call.1} parent=11 // pred_fallthru
          _
      $region12: #{tpu_custom_call.1} parent=5 // pred_fallthru
        _
      %p151 = scmp.lt.s32.totalorder %s16, 2
      // Predicated region
      $region21: #{tpu_custom_call.1} parent=5 // pred_check
        %p152 = pneg %p151
      $region22: #{tpu_custom_call.1} parent=5 // pred_check_branch
        %154 = sbr.rel (%p152) target = $region24
      $region23: #{tpu_custom_call.1} parent=5 // pred_region
        // Predicated region
        $region25: #{tpu_custom_call.1} parent=23 // pred_check
          %p155 = pneg %p36
        $region26: #{tpu_custom_call.1} parent=23 // pred_check_branch
          %157 = sbr.rel (%p155) target = $region28
        $region27: #{tpu_custom_call.1} parent=23 // pred_region
          %s158 = sand.u32 %s26, 1
          %s159 = scalar_lea.sflag [#allocation4], %s158
          %s160 = sand.u32 %s26, 1
          %s161 = smul.addr %s160, 256
          %s162 = scalar_lea.vmem [#allocation3], %s161
          %s164 = ssub.s32 4096, 4096
          %165 = vsyncadd %s159, %s164
          %s166 = smul.addr %s16, 32
          %s167 = smul.addr %s166, 128
          %s168 = scalar_lea.hbm %s0, %s167
          %s169 = sshll.u32 %s162, 4
          %s170 = int_to_ptr.vmem [resolvable:$true] %s169
          %175 = dma.hbm_to_vmem [thread:$0]  %s168, 4096, %s170, %s159, 128, 128, 8
        $region28: #{tpu_custom_call.1} parent=23 // pred_fallthru
          _
      $region24: #{tpu_custom_call.1} parent=5 // pred_fallthru
        _
      %p176 = scmp.le.s32.totalorder 1, %s16
      %p177 = scmp.lt.s32.totalorder %s16, 3
      %p178 = pnand %p176, %p177
      %p179 = pneg %p178
      // Predicated region
      $region29: #{tpu_custom_call.1} parent=5 // pred_check
        _
      $region30: #{tpu_custom_call.1} parent=5 // pred_check_branch
        %181 = sbr.rel (%p178) target = $region32
      $region31: #{tpu_custom_call.1} parent=5 // pred_region
        %s182 = ssub.s32 %s16, 1
        %s183 = sand.u32 %s29, 1
        %s184 = scalar_lea.sflag [#allocation4], %s183
        %s185 = sand.u32 %s29, 1
        %s186 = smul.addr %s185, 256
        %s187 = scalar_lea.vmem [#allocation3], %s186
        // Predicated region
        $region33: #{tpu_custom_call.1} parent=31 // pred_check
          %p188 = pneg %p42
        $region34: #{tpu_custom_call.1} parent=31 // pred_check_branch
          %190 = sbr.rel (%p188) target = $region36
        $region35: #{tpu_custom_call.1} parent=31 // pred_region
          %191 = dma.done %s184, 4096
        $region36: #{tpu_custom_call.1} parent=31 // pred_fallthru
          _
        // Predicated region
        $region37: #{tpu_custom_call.1} parent=31 // pred_check
          %p192 = pneg %p63
        $region38: #{tpu_custom_call.1} parent=31 // pred_check_branch
          %194 = sbr.rel (%p192) target = $region40
        $region39: #{tpu_custom_call.1} parent=31 // pred_region
          %195 = dma.done [#allocation7], 9216
        $region40: #{tpu_custom_call.1} parent=31 // pred_fallthru
          _
        // Predicated region
        $region41: #{tpu_custom_call.1} parent=31 // pred_check
          %p196 = pneg %p84
        $region42: #{tpu_custom_call.1} parent=31 // pred_check_branch
          %198 = sbr.rel (%p196) target = $region44
        $region43: #{tpu_custom_call.1} parent=31 // pred_region
          %199 = dma.done [#allocation7], 9216
        $region44: #{tpu_custom_call.1} parent=31 // pred_fallthru
          _
        %s200 = sand.u32 %s29, 1
        %s201 = scalar_lea.sflag [#allocation4], %s200
        %s202 = sand.u32 %s29, 1
        %s203 = smul.addr %s202, 256
        %s204 = scalar_lea.vmem [#allocation3], %s203
        %p205 = pneg %p42
        %p206 = pneg %p39
        %p207 = pneg %p63
        %p208 = pneg %p60
        %p209 = pneg %p84
        %p210 = pneg %p81
        %p211 = pneg %p110
        %p212 = pneg %p107
        %s213 = sand.u32 %s97, 1
        %s214 = scalar_lea.sflag [#allocation5], %s213
        %s215 = sand.u32 %s97, 1
        %s216 = smul.addr %s215, 256
        %s217 = scalar_lea.vmem [#allocation9], %s216
        %v219 = vld [vmem:[%s187] sm:$0xff]
        %v220 = vld [vmem:[%s187 + $0x8] sm:$0xff]
        %v221 = vld [vmem:[%s187 + $0x10] sm:$0xff]
        %v222 = vld [vmem:[%s187 + $0x18] sm:$0xff]
        %v223 = vld [vmem:[%s187 + $0x20] sm:$0xff]
        %v224 = vld [vmem:[%s187 + $0x28] sm:$0xff]
        %v225 = vld [vmem:[%s187 + $0x30] sm:$0xff]
        %v226 = vld [vmem:[%s187 + $0x38] sm:$0xff]
        %v227 = vld [vmem:[%s187 + $0x40] sm:$0xff]
        %v228 = vld [vmem:[%s187 + $0x48] sm:$0xff]
        %v229 = vld [vmem:[%s187 + $0x50] sm:$0xff]
        %v230 = vld [vmem:[%s187 + $0x58] sm:$0xff]
        %v231 = vld [vmem:[%s187 + $0x60] sm:$0xff]
        %v232 = vld [vmem:[%s187 + $0x68] sm:$0xff]
        %v233 = vld [vmem:[%s187 + $0x70] sm:$0xff]
        %v234 = vld [vmem:[%s187 + $0x78] sm:$0xff]
        %v235 = vld [vmem:[%s187 + $0x80] sm:$0xff]
        %v236 = vld [vmem:[%s187 + $0x88] sm:$0xff]
        %v237 = vld [vmem:[%s187 + $0x90] sm:$0xff]
        %v238 = vld [vmem:[%s187 + $0x98] sm:$0xff]
        %v239 = vld [vmem:[%s187 + $0xa0] sm:$0xff]
        %v240 = vld [vmem:[%s187 + $0xa8] sm:$0xff]
        %v241 = vld [vmem:[%s187 + $0xb0] sm:$0xff]
        %v242 = vld [vmem:[%s187 + $0xb8] sm:$0xff]
        %v243 = vld [vmem:[%s187 + $0xc0] sm:$0xff]
        %v244 = vld [vmem:[%s187 + $0xc8] sm:$0xff]
        %v245 = vld [vmem:[%s187 + $0xd0] sm:$0xff]
        %v246 = vld [vmem:[%s187 + $0xd8] sm:$0xff]
        %v247 = vld [vmem:[%s187 + $0xe0] sm:$0xff]
        %v248 = vld [vmem:[%s187 + $0xe8] sm:$0xff]
        %v249 = vld [vmem:[%s187 + $0xf0] sm:$0xff]
        %v250 = vld [vmem:[%s187 + $0xf8] sm:$0xff]
        %v251 = vpack.c.bf16 %v220, %v219
        %v252 = vpack.c.bf16 %v222, %v221
        %v253 = vpack.c.bf16 %v224, %v223
        %v254 = vpack.c.bf16 %v226, %v225
        %v255 = vpack.c.bf16 %v228, %v227
        %v256 = vpack.c.bf16 %v230, %v229
        %v257 = vpack.c.bf16 %v232, %v231
        %v258 = vpack.c.bf16 %v234, %v233
        %v259 = vpack.c.bf16 %v236, %v235
        %v260 = vpack.c.bf16 %v238, %v237
        %v261 = vpack.c.bf16 %v240, %v239
        %v262 = vpack.c.bf16 %v242, %v241
        %v263 = vpack.c.bf16 %v244, %v243
        %v264 = vpack.c.bf16 %v246, %v245
        %v265 = vpack.c.bf16 %v248, %v247
        %v266 = vpack.c.bf16 %v250, %v249
        %v283 = vunpack.c.l.b16 %v251
        %v284 = vunpack.c.h.b16 %v251
        %v285 = vunpack.c.l.b16 %v252
        %v286 = vunpack.c.h.b16 %v252
        %v287 = vunpack.c.l.b16 %v253
        %v288 = vunpack.c.h.b16 %v253
        %v289 = vunpack.c.l.b16 %v254
        %v290 = vunpack.c.h.b16 %v254
        %v291 = vunpack.c.l.b16 %v255
        %v292 = vunpack.c.h.b16 %v255
        %v293 = vunpack.c.l.b16 %v256
        %v294 = vunpack.c.h.b16 %v256
        %v295 = vunpack.c.l.b16 %v257
        %v296 = vunpack.c.h.b16 %v257
        %v297 = vunpack.c.l.b16 %v258
        %v298 = vunpack.c.h.b16 %v258
        %v299 = vunpack.c.l.b16 %v259
        %v300 = vunpack.c.h.b16 %v259
        %v301 = vunpack.c.l.b16 %v260
        %v302 = vunpack.c.h.b16 %v260
        %v303 = vunpack.c.l.b16 %v261
        %v304 = vunpack.c.h.b16 %v261
        %v305 = vunpack.c.l.b16 %v262
        %v306 = vunpack.c.h.b16 %v262
        %v307 = vunpack.c.l.b16 %v263
        %v308 = vunpack.c.h.b16 %v263
        %v309 = vunpack.c.l.b16 %v264
        %v310 = vunpack.c.h.b16 %v264
        %v311 = vunpack.c.l.b16 %v265
        %v312 = vunpack.c.h.b16 %v265
        %v313 = vunpack.c.l.b16 %v266
        %v314 = vunpack.c.h.b16 %v266
        %v315 = vpack.c.b16 %v283, %v283
        %v316 = vpack.c.b16 %v284, %v284
        %v317 = vpack.c.b16 %v285, %v285
        %v318 = vpack.c.b16 %v286, %v286
        %v319 = vpack.c.b16 %v287, %v287
        %v320 = vpack.c.b16 %v288, %v288
        %v321 = vpack.c.b16 %v289, %v289
        %v322 = vpack.c.b16 %v290, %v290
        %v323 = vpack.c.b16 %v291, %v291
        %v324 = vpack.c.b16 %v292, %v292
        %v325 = vpack.c.b16 %v293, %v293
        %v326 = vpack.c.b16 %v294, %v294
        %v327 = vpack.c.b16 %v295, %v295
        %v328 = vpack.c.b16 %v296, %v296
        %v329 = vpack.c.b16 %v297, %v297
        %v330 = vpack.c.b16 %v298, %v298
        %v331 = vpack.c.b16 %v299, %v299
        %v332 = vpack.c.b16 %v300, %v300
        %v333 = vpack.c.b16 %v301, %v301
        %v334 = vpack.c.b16 %v302, %v302
        %v335 = vpack.c.b16 %v303, %v303
        %v336 = vpack.c.b16 %v304, %v304
        %v337 = vpack.c.b16 %v305, %v305
        %v338 = vpack.c.b16 %v306, %v306
        %v339 = vpack.c.b16 %v307, %v307
        %v340 = vpack.c.b16 %v308, %v308
        %v341 = vpack.c.b16 %v309, %v309
        %v342 = vpack.c.b16 %v310, %v310
        %v343 = vpack.c.b16 %v311, %v311
        %v344 = vpack.c.b16 %v312, %v312
        %v345 = vpack.c.b16 %v313, %v313
        %v346 = vpack.c.b16 %v314, %v314
        %s379 = scalar_lea.vmem [#allocation2], 24
        %380 = vst [vmem:[%s379 + $0x4] sm:$0xf] %v315
        %381 = vst [vmem:[%s379 + $0x10] sm:$0xf] %v316
        %382 = vst [vmem:[%s379 + $0x1c] sm:$0xf] %v317
        %383 = vst [vmem:[%s379 + $0x28] sm:$0xf] %v318
        %384 = vst [vmem:[%s379 + $0x34] sm:$0xf] %v319
        %385 = vst [vmem:[%s379 + $0x40] sm:$0xf] %v320
        %386 = vst [vmem:[%s379 + $0x4c] sm:$0xf] %v321
        %387 = vst [vmem:[%s379 + $0x58] sm:$0xf] %v322
        %388 = vst [vmem:[%s379 + $0x64] sm:$0xf] %v323
        %389 = vst [vmem:[%s379 + $0x70] sm:$0xf] %v324
        %390 = vst [vmem:[%s379 + $0x7c] sm:$0xf] %v325
        %391 = vst [vmem:[%s379 + $0x88] sm:$0xf] %v326
        %392 = vst [vmem:[%s379 + $0x94] sm:$0xf] %v327
        %393 = vst [vmem:[%s379 + $0xa0] sm:$0xf] %v328
        %394 = vst [vmem:[%s379 + $0xac] sm:$0xf] %v329
        %395 = vst [vmem:[%s379 + $0xb8] sm:$0xf] %v330
        %396 = vst [vmem:[%s379 + $0xc4] sm:$0xf] %v331
        %397 = vst [vmem:[%s379 + $0xd0] sm:$0xf] %v332
        %398 = vst [vmem:[%s379 + $0xdc] sm:$0xf] %v333
        %399 = vst [vmem:[%s379 + $0xe8] sm:$0xf] %v334
        %400 = vst [vmem:[%s379 + $0xf4] sm:$0xf] %v335
        %401 = vst [vmem:[%s379 + $0x100] sm:$0xf] %v336
        %402 = vst [vmem:[%s379 + $0x10c] sm:$0xf] %v337
        %403 = vst [vmem:[%s379 + $0x118] sm:$0xf] %v338
        %404 = vst [vmem:[%s379 + $0x124] sm:$0xf] %v339
        %405 = vst [vmem:[%s379 + $0x130] sm:$0xf] %v340
        %406 = vst [vmem:[%s379 + $0x13c] sm:$0xf] %v341
        %407 = vst [vmem:[%s379 + $0x148] sm:$0xf] %v342
        %408 = vst [vmem:[%s379 + $0x154] sm:$0xf] %v343
        %409 = vst [vmem:[%s379 + $0x160] sm:$0xf] %v344
        %410 = vst [vmem:[%s379 + $0x16c] sm:$0xf] %v345
        %411 = vst [vmem:[%s379 + $0x178] sm:$0xf] %v346
        %vm412 = vsmask.f32 256
        %vm413 = vsmask.f32 4368
        %vm414 = vmor %vm412, %vm413
        %v416 = vshrl.u32 %v315, 16
        %v418 = vrot.slane %v416, 7
        %v419 = vshll.u32 %v315, 16
        %v421 = vor.u32 %v418, %v419
        %v422 = vrot.slane %v418, 4
        %v424 = vshrl.u32 %v316, 16
        %v426 = vrot.slane %v424, 7
        %v427 = vshll.u32 %v316, 16
        %v429 = vor.u32 %v426, %v427
        %v430 = vsel %vm414, %v422, %v429
        %v432 = vshrl.u32 %v317, 16
        %v434 = vrot.slane %v432, 7
        %v435 = vshll.u32 %v317, 16
        %v437 = vor.u32 %v434, %v435
        %v438 = vrot.slane %v434, 4
        %v440 = vshrl.u32 %v318, 16
        %v442 = vrot.slane %v440, 7
        %v443 = vshll.u32 %v318, 16
        %v445 = vor.u32 %v442, %v443
        %v446 = vsel %vm414, %v438, %v445
        %v448 = vshrl.u32 %v319, 16
        %v450 = vrot.slane %v448, 7
        %v451 = vshll.u32 %v319, 16
        %v453 = vor.u32 %v450, %v451
        %v454 = vrot.slane %v450, 4
        %v456 = vshrl.u32 %v320, 16
        %v458 = vrot.slane %v456, 7
        %v459 = vshll.u32 %v320, 16
        %v461 = vor.u32 %v458, %v459
        %v462 = vsel %vm414, %v454, %v461
        %v464 = vshrl.u32 %v321, 16
        %v466 = vrot.slane %v464, 7
        %v467 = vshll.u32 %v321, 16
        %v469 = vor.u32 %v466, %v467
        %v470 = vrot.slane %v466, 4
        %v472 = vshrl.u32 %v322, 16
        %v474 = vrot.slane %v472, 7
        %v475 = vshll.u32 %v322, 16
        %v477 = vor.u32 %v474, %v475
        %v478 = vsel %vm414, %v470, %v477
        %v480 = vshrl.u32 %v323, 16
        %v482 = vrot.slane %v480, 7
        %v483 = vshll.u32 %v323, 16
        %v485 = vor.u32 %v482, %v483
        %v486 = vrot.slane %v482, 4
        %v488 = vshrl.u32 %v324, 16
        %v490 = vrot.slane %v488, 7
        %v491 = vshll.u32 %v324, 16
        %v493 = vor.u32 %v490, %v491
        %v494 = vsel %vm414, %v486, %v493
        %v496 = vshrl.u32 %v325, 16
        %v498 = vrot.slane %v496, 7
        %v499 = vshll.u32 %v325, 16
        %v501 = vor.u32 %v498, %v499
        %v502 = vrot.slane %v498, 4
        %v504 = vshrl.u32 %v326, 16
        %v506 = vrot.slane %v504, 7
        %v507 = vshll.u32 %v326, 16
        %v509 = vor.u32 %v506, %v507
        %v510 = vsel %vm414, %v502, %v509
        %v512 = vshrl.u32 %v327, 16
        %v514 = vrot.slane %v512, 7
        %v515 = vshll.u32 %v327, 16
        %v517 = vor.u32 %v514, %v515
        %v518 = vrot.slane %v514, 4
        %v520 = vshrl.u32 %v328, 16
        %v522 = vrot.slane %v520, 7
        %v523 = vshll.u32 %v328, 16
        %v525 = vor.u32 %v522, %v523
        %v526 = vsel %vm414, %v518, %v525
        %v528 = vshrl.u32 %v329, 16
        %v530 = vrot.slane %v528, 7
        %v531 = vshll.u32 %v329, 16
        %v533 = vor.u32 %v530, %v531
        %v534 = vrot.slane %v530, 4
        %v536 = vshrl.u32 %v330, 16
        %v538 = vrot.slane %v536, 7
        %v539 = vshll.u32 %v330, 16
        %v541 = vor.u32 %v538, %v539
        %v542 = vsel %vm414, %v534, %v541
        %v544 = vshrl.u32 %v331, 16
        %v546 = vrot.slane %v544, 7
        %v547 = vshll.u32 %v331, 16
        %v549 = vor.u32 %v546, %v547
        %v550 = vrot.slane %v546, 4
        %v552 = vshrl.u32 %v332, 16
        %v554 = vrot.slane %v552, 7
        %v555 = vshll.u32 %v332, 16
        %v557 = vor.u32 %v554, %v555
        %v558 = vsel %vm414, %v550, %v557
        %v560 = vshrl.u32 %v333, 16
        %v562 = vrot.slane %v560, 7
        %v563 = vshll.u32 %v333, 16
        %v565 = vor.u32 %v562, %v563
        %v566 = vrot.slane %v562, 4
        %v568 = vshrl.u32 %v334, 16
        %v570 = vrot.slane %v568, 7
        %v571 = vshll.u32 %v334, 16
        %v573 = vor.u32 %v570, %v571
        %v574 = vsel %vm414, %v566, %v573
        %v576 = vshrl.u32 %v335, 16
        %v578 = vrot.slane %v576, 7
        %v579 = vshll.u32 %v335, 16
        %v581 = vor.u32 %v578, %v579
        %v582 = vrot.slane %v578, 4
        %v584 = vshrl.u32 %v336, 16
        %v586 = vrot.slane %v584, 7
        %v587 = vshll.u32 %v336, 16
        %v589 = vor.u32 %v586, %v587
        %v590 = vsel %vm414, %v582, %v589
        %v592 = vshrl.u32 %v337, 16
        %v594 = vrot.slane %v592, 7
        %v595 = vshll.u32 %v337, 16
        %v597 = vor.u32 %v594, %v595
        %v598 = vrot.slane %v594, 4
        %v600 = vshrl.u32 %v338, 16
        %v602 = vrot.slane %v600, 7
        %v603 = vshll.u32 %v338, 16
        %v605 = vor.u32 %v602, %v603
        %v606 = vsel %vm414, %v598, %v605
        %v608 = vshrl.u32 %v339, 16
        %v610 = vrot.slane %v608, 7
        %v611 = vshll.u32 %v339, 16
        %v613 = vor.u32 %v610, %v611
        %v614 = vrot.slane %v610, 4
        %v616 = vshrl.u32 %v340, 16
        %v618 = vrot.slane %v616, 7
        %v619 = vshll.u32 %v340, 16
        %v621 = vor.u32 %v618, %v619
        %v622 = vsel %vm414, %v614, %v621
        %v624 = vshrl.u32 %v341, 16
        %v626 = vrot.slane %v624, 7
        %v627 = vshll.u32 %v341, 16
        %v629 = vor.u32 %v626, %v627
        %v630 = vrot.slane %v626, 4
        %v632 = vshrl.u32 %v342, 16
        %v634 = vrot.slane %v632, 7
        %v635 = vshll.u32 %v342, 16
        %v637 = vor.u32 %v634, %v635
        %v638 = vsel %vm414, %v630, %v637
        %v640 = vshrl.u32 %v343, 16
        %v642 = vrot.slane %v640, 7
        %v643 = vshll.u32 %v343, 16
        %v645 = vor.u32 %v642, %v643
        %v646 = vrot.slane %v642, 4
        %v648 = vshrl.u32 %v344, 16
        %v650 = vrot.slane %v648, 7
        %v651 = vshll.u32 %v344, 16
        %v653 = vor.u32 %v650, %v651
        %v654 = vsel %vm414, %v646, %v653
        %v656 = vshrl.u32 %v345, 16
        %v658 = vrot.slane %v656, 7
        %v659 = vshll.u32 %v345, 16
        %v661 = vor.u32 %v658, %v659
        %v662 = vrot.slane %v658, 4
        %v664 = vshrl.u32 %v346, 16
        %v666 = vrot.slane %v664, 7
        %v667 = vshll.u32 %v346, 16
        %v669 = vor.u32 %v666, %v667
        %v670 = vsel %vm414, %v662, %v669
        %vm703 = vcmask 1043456
        %vm704 = vsmask.f32 7938
        %vm705 = vmand %vm703, %vm704
        %v706 = vld [vmem:[%s379] sm:$0xf]
        %v707 = vsel %vm705, %v421, %v706
        %708 = vst [vmem:[%s379] sm:$0xf] %v707
        %709 = vst [vmem:[%s379 + $0xc] sm:$0xf] %v430
        %v710 = vld [vmem:[%s379 + $0x18] sm:$0xf]
        %v711 = vsel %vm705, %v437, %v710
        %712 = vst [vmem:[%s379 + $0x18] sm:$0xf] %v711
        %713 = vst [vmem:[%s379 + $0x24] sm:$0xf] %v446
        %v714 = vld [vmem:[%s379 + $0x30] sm:$0xf]
        %v715 = vsel %vm705, %v453, %v714
        %716 = vst [vmem:[%s379 + $0x30] sm:$0xf] %v715
        %717 = vst [vmem:[%s379 + $0x3c] sm:$0xf] %v462
        %v718 = vld [vmem:[%s379 + $0x48] sm:$0xf]
        %v719 = vsel %vm705, %v469, %v718
        %720 = vst [vmem:[%s379 + $0x48] sm:$0xf] %v719
        %721 = vst [vmem:[%s379 + $0x54] sm:$0xf] %v478
        %v722 = vld [vmem:[%s379 + $0x60] sm:$0xf]
        %v723 = vsel %vm705, %v485, %v722
        %724 = vst [vmem:[%s379 + $0x60] sm:$0xf] %v723
        %725 = vst [vmem:[%s379 + $0x6c] sm:$0xf] %v494
        %v726 = vld [vmem:[%s379 + $0x78] sm:$0xf]
        %v727 = vsel %vm705, %v501, %v726
        %728 = vst [vmem:[%s379 + $0x78] sm:$0xf] %v727
        %729 = vst [vmem:[%s379 + $0x84] sm:$0xf] %v510
        %v730 = vld [vmem:[%s379 + $0x90] sm:$0xf]
        %v731 = vsel %vm705, %v517, %v730
        %732 = vst [vmem:[%s379 + $0x90] sm:$0xf] %v731
        %733 = vst [vmem:[%s379 + $0x9c] sm:$0xf] %v526
        %v734 = vld [vmem:[%s379 + $0xa8] sm:$0xf]
        %v735 = vsel %vm705, %v533, %v734
        %736 = vst [vmem:[%s379 + $0xa8] sm:$0xf] %v735
        %737 = vst [vmem:[%s379 + $0xb4] sm:$0xf] %v542
        %v738 = vld [vmem:[%s379 + $0xc0] sm:$0xf]
        %v739 = vsel %vm705, %v549, %v738
        %740 = vst [vmem:[%s379 + $0xc0] sm:$0xf] %v739
        %741 = vst [vmem:[%s379 + $0xcc] sm:$0xf] %v558
        %v742 = vld [vmem:[%s379 + $0xd8] sm:$0xf]
        %v743 = vsel %vm705, %v565, %v742
        %744 = vst [vmem:[%s379 + $0xd8] sm:$0xf] %v743
        %745 = vst [vmem:[%s379 + $0xe4] sm:$0xf] %v574
        %v746 = vld [vmem:[%s379 + $0xf0] sm:$0xf]
        %v747 = vsel %vm705, %v581, %v746
        %748 = vst [vmem:[%s379 + $0xf0] sm:$0xf] %v747
        %749 = vst [vmem:[%s379 + $0xfc] sm:$0xf] %v590
        %v750 = vld [vmem:[%s379 + $0x108] sm:$0xf]
        %v751 = vsel %vm705, %v597, %v750
        %752 = vst [vmem:[%s379 + $0x108] sm:$0xf] %v751
        %753 = vst [vmem:[%s379 + $0x114] sm:$0xf] %v606
        %v754 = vld [vmem:[%s379 + $0x120] sm:$0xf]
        %v755 = vsel %vm705, %v613, %v754
        %756 = vst [vmem:[%s379 + $0x120] sm:$0xf] %v755
        %757 = vst [vmem:[%s379 + $0x12c] sm:$0xf] %v622
        %v758 = vld [vmem:[%s379 + $0x138] sm:$0xf]
        %v759 = vsel %vm705, %v629, %v758
        %760 = vst [vmem:[%s379 + $0x138] sm:$0xf] %v759
        %761 = vst [vmem:[%s379 + $0x144] sm:$0xf] %v638
        %v762 = vld [vmem:[%s379 + $0x150] sm:$0xf]
        %v763 = vsel %vm705, %v645, %v762
        %764 = vst [vmem:[%s379 + $0x150] sm:$0xf] %v763
        %765 = vst [vmem:[%s379 + $0x15c] sm:$0xf] %v654
        %v766 = vld [vmem:[%s379 + $0x168] sm:$0xf]
        %v767 = vsel %vm705, %v661, %v766
        %768 = vst [vmem:[%s379 + $0x168] sm:$0xf] %v767
        %769 = vst [vmem:[%s379 + $0x174] sm:$0xf] %v670
        %vm770 = vsmask.f32 3328
        %vm771 = vsmask.f32 7440
        %vm772 = vmor %vm770, %vm771
        %v773 = vrot.slane %v416, 4
        %v774 = vrot.slane %v419, 5
        %v775 = vor.u32 %v773, %v774
        %v776 = vrot.slane %v775, 4
        %v777 = vrot.slane %v427, 5
        %v778 = vsel %vm772, %v776, %v777
        %v779 = vrot.slane %v424, 4
        %v780 = vor.u32 %v779, %v777
        %v781 = vrot.slane %v780, 4
        %v782 = vrot.slane %v432, 4
        %v783 = vrot.slane %v435, 5
        %v784 = vor.u32 %v782, %v783
        %v785 = vrot.slane %v784, 4
        %v786 = vrot.slane %v443, 5
        %v787 = vsel %vm772, %v785, %v786
        %v788 = vrot.slane %v440, 4
        %v789 = vor.u32 %v788, %v786
        %v790 = vrot.slane %v789, 4
        %v791 = vrot.slane %v448, 4
        %v792 = vrot.slane %v451, 5
        %v793 = vor.u32 %v791, %v792
        %v794 = vrot.slane %v793, 4
        %v795 = vrot.slane %v459, 5
        %v796 = vsel %vm772, %v794, %v795
        %v797 = vrot.slane %v456, 4
        %v798 = vor.u32 %v797, %v795
        %v799 = vrot.slane %v798, 4
        %v800 = vrot.slane %v464, 4
        %v801 = vrot.slane %v467, 5
        %v802 = vor.u32 %v800, %v801
        %v803 = vrot.slane %v802, 4
        %v804 = vrot.slane %v475, 5
        %v805 = vsel %vm772, %v803, %v804
        %v806 = vrot.slane %v472, 4
        %v807 = vor.u32 %v806, %v804
        %v808 = vrot.slane %v807, 4
        %v809 = vrot.slane %v480, 4
        %v810 = vrot.slane %v483, 5
        %v811 = vor.u32 %v809, %v810
        %v812 = vrot.slane %v811, 4
        %v813 = vrot.slane %v491, 5
        %v814 = vsel %vm772, %v812, %v813
        %v815 = vrot.slane %v488, 4
        %v816 = vor.u32 %v815, %v813
        %v817 = vrot.slane %v816, 4
        %v818 = vrot.slane %v496, 4
        %v819 = vrot.slane %v499, 5
        %v820 = vor.u32 %v818, %v819
        %v821 = vrot.slane %v820, 4
        %v822 = vrot.slane %v507, 5
        %v823 = vsel %vm772, %v821, %v822
        %v824 = vrot.slane %v504, 4
        %v825 = vor.u32 %v824, %v822
        %v826 = vrot.slane %v825, 4
        %v827 = vrot.slane %v512, 4
        %v828 = vrot.slane %v515, 5
        %v829 = vor.u32 %v827, %v828
        %v830 = vrot.slane %v829, 4
        %v831 = vrot.slane %v523, 5
        %v832 = vsel %vm772, %v830, %v831
        %v833 = vrot.slane %v520, 4
        %v834 = vor.u32 %v833, %v831
        %v835 = vrot.slane %v834, 4
        %v836 = vrot.slane %v528, 4
        %v837 = vrot.slane %v531, 5
        %v838 = vor.u32 %v836, %v837
        %v839 = vrot.slane %v838, 4
        %v840 = vrot.slane %v539, 5
        %v841 = vsel %vm772, %v839, %v840
        %v842 = vrot.slane %v536, 4
        %v843 = vor.u32 %v842, %v840
        %v844 = vrot.slane %v843, 4
        %v845 = vrot.slane %v544, 4
        %v846 = vrot.slane %v547, 5
        %v847 = vor.u32 %v845, %v846
        %v848 = vrot.slane %v847, 4
        %v849 = vrot.slane %v555, 5
        %v850 = vsel %vm772, %v848, %v849
        %v851 = vrot.slane %v552, 4
        %v852 = vor.u32 %v851, %v849
        %v853 = vrot.slane %v852, 4
        %v854 = vrot.slane %v560, 4
        %v855 = vrot.slane %v563, 5
        %v856 = vor.u32 %v854, %v855
        %v857 = vrot.slane %v856, 4
        %v858 = vrot.slane %v571, 5
        %v859 = vsel %vm772, %v857, %v858
        %v860 = vrot.slane %v568, 4
        %v861 = vor.u32 %v860, %v858
        %v862 = vrot.slane %v861, 4
        %v863 = vrot.slane %v576, 4
        %v864 = vrot.slane %v579, 5
        %v865 = vor.u32 %v863, %v864
        %v866 = vrot.slane %v865, 4
        %v867 = vrot.slane %v587, 5
        %v868 = vsel %vm772, %v866, %v867
        %v869 = vrot.slane %v584, 4
        %v870 = vor.u32 %v869, %v867
        %v871 = vrot.slane %v870, 4
        %v872 = vrot.slane %v592, 4
        %v873 = vrot.slane %v595, 5
        %v874 = vor.u32 %v872, %v873
        %v875 = vrot.slane %v874, 4
        %v876 = vrot.slane %v603, 5
        %v877 = vsel %vm772, %v875, %v876
        %v878 = vrot.slane %v600, 4
        %v879 = vor.u32 %v878, %v876
        %v880 = vrot.slane %v879, 4
        %v881 = vrot.slane %v608, 4
        %v882 = vrot.slane %v611, 5
        %v883 = vor.u32 %v881, %v882
        %v884 = vrot.slane %v883, 4
        %v885 = vrot.slane %v619, 5
        %v886 = vsel %vm772, %v884, %v885
        %v887 = vrot.slane %v616, 4
        %v888 = vor.u32 %v887, %v885
        %v889 = vrot.slane %v888, 4
        %v890 = vrot.slane %v624, 4
        %v891 = vrot.slane %v627, 5
        %v892 = vor.u32 %v890, %v891
        %v893 = vrot.slane %v892, 4
        %v894 = vrot.slane %v635, 5
        %v895 = vsel %vm772, %v893, %v894
        %v896 = vrot.slane %v632, 4
        %v897 = vor.u32 %v896, %v894
        %v898 = vrot.slane %v897, 4
        %v899 = vrot.slane %v640, 4
        %v900 = vrot.slane %v643, 5
        %v901 = vor.u32 %v899, %v900
        %v902 = vrot.slane %v901, 4
        %v903 = vrot.slane %v651, 5
        %v904 = vsel %vm772, %v902, %v903
        %v905 = vrot.slane %v648, 4
        %v906 = vor.u32 %v905, %v903
        %v907 = vrot.slane %v906, 4
        %v908 = vrot.slane %v656, 4
        %v909 = vrot.slane %v659, 5
        %v910 = vor.u32 %v908, %v909
        %v911 = vrot.slane %v910, 4
        %v912 = vrot.slane %v667, 5
        %v913 = vsel %vm772, %v911, %v912
        %v914 = vrot.slane %v664, 4
        %v915 = vor.u32 %v914, %v912
        %v916 = vrot.slane %v915, 4
        %949 = vst [vmem:[%s379 + $0x8] sm:$0xf] %v778
        %vm950 = vmand %vm703, %vm770
        %v951 = vld [vmem:[%s379 + $0x14] sm:$0xf]
        %v952 = vsel %vm950, %v781, %v951
        %953 = vst [vmem:[%s379 + $0x14] sm:$0xf] %v952
        %954 = vst [vmem:[%s379 + $0x20] sm:$0xf] %v787
        %v955 = vld [vmem:[%s379 + $0x2c] sm:$0xf]
        %v956 = vsel %vm950, %v790, %v955
        %957 = vst [vmem:[%s379 + $0x2c] sm:$0xf] %v956
        %958 = vst [vmem:[%s379 + $0x38] sm:$0xf] %v796
        %v959 = vld [vmem:[%s379 + $0x44] sm:$0xf]
        %v960 = vsel %vm950, %v799, %v959
        %961 = vst [vmem:[%s379 + $0x44] sm:$0xf] %v960
        %962 = vst [vmem:[%s379 + $0x50] sm:$0xf] %v805
        %v963 = vld [vmem:[%s379 + $0x5c] sm:$0xf]
        %v964 = vsel %vm950, %v808, %v963
        %965 = vst [vmem:[%s379 + $0x5c] sm:$0xf] %v964
        %966 = vst [vmem:[%s379 + $0x68] sm:$0xf] %v814
        %v967 = vld [vmem:[%s379 + $0x74] sm:$0xf]
        %v968 = vsel %vm950, %v817, %v967
        %969 = vst [vmem:[%s379 + $0x74] sm:$0xf] %v968
        %970 = vst [vmem:[%s379 + $0x80] sm:$0xf] %v823
        %v971 = vld [vmem:[%s379 + $0x8c] sm:$0xf]
        %v972 = vsel %vm950, %v826, %v971
        %973 = vst [vmem:[%s379 + $0x8c] sm:$0xf] %v972
        %974 = vst [vmem:[%s379 + $0x98] sm:$0xf] %v832
        %v975 = vld [vmem:[%s379 + $0xa4] sm:$0xf]
        %v976 = vsel %vm950, %v835, %v975
        %977 = vst [vmem:[%s379 + $0xa4] sm:$0xf] %v976
        %978 = vst [vmem:[%s379 + $0xb0] sm:$0xf] %v841
        %v979 = vld [vmem:[%s379 + $0xbc] sm:$0xf]
        %v980 = vsel %vm950, %v844, %v979
        %981 = vst [vmem:[%s379 + $0xbc] sm:$0xf] %v980
        %982 = vst [vmem:[%s379 + $0xc8] sm:$0xf] %v850
        %v983 = vld [vmem:[%s379 + $0xd4] sm:$0xf]
        %v984 = vsel %vm950, %v853, %v983
        %985 = vst [vmem:[%s379 + $0xd4] sm:$0xf] %v984
        %986 = vst [vmem:[%s379 + $0xe0] sm:$0xf] %v859
        %v987 = vld [vmem:[%s379 + $0xec] sm:$0xf]
        %v988 = vsel %vm950, %v862, %v987
        %989 = vst [vmem:[%s379 + $0xec] sm:$0xf] %v988
        %990 = vst [vmem:[%s379 + $0xf8] sm:$0xf] %v868
        %v991 = vld [vmem:[%s379 + $0x104] sm:$0xf]
        %v992 = vsel %vm950, %v871, %v991
        %993 = vst [vmem:[%s379 + $0x104] sm:$0xf] %v992
        %994 = vst [vmem:[%s379 + $0x110] sm:$0xf] %v877
        %v995 = vld [vmem:[%s379 + $0x11c] sm:$0xf]
        %v996 = vsel %vm950, %v880, %v995
        %997 = vst [vmem:[%s379 + $0x11c] sm:$0xf] %v996
        %998 = vst [vmem:[%s379 + $0x128] sm:$0xf] %v886
        %v999 = vld [vmem:[%s379 + $0x134] sm:$0xf]
        %v1000 = vsel %vm950, %v889, %v999
        %1001 = vst [vmem:[%s379 + $0x134] sm:$0xf] %v1000
        %1002 = vst [vmem:[%s379 + $0x140] sm:$0xf] %v895
        %v1003 = vld [vmem:[%s379 + $0x14c] sm:$0xf]
        %v1004 = vsel %vm950, %v898, %v1003
        %1005 = vst [vmem:[%s379 + $0x14c] sm:$0xf] %v1004
        %1006 = vst [vmem:[%s379 + $0x158] sm:$0xf] %v904
        %v1007 = vld [vmem:[%s379 + $0x164] sm:$0xf]
        %v1008 = vsel %vm950, %v907, %v1007
        %1009 = vst [vmem:[%s379 + $0x164] sm:$0xf] %v1008
        %1010 = vst [vmem:[%s379 + $0x170] sm:$0xf] %v913
        %v1011 = vld [vmem:[%s379 + $0x17c] sm:$0xf]
        %v1012 = vsel %vm950, %v916, %v1011
        %1013 = vst [vmem:[%s379 + $0x17c] sm:$0xf] %v1012
        %v1014 = vrot.slane %v773, 4
        %v1015 = vrot.slane %v782, 4
        %v1016 = vrot.slane %v791, 4
        %v1017 = vrot.slane %v800, 4
        %v1018 = vrot.slane %v809, 4
        %v1019 = vrot.slane %v818, 4
        %v1020 = vrot.slane %v827, 4
        %v1021 = vrot.slane %v836, 4
        %v1022 = vrot.slane %v845, 4
        %v1023 = vrot.slane %v854, 4
        %v1024 = vrot.slane %v863, 4
        %v1025 = vrot.slane %v872, 4
        %v1026 = vrot.slane %v881, 4
        %v1027 = vrot.slane %v890, 4
        %v1028 = vrot.slane %v899, 4
        %v1029 = vrot.slane %v908, 4
        %vm1046 = vcmask 1040384
        %vm1047 = vmand %vm1046, %vm412
        %v1048 = vld [vmem:[%s379] sm:$0x1]
        %v1049 = vsel %vm1047, %v1014, %v1048
        %1050 = vst [vmem:[%s379] sm:$0x1] %v1049
        %v1051 = vld [vmem:[%s379 + $0x18] sm:$0x1]
        %v1052 = vsel %vm1047, %v1015, %v1051
        %1053 = vst [vmem:[%s379 + $0x18] sm:$0x1] %v1052
        %v1054 = vld [vmem:[%s379 + $0x30] sm:$0x1]
        %v1055 = vsel %vm1047, %v1016, %v1054
        %1056 = vst [vmem:[%s379 + $0x30] sm:$0x1] %v1055
        %v1057 = vld [vmem:[%s379 + $0x48] sm:$0x1]
        %v1058 = vsel %vm1047, %v1017, %v1057
        %1059 = vst [vmem:[%s379 + $0x48] sm:$0x1] %v1058
        %v1060 = vld [vmem:[%s379 + $0x60] sm:$0x1]
        %v1061 = vsel %vm1047, %v1018, %v1060
        %1062 = vst [vmem:[%s379 + $0x60] sm:$0x1] %v1061
        %v1063 = vld [vmem:[%s379 + $0x78] sm:$0x1]
        %v1064 = vsel %vm1047, %v1019, %v1063
        %1065 = vst [vmem:[%s379 + $0x78] sm:$0x1] %v1064
        %v1066 = vld [vmem:[%s379 + $0x90] sm:$0x1]
        %v1067 = vsel %vm1047, %v1020, %v1066
        %1068 = vst [vmem:[%s379 + $0x90] sm:$0x1] %v1067
        %v1069 = vld [vmem:[%s379 + $0xa8] sm:$0x1]
        %v1070 = vsel %vm1047, %v1021, %v1069
        %1071 = vst [vmem:[%s379 + $0xa8] sm:$0x1] %v1070
        %v1072 = vld [vmem:[%s379 + $0xc0] sm:$0x1]
        %v1073 = vsel %vm1047, %v1022, %v1072
        %1074 = vst [vmem:[%s379 + $0xc0] sm:$0x1] %v1073
        %v1075 = vld [vmem:[%s379 + $0xd8] sm:$0x1]
        %v1076 = vsel %vm1047, %v1023, %v1075
        %1077 = vst [vmem:[%s379 + $0xd8] sm:$0x1] %v1076
        %v1078 = vld [vmem:[%s379 + $0xf0] sm:$0x1]
        %v1079 = vsel %vm1047, %v1024, %v1078
        %1080 = vst [vmem:[%s379 + $0xf0] sm:$0x1] %v1079
        %v1081 = vld [vmem:[%s379 + $0x108] sm:$0x1]
        %v1082 = vsel %vm1047, %v1025, %v1081
        %1083 = vst [vmem:[%s379 + $0x108] sm:$0x1] %v1082
        %v1084 = vld [vmem:[%s379 + $0x120] sm:$0x1]
        %v1085 = vsel %vm1047, %v1026, %v1084
        %1086 = vst [vmem:[%s379 + $0x120] sm:$0x1] %v1085
        %v1087 = vld [vmem:[%s379 + $0x138] sm:$0x1]
        %v1088 = vsel %vm1047, %v1027, %v1087
        %1089 = vst [vmem:[%s379 + $0x138] sm:$0x1] %v1088
        %v1090 = vld [vmem:[%s379 + $0x150] sm:$0x1]
        %v1091 = vsel %vm1047, %v1028, %v1090
        %1092 = vst [vmem:[%s379 + $0x150] sm:$0x1] %v1091
        %v1093 = vld [vmem:[%s379 + $0x168] sm:$0x1]
        %v1094 = vsel %vm1047, %v1029, %v1093
        %1095 = vst [vmem:[%s379 + $0x168] sm:$0x1] %v1094
        %vm1112 = vcmask 1043459
        %vm1113 = vsmask.f32 7950
        %vm1114 = vmand %vm1112, %vm1113
        %v1115 = vld [vmem:[%s379 + $0x14] sm:$0x8]
        %v1116 = vsel %vm1114, %v427, %v1115
        %1117 = vst [vmem:[%s379 + $0x14] sm:$0x8] %v1116
        %v1118 = vld [vmem:[%s379 + $0x2c] sm:$0x8]
        %v1119 = vsel %vm1114, %v443, %v1118
        %1120 = vst [vmem:[%s379 + $0x2c] sm:$0x8] %v1119
        %v1121 = vld [vmem:[%s379 + $0x44] sm:$0x8]
        %v1122 = vsel %vm1114, %v459, %v1121
        %1123 = vst [vmem:[%s379 + $0x44] sm:$0x8] %v1122
        %v1124 = vld [vmem:[%s379 + $0x5c] sm:$0x8]
        %v1125 = vsel %vm1114, %v475, %v1124
        %1126 = vst [vmem:[%s379 + $0x5c] sm:$0x8] %v1125
        %v1127 = vld [vmem:[%s379 + $0x74] sm:$0x8]
        %v1128 = vsel %vm1114, %v491, %v1127
        %1129 = vst [vmem:[%s379 + $0x74] sm:$0x8] %v1128
        %v1130 = vld [vmem:[%s379 + $0x8c] sm:$0x8]
        %v1131 = vsel %vm1114, %v507, %v1130
        %1132 = vst [vmem:[%s379 + $0x8c] sm:$0x8] %v1131
        %v1133 = vld [vmem:[%s379 + $0xa4] sm:$0x8]
        %v1134 = vsel %vm1114, %v523, %v1133
        %1135 = vst [vmem:[%s379 + $0xa4] sm:$0x8] %v1134
        %v1136 = vld [vmem:[%s379 + $0xbc] sm:$0x8]
        %v1137 = vsel %vm1114, %v539, %v1136
        %1138 = vst [vmem:[%s379 + $0xbc] sm:$0x8] %v1137
        %v1139 = vld [vmem:[%s379 + $0xd4] sm:$0x8]
        %v1140 = vsel %vm1114, %v555, %v1139
        %1141 = vst [vmem:[%s379 + $0xd4] sm:$0x8] %v1140
        %v1142 = vld [vmem:[%s379 + $0xec] sm:$0x8]
        %v1143 = vsel %vm1114, %v571, %v1142
        %1144 = vst [vmem:[%s379 + $0xec] sm:$0x8] %v1143
        %v1145 = vld [vmem:[%s379 + $0x104] sm:$0x8]
        %v1146 = vsel %vm1114, %v587, %v1145
        %1147 = vst [vmem:[%s379 + $0x104] sm:$0x8] %v1146
        %v1148 = vld [vmem:[%s379 + $0x11c] sm:$0x8]
        %v1149 = vsel %vm1114, %v603, %v1148
        %1150 = vst [vmem:[%s379 + $0x11c] sm:$0x8] %v1149
        %v1151 = vld [vmem:[%s379 + $0x134] sm:$0x8]
        %v1152 = vsel %vm1114, %v619, %v1151
        %1153 = vst [vmem:[%s379 + $0x134] sm:$0x8] %v1152
        %v1154 = vld [vmem:[%s379 + $0x14c] sm:$0x8]
        %v1155 = vsel %vm1114, %v635, %v1154
        %1156 = vst [vmem:[%s379 + $0x14c] sm:$0x8] %v1155
        %v1157 = vld [vmem:[%s379 + $0x164] sm:$0x8]
        %v1158 = vsel %vm1114, %v651, %v1157
        %1159 = vst [vmem:[%s379 + $0x164] sm:$0x8] %v1158
        %v1160 = vld [vmem:[%s379 + $0x17c] sm:$0x8]
        %v1161 = vsel %vm1114, %v667, %v1160
        %1162 = vst [vmem:[%s379 + $0x17c] sm:$0x8] %v1161
        %s1163 = scalar_lea.vmem [#allocation2], 48
        %v1164 = vld [vmem:[%s1163] sm:$0xff]
        %v1165 = vld [vmem:[%s1163 + $0x8] sm:$0xf]
        %v1166 = vld [vmem:[%s1163 + $0xc] sm:$0xff]
        %v1167 = vld [vmem:[%s1163 + $0x14] sm:$0xf]
        %1168 = vst [vmem:[#allocation2] sm:$0xff] %v1164
        %1169 = vst [vmem:[#allocation2 + $0x8] sm:$0xf] %v1165
        %1170 = vst [vmem:[#allocation2 + $0xc] sm:$0xff] %v1166
        %1171 = vst [vmem:[#allocation2 + $0x14] sm:$0xf] %v1167
        %s1172 = scalar_lea.vmem [#allocation2], 360
        %v1173 = vld [vmem:[%s1172] sm:$0xff]
        %v1174 = vld [vmem:[%s1172 + $0x8] sm:$0xf]
        %v1175 = vld [vmem:[%s1172 + $0xc] sm:$0xff]
        %v1176 = vld [vmem:[%s1172 + $0x14] sm:$0xf]
        %s1177 = scalar_lea.vmem [#allocation2], 408
        %1178 = vst [vmem:[%s1177] sm:$0xff] %v1173
        %1179 = vst [vmem:[%s1177 + $0x8] sm:$0xf] %v1174
        %1180 = vst [vmem:[%s1177 + $0xc] sm:$0xff] %v1175
        %1181 = vst [vmem:[%s1177 + $0x14] sm:$0xf] %v1176
        %v1182 = vld [vmem:[#allocation2] sm:$0xff]
        %v1183 = vld [vmem:[#allocation2 + $0x8] sm:$0xf]
        %v1184 = vld [vmem:[#allocation2 + $0xc] sm:$0xff]
        %v1185 = vld [vmem:[#allocation2 + $0x14] sm:$0xf]
        %v1186 = vld [vmem:[#allocation2 + $0x18] sm:$0xff]
        %v1187 = vld [vmem:[#allocation2 + $0x20] sm:$0xf]
        %v1188 = vld [vmem:[#allocation2 + $0x24] sm:$0xff]
        %v1189 = vld [vmem:[#allocation2 + $0x2c] sm:$0xf]
        %v1190 = vld [vmem:[#allocation2 + $0x30] sm:$0xff]
        %v1191 = vld [vmem:[#allocation2 + $0x38] sm:$0xf]
        %v1192 = vld [vmem:[#allocation2 + $0x3c] sm:$0xff]
        %v1193 = vld [vmem:[#allocation2 + $0x44] sm:$0xf]
        %v1194 = vld [vmem:[#allocation2 + $0x48] sm:$0xff]
        %v1195 = vld [vmem:[#allocation2 + $0x50] sm:$0xf]
        %v1196 = vld [vmem:[#allocation2 + $0x54] sm:$0xff]
        %v1197 = vld [vmem:[#allocation2 + $0x5c] sm:$0xf]
        %v1198 = vld [vmem:[#allocation2 + $0x60] sm:$0xff]
        %v1199 = vld [vmem:[#allocation2 + $0x68] sm:$0xf]
        %v1200 = vld [vmem:[#allocation2 + $0x6c] sm:$0xff]
        %v1201 = vld [vmem:[#allocation2 + $0x74] sm:$0xf]
        %v1202 = vld [vmem:[#allocation2 + $0x78] sm:$0xff]
        %v1203 = vld [vmem:[#allocation2 + $0x80] sm:$0xf]
        %v1204 = vld [vmem:[#allocation2 + $0x84] sm:$0xff]
        %v1205 = vld [vmem:[#allocation2 + $0x8c] sm:$0xf]
        %v1206 = vld [vmem:[#allocation2 + $0x90] sm:$0xff]
        %v1207 = vld [vmem:[#allocation2 + $0x98] sm:$0xf]
        %v1208 = vld [vmem:[#allocation2 + $0x9c] sm:$0xff]
        %v1209 = vld [vmem:[#allocation2 + $0xa4] sm:$0xf]
        %v1210 = vld [vmem:[#allocation2 + $0xa8] sm:$0xff]
        %v1211 = vld [vmem:[#allocation2 + $0xb0] sm:$0xf]
        %v1212 = vld [vmem:[#allocation2 + $0xb4] sm:$0xff]
        %v1213 = vld [vmem:[#allocation2 + $0xbc] sm:$0xf]
        %v1214 = vld [vmem:[#allocation2 + $0xc0] sm:$0xff]
        %v1215 = vld [vmem:[#allocation2 + $0xc8] sm:$0xf]
        %v1216 = vld [vmem:[#allocation2 + $0xcc] sm:$0xff]
        %v1217 = vld [vmem:[#allocation2 + $0xd4] sm:$0xf]
        %v1218 = vld [vmem:[#allocation2 + $0xd8] sm:$0xff]
        %v1219 = vld [vmem:[#allocation2 + $0xe0] sm:$0xf]
        %v1220 = vld [vmem:[#allocation2 + $0xe4] sm:$0xff]
        %v1221 = vld [vmem:[#allocation2 + $0xec] sm:$0xf]
        %v1222 = vld [vmem:[#allocation2 + $0xf0] sm:$0xff]
        %v1223 = vld [vmem:[#allocation2 + $0xf8] sm:$0xf]
        %v1224 = vld [vmem:[#allocation2 + $0xfc] sm:$0xff]
        %v1225 = vld [vmem:[#allocation2 + $0x104] sm:$0xf]
        %v1226 = vld [vmem:[#allocation2 + $0x108] sm:$0xff]
        %v1227 = vld [vmem:[#allocation2 + $0x110] sm:$0xf]
        %v1228 = vld [vmem:[#allocation2 + $0x114] sm:$0xff]
        %v1229 = vld [vmem:[#allocation2 + $0x11c] sm:$0xf]
        %v1230 = vld [vmem:[#allocation2 + $0x120] sm:$0xff]
        %v1231 = vld [vmem:[#allocation2 + $0x128] sm:$0xf]
        %v1232 = vld [vmem:[#allocation2 + $0x12c] sm:$0xff]
        %v1233 = vld [vmem:[#allocation2 + $0x134] sm:$0xf]
        %v1234 = vld [vmem:[#allocation2 + $0x138] sm:$0xff]
        %v1235 = vld [vmem:[#allocation2 + $0x140] sm:$0xf]
        %v1236 = vld [vmem:[#allocation2 + $0x144] sm:$0xff]
        %v1237 = vld [vmem:[#allocation2 + $0x14c] sm:$0xf]
        %v1238 = vld [vmem:[#allocation2 + $0x150] sm:$0xff]
        %v1239 = vld [vmem:[#allocation2 + $0x158] sm:$0xf]
        %v1240 = vld [vmem:[#allocation2 + $0x15c] sm:$0xff]
        %v1241 = vld [vmem:[#allocation2 + $0x164] sm:$0xf]
        %v1242 = vld [vmem:[#allocation2 + $0x168] sm:$0xff]
        %v1243 = vld [vmem:[#allocation2 + $0x170] sm:$0xf]
        %v1244 = vld [vmem:[#allocation2 + $0x174] sm:$0xff]
        %v1245 = vld [vmem:[#allocation2 + $0x17c] sm:$0xf]
        %v1246 = vld [vmem:[#allocation6] sm:$0xf]
        %v1247 = vld [vmem:[#allocation6 + $0x4] sm:$0xf]
        %v1248 = vld [vmem:[#allocation6 + $0x8] sm:$0xf]
        %v1249 = vld [vmem:[#allocation6 + $0xc] sm:$0xf]
        %v1250 = vld [vmem:[#allocation6 + $0x10] sm:$0xf]
        %v1251 = vld [vmem:[#allocation6 + $0x14] sm:$0xf]
        %v1252 = vld [vmem:[#allocation6 + $0x18] sm:$0xf]
        %v1253 = vld [vmem:[#allocation6 + $0x1c] sm:$0xf]
        %v1254 = vld [vmem:[#allocation6 + $0x20] sm:$0xf]
        %v1255 = vld [vmem:[#allocation6 + $0x24] sm:$0xf]
        %v1256 = vld [vmem:[#allocation6 + $0x28] sm:$0xf]
        %v1257 = vld [vmem:[#allocation6 + $0x2c] sm:$0xf]
        %v1258 = vld [vmem:[#allocation6 + $0x30] sm:$0xf]
        %v1259 = vld [vmem:[#allocation6 + $0x34] sm:$0xf]
        %v1260 = vld [vmem:[#allocation6 + $0x38] sm:$0xf]
        %v1261 = vld [vmem:[#allocation6 + $0x3c] sm:$0xf]
        %v1262 = vld [vmem:[#allocation6 + $0x40] sm:$0xf]
        %v1263 = vld [vmem:[#allocation6 + $0x44] sm:$0xf]
        %v1264 = vld [vmem:[#allocation6 + $0x48] sm:$0xf]
        %v1265 = vld [vmem:[#allocation6 + $0x4c] sm:$0xf]
        %v1266 = vld [vmem:[#allocation6 + $0x50] sm:$0xf]
        %v1267 = vld [vmem:[#allocation6 + $0x54] sm:$0xf]
        %v1268 = vld [vmem:[#allocation6 + $0x58] sm:$0xf]
        %v1269 = vld [vmem:[#allocation6 + $0x5c] sm:$0xf]
        %v1270 = vld [vmem:[#allocation6 + $0x60] sm:$0xf]
        %v1271 = vld [vmem:[#allocation6 + $0x64] sm:$0xf]
        %v1272 = vld [vmem:[#allocation6 + $0x68] sm:$0xf]
        %v1273 = vld [vmem:[#allocation6 + $0x6c] sm:$0xf]
        %v1274 = vld [vmem:[#allocation6 + $0x70] sm:$0xf]
        %v1275 = vld [vmem:[#allocation6 + $0x74] sm:$0xf]
        %v1276 = vld [vmem:[#allocation6 + $0x78] sm:$0xf]
        %v1277 = vld [vmem:[#allocation6 + $0x7c] sm:$0xf]
        %v1278 = vld [vmem:[#allocation6 + $0x80] sm:$0xf]
        %v1279 = vld [vmem:[#allocation6 + $0x84] sm:$0xf]
        %v1280 = vld [vmem:[#allocation6 + $0x88] sm:$0xf]
        %v1281 = vld [vmem:[#allocation6 + $0x8c] sm:$0xf]
        %v1282 = vld [vmem:[#allocation6 + $0x90] sm:$0xf]
        %v1283 = vld [vmem:[#allocation6 + $0x94] sm:$0xf]
        %v1284 = vld [vmem:[#allocation6 + $0x98] sm:$0xf]
        %v1285 = vld [vmem:[#allocation6 + $0x9c] sm:$0xf]
        %v1286 = vld [vmem:[#allocation6 + $0xa0] sm:$0xf]
        %v1287 = vld [vmem:[#allocation6 + $0xa4] sm:$0xf]
        %v1288 = vld [vmem:[#allocation6 + $0xa8] sm:$0xf]
        %v1289 = vld [vmem:[#allocation6 + $0xac] sm:$0xf]
        %v1290 = vld [vmem:[#allocation6 + $0xb0] sm:$0xf]
        %v1291 = vld [vmem:[#allocation6 + $0xb4] sm:$0xf]
        %v1292 = vld [vmem:[#allocation6 + $0xb8] sm:$0xf]
        %v1293 = vld [vmem:[#allocation6 + $0xbc] sm:$0xf]
        %v1294 = vld [vmem:[%s379] sm:$0xff]
        %v1295 = vld [vmem:[%s379 + $0x8] sm:$0xf]
        %v1296 = vld [vmem:[%s379 + $0xc] sm:$0xff]
        %v1297 = vld [vmem:[%s379 + $0x14] sm:$0xf]
        %v1298 = vld [vmem:[%s379 + $0x18] sm:$0xff]
        %v1299 = vld [vmem:[%s379 + $0x20] sm:$0xf]
        %v1300 = vld [vmem:[%s379 + $0x24] sm:$0xff]
        %v1301 = vld [vmem:[%s379 + $0x2c] sm:$0xf]
        %v1302 = vld [vmem:[%s379 + $0x30] sm:$0xff]
        %v1303 = vld [vmem:[%s379 + $0x38] sm:$0xf]
        %v1304 = vld [vmem:[%s379 + $0x3c] sm:$0xff]
        %v1305 = vld [vmem:[%s379 + $0x44] sm:$0xf]
        %v1306 = vld [vmem:[%s379 + $0x48] sm:$0xff]
        %v1307 = vld [vmem:[%s379 + $0x50] sm:$0xf]
        %v1308 = vld [vmem:[%s379 + $0x54] sm:$0xff]
        %v1309 = vld [vmem:[%s379 + $0x5c] sm:$0xf]
        %v1310 = vld [vmem:[%s379 + $0x60] sm:$0xff]
        %v1311 = vld [vmem:[%s379 + $0x68] sm:$0xf]
        %v1312 = vld [vmem:[%s379 + $0x6c] sm:$0xff]
        %v1313 = vld [vmem:[%s379 + $0x74] sm:$0xf]
        %v1314 = vld [vmem:[%s379 + $0x78] sm:$0xff]
        %v1315 = vld [vmem:[%s379 + $0x80] sm:$0xf]
        %v1316 = vld [vmem:[%s379 + $0x84] sm:$0xff]
        %v1317 = vld [vmem:[%s379 + $0x8c] sm:$0xf]
        %v1318 = vld [vmem:[%s379 + $0x90] sm:$0xff]
        %v1319 = vld [vmem:[%s379 + $0x98] sm:$0xf]
        %v1320 = vld [vmem:[%s379 + $0x9c] sm:$0xff]
        %v1321 = vld [vmem:[%s379 + $0xa4] sm:$0xf]
        %v1322 = vld [vmem:[%s379 + $0xa8] sm:$0xff]
        %v1323 = vld [vmem:[%s379 + $0xb0] sm:$0xf]
        %v1324 = vld [vmem:[%s379 + $0xb4] sm:$0xff]
        %v1325 = vld [vmem:[%s379 + $0xbc] sm:$0xf]
        %v1326 = vld [vmem:[%s379 + $0xc0] sm:$0xff]
        %v1327 = vld [vmem:[%s379 + $0xc8] sm:$0xf]
        %v1328 = vld [vmem:[%s379 + $0xcc] sm:$0xff]
        %v1329 = vld [vmem:[%s379 + $0xd4] sm:$0xf]
        %v1330 = vld [vmem:[%s379 + $0xd8] sm:$0xff]
        %v1331 = vld [vmem:[%s379 + $0xe0] sm:$0xf]
        %v1332 = vld [vmem:[%s379 + $0xe4] sm:$0xff]
        %v1333 = vld [vmem:[%s379 + $0xec] sm:$0xf]
        %v1334 = vld [vmem:[%s379 + $0xf0] sm:$0xff]
        %v1335 = vld [vmem:[%s379 + $0xf8] sm:$0xf]
        %v1336 = vld [vmem:[%s379 + $0xfc] sm:$0xff]
        %v1337 = vld [vmem:[%s379 + $0x104] sm:$0xf]
        %v1338 = vld [vmem:[%s379 + $0x108] sm:$0xff]
        %v1339 = vld [vmem:[%s379 + $0x110] sm:$0xf]
        %v1340 = vld [vmem:[%s379 + $0x114] sm:$0xff]
        %v1341 = vld [vmem:[%s379 + $0x11c] sm:$0xf]
        %v1342 = vld [vmem:[%s379 + $0x120] sm:$0xff]
        %v1343 = vld [vmem:[%s379 + $0x128] sm:$0xf]
        %v1344 = vld [vmem:[%s379 + $0x12c] sm:$0xff]
        %v1345 = vld [vmem:[%s379 + $0x134] sm:$0xf]
        %v1346 = vld [vmem:[%s379 + $0x138] sm:$0xff]
        %v1347 = vld [vmem:[%s379 + $0x140] sm:$0xf]
        %v1348 = vld [vmem:[%s379 + $0x144] sm:$0xff]
        %v1349 = vld [vmem:[%s379 + $0x14c] sm:$0xf]
        %v1350 = vld [vmem:[%s379 + $0x150] sm:$0xff]
        %v1351 = vld [vmem:[%s379 + $0x158] sm:$0xf]
        %v1352 = vld [vmem:[%s379 + $0x15c] sm:$0xff]
        %v1353 = vld [vmem:[%s379 + $0x164] sm:$0xf]
        %v1354 = vld [vmem:[%s379 + $0x168] sm:$0xff]
        %v1355 = vld [vmem:[%s379 + $0x170] sm:$0xf]
        %v1356 = vld [vmem:[%s379 + $0x174] sm:$0xff]
        %v1357 = vld [vmem:[%s379 + $0x17c] sm:$0xf]
        %s1358 = scalar_lea.vmem [#allocation6], 192
        %v1359 = vld [vmem:[%s1358] sm:$0xf]
        %v1360 = vld [vmem:[%s1358 + $0x4] sm:$0xf]
        %v1361 = vld [vmem:[%s1358 + $0x8] sm:$0xf]
        %v1362 = vld [vmem:[%s1358 + $0xc] sm:$0xf]
        %v1363 = vld [vmem:[%s1358 + $0x10] sm:$0xf]
        %v1364 = vld [vmem:[%s1358 + $0x14] sm:$0xf]
        %v1365 = vld [vmem:[%s1358 + $0x18] sm:$0xf]
        %v1366 = vld [vmem:[%s1358 + $0x1c] sm:$0xf]
        %v1367 = vld [vmem:[%s1358 + $0x20] sm:$0xf]
        %v1368 = vld [vmem:[%s1358 + $0x24] sm:$0xf]
        %v1369 = vld [vmem:[%s1358 + $0x28] sm:$0xf]
        %v1370 = vld [vmem:[%s1358 + $0x2c] sm:$0xf]
        %v1371 = vld [vmem:[%s1358 + $0x30] sm:$0xf]
        %v1372 = vld [vmem:[%s1358 + $0x34] sm:$0xf]
        %v1373 = vld [vmem:[%s1358 + $0x38] sm:$0xf]
        %v1374 = vld [vmem:[%s1358 + $0x3c] sm:$0xf]
        %v1375 = vld [vmem:[%s1358 + $0x40] sm:$0xf]
        %v1376 = vld [vmem:[%s1358 + $0x44] sm:$0xf]
        %v1377 = vld [vmem:[%s1358 + $0x48] sm:$0xf]
        %v1378 = vld [vmem:[%s1358 + $0x4c] sm:$0xf]
        %v1379 = vld [vmem:[%s1358 + $0x50] sm:$0xf]
        %v1380 = vld [vmem:[%s1358 + $0x54] sm:$0xf]
        %v1381 = vld [vmem:[%s1358 + $0x58] sm:$0xf]
        %v1382 = vld [vmem:[%s1358 + $0x5c] sm:$0xf]
        %v1383 = vld [vmem:[%s1358 + $0x60] sm:$0xf]
        %v1384 = vld [vmem:[%s1358 + $0x64] sm:$0xf]
        %v1385 = vld [vmem:[%s1358 + $0x68] sm:$0xf]
        %v1386 = vld [vmem:[%s1358 + $0x6c] sm:$0xf]
        %v1387 = vld [vmem:[%s1358 + $0x70] sm:$0xf]
        %v1388 = vld [vmem:[%s1358 + $0x74] sm:$0xf]
        %v1389 = vld [vmem:[%s1358 + $0x78] sm:$0xf]
        %v1390 = vld [vmem:[%s1358 + $0x7c] sm:$0xf]
        %v1391 = vld [vmem:[%s1358 + $0x80] sm:$0xf]
        %v1392 = vld [vmem:[%s1358 + $0x84] sm:$0xf]
        %v1393 = vld [vmem:[%s1358 + $0x88] sm:$0xf]
        %v1394 = vld [vmem:[%s1358 + $0x8c] sm:$0xf]
        %v1395 = vld [vmem:[%s1358 + $0x90] sm:$0xf]
        %v1396 = vld [vmem:[%s1358 + $0x94] sm:$0xf]
        %v1397 = vld [vmem:[%s1358 + $0x98] sm:$0xf]
        %v1398 = vld [vmem:[%s1358 + $0x9c] sm:$0xf]
        %v1399 = vld [vmem:[%s1358 + $0xa0] sm:$0xf]
        %v1400 = vld [vmem:[%s1358 + $0xa4] sm:$0xf]
        %v1401 = vld [vmem:[%s1358 + $0xa8] sm:$0xf]
        %v1402 = vld [vmem:[%s1358 + $0xac] sm:$0xf]
        %v1403 = vld [vmem:[%s1358 + $0xb0] sm:$0xf]
        %v1404 = vld [vmem:[%s1358 + $0xb4] sm:$0xf]
        %v1405 = vld [vmem:[%s1358 + $0xb8] sm:$0xf]
        %v1406 = vld [vmem:[%s1358 + $0xbc] sm:$0xf]
        %v1471 = vunpack.c.l.b16 %v1294
        %v1472 = vunpack.c.h.b16 %v1294
        %v1473 = vunpack.c.l.b16 %v1295
        %v1474 = vunpack.c.l.b16 %v1296
        %v1475 = vunpack.c.h.b16 %v1296
        %v1476 = vunpack.c.l.b16 %v1297
        %v1477 = vunpack.c.l.b16 %v1298
        %v1478 = vunpack.c.h.b16 %v1298
        %v1479 = vunpack.c.l.b16 %v1299
        %v1480 = vunpack.c.l.b16 %v1300
        %v1481 = vunpack.c.h.b16 %v1300
        %v1482 = vunpack.c.l.b16 %v1301
        %v1483 = vunpack.c.l.b16 %v1302
        %v1484 = vunpack.c.h.b16 %v1302
        %v1485 = vunpack.c.l.b16 %v1303
        %v1486 = vunpack.c.l.b16 %v1304
        %v1487 = vunpack.c.h.b16 %v1304
        %v1488 = vunpack.c.l.b16 %v1305
        %v1489 = vunpack.c.l.b16 %v1306
        %v1490 = vunpack.c.h.b16 %v1306
        %v1491 = vunpack.c.l.b16 %v1307
        %v1492 = vunpack.c.l.b16 %v1308
        %v1493 = vunpack.c.h.b16 %v1308
        %v1494 = vunpack.c.l.b16 %v1309
        %v1495 = vunpack.c.l.b16 %v1310
        %v1496 = vunpack.c.h.b16 %v1310
        %v1497 = vunpack.c.l.b16 %v1311
        %v1498 = vunpack.c.l.b16 %v1312
        %v1499 = vunpack.c.h.b16 %v1312
        %v1500 = vunpack.c.l.b16 %v1313
        %v1501 = vunpack.c.l.b16 %v1314
        %v1502 = vunpack.c.h.b16 %v1314
        %v1503 = vunpack.c.l.b16 %v1315
        %v1504 = vunpack.c.l.b16 %v1316
        %v1505 = vunpack.c.h.b16 %v1316
        %v1506 = vunpack.c.l.b16 %v1317
        %v1507 = vunpack.c.l.b16 %v1318
        %v1508 = vunpack.c.h.b16 %v1318
        %v1509 = vunpack.c.l.b16 %v1319
        %v1510 = vunpack.c.l.b16 %v1320
        %v1511 = vunpack.c.h.b16 %v1320
        %v1512 = vunpack.c.l.b16 %v1321
        %v1513 = vunpack.c.l.b16 %v1322
        %v1514 = vunpack.c.h.b16 %v1322
        %v1515 = vunpack.c.l.b16 %v1323
        %v1516 = vunpack.c.l.b16 %v1324
        %v1517 = vunpack.c.h.b16 %v1324
        %v1518 = vunpack.c.l.b16 %v1325
        %v1519 = vunpack.c.l.b16 %v1326
        %v1520 = vunpack.c.h.b16 %v1326
        %v1521 = vunpack.c.l.b16 %v1327
        %v1522 = vunpack.c.l.b16 %v1328
        %v1523 = vunpack.c.h.b16 %v1328
        %v1524 = vunpack.c.l.b16 %v1329
        %v1525 = vunpack.c.l.b16 %v1330
        %v1526 = vunpack.c.h.b16 %v1330
        %v1527 = vunpack.c.l.b16 %v1331
        %v1528 = vunpack.c.l.b16 %v1332
        %v1529 = vunpack.c.h.b16 %v1332
        %v1530 = vunpack.c.l.b16 %v1333
        %v1531 = vunpack.c.l.b16 %v1334
        %v1532 = vunpack.c.h.b16 %v1334
        %v1533 = vunpack.c.l.b16 %v1335
        %v1534 = vunpack.c.l.b16 %v1336
        %v1535 = vunpack.c.h.b16 %v1336
        %v1536 = vunpack.c.l.b16 %v1337
        %v1537 = vunpack.c.l.b16 %v1338
        %v1538 = vunpack.c.h.b16 %v1338
        %v1539 = vunpack.c.l.b16 %v1339
        %v1540 = vunpack.c.l.b16 %v1340
        %v1541 = vunpack.c.h.b16 %v1340
        %v1542 = vunpack.c.l.b16 %v1341
        %v1543 = vunpack.c.l.b16 %v1342
        %v1544 = vunpack.c.h.b16 %v1342
        %v1545 = vunpack.c.l.b16 %v1343
        %v1546 = vunpack.c.l.b16 %v1344
        %v1547 = vunpack.c.h.b16 %v1344
        %v1548 = vunpack.c.l.b16 %v1345
        %v1549 = vunpack.c.l.b16 %v1346
        %v1550 = vunpack.c.h.b16 %v1346
        %v1551 = vunpack.c.l.b16 %v1347
        %v1552 = vunpack.c.l.b16 %v1348
        %v1553 = vunpack.c.h.b16 %v1348
        %v1554 = vunpack.c.l.b16 %v1349
        %v1555 = vunpack.c.l.b16 %v1350
        %v1556 = vunpack.c.h.b16 %v1350
        %v1557 = vunpack.c.l.b16 %v1351
        %v1558 = vunpack.c.l.b16 %v1352
        %v1559 = vunpack.c.h.b16 %v1352
        %v1560 = vunpack.c.l.b16 %v1353
        %v1561 = vunpack.c.l.b16 %v1354
        %v1562 = vunpack.c.h.b16 %v1354
        %v1563 = vunpack.c.l.b16 %v1355
        %v1564 = vunpack.c.l.b16 %v1356
        %v1565 = vunpack.c.h.b16 %v1356
        %v1566 = vunpack.c.l.b16 %v1357
        %v1567 = vpack.c.b16 %v1474, %v1471
        %v1568 = vpack.c.b16 %v1475, %v1472
        %v1569 = vpack.c.b16 %v1476, %v1473
        %v1570 = vpack.c.b16 %v1480, %v1477
        %v1571 = vpack.c.b16 %v1481, %v1478
        %v1572 = vpack.c.b16 %v1482, %v1479
        %v1573 = vpack.c.b16 %v1486, %v1483
        %v1574 = vpack.c.b16 %v1487, %v1484
        %v1575 = vpack.c.b16 %v1488, %v1485
        %v1576 = vpack.c.b16 %v1492, %v1489
        %v1577 = vpack.c.b16 %v1493, %v1490
        %v1578 = vpack.c.b16 %v1494, %v1491
        %v1579 = vpack.c.b16 %v1498, %v1495
        %v1580 = vpack.c.b16 %v1499, %v1496
        %v1581 = vpack.c.b16 %v1500, %v1497
        %v1582 = vpack.c.b16 %v1504, %v1501
        %v1583 = vpack.c.b16 %v1505, %v1502
        %v1584 = vpack.c.b16 %v1506, %v1503
        %v1585 = vpack.c.b16 %v1510, %v1507
        %v1586 = vpack.c.b16 %v1511, %v1508
        %v1587 = vpack.c.b16 %v1512, %v1509
        %v1588 = vpack.c.b16 %v1516, %v1513
        %v1589 = vpack.c.b16 %v1517, %v1514
        %v1590 = vpack.c.b16 %v1518, %v1515
        %v1591 = vpack.c.b16 %v1522, %v1519
        %v1592 = vpack.c.b16 %v1523, %v1520
        %v1593 = vpack.c.b16 %v1524, %v1521
        %v1594 = vpack.c.b16 %v1528, %v1525
        %v1595 = vpack.c.b16 %v1529, %v1526
        %v1596 = vpack.c.b16 %v1530, %v1527
        %v1597 = vpack.c.b16 %v1534, %v1531
        %v1598 = vpack.c.b16 %v1535, %v1532
        %v1599 = vpack.c.b16 %v1536, %v1533
        %v1600 = vpack.c.b16 %v1540, %v1537
        %v1601 = vpack.c.b16 %v1541, %v1538
        %v1602 = vpack.c.b16 %v1542, %v1539
        %v1603 = vpack.c.b16 %v1546, %v1543
        %v1604 = vpack.c.b16 %v1547, %v1544
        %v1605 = vpack.c.b16 %v1548, %v1545
        %v1606 = vpack.c.b16 %v1552, %v1549
        %v1607 = vpack.c.b16 %v1553, %v1550
        %v1608 = vpack.c.b16 %v1554, %v1551
        %v1609 = vpack.c.b16 %v1558, %v1555
        %v1610 = vpack.c.b16 %v1559, %v1556
        %v1611 = vpack.c.b16 %v1560, %v1557
        %v1612 = vpack.c.b16 %v1564, %v1561
        %v1613 = vpack.c.b16 %v1565, %v1562
        %v1614 = vpack.c.b16 %v1566, %v1563
        %v1711 = vunpack.c.l.b16 %v1359
        %v1712 = vunpack.c.l.b16 %v1360
        %v1713 = vunpack.c.l.b16 %v1361
        %v1714 = vunpack.c.l.b16 %v1362
        %v1715 = vunpack.c.l.b16 %v1363
        %v1716 = vunpack.c.l.b16 %v1364
        %v1717 = vunpack.c.l.b16 %v1365
        %v1718 = vunpack.c.l.b16 %v1366
        %v1719 = vunpack.c.l.b16 %v1367
        %v1720 = vunpack.c.l.b16 %v1368
        %v1721 = vunpack.c.l.b16 %v1369
        %v1722 = vunpack.c.l.b16 %v1370
        %v1723 = vunpack.c.l.b16 %v1371
        %v1724 = vunpack.c.l.b16 %v1372
        %v1725 = vunpack.c.l.b16 %v1373
        %v1726 = vunpack.c.l.b16 %v1374
        %v1727 = vunpack.c.l.b16 %v1375
        %v1728 = vunpack.c.l.b16 %v1376
        %v1729 = vunpack.c.l.b16 %v1377
        %v1730 = vunpack.c.l.b16 %v1378
        %v1731 = vunpack.c.l.b16 %v1379
        %v1732 = vunpack.c.l.b16 %v1380
        %v1733 = vunpack.c.l.b16 %v1381
        %v1734 = vunpack.c.l.b16 %v1382
        %v1735 = vunpack.c.l.b16 %v1383
        %v1736 = vunpack.c.l.b16 %v1384
        %v1737 = vunpack.c.l.b16 %v1385
        %v1738 = vunpack.c.l.b16 %v1386
        %v1739 = vunpack.c.l.b16 %v1387
        %v1740 = vunpack.c.l.b16 %v1388
        %v1741 = vunpack.c.l.b16 %v1389
        %v1742 = vunpack.c.l.b16 %v1390
        %v1743 = vunpack.c.l.b16 %v1391
        %v1744 = vunpack.c.l.b16 %v1392
        %v1745 = vunpack.c.l.b16 %v1393
        %v1746 = vunpack.c.l.b16 %v1394
        %v1747 = vunpack.c.l.b16 %v1395
        %v1748 = vunpack.c.l.b16 %v1396
        %v1749 = vunpack.c.l.b16 %v1397
        %v1750 = vunpack.c.l.b16 %v1398
        %v1751 = vunpack.c.l.b16 %v1399
        %v1752 = vunpack.c.l.b16 %v1400
        %v1753 = vunpack.c.l.b16 %v1401
        %v1754 = vunpack.c.l.b16 %v1402
        %v1755 = vunpack.c.l.b16 %v1403
        %v1756 = vunpack.c.l.b16 %v1404
        %v1757 = vunpack.c.l.b16 %v1405
        %v1758 = vunpack.c.l.b16 %v1406
        %v1759 = vpack.c.b16 %v1712, %v1711
        %v1760 = vpack.c.b16 %v1714, %v1713
        %v1761 = vpack.c.b16 %v1716, %v1715
        %v1762 = vpack.c.b16 %v1718, %v1717
        %v1763 = vpack.c.b16 %v1720, %v1719
        %v1764 = vpack.c.b16 %v1722, %v1721
        %v1765 = vpack.c.b16 %v1724, %v1723
        %v1766 = vpack.c.b16 %v1726, %v1725
        %v1767 = vpack.c.b16 %v1728, %v1727
        %v1768 = vpack.c.b16 %v1730, %v1729
        %v1769 = vpack.c.b16 %v1732, %v1731
        %v1770 = vpack.c.b16 %v1734, %v1733
        %v1771 = vpack.c.b16 %v1736, %v1735
        %v1772 = vpack.c.b16 %v1738, %v1737
        %v1773 = vpack.c.b16 %v1740, %v1739
        %v1774 = vpack.c.b16 %v1742, %v1741
        %v1775 = vpack.c.b16 %v1744, %v1743
        %v1776 = vpack.c.b16 %v1746, %v1745
        %v1777 = vpack.c.b16 %v1748, %v1747
        %v1778 = vpack.c.b16 %v1750, %v1749
        %v1779 = vpack.c.b16 %v1752, %v1751
        %v1780 = vpack.c.b16 %v1754, %v1753
        %v1781 = vpack.c.b16 %v1756, %v1755
        %v1782 = vpack.c.b16 %v1758, %v1757
        %1807 = vmatprep.subr.bf16.mxu0 0
        %1808 = vmatpush1.bf16.msra.mxu0 %v1766
        %1809 = vmatprep.subr.bf16.mxu0 0
        %1810 = vmatpush1.bf16.msra.mxu0 %v1765
        %1811 = vmatprep.subr.bf16.mxu0 0
        %1812 = vmatpush1.bf16.msra.mxu0 %v1764
        %1813 = vmatprep.subr.bf16.mxu0 0
        %1814 = vmatpush1.bf16.msra.mxu0 %v1763
        %1815 = vmatprep.subr.bf16.mxu0 0
        %1816 = vmatpush1.bf16.msra.mxu0 %v1762
        %1817 = vmatprep.subr.bf16.mxu0 0
        %1818 = vmatpush1.bf16.msra.mxu0 %v1761
        %1819 = vmatprep.subr.bf16.mxu0 0
        %1820 = vmatpush1.bf16.msra.mxu0 %v1760
        %1821 = vmatprep.subr.bf16.mxu0 0
        %1822 = vmatpush1.bf16.msra.mxu0 %v1759
        %1823 = vmatprep.subr.bf16.mxu0 0
        %1824 = vmatpush2.bf16.msra.mxu0 %v1774
        %1825 = vmatprep.subr.bf16.mxu0 0
        %1826 = vmatpush2.bf16.msra.mxu0 %v1773
        %1827 = vmatprep.subr.bf16.mxu0 0
        %1828 = vmatpush2.bf16.msra.mxu0 %v1772
        %1829 = vmatprep.subr.bf16.mxu0 0
        %1830 = vmatpush2.bf16.msra.mxu0 %v1771
        %1831 = vmatprep.subr.bf16.mxu0 0
        %1832 = vmatpush2.bf16.msra.mxu0 %v1770
        %1833 = vmatprep.subr.bf16.mxu0 0
        %1834 = vmatpush2.bf16.msra.mxu0 %v1769
        %1835 = vmatprep.subr.bf16.mxu0 0
        %1836 = vmatpush2.bf16.msra.mxu0 %v1768
        %1837 = vmatprep.subr.bf16.mxu0 0
        %1838 = vmatpush2.bf16.msra.mxu0 %v1767
        %1839 = vmatprep.mubr.bf16.mxu0 %v1568
        %1840 = vmatmul.mubr.bf16.gmra.mxu0 %v1567
        %v1841 = vpop.f32.mrf.mxu0
        %v1842 = vadd.f32 0.0, %v1841
        %v1843 = vpop.f32.mrf.mxu0
        %v1844 = vpop.f32.mrf.mxu0
        %v1845 = vadd.f32 0.0, %v1844
        %v1846 = vpop.f32.mrf.mxu0
        %1847 = vmatprep.mubr.bf16.mxu0 %v1571
        %1848 = vmatmul.mubr.bf16.gmra.mxu0 %v1570
        %v1849 = vpop.f32.mrf.mxu0
        %v1850 = vadd.f32 0.0, %v1849
        %v1851 = vpop.f32.mrf.mxu0
        %v1852 = vpop.f32.mrf.mxu0
        %v1853 = vadd.f32 0.0, %v1852
        %v1854 = vpop.f32.mrf.mxu0
        %1855 = vmatprep.mubr.bf16.mxu0 %v1574
        %1856 = vmatmul.mubr.bf16.gmra.mxu0 %v1573
        %v1857 = vpop.f32.mrf.mxu0
        %v1858 = vadd.f32 0.0, %v1857
        %v1859 = vpop.f32.mrf.mxu0
        %v1860 = vpop.f32.mrf.mxu0
        %v1861 = vadd.f32 0.0, %v1860
        %v1862 = vpop.f32.mrf.mxu0
        %1863 = vmatprep.mubr.bf16.mxu0 %v1577
        %1864 = vmatmul.mubr.bf16.gmra.mxu0 %v1576
        %v1865 = vpop.f32.mrf.mxu0
        %v1866 = vadd.f32 0.0, %v1865
        %v1867 = vpop.f32.mrf.mxu0
        %v1868 = vpop.f32.mrf.mxu0
        %v1869 = vadd.f32 0.0, %v1868
        %v1870 = vpop.f32.mrf.mxu0
        %1871 = vmatprep.mubr.bf16.mxu0 %v1580
        %1872 = vmatmul.mubr.bf16.gmra.mxu0 %v1579
        %v1873 = vpop.f32.mrf.mxu0
        %v1874 = vadd.f32 0.0, %v1873
        %v1875 = vpop.f32.mrf.mxu0
        %v1876 = vpop.f32.mrf.mxu0
        %v1877 = vadd.f32 0.0, %v1876
        %v1878 = vpop.f32.mrf.mxu0
        %1879 = vmatprep.mubr.bf16.mxu0 %v1583
        %1880 = vmatmul.mubr.bf16.gmra.mxu0 %v1582
        %v1881 = vpop.f32.mrf.mxu0
        %v1882 = vadd.f32 0.0, %v1881
        %v1883 = vpop.f32.mrf.mxu0
        %v1884 = vpop.f32.mrf.mxu0
        %v1885 = vadd.f32 0.0, %v1884
        %v1886 = vpop.f32.mrf.mxu0
        %1887 = vmatprep.mubr.bf16.mxu0 %v1586
        %1888 = vmatmul.mubr.bf16.gmra.mxu0 %v1585
        %v1889 = vpop.f32.mrf.mxu0
        %v1890 = vadd.f32 0.0, %v1889
        %v1891 = vpop.f32.mrf.mxu0
        %v1892 = vpop.f32.mrf.mxu0
        %v1893 = vadd.f32 0.0, %v1892
        %v1894 = vpop.f32.mrf.mxu0
        %1895 = vmatprep.mubr.bf16.mxu0 %v1589
        %1896 = vmatmul.mubr.bf16.gmra.mxu0 %v1588
        %v1897 = vpop.f32.mrf.mxu0
        %v1898 = vadd.f32 0.0, %v1897
        %v1899 = vpop.f32.mrf.mxu0
        %v1900 = vpop.f32.mrf.mxu0
        %v1901 = vadd.f32 0.0, %v1900
        %v1902 = vpop.f32.mrf.mxu0
        %1903 = vmatprep.mubr.bf16.mxu0 %v1592
        %1904 = vmatmul.mubr.bf16.gmra.mxu0 %v1591
        %v1905 = vpop.f32.mrf.mxu0
        %v1906 = vadd.f32 0.0, %v1905
        %v1907 = vpop.f32.mrf.mxu0
        %v1908 = vpop.f32.mrf.mxu0
        %v1909 = vadd.f32 0.0, %v1908
        %v1910 = vpop.f32.mrf.mxu0
        %1911 = vmatprep.mubr.bf16.mxu0 %v1595
        %1912 = vmatmul.mubr.bf16.gmra.mxu0 %v1594
        %v1913 = vpop.f32.mrf.mxu0
        %v1914 = vadd.f32 0.0, %v1913
        %v1915 = vpop.f32.mrf.mxu0
        %v1916 = vpop.f32.mrf.mxu0
        %v1917 = vadd.f32 0.0, %v1916
        %v1918 = vpop.f32.mrf.mxu0
        %1919 = vmatprep.mubr.bf16.mxu0 %v1598
        %1920 = vmatmul.mubr.bf16.gmra.mxu0 %v1597
        %v1921 = vpop.f32.mrf.mxu0
        %v1922 = vadd.f32 0.0, %v1921
        %v1923 = vpop.f32.mrf.mxu0
        %v1924 = vpop.f32.mrf.mxu0
        %v1925 = vadd.f32 0.0, %v1924
        %v1926 = vpop.f32.mrf.mxu0
        %1927 = vmatprep.mubr.bf16.mxu0 %v1601
        %1928 = vmatmul.mubr.bf16.gmra.mxu0 %v1600
        %v1929 = vpop.f32.mrf.mxu0
        %v1930 = vadd.f32 0.0, %v1929
        %v1931 = vpop.f32.mrf.mxu0
        %v1932 = vpop.f32.mrf.mxu0
        %v1933 = vadd.f32 0.0, %v1932
        %v1934 = vpop.f32.mrf.mxu0
        %1935 = vmatprep.mubr.bf16.mxu0 %v1604
        %1936 = vmatmul.mubr.bf16.gmra.mxu0 %v1603
        %v1937 = vpop.f32.mrf.mxu0
        %v1938 = vadd.f32 0.0, %v1937
        %v1939 = vpop.f32.mrf.mxu0
        %v1940 = vpop.f32.mrf.mxu0
        %v1941 = vadd.f32 0.0, %v1940
        %v1942 = vpop.f32.mrf.mxu0
        %1943 = vmatprep.mubr.bf16.mxu0 %v1607
        %1944 = vmatmul.mubr.bf16.gmra.mxu0 %v1606
        %v1945 = vpop.f32.mrf.mxu0
        %v1946 = vadd.f32 0.0, %v1945
        %v1947 = vpop.f32.mrf.mxu0
        %v1948 = vpop.f32.mrf.mxu0
        %v1949 = vadd.f32 0.0, %v1948
        %v1950 = vpop.f32.mrf.mxu0
        %1951 = vmatprep.mubr.bf16.mxu0 %v1610
        %1952 = vmatmul.mubr.bf16.gmra.mxu0 %v1609
        %v1953 = vpop.f32.mrf.mxu0
        %v1954 = vadd.f32 0.0, %v1953
        %v1955 = vpop.f32.mrf.mxu0
        %v1956 = vpop.f32.mrf.mxu0
        %v1957 = vadd.f32 0.0, %v1956
        %v1958 = vpop.f32.mrf.mxu0
        %1959 = vmatprep.mubr.bf16.mxu0 %v1613
        %1960 = vmatmul.mubr.bf16.gmra.mxu0 %v1612
        %v1961 = vpop.f32.mrf.mxu0
        %v1962 = vadd.f32 0.0, %v1961
        %v1963 = vpop.f32.mrf.mxu0
        %v1964 = vpop.f32.mrf.mxu0
        %v1965 = vadd.f32 0.0, %v1964
        %v1966 = vpop.f32.mrf.mxu0
        %1967 = vdwg.mxu0
        %1968 = vmatprep.subr.bf16.mxu0 0
        %1969 = vmatpush1.bf16.msra.mxu0 %v1782
        %1970 = vmatprep.subr.bf16.mxu0 0
        %1971 = vmatpush1.bf16.msra.mxu0 %v1781
        %1972 = vmatprep.subr.bf16.mxu0 0
        %1973 = vmatpush1.bf16.msra.mxu0 %v1780
        %1974 = vmatprep.subr.bf16.mxu0 0
        %1975 = vmatpush1.bf16.msra.mxu0 %v1779
        %1976 = vmatprep.subr.bf16.mxu0 0
        %1977 = vmatpush1.bf16.msra.mxu0 %v1778
        %1978 = vmatprep.subr.bf16.mxu0 0
        %1979 = vmatpush1.bf16.msra.mxu0 %v1777
        %1980 = vmatprep.subr.bf16.mxu0 0
        %1981 = vmatpush1.bf16.msra.mxu0 %v1776
        %1982 = vmatprep.subr.bf16.mxu0 0
        %1983 = vmatpush1.bf16.msra.mxu0 %v1775
        %1984 = vmatprep.subr.bf16.mxu0 0
        %1985 = vmatpush2.bf16.msra.mxu0 0
        %1986 = vmatprep.subr.bf16.mxu0 0
        %1987 = vmatpush2.bf16.msra.mxu0 0
        %1988 = vmatprep.subr.bf16.mxu0 0
        %1989 = vmatpush2.bf16.msra.mxu0 0
        %1990 = vmatprep.subr.bf16.mxu0 0
        %1991 = vmatpush2.bf16.msra.mxu0 0
        %1992 = vmatprep.subr.bf16.mxu0 0
        %1993 = vmatpush2.bf16.msra.mxu0 0
        %1994 = vmatprep.subr.bf16.mxu0 0
        %1995 = vmatpush2.bf16.msra.mxu0 0
        %1996 = vmatprep.subr.bf16.mxu0 0
        %1997 = vmatpush2.bf16.msra.mxu0 0
        %1998 = vmatprep.subr.bf16.mxu0 0
        %1999 = vmatpush2.bf16.msra.mxu0 0
        %2000 = vmatprep.mubr.bf16.mxu0 0
        %2001 = vmatmul.mubr.bf16.gmra.mxu0 %v1569
        %v2002 = vpop.f32.mrf.mxu0
        %v2003 = vadd.f32 %v1842, %v2002
        %v2004 = vpop.f32.mrf.mxu0
        %v2005 = vpop.f32.mrf.mxu0
        %v2006 = vadd.f32 %v1845, %v2005
        %v2007 = vpop.f32.mrf.mxu0
        %2008 = vmatprep.mubr.bf16.mxu0 0
        %2009 = vmatmul.mubr.bf16.gmra.mxu0 %v1572
        %v2010 = vpop.f32.mrf.mxu0
        %v2011 = vadd.f32 %v1850, %v2010
        %v2012 = vpop.f32.mrf.mxu0
        %v2013 = vpop.f32.mrf.mxu0
        %v2014 = vadd.f32 %v1853, %v2013
        %v2015 = vpop.f32.mrf.mxu0
        %2016 = vmatprep.mubr.bf16.mxu0 0
        %2017 = vmatmul.mubr.bf16.gmra.mxu0 %v1575
        %v2018 = vpop.f32.mrf.mxu0
        %v2019 = vadd.f32 %v1858, %v2018
        %v2020 = vpop.f32.mrf.mxu0
        %v2021 = vpop.f32.mrf.mxu0
        %v2022 = vadd.f32 %v1861, %v2021
        %v2023 = vpop.f32.mrf.mxu0
        %2024 = vmatprep.mubr.bf16.mxu0 0
        %2025 = vmatmul.mubr.bf16.gmra.mxu0 %v1578
        %v2026 = vpop.f32.mrf.mxu0
        %v2027 = vadd.f32 %v1866, %v2026
        %v2028 = vpop.f32.mrf.mxu0
        %v2029 = vpop.f32.mrf.mxu0
        %v2030 = vadd.f32 %v1869, %v2029
        %v2031 = vpop.f32.mrf.mxu0
        %2032 = vmatprep.mubr.bf16.mxu0 0
        %2033 = vmatmul.mubr.bf16.gmra.mxu0 %v1581
        %v2034 = vpop.f32.mrf.mxu0
        %v2035 = vadd.f32 %v1874, %v2034
        %v2036 = vpop.f32.mrf.mxu0
        %v2037 = vpop.f32.mrf.mxu0
        %v2038 = vadd.f32 %v1877, %v2037
        %v2039 = vpop.f32.mrf.mxu0
        %2040 = vmatprep.mubr.bf16.mxu0 0
        %2041 = vmatmul.mubr.bf16.gmra.mxu0 %v1584
        %v2042 = vpop.f32.mrf.mxu0
        %v2043 = vadd.f32 %v1882, %v2042
        %v2044 = vpop.f32.mrf.mxu0
        %v2045 = vpop.f32.mrf.mxu0
        %v2046 = vadd.f32 %v1885, %v2045
        %v2047 = vpop.f32.mrf.mxu0
        %2048 = vmatprep.mubr.bf16.mxu0 0
        %2049 = vmatmul.mubr.bf16.gmra.mxu0 %v1587
        %v2050 = vpop.f32.mrf.mxu0
        %v2051 = vadd.f32 %v1890, %v2050
        %v2052 = vpop.f32.mrf.mxu0
        %v2053 = vpop.f32.mrf.mxu0
        %v2054 = vadd.f32 %v1893, %v2053
        %v2055 = vpop.f32.mrf.mxu0
        %2056 = vmatprep.mubr.bf16.mxu0 0
        %2057 = vmatmul.mubr.bf16.gmra.mxu0 %v1590
        %v2058 = vpop.f32.mrf.mxu0
        %v2059 = vadd.f32 %v1898, %v2058
        %v2060 = vpop.f32.mrf.mxu0
        %v2061 = vpop.f32.mrf.mxu0
        %v2062 = vadd.f32 %v1901, %v2061
        %v2063 = vpop.f32.mrf.mxu0
        %2064 = vmatprep.mubr.bf16.mxu0 0
        %2065 = vmatmul.mubr.bf16.gmra.mxu0 %v1593
        %v2066 = vpop.f32.mrf.mxu0
        %v2067 = vadd.f32 %v1906, %v2066
        %v2068 = vpop.f32.mrf.mxu0
        %v2069 = vpop.f32.mrf.mxu0
        %v2070 = vadd.f32 %v1909, %v2069
        %v2071 = vpop.f32.mrf.mxu0
        %2072 = vmatprep.mubr.bf16.mxu0 0
        %2073 = vmatmul.mubr.bf16.gmra.mxu0 %v1596
        %v2074 = vpop.f32.mrf.mxu0
        %v2075 = vadd.f32 %v1914, %v2074
        %v2076 = vpop.f32.mrf.mxu0
        %v2077 = vpop.f32.mrf.mxu0
        %v2078 = vadd.f32 %v1917, %v2077
        %v2079 = vpop.f32.mrf.mxu0
        %2080 = vmatprep.mubr.bf16.mxu0 0
        %2081 = vmatmul.mubr.bf16.gmra.mxu0 %v1599
        %v2082 = vpop.f32.mrf.mxu0
        %v2083 = vadd.f32 %v1922, %v2082
        %v2084 = vpop.f32.mrf.mxu0
        %v2085 = vpop.f32.mrf.mxu0
        %v2086 = vadd.f32 %v1925, %v2085
        %v2087 = vpop.f32.mrf.mxu0
        %2088 = vmatprep.mubr.bf16.mxu0 0
        %2089 = vmatmul.mubr.bf16.gmra.mxu0 %v1602
        %v2090 = vpop.f32.mrf.mxu0
        %v2091 = vadd.f32 %v1930, %v2090
        %v2092 = vpop.f32.mrf.mxu0
        %v2093 = vpop.f32.mrf.mxu0
        %v2094 = vadd.f32 %v1933, %v2093
        %v2095 = vpop.f32.mrf.mxu0
        %2096 = vmatprep.mubr.bf16.mxu0 0
        %2097 = vmatmul.mubr.bf16.gmra.mxu0 %v1605
        %v2098 = vpop.f32.mrf.mxu0
        %v2099 = vadd.f32 %v1938, %v2098
        %v2100 = vpop.f32.mrf.mxu0
        %v2101 = vpop.f32.mrf.mxu0
        %v2102 = vadd.f32 %v1941, %v2101
        %v2103 = vpop.f32.mrf.mxu0
        %2104 = vmatprep.mubr.bf16.mxu0 0
        %2105 = vmatmul.mubr.bf16.gmra.mxu0 %v1608
        %v2106 = vpop.f32.mrf.mxu0
        %v2107 = vadd.f32 %v1946, %v2106
        %v2108 = vpop.f32.mrf.mxu0
        %v2109 = vpop.f32.mrf.mxu0
        %v2110 = vadd.f32 %v1949, %v2109
        %v2111 = vpop.f32.mrf.mxu0
        %2112 = vmatprep.mubr.bf16.mxu0 0
        %2113 = vmatmul.mubr.bf16.gmra.mxu0 %v1611
        %v2114 = vpop.f32.mrf.mxu0
        %v2115 = vadd.f32 %v1954, %v2114
        %v2116 = vpop.f32.mrf.mxu0
        %v2117 = vpop.f32.mrf.mxu0
        %v2118 = vadd.f32 %v1957, %v2117
        %v2119 = vpop.f32.mrf.mxu0
        %2120 = vmatprep.mubr.bf16.mxu0 0
        %2121 = vmatmul.mubr.bf16.gmra.mxu0 %v1614
        %v2122 = vpop.f32.mrf.mxu0
        %v2123 = vadd.f32 %v1962, %v2122
        %v2124 = vpop.f32.mrf.mxu0
        %v2125 = vpop.f32.mrf.mxu0
        %v2126 = vadd.f32 %v1965, %v2125
        %v2127 = vpop.f32.mrf.mxu0
        %2128 = vdwg.mxu0
        %v2193 = vunpack.c.l.b16 %v1182
        %v2194 = vunpack.c.h.b16 %v1182
        %v2195 = vunpack.c.l.b16 %v1183
        %v2196 = vunpack.c.l.b16 %v1184
        %v2197 = vunpack.c.h.b16 %v1184
        %v2198 = vunpack.c.l.b16 %v1185
        %v2199 = vunpack.c.l.b16 %v1186
        %v2200 = vunpack.c.h.b16 %v1186
        %v2201 = vunpack.c.l.b16 %v1187
        %v2202 = vunpack.c.l.b16 %v1188
        %v2203 = vunpack.c.h.b16 %v1188
        %v2204 = vunpack.c.l.b16 %v1189
        %v2205 = vunpack.c.l.b16 %v1190
        %v2206 = vunpack.c.h.b16 %v1190
        %v2207 = vunpack.c.l.b16 %v1191
        %v2208 = vunpack.c.l.b16 %v1192
        %v2209 = vunpack.c.h.b16 %v1192
        %v2210 = vunpack.c.l.b16 %v1193
        %v2211 = vunpack.c.l.b16 %v1194
        %v2212 = vunpack.c.h.b16 %v1194
        %v2213 = vunpack.c.l.b16 %v1195
        %v2214 = vunpack.c.l.b16 %v1196
        %v2215 = vunpack.c.h.b16 %v1196
        %v2216 = vunpack.c.l.b16 %v1197
        %v2217 = vunpack.c.l.b16 %v1198
        %v2218 = vunpack.c.h.b16 %v1198
        %v2219 = vunpack.c.l.b16 %v1199
        %v2220 = vunpack.c.l.b16 %v1200
        %v2221 = vunpack.c.h.b16 %v1200
        %v2222 = vunpack.c.l.b16 %v1201
        %v2223 = vunpack.c.l.b16 %v1202
        %v2224 = vunpack.c.h.b16 %v1202
        %v2225 = vunpack.c.l.b16 %v1203
        %v2226 = vunpack.c.l.b16 %v1204
        %v2227 = vunpack.c.h.b16 %v1204
        %v2228 = vunpack.c.l.b16 %v1205
        %v2229 = vunpack.c.l.b16 %v1206
        %v2230 = vunpack.c.h.b16 %v1206
        %v2231 = vunpack.c.l.b16 %v1207
        %v2232 = vunpack.c.l.b16 %v1208
        %v2233 = vunpack.c.h.b16 %v1208
        %v2234 = vunpack.c.l.b16 %v1209
        %v2235 = vunpack.c.l.b16 %v1210
        %v2236 = vunpack.c.h.b16 %v1210
        %v2237 = vunpack.c.l.b16 %v1211
        %v2238 = vunpack.c.l.b16 %v1212
        %v2239 = vunpack.c.h.b16 %v1212
        %v2240 = vunpack.c.l.b16 %v1213
        %v2241 = vunpack.c.l.b16 %v1214
        %v2242 = vunpack.c.h.b16 %v1214
        %v2243 = vunpack.c.l.b16 %v1215
        %v2244 = vunpack.c.l.b16 %v1216
        %v2245 = vunpack.c.h.b16 %v1216
        %v2246 = vunpack.c.l.b16 %v1217
        %v2247 = vunpack.c.l.b16 %v1218
        %v2248 = vunpack.c.h.b16 %v1218
        %v2249 = vunpack.c.l.b16 %v1219
        %v2250 = vunpack.c.l.b16 %v1220
        %v2251 = vunpack.c.h.b16 %v1220
        %v2252 = vunpack.c.l.b16 %v1221
        %v2253 = vunpack.c.l.b16 %v1222
        %v2254 = vunpack.c.h.b16 %v1222
        %v2255 = vunpack.c.l.b16 %v1223
        %v2256 = vunpack.c.l.b16 %v1224
        %v2257 = vunpack.c.h.b16 %v1224
        %v2258 = vunpack.c.l.b16 %v1225
        %v2259 = vunpack.c.l.b16 %v1226
        %v2260 = vunpack.c.h.b16 %v1226
        %v2261 = vunpack.c.l.b16 %v1227
        %v2262 = vunpack.c.l.b16 %v1228
        %v2263 = vunpack.c.h.b16 %v1228
        %v2264 = vunpack.c.l.b16 %v1229
        %v2265 = vunpack.c.l.b16 %v1230
        %v2266 = vunpack.c.h.b16 %v1230
        %v2267 = vunpack.c.l.b16 %v1231
        %v2268 = vunpack.c.l.b16 %v1232
        %v2269 = vunpack.c.h.b16 %v1232
        %v2270 = vunpack.c.l.b16 %v1233
        %v2271 = vunpack.c.l.b16 %v1234
        %v2272 = vunpack.c.h.b16 %v1234
        %v2273 = vunpack.c.l.b16 %v1235
        %v2274 = vunpack.c.l.b16 %v1236
        %v2275 = vunpack.c.h.b16 %v1236
        %v2276 = vunpack.c.l.b16 %v1237
        %v2277 = vunpack.c.l.b16 %v1238
        %v2278 = vunpack.c.h.b16 %v1238
        %v2279 = vunpack.c.l.b16 %v1239
        %v2280 = vunpack.c.l.b16 %v1240
        %v2281 = vunpack.c.h.b16 %v1240
        %v2282 = vunpack.c.l.b16 %v1241
        %v2283 = vunpack.c.l.b16 %v1242
        %v2284 = vunpack.c.h.b16 %v1242
        %v2285 = vunpack.c.l.b16 %v1243
        %v2286 = vunpack.c.l.b16 %v1244
        %v2287 = vunpack.c.h.b16 %v1244
        %v2288 = vunpack.c.l.b16 %v1245
        %v2289 = vpack.c.b16 %v2196, %v2193
        %v2290 = vpack.c.b16 %v2197, %v2194
        %v2291 = vpack.c.b16 %v2198, %v2195
        %v2292 = vpack.c.b16 %v2202, %v2199
        %v2293 = vpack.c.b16 %v2203, %v2200
        %v2294 = vpack.c.b16 %v2204, %v2201
        %v2295 = vpack.c.b16 %v2208, %v2205
        %v2296 = vpack.c.b16 %v2209, %v2206
        %v2297 = vpack.c.b16 %v2210, %v2207
        %v2298 = vpack.c.b16 %v2214, %v2211
        %v2299 = vpack.c.b16 %v2215, %v2212
        %v2300 = vpack.c.b16 %v2216, %v2213
        %v2301 = vpack.c.b16 %v2220, %v2217
        %v2302 = vpack.c.b16 %v2221, %v2218
        %v2303 = vpack.c.b16 %v2222, %v2219
        %v2304 = vpack.c.b16 %v2226, %v2223
        %v2305 = vpack.c.b16 %v2227, %v2224
        %v2306 = vpack.c.b16 %v2228, %v2225
        %v2307 = vpack.c.b16 %v2232, %v2229
        %v2308 = vpack.c.b16 %v2233, %v2230
        %v2309 = vpack.c.b16 %v2234, %v2231
        %v2310 = vpack.c.b16 %v2238, %v2235
        %v2311 = vpack.c.b16 %v2239, %v2236
        %v2312 = vpack.c.b16 %v2240, %v2237
        %v2313 = vpack.c.b16 %v2244, %v2241
        %v2314 = vpack.c.b16 %v2245, %v2242
        %v2315 = vpack.c.b16 %v2246, %v2243
        %v2316 = vpack.c.b16 %v2250, %v2247
        %v2317 = vpack.c.b16 %v2251, %v2248
        %v2318 = vpack.c.b16 %v2252, %v2249
        %v2319 = vpack.c.b16 %v2256, %v2253
        %v2320 = vpack.c.b16 %v2257, %v2254
        %v2321 = vpack.c.b16 %v2258, %v2255
        %v2322 = vpack.c.b16 %v2262, %v2259
        %v2323 = vpack.c.b16 %v2263, %v2260
        %v2324 = vpack.c.b16 %v2264, %v2261
        %v2325 = vpack.c.b16 %v2268, %v2265
        %v2326 = vpack.c.b16 %v2269, %v2266
        %v2327 = vpack.c.b16 %v2270, %v2267
        %v2328 = vpack.c.b16 %v2274, %v2271
        %v2329 = vpack.c.b16 %v2275, %v2272
        %v2330 = vpack.c.b16 %v2276, %v2273
        %v2331 = vpack.c.b16 %v2280, %v2277
        %v2332 = vpack.c.b16 %v2281, %v2278
        %v2333 = vpack.c.b16 %v2282, %v2279
        %v2334 = vpack.c.b16 %v2286, %v2283
        %v2335 = vpack.c.b16 %v2287, %v2284
        %v2336 = vpack.c.b16 %v2288, %v2285
        %v2433 = vunpack.c.l.b16 %v1246
        %v2434 = vunpack.c.l.b16 %v1247
        %v2435 = vunpack.c.l.b16 %v1248
        %v2436 = vunpack.c.l.b16 %v1249
        %v2437 = vunpack.c.l.b16 %v1250
        %v2438 = vunpack.c.l.b16 %v1251
        %v2439 = vunpack.c.l.b16 %v1252
        %v2440 = vunpack.c.l.b16 %v1253
        %v2441 = vunpack.c.l.b16 %v1254
        %v2442 = vunpack.c.l.b16 %v1255
        %v2443 = vunpack.c.l.b16 %v1256
        %v2444 = vunpack.c.l.b16 %v1257
        %v2445 = vunpack.c.l.b16 %v1258
        %v2446 = vunpack.c.l.b16 %v1259
        %v2447 = vunpack.c.l.b16 %v1260
        %v2448 = vunpack.c.l.b16 %v1261
        %v2449 = vunpack.c.l.b16 %v1262
        %v2450 = vunpack.c.l.b16 %v1263
        %v2451 = vunpack.c.l.b16 %v1264
        %v2452 = vunpack.c.l.b16 %v1265
        %v2453 = vunpack.c.l.b16 %v1266
        %v2454 = vunpack.c.l.b16 %v1267
        %v2455 = vunpack.c.l.b16 %v1268
        %v2456 = vunpack.c.l.b16 %v1269
        %v2457 = vunpack.c.l.b16 %v1270
        %v2458 = vunpack.c.l.b16 %v1271
        %v2459 = vunpack.c.l.b16 %v1272
        %v2460 = vunpack.c.l.b16 %v1273
        %v2461 = vunpack.c.l.b16 %v1274
        %v2462 = vunpack.c.l.b16 %v1275
        %v2463 = vunpack.c.l.b16 %v1276
        %v2464 = vunpack.c.l.b16 %v1277
        %v2465 = vunpack.c.l.b16 %v1278
        %v2466 = vunpack.c.l.b16 %v1279
        %v2467 = vunpack.c.l.b16 %v1280
        %v2468 = vunpack.c.l.b16 %v1281
        %v2469 = vunpack.c.l.b16 %v1282
        %v2470 = vunpack.c.l.b16 %v1283
        %v2471 = vunpack.c.l.b16 %v1284
        %v2472 = vunpack.c.l.b16 %v1285
        %v2473 = vunpack.c.l.b16 %v1286
        %v2474 = vunpack.c.l.b16 %v1287
        %v2475 = vunpack.c.l.b16 %v1288
        %v2476 = vunpack.c.l.b16 %v1289
        %v2477 = vunpack.c.l.b16 %v1290
        %v2478 = vunpack.c.l.b16 %v1291
        %v2479 = vunpack.c.l.b16 %v1292
        %v2480 = vunpack.c.l.b16 %v1293
        %v2481 = vpack.c.b16 %v2434, %v2433
        %v2482 = vpack.c.b16 %v2436, %v2435
        %v2483 = vpack.c.b16 %v2438, %v2437
        %v2484 = vpack.c.b16 %v2440, %v2439
        %v2485 = vpack.c.b16 %v2442, %v2441
        %v2486 = vpack.c.b16 %v2444, %v2443
        %v2487 = vpack.c.b16 %v2446, %v2445
        %v2488 = vpack.c.b16 %v2448, %v2447
        %v2489 = vpack.c.b16 %v2450, %v2449
        %v2490 = vpack.c.b16 %v2452, %v2451
        %v2491 = vpack.c.b16 %v2454, %v2453
        %v2492 = vpack.c.b16 %v2456, %v2455
        %v2493 = vpack.c.b16 %v2458, %v2457
        %v2494 = vpack.c.b16 %v2460, %v2459
        %v2495 = vpack.c.b16 %v2462, %v2461
        %v2496 = vpack.c.b16 %v2464, %v2463
        %v2497 = vpack.c.b16 %v2466, %v2465
        %v2498 = vpack.c.b16 %v2468, %v2467
        %v2499 = vpack.c.b16 %v2470, %v2469
        %v2500 = vpack.c.b16 %v2472, %v2471
        %v2501 = vpack.c.b16 %v2474, %v2473
        %v2502 = vpack.c.b16 %v2476, %v2475
        %v2503 = vpack.c.b16 %v2478, %v2477
        %v2504 = vpack.c.b16 %v2480, %v2479
        %2529 = vmatprep.subr.bf16.mxu0 0
        %2530 = vmatpush1.bf16.msra.mxu0 %v2488
        %2531 = vmatprep.subr.bf16.mxu0 0
        %2532 = vmatpush1.bf16.msra.mxu0 %v2487
        %2533 = vmatprep.subr.bf16.mxu0 0
        %2534 = vmatpush1.bf16.msra.mxu0 %v2486
        %2535 = vmatprep.subr.bf16.mxu0 0
        %2536 = vmatpush1.bf16.msra.mxu0 %v2485
        %2537 = vmatprep.subr.bf16.mxu0 0
        %2538 = vmatpush1.bf16.msra.mxu0 %v2484
        %2539 = vmatprep.subr.bf16.mxu0 0
        %2540 = vmatpush1.bf16.msra.mxu0 %v2483
        %2541 = vmatprep.subr.bf16.mxu0 0
        %2542 = vmatpush1.bf16.msra.mxu0 %v2482
        %2543 = vmatprep.subr.bf16.mxu0 0
        %2544 = vmatpush1.bf16.msra.mxu0 %v2481
        %2545 = vmatprep.subr.bf16.mxu0 0
        %2546 = vmatpush2.bf16.msra.mxu0 %v2496
        %2547 = vmatprep.subr.bf16.mxu0 0
        %2548 = vmatpush2.bf16.msra.mxu0 %v2495
        %2549 = vmatprep.subr.bf16.mxu0 0
        %2550 = vmatpush2.bf16.msra.mxu0 %v2494
        %2551 = vmatprep.subr.bf16.mxu0 0
        %2552 = vmatpush2.bf16.msra.mxu0 %v2493
        %2553 = vmatprep.subr.bf16.mxu0 0
        %2554 = vmatpush2.bf16.msra.mxu0 %v2492
        %2555 = vmatprep.subr.bf16.mxu0 0
        %2556 = vmatpush2.bf16.msra.mxu0 %v2491
        %2557 = vmatprep.subr.bf16.mxu0 0
        %2558 = vmatpush2.bf16.msra.mxu0 %v2490
        %2559 = vmatprep.subr.bf16.mxu0 0
        %2560 = vmatpush2.bf16.msra.mxu0 %v2489
        %2561 = vmatprep.mubr.bf16.mxu0 %v2290
        %2562 = vmatmul.mubr.bf16.gmra.mxu0 %v2289
        %v2563 = vpop.f32.mrf.mxu0
        %v2564 = vadd.f32 %v2003, %v2563
        %v2565 = vpop.f32.mrf.mxu0
        %v2566 = vpop.f32.mrf.mxu0
        %v2567 = vadd.f32 %v2006, %v2566
        %v2568 = vpop.f32.mrf.mxu0
        %2569 = vmatprep.mubr.bf16.mxu0 %v2293
        %2570 = vmatmul.mubr.bf16.gmra.mxu0 %v2292
        %v2571 = vpop.f32.mrf.mxu0
        %v2572 = vadd.f32 %v2011, %v2571
        %v2573 = vpop.f32.mrf.mxu0
        %v2574 = vpop.f32.mrf.mxu0
        %v2575 = vadd.f32 %v2014, %v2574
        %v2576 = vpop.f32.mrf.mxu0
        %2577 = vmatprep.mubr.bf16.mxu0 %v2296
        %2578 = vmatmul.mubr.bf16.gmra.mxu0 %v2295
        %v2579 = vpop.f32.mrf.mxu0
        %v2580 = vadd.f32 %v2019, %v2579
        %v2581 = vpop.f32.mrf.mxu0
        %v2582 = vpop.f32.mrf.mxu0
        %v2583 = vadd.f32 %v2022, %v2582
        %v2584 = vpop.f32.mrf.mxu0
        %2585 = vmatprep.mubr.bf16.mxu0 %v2299
        %2586 = vmatmul.mubr.bf16.gmra.mxu0 %v2298
        %v2587 = vpop.f32.mrf.mxu0
        %v2588 = vadd.f32 %v2027, %v2587
        %v2589 = vpop.f32.mrf.mxu0
        %v2590 = vpop.f32.mrf.mxu0
        %v2591 = vadd.f32 %v2030, %v2590
        %v2592 = vpop.f32.mrf.mxu0
        %2593 = vmatprep.mubr.bf16.mxu0 %v2302
        %2594 = vmatmul.mubr.bf16.gmra.mxu0 %v2301
        %v2595 = vpop.f32.mrf.mxu0
        %v2596 = vadd.f32 %v2035, %v2595
        %v2597 = vpop.f32.mrf.mxu0
        %v2598 = vpop.f32.mrf.mxu0
        %v2599 = vadd.f32 %v2038, %v2598
        %v2600 = vpop.f32.mrf.mxu0
        %2601 = vmatprep.mubr.bf16.mxu0 %v2305
        %2602 = vmatmul.mubr.bf16.gmra.mxu0 %v2304
        %v2603 = vpop.f32.mrf.mxu0
        %v2604 = vadd.f32 %v2043, %v2603
        %v2605 = vpop.f32.mrf.mxu0
        %v2606 = vpop.f32.mrf.mxu0
        %v2607 = vadd.f32 %v2046, %v2606
        %v2608 = vpop.f32.mrf.mxu0
        %2609 = vmatprep.mubr.bf16.mxu0 %v2308
        %2610 = vmatmul.mubr.bf16.gmra.mxu0 %v2307
        %v2611 = vpop.f32.mrf.mxu0
        %v2612 = vadd.f32 %v2051, %v2611
        %v2613 = vpop.f32.mrf.mxu0
        %v2614 = vpop.f32.mrf.mxu0
        %v2615 = vadd.f32 %v2054, %v2614
        %v2616 = vpop.f32.mrf.mxu0
        %2617 = vmatprep.mubr.bf16.mxu0 %v2311
        %2618 = vmatmul.mubr.bf16.gmra.mxu0 %v2310
        %v2619 = vpop.f32.mrf.mxu0
        %v2620 = vadd.f32 %v2059, %v2619
        %v2621 = vpop.f32.mrf.mxu0
        %v2622 = vpop.f32.mrf.mxu0
        %v2623 = vadd.f32 %v2062, %v2622
        %v2624 = vpop.f32.mrf.mxu0
        %2625 = vmatprep.mubr.bf16.mxu0 %v2314
        %2626 = vmatmul.mubr.bf16.gmra.mxu0 %v2313
        %v2627 = vpop.f32.mrf.mxu0
        %v2628 = vadd.f32 %v2067, %v2627
        %v2629 = vpop.f32.mrf.mxu0
        %v2630 = vpop.f32.mrf.mxu0
        %v2631 = vadd.f32 %v2070, %v2630
        %v2632 = vpop.f32.mrf.mxu0
        %2633 = vmatprep.mubr.bf16.mxu0 %v2317
        %2634 = vmatmul.mubr.bf16.gmra.mxu0 %v2316
        %v2635 = vpop.f32.mrf.mxu0
        %v2636 = vadd.f32 %v2075, %v2635
        %v2637 = vpop.f32.mrf.mxu0
        %v2638 = vpop.f32.mrf.mxu0
        %v2639 = vadd.f32 %v2078, %v2638
        %v2640 = vpop.f32.mrf.mxu0
        %2641 = vmatprep.mubr.bf16.mxu0 %v2320
        %2642 = vmatmul.mubr.bf16.gmra.mxu0 %v2319
        %v2643 = vpop.f32.mrf.mxu0
        %v2644 = vadd.f32 %v2083, %v2643
        %v2645 = vpop.f32.mrf.mxu0
        %v2646 = vpop.f32.mrf.mxu0
        %v2647 = vadd.f32 %v2086, %v2646
        %v2648 = vpop.f32.mrf.mxu0
        %2649 = vmatprep.mubr.bf16.mxu0 %v2323
        %2650 = vmatmul.mubr.bf16.gmra.mxu0 %v2322
        %v2651 = vpop.f32.mrf.mxu0
        %v2652 = vadd.f32 %v2091, %v2651
        %v2653 = vpop.f32.mrf.mxu0
        %v2654 = vpop.f32.mrf.mxu0
        %v2655 = vadd.f32 %v2094, %v2654
        %v2656 = vpop.f32.mrf.mxu0
        %2657 = vmatprep.mubr.bf16.mxu0 %v2326
        %2658 = vmatmul.mubr.bf16.gmra.mxu0 %v2325
        %v2659 = vpop.f32.mrf.mxu0
        %v2660 = vadd.f32 %v2099, %v2659
        %v2661 = vpop.f32.mrf.mxu0
        %v2662 = vpop.f32.mrf.mxu0
        %v2663 = vadd.f32 %v2102, %v2662
        %v2664 = vpop.f32.mrf.mxu0
        %2665 = vmatprep.mubr.bf16.mxu0 %v2329
        %2666 = vmatmul.mubr.bf16.gmra.mxu0 %v2328
        %v2667 = vpop.f32.mrf.mxu0
        %v2668 = vadd.f32 %v2107, %v2667
        %v2669 = vpop.f32.mrf.mxu0
        %v2670 = vpop.f32.mrf.mxu0
        %v2671 = vadd.f32 %v2110, %v2670
        %v2672 = vpop.f32.mrf.mxu0
        %2673 = vmatprep.mubr.bf16.mxu0 %v2332
        %2674 = vmatmul.mubr.bf16.gmra.mxu0 %v2331
        %v2675 = vpop.f32.mrf.mxu0
        %v2676 = vadd.f32 %v2115, %v2675
        %v2677 = vpop.f32.mrf.mxu0
        %v2678 = vpop.f32.mrf.mxu0
        %v2679 = vadd.f32 %v2118, %v2678
        %v2680 = vpop.f32.mrf.mxu0
        %2681 = vmatprep.mubr.bf16.mxu0 %v2335
        %2682 = vmatmul.mubr.bf16.gmra.mxu0 %v2334
        %v2683 = vpop.f32.mrf.mxu0
        %v2684 = vadd.f32 %v2123, %v2683
        %v2685 = vpop.f32.mrf.mxu0
        %v2686 = vpop.f32.mrf.mxu0
        %v2687 = vadd.f32 %v2126, %v2686
        %v2688 = vpop.f32.mrf.mxu0
        %2689 = vdwg.mxu0
        %2690 = vmatprep.subr.bf16.mxu0 0
        %2691 = vmatpush1.bf16.msra.mxu0 %v2504
        %2692 = vmatprep.subr.bf16.mxu0 0
        %2693 = vmatpush1.bf16.msra.mxu0 %v2503
        %2694 = vmatprep.subr.bf16.mxu0 0
        %2695 = vmatpush1.bf16.msra.mxu0 %v2502
        %2696 = vmatprep.subr.bf16.mxu0 0
        %2697 = vmatpush1.bf16.msra.mxu0 %v2501
        %2698 = vmatprep.subr.bf16.mxu0 0
        %2699 = vmatpush1.bf16.msra.mxu0 %v2500
        %2700 = vmatprep.subr.bf16.mxu0 0
        %2701 = vmatpush1.bf16.msra.mxu0 %v2499
        %2702 = vmatprep.subr.bf16.mxu0 0
        %2703 = vmatpush1.bf16.msra.mxu0 %v2498
        %2704 = vmatprep.subr.bf16.mxu0 0
        %2705 = vmatpush1.bf16.msra.mxu0 %v2497
        %2706 = vmatprep.subr.bf16.mxu0 0
        %2707 = vmatpush2.bf16.msra.mxu0 0
        %2708 = vmatprep.subr.bf16.mxu0 0
        %2709 = vmatpush2.bf16.msra.mxu0 0
        %2710 = vmatprep.subr.bf16.mxu0 0
        %2711 = vmatpush2.bf16.msra.mxu0 0
        %2712 = vmatprep.subr.bf16.mxu0 0
        %2713 = vmatpush2.bf16.msra.mxu0 0
        %2714 = vmatprep.subr.bf16.mxu0 0
        %2715 = vmatpush2.bf16.msra.mxu0 0
        %2716 = vmatprep.subr.bf16.mxu0 0
        %2717 = vmatpush2.bf16.msra.mxu0 0
        %2718 = vmatprep.subr.bf16.mxu0 0
        %2719 = vmatpush2.bf16.msra.mxu0 0
        %2720 = vmatprep.subr.bf16.mxu0 0
        %2721 = vmatpush2.bf16.msra.mxu0 0
        %2722 = vmatprep.mubr.bf16.mxu0 0
        %2723 = vmatmul.mubr.bf16.gmra.mxu0 %v2291
        %v2724 = vpop.f32.mrf.mxu0
        %v2725 = vadd.f32 %v2564, %v2724
        %v2726 = vpop.f32.mrf.mxu0
        %v2727 = vpop.f32.mrf.mxu0
        %v2728 = vadd.f32 %v2567, %v2727
        %v2729 = vpop.f32.mrf.mxu0
        %2730 = vmatprep.mubr.bf16.mxu0 0
        %2731 = vmatmul.mubr.bf16.gmra.mxu0 %v2294
        %v2732 = vpop.f32.mrf.mxu0
        %v2733 = vadd.f32 %v2572, %v2732
        %v2734 = vpop.f32.mrf.mxu0
        %v2735 = vpop.f32.mrf.mxu0
        %v2736 = vadd.f32 %v2575, %v2735
        %v2737 = vpop.f32.mrf.mxu0
        %2738 = vmatprep.mubr.bf16.mxu0 0
        %2739 = vmatmul.mubr.bf16.gmra.mxu0 %v2297
        %v2740 = vpop.f32.mrf.mxu0
        %v2741 = vadd.f32 %v2580, %v2740
        %v2742 = vpop.f32.mrf.mxu0
        %v2743 = vpop.f32.mrf.mxu0
        %v2744 = vadd.f32 %v2583, %v2743
        %v2745 = vpop.f32.mrf.mxu0
        %2746 = vmatprep.mubr.bf16.mxu0 0
        %2747 = vmatmul.mubr.bf16.gmra.mxu0 %v2300
        %v2748 = vpop.f32.mrf.mxu0
        %v2749 = vadd.f32 %v2588, %v2748
        %v2750 = vpop.f32.mrf.mxu0
        %v2751 = vpop.f32.mrf.mxu0
        %v2752 = vadd.f32 %v2591, %v2751
        %v2753 = vpop.f32.mrf.mxu0
        %2754 = vmatprep.mubr.bf16.mxu0 0
        %2755 = vmatmul.mubr.bf16.gmra.mxu0 %v2303
        %v2756 = vpop.f32.mrf.mxu0
        %v2757 = vadd.f32 %v2596, %v2756
        %v2758 = vpop.f32.mrf.mxu0
        %v2759 = vpop.f32.mrf.mxu0
        %v2760 = vadd.f32 %v2599, %v2759
        %v2761 = vpop.f32.mrf.mxu0
        %2762 = vmatprep.mubr.bf16.mxu0 0
        %2763 = vmatmul.mubr.bf16.gmra.mxu0 %v2306
        %v2764 = vpop.f32.mrf.mxu0
        %v2765 = vadd.f32 %v2604, %v2764
        %v2766 = vpop.f32.mrf.mxu0
        %v2767 = vpop.f32.mrf.mxu0
        %v2768 = vadd.f32 %v2607, %v2767
        %v2769 = vpop.f32.mrf.mxu0
        %2770 = vmatprep.mubr.bf16.mxu0 0
        %2771 = vmatmul.mubr.bf16.gmra.mxu0 %v2309
        %v2772 = vpop.f32.mrf.mxu0
        %v2773 = vadd.f32 %v2612, %v2772
        %v2774 = vpop.f32.mrf.mxu0
        %v2775 = vpop.f32.mrf.mxu0
        %v2776 = vadd.f32 %v2615, %v2775
        %v2777 = vpop.f32.mrf.mxu0
        %2778 = vmatprep.mubr.bf16.mxu0 0
        %2779 = vmatmul.mubr.bf16.gmra.mxu0 %v2312
        %v2780 = vpop.f32.mrf.mxu0
        %v2781 = vadd.f32 %v2620, %v2780
        %v2782 = vpop.f32.mrf.mxu0
        %v2783 = vpop.f32.mrf.mxu0
        %v2784 = vadd.f32 %v2623, %v2783
        %v2785 = vpop.f32.mrf.mxu0
        %2786 = vmatprep.mubr.bf16.mxu0 0
        %2787 = vmatmul.mubr.bf16.gmra.mxu0 %v2315
        %v2788 = vpop.f32.mrf.mxu0
        %v2789 = vadd.f32 %v2628, %v2788
        %v2790 = vpop.f32.mrf.mxu0
        %v2791 = vpop.f32.mrf.mxu0
        %v2792 = vadd.f32 %v2631, %v2791
        %v2793 = vpop.f32.mrf.mxu0
        %2794 = vmatprep.mubr.bf16.mxu0 0
        %2795 = vmatmul.mubr.bf16.gmra.mxu0 %v2318
        %v2796 = vpop.f32.mrf.mxu0
        %v2797 = vadd.f32 %v2636, %v2796
        %v2798 = vpop.f32.mrf.mxu0
        %v2799 = vpop.f32.mrf.mxu0
        %v2800 = vadd.f32 %v2639, %v2799
        %v2801 = vpop.f32.mrf.mxu0
        %2802 = vmatprep.mubr.bf16.mxu0 0
        %2803 = vmatmul.mubr.bf16.gmra.mxu0 %v2321
        %v2804 = vpop.f32.mrf.mxu0
        %v2805 = vadd.f32 %v2644, %v2804
        %v2806 = vpop.f32.mrf.mxu0
        %v2807 = vpop.f32.mrf.mxu0
        %v2808 = vadd.f32 %v2647, %v2807
        %v2809 = vpop.f32.mrf.mxu0
        %2810 = vmatprep.mubr.bf16.mxu0 0
        %2811 = vmatmul.mubr.bf16.gmra.mxu0 %v2324
        %v2812 = vpop.f32.mrf.mxu0
        %v2813 = vadd.f32 %v2652, %v2812
        %v2814 = vpop.f32.mrf.mxu0
        %v2815 = vpop.f32.mrf.mxu0
        %v2816 = vadd.f32 %v2655, %v2815
        %v2817 = vpop.f32.mrf.mxu0
        %2818 = vmatprep.mubr.bf16.mxu0 0
        %2819 = vmatmul.mubr.bf16.gmra.mxu0 %v2327
        %v2820 = vpop.f32.mrf.mxu0
        %v2821 = vadd.f32 %v2660, %v2820
        %v2822 = vpop.f32.mrf.mxu0
        %v2823 = vpop.f32.mrf.mxu0
        %v2824 = vadd.f32 %v2663, %v2823
        %v2825 = vpop.f32.mrf.mxu0
        %2826 = vmatprep.mubr.bf16.mxu0 0
        %2827 = vmatmul.mubr.bf16.gmra.mxu0 %v2330
        %v2828 = vpop.f32.mrf.mxu0
        %v2829 = vadd.f32 %v2668, %v2828
        %v2830 = vpop.f32.mrf.mxu0
        %v2831 = vpop.f32.mrf.mxu0
        %v2832 = vadd.f32 %v2671, %v2831
        %v2833 = vpop.f32.mrf.mxu0
        %2834 = vmatprep.mubr.bf16.mxu0 0
        %2835 = vmatmul.mubr.bf16.gmra.mxu0 %v2333
        %v2836 = vpop.f32.mrf.mxu0
        %v2837 = vadd.f32 %v2676, %v2836
        %v2838 = vpop.f32.mrf.mxu0
        %v2839 = vpop.f32.mrf.mxu0
        %v2840 = vadd.f32 %v2679, %v2839
        %v2841 = vpop.f32.mrf.mxu0
        %2842 = vmatprep.mubr.bf16.mxu0 0
        %2843 = vmatmul.mubr.bf16.gmra.mxu0 %v2336
        %v2844 = vpop.f32.mrf.mxu0
        %v2845 = vadd.f32 %v2684, %v2844
        %v2846 = vpop.f32.mrf.mxu0
        %v2847 = vpop.f32.mrf.mxu0
        %v2848 = vadd.f32 %v2687, %v2847
        %v2849 = vpop.f32.mrf.mxu0
        %2850 = vdwg.mxu0
        %v2851 = vld [vmem:[%s1163] sm:$0xff]
        %v2852 = vld [vmem:[%s1163 + $0x8] sm:$0xf]
        %v2853 = vld [vmem:[%s1163 + $0xc] sm:$0xff]
        %v2854 = vld [vmem:[%s1163 + $0x14] sm:$0xf]
        %v2855 = vld [vmem:[%s1163 + $0x18] sm:$0xff]
        %v2856 = vld [vmem:[%s1163 + $0x20] sm:$0xf]
        %v2857 = vld [vmem:[%s1163 + $0x24] sm:$0xff]
        %v2858 = vld [vmem:[%s1163 + $0x2c] sm:$0xf]
        %v2859 = vld [vmem:[%s1163 + $0x30] sm:$0xff]
        %v2860 = vld [vmem:[%s1163 + $0x38] sm:$0xf]
        %v2861 = vld [vmem:[%s1163 + $0x3c] sm:$0xff]
        %v2862 = vld [vmem:[%s1163 + $0x44] sm:$0xf]
        %v2863 = vld [vmem:[%s1163 + $0x48] sm:$0xff]
        %v2864 = vld [vmem:[%s1163 + $0x50] sm:$0xf]
        %v2865 = vld [vmem:[%s1163 + $0x54] sm:$0xff]
        %v2866 = vld [vmem:[%s1163 + $0x5c] sm:$0xf]
        %v2867 = vld [vmem:[%s1163 + $0x60] sm:$0xff]
        %v2868 = vld [vmem:[%s1163 + $0x68] sm:$0xf]
        %v2869 = vld [vmem:[%s1163 + $0x6c] sm:$0xff]
        %v2870 = vld [vmem:[%s1163 + $0x74] sm:$0xf]
        %v2871 = vld [vmem:[%s1163 + $0x78] sm:$0xff]
        %v2872 = vld [vmem:[%s1163 + $0x80] sm:$0xf]
        %v2873 = vld [vmem:[%s1163 + $0x84] sm:$0xff]
        %v2874 = vld [vmem:[%s1163 + $0x8c] sm:$0xf]
        %v2875 = vld [vmem:[%s1163 + $0x90] sm:$0xff]
        %v2876 = vld [vmem:[%s1163 + $0x98] sm:$0xf]
        %v2877 = vld [vmem:[%s1163 + $0x9c] sm:$0xff]
        %v2878 = vld [vmem:[%s1163 + $0xa4] sm:$0xf]
        %v2879 = vld [vmem:[%s1163 + $0xa8] sm:$0xff]
        %v2880 = vld [vmem:[%s1163 + $0xb0] sm:$0xf]
        %v2881 = vld [vmem:[%s1163 + $0xb4] sm:$0xff]
        %v2882 = vld [vmem:[%s1163 + $0xbc] sm:$0xf]
        %v2883 = vld [vmem:[%s1163 + $0xc0] sm:$0xff]
        %v2884 = vld [vmem:[%s1163 + $0xc8] sm:$0xf]
        %v2885 = vld [vmem:[%s1163 + $0xcc] sm:$0xff]
        %v2886 = vld [vmem:[%s1163 + $0xd4] sm:$0xf]
        %v2887 = vld [vmem:[%s1163 + $0xd8] sm:$0xff]
        %v2888 = vld [vmem:[%s1163 + $0xe0] sm:$0xf]
        %v2889 = vld [vmem:[%s1163 + $0xe4] sm:$0xff]
        %v2890 = vld [vmem:[%s1163 + $0xec] sm:$0xf]
        %v2891 = vld [vmem:[%s1163 + $0xf0] sm:$0xff]
        %v2892 = vld [vmem:[%s1163 + $0xf8] sm:$0xf]
        %v2893 = vld [vmem:[%s1163 + $0xfc] sm:$0xff]
        %v2894 = vld [vmem:[%s1163 + $0x104] sm:$0xf]
        %v2895 = vld [vmem:[%s1163 + $0x108] sm:$0xff]
        %v2896 = vld [vmem:[%s1163 + $0x110] sm:$0xf]
        %v2897 = vld [vmem:[%s1163 + $0x114] sm:$0xff]
        %v2898 = vld [vmem:[%s1163 + $0x11c] sm:$0xf]
        %v2899 = vld [vmem:[%s1163 + $0x120] sm:$0xff]
        %v2900 = vld [vmem:[%s1163 + $0x128] sm:$0xf]
        %v2901 = vld [vmem:[%s1163 + $0x12c] sm:$0xff]
        %v2902 = vld [vmem:[%s1163 + $0x134] sm:$0xf]
        %v2903 = vld [vmem:[%s1163 + $0x138] sm:$0xff]
        %v2904 = vld [vmem:[%s1163 + $0x140] sm:$0xf]
        %v2905 = vld [vmem:[%s1163 + $0x144] sm:$0xff]
        %v2906 = vld [vmem:[%s1163 + $0x14c] sm:$0xf]
        %v2907 = vld [vmem:[%s1163 + $0x150] sm:$0xff]
        %v2908 = vld [vmem:[%s1163 + $0x158] sm:$0xf]
        %v2909 = vld [vmem:[%s1163 + $0x15c] sm:$0xff]
        %v2910 = vld [vmem:[%s1163 + $0x164] sm:$0xf]
        %v2911 = vld [vmem:[%s1163 + $0x168] sm:$0xff]
        %v2912 = vld [vmem:[%s1163 + $0x170] sm:$0xf]
        %v2913 = vld [vmem:[%s1163 + $0x174] sm:$0xff]
        %v2914 = vld [vmem:[%s1163 + $0x17c] sm:$0xf]
        %s2915 = scalar_lea.vmem [#allocation6], 384
        %v2916 = vld [vmem:[%s2915] sm:$0xf]
        %v2917 = vld [vmem:[%s2915 + $0x4] sm:$0xf]
        %v2918 = vld [vmem:[%s2915 + $0x8] sm:$0xf]
        %v2919 = vld [vmem:[%s2915 + $0xc] sm:$0xf]
        %v2920 = vld [vmem:[%s2915 + $0x10] sm:$0xf]
        %v2921 = vld [vmem:[%s2915 + $0x14] sm:$0xf]
        %v2922 = vld [vmem:[%s2915 + $0x18] sm:$0xf]
        %v2923 = vld [vmem:[%s2915 + $0x1c] sm:$0xf]
        %v2924 = vld [vmem:[%s2915 + $0x20] sm:$0xf]
        %v2925 = vld [vmem:[%s2915 + $0x24] sm:$0xf]
        %v2926 = vld [vmem:[%s2915 + $0x28] sm:$0xf]
        %v2927 = vld [vmem:[%s2915 + $0x2c] sm:$0xf]
        %v2928 = vld [vmem:[%s2915 + $0x30] sm:$0xf]
        %v2929 = vld [vmem:[%s2915 + $0x34] sm:$0xf]
        %v2930 = vld [vmem:[%s2915 + $0x38] sm:$0xf]
        %v2931 = vld [vmem:[%s2915 + $0x3c] sm:$0xf]
        %v2932 = vld [vmem:[%s2915 + $0x40] sm:$0xf]
        %v2933 = vld [vmem:[%s2915 + $0x44] sm:$0xf]
        %v2934 = vld [vmem:[%s2915 + $0x48] sm:$0xf]
        %v2935 = vld [vmem:[%s2915 + $0x4c] sm:$0xf]
        %v2936 = vld [vmem:[%s2915 + $0x50] sm:$0xf]
        %v2937 = vld [vmem:[%s2915 + $0x54] sm:$0xf]
        %v2938 = vld [vmem:[%s2915 + $0x58] sm:$0xf]
        %v2939 = vld [vmem:[%s2915 + $0x5c] sm:$0xf]
        %v2940 = vld [vmem:[%s2915 + $0x60] sm:$0xf]
        %v2941 = vld [vmem:[%s2915 + $0x64] sm:$0xf]
        %v2942 = vld [vmem:[%s2915 + $0x68] sm:$0xf]
        %v2943 = vld [vmem:[%s2915 + $0x6c] sm:$0xf]
        %v2944 = vld [vmem:[%s2915 + $0x70] sm:$0xf]
        %v2945 = vld [vmem:[%s2915 + $0x74] sm:$0xf]
        %v2946 = vld [vmem:[%s2915 + $0x78] sm:$0xf]
        %v2947 = vld [vmem:[%s2915 + $0x7c] sm:$0xf]
        %v2948 = vld [vmem:[%s2915 + $0x80] sm:$0xf]
        %v2949 = vld [vmem:[%s2915 + $0x84] sm:$0xf]
        %v2950 = vld [vmem:[%s2915 + $0x88] sm:$0xf]
        %v2951 = vld [vmem:[%s2915 + $0x8c] sm:$0xf]
        %v2952 = vld [vmem:[%s2915 + $0x90] sm:$0xf]
        %v2953 = vld [vmem:[%s2915 + $0x94] sm:$0xf]
        %v2954 = vld [vmem:[%s2915 + $0x98] sm:$0xf]
        %v2955 = vld [vmem:[%s2915 + $0x9c] sm:$0xf]
        %v2956 = vld [vmem:[%s2915 + $0xa0] sm:$0xf]
        %v2957 = vld [vmem:[%s2915 + $0xa4] sm:$0xf]
        %v2958 = vld [vmem:[%s2915 + $0xa8] sm:$0xf]
        %v2959 = vld [vmem:[%s2915 + $0xac] sm:$0xf]
        %v2960 = vld [vmem:[%s2915 + $0xb0] sm:$0xf]
        %v2961 = vld [vmem:[%s2915 + $0xb4] sm:$0xf]
        %v2962 = vld [vmem:[%s2915 + $0xb8] sm:$0xf]
        %v2963 = vld [vmem:[%s2915 + $0xbc] sm:$0xf]
        %v3028 = vunpack.c.l.b16 %v2851
        %v3029 = vunpack.c.h.b16 %v2851
        %v3030 = vunpack.c.l.b16 %v2852
        %v3031 = vunpack.c.l.b16 %v2853
        %v3032 = vunpack.c.h.b16 %v2853
        %v3033 = vunpack.c.l.b16 %v2854
        %v3034 = vunpack.c.l.b16 %v2855
        %v3035 = vunpack.c.h.b16 %v2855
        %v3036 = vunpack.c.l.b16 %v2856
        %v3037 = vunpack.c.l.b16 %v2857
        %v3038 = vunpack.c.h.b16 %v2857
        %v3039 = vunpack.c.l.b16 %v2858
        %v3040 = vunpack.c.l.b16 %v2859
        %v3041 = vunpack.c.h.b16 %v2859
        %v3042 = vunpack.c.l.b16 %v2860
        %v3043 = vunpack.c.l.b16 %v2861
        %v3044 = vunpack.c.h.b16 %v2861
        %v3045 = vunpack.c.l.b16 %v2862
        %v3046 = vunpack.c.l.b16 %v2863
        %v3047 = vunpack.c.h.b16 %v2863
        %v3048 = vunpack.c.l.b16 %v2864
        %v3049 = vunpack.c.l.b16 %v2865
        %v3050 = vunpack.c.h.b16 %v2865
        %v3051 = vunpack.c.l.b16 %v2866
        %v3052 = vunpack.c.l.b16 %v2867
        %v3053 = vunpack.c.h.b16 %v2867
        %v3054 = vunpack.c.l.b16 %v2868
        %v3055 = vunpack.c.l.b16 %v2869
        %v3056 = vunpack.c.h.b16 %v2869
        %v3057 = vunpack.c.l.b16 %v2870
        %v3058 = vunpack.c.l.b16 %v2871
        %v3059 = vunpack.c.h.b16 %v2871
        %v3060 = vunpack.c.l.b16 %v2872
        %v3061 = vunpack.c.l.b16 %v2873
        %v3062 = vunpack.c.h.b16 %v2873
        %v3063 = vunpack.c.l.b16 %v2874
        %v3064 = vunpack.c.l.b16 %v2875
        %v3065 = vunpack.c.h.b16 %v2875
        %v3066 = vunpack.c.l.b16 %v2876
        %v3067 = vunpack.c.l.b16 %v2877
        %v3068 = vunpack.c.h.b16 %v2877
        %v3069 = vunpack.c.l.b16 %v2878
        %v3070 = vunpack.c.l.b16 %v2879
        %v3071 = vunpack.c.h.b16 %v2879
        %v3072 = vunpack.c.l.b16 %v2880
        %v3073 = vunpack.c.l.b16 %v2881
        %v3074 = vunpack.c.h.b16 %v2881
        %v3075 = vunpack.c.l.b16 %v2882
        %v3076 = vunpack.c.l.b16 %v2883
        %v3077 = vunpack.c.h.b16 %v2883
        %v3078 = vunpack.c.l.b16 %v2884
        %v3079 = vunpack.c.l.b16 %v2885
        %v3080 = vunpack.c.h.b16 %v2885
        %v3081 = vunpack.c.l.b16 %v2886
        %v3082 = vunpack.c.l.b16 %v2887
        %v3083 = vunpack.c.h.b16 %v2887
        %v3084 = vunpack.c.l.b16 %v2888
        %v3085 = vunpack.c.l.b16 %v2889
        %v3086 = vunpack.c.h.b16 %v2889
        %v3087 = vunpack.c.l.b16 %v2890
        %v3088 = vunpack.c.l.b16 %v2891
        %v3089 = vunpack.c.h.b16 %v2891
        %v3090 = vunpack.c.l.b16 %v2892
        %v3091 = vunpack.c.l.b16 %v2893
        %v3092 = vunpack.c.h.b16 %v2893
        %v3093 = vunpack.c.l.b16 %v2894
        %v3094 = vunpack.c.l.b16 %v2895
        %v3095 = vunpack.c.h.b16 %v2895
        %v3096 = vunpack.c.l.b16 %v2896
        %v3097 = vunpack.c.l.b16 %v2897
        %v3098 = vunpack.c.h.b16 %v2897
        %v3099 = vunpack.c.l.b16 %v2898
        %v3100 = vunpack.c.l.b16 %v2899
        %v3101 = vunpack.c.h.b16 %v2899
        %v3102 = vunpack.c.l.b16 %v2900
        %v3103 = vunpack.c.l.b16 %v2901
        %v3104 = vunpack.c.h.b16 %v2901
        %v3105 = vunpack.c.l.b16 %v2902
        %v3106 = vunpack.c.l.b16 %v2903
        %v3107 = vunpack.c.h.b16 %v2903
        %v3108 = vunpack.c.l.b16 %v2904
        %v3109 = vunpack.c.l.b16 %v2905
        %v3110 = vunpack.c.h.b16 %v2905
        %v3111 = vunpack.c.l.b16 %v2906
        %v3112 = vunpack.c.l.b16 %v2907
        %v3113 = vunpack.c.h.b16 %v2907
        %v3114 = vunpack.c.l.b16 %v2908
        %v3115 = vunpack.c.l.b16 %v2909
        %v3116 = vunpack.c.h.b16 %v2909
        %v3117 = vunpack.c.l.b16 %v2910
        %v3118 = vunpack.c.l.b16 %v2911
        %v3119 = vunpack.c.h.b16 %v2911
        %v3120 = vunpack.c.l.b16 %v2912
        %v3121 = vunpack.c.l.b16 %v2913
        %v3122 = vunpack.c.h.b16 %v2913
        %v3123 = vunpack.c.l.b16 %v2914
        %v3124 = vpack.c.b16 %v3031, %v3028
        %v3125 = vpack.c.b16 %v3032, %v3029
        %v3126 = vpack.c.b16 %v3033, %v3030
        %v3127 = vpack.c.b16 %v3037, %v3034
        %v3128 = vpack.c.b16 %v3038, %v3035
        %v3129 = vpack.c.b16 %v3039, %v3036
        %v3130 = vpack.c.b16 %v3043, %v3040
        %v3131 = vpack.c.b16 %v3044, %v3041
        %v3132 = vpack.c.b16 %v3045, %v3042
        %v3133 = vpack.c.b16 %v3049, %v3046
        %v3134 = vpack.c.b16 %v3050, %v3047
        %v3135 = vpack.c.b16 %v3051, %v3048
        %v3136 = vpack.c.b16 %v3055, %v3052
        %v3137 = vpack.c.b16 %v3056, %v3053
        %v3138 = vpack.c.b16 %v3057, %v3054
        %v3139 = vpack.c.b16 %v3061, %v3058
        %v3140 = vpack.c.b16 %v3062, %v3059
        %v3141 = vpack.c.b16 %v3063, %v3060
        %v3142 = vpack.c.b16 %v3067, %v3064
        %v3143 = vpack.c.b16 %v3068, %v3065
        %v3144 = vpack.c.b16 %v3069, %v3066
        %v3145 = vpack.c.b16 %v3073, %v3070
        %v3146 = vpack.c.b16 %v3074, %v3071
        %v3147 = vpack.c.b16 %v3075, %v3072
        %v3148 = vpack.c.b16 %v3079, %v3076
        %v3149 = vpack.c.b16 %v3080, %v3077
        %v3150 = vpack.c.b16 %v3081, %v3078
        %v3151 = vpack.c.b16 %v3085, %v3082
        %v3152 = vpack.c.b16 %v3086, %v3083
        %v3153 = vpack.c.b16 %v3087, %v3084
        %v3154 = vpack.c.b16 %v3091, %v3088
        %v3155 = vpack.c.b16 %v3092, %v3089
        %v3156 = vpack.c.b16 %v3093, %v3090
        %v3157 = vpack.c.b16 %v3097, %v3094
        %v3158 = vpack.c.b16 %v3098, %v3095
        %v3159 = vpack.c.b16 %v3099, %v3096
        %v3160 = vpack.c.b16 %v3103, %v3100
        %v3161 = vpack.c.b16 %v3104, %v3101
        %v3162 = vpack.c.b16 %v3105, %v3102
        %v3163 = vpack.c.b16 %v3109, %v3106
        %v3164 = vpack.c.b16 %v3110, %v3107
        %v3165 = vpack.c.b16 %v3111, %v3108
        %v3166 = vpack.c.b16 %v3115, %v3112
        %v3167 = vpack.c.b16 %v3116, %v3113
        %v3168 = vpack.c.b16 %v3117, %v3114
        %v3169 = vpack.c.b16 %v3121, %v3118
        %v3170 = vpack.c.b16 %v3122, %v3119
        %v3171 = vpack.c.b16 %v3123, %v3120
        %v3268 = vunpack.c.l.b16 %v2916
        %v3269 = vunpack.c.l.b16 %v2917
        %v3270 = vunpack.c.l.b16 %v2918
        %v3271 = vunpack.c.l.b16 %v2919
        %v3272 = vunpack.c.l.b16 %v2920
        %v3273 = vunpack.c.l.b16 %v2921
        %v3274 = vunpack.c.l.b16 %v2922
        %v3275 = vunpack.c.l.b16 %v2923
        %v3276 = vunpack.c.l.b16 %v2924
        %v3277 = vunpack.c.l.b16 %v2925
        %v3278 = vunpack.c.l.b16 %v2926
        %v3279 = vunpack.c.l.b16 %v2927
        %v3280 = vunpack.c.l.b16 %v2928
        %v3281 = vunpack.c.l.b16 %v2929
        %v3282 = vunpack.c.l.b16 %v2930
        %v3283 = vunpack.c.l.b16 %v2931
        %v3284 = vunpack.c.l.b16 %v2932
        %v3285 = vunpack.c.l.b16 %v2933
        %v3286 = vunpack.c.l.b16 %v2934
        %v3287 = vunpack.c.l.b16 %v2935
        %v3288 = vunpack.c.l.b16 %v2936
        %v3289 = vunpack.c.l.b16 %v2937
        %v3290 = vunpack.c.l.b16 %v2938
        %v3291 = vunpack.c.l.b16 %v2939
        %v3292 = vunpack.c.l.b16 %v2940
        %v3293 = vunpack.c.l.b16 %v2941
        %v3294 = vunpack.c.l.b16 %v2942
        %v3295 = vunpack.c.l.b16 %v2943
        %v3296 = vunpack.c.l.b16 %v2944
        %v3297 = vunpack.c.l.b16 %v2945
        %v3298 = vunpack.c.l.b16 %v2946
        %v3299 = vunpack.c.l.b16 %v2947
        %v3300 = vunpack.c.l.b16 %v2948
        %v3301 = vunpack.c.l.b16 %v2949
        %v3302 = vunpack.c.l.b16 %v2950
        %v3303 = vunpack.c.l.b16 %v2951
        %v3304 = vunpack.c.l.b16 %v2952
        %v3305 = vunpack.c.l.b16 %v2953
        %v3306 = vunpack.c.l.b16 %v2954
        %v3307 = vunpack.c.l.b16 %v2955
        %v3308 = vunpack.c.l.b16 %v2956
        %v3309 = vunpack.c.l.b16 %v2957
        %v3310 = vunpack.c.l.b16 %v2958
        %v3311 = vunpack.c.l.b16 %v2959
        %v3312 = vunpack.c.l.b16 %v2960
        %v3313 = vunpack.c.l.b16 %v2961
        %v3314 = vunpack.c.l.b16 %v2962
        %v3315 = vunpack.c.l.b16 %v2963
        %v3316 = vpack.c.b16 %v3269, %v3268
        %v3317 = vpack.c.b16 %v3271, %v3270
        %v3318 = vpack.c.b16 %v3273, %v3272
        %v3319 = vpack.c.b16 %v3275, %v3274
        %v3320 = vpack.c.b16 %v3277, %v3276
        %v3321 = vpack.c.b16 %v3279, %v3278
        %v3322 = vpack.c.b16 %v3281, %v3280
        %v3323 = vpack.c.b16 %v3283, %v3282
        %v3324 = vpack.c.b16 %v3285, %v3284
        %v3325 = vpack.c.b16 %v3287, %v3286
        %v3326 = vpack.c.b16 %v3289, %v3288
        %v3327 = vpack.c.b16 %v3291, %v3290
        %v3328 = vpack.c.b16 %v3293, %v3292
        %v3329 = vpack.c.b16 %v3295, %v3294
        %v3330 = vpack.c.b16 %v3297, %v3296
        %v3331 = vpack.c.b16 %v3299, %v3298
        %v3332 = vpack.c.b16 %v3301, %v3300
        %v3333 = vpack.c.b16 %v3303, %v3302
        %v3334 = vpack.c.b16 %v3305, %v3304
        %v3335 = vpack.c.b16 %v3307, %v3306
        %v3336 = vpack.c.b16 %v3309, %v3308
        %v3337 = vpack.c.b16 %v3311, %v3310
        %v3338 = vpack.c.b16 %v3313, %v3312
        %v3339 = vpack.c.b16 %v3315, %v3314
        %3364 = vmatprep.subr.bf16.mxu0 0
        %3365 = vmatpush1.bf16.msra.mxu0 %v3323
        %3366 = vmatprep.subr.bf16.mxu0 0
        %3367 = vmatpush1.bf16.msra.mxu0 %v3322
        %3368 = vmatprep.subr.bf16.mxu0 0
        %3369 = vmatpush1.bf16.msra.mxu0 %v3321
        %3370 = vmatprep.subr.bf16.mxu0 0
        %3371 = vmatpush1.bf16.msra.mxu0 %v3320
        %3372 = vmatprep.subr.bf16.mxu0 0
        %3373 = vmatpush1.bf16.msra.mxu0 %v3319
        %3374 = vmatprep.subr.bf16.mxu0 0
        %3375 = vmatpush1.bf16.msra.mxu0 %v3318
        %3376 = vmatprep.subr.bf16.mxu0 0
        %3377 = vmatpush1.bf16.msra.mxu0 %v3317
        %3378 = vmatprep.subr.bf16.mxu0 0
        %3379 = vmatpush1.bf16.msra.mxu0 %v3316
        %3380 = vmatprep.subr.bf16.mxu0 0
        %3381 = vmatpush2.bf16.msra.mxu0 %v3331
        %3382 = vmatprep.subr.bf16.mxu0 0
        %3383 = vmatpush2.bf16.msra.mxu0 %v3330
        %3384 = vmatprep.subr.bf16.mxu0 0
        %3385 = vmatpush2.bf16.msra.mxu0 %v3329
        %3386 = vmatprep.subr.bf16.mxu0 0
        %3387 = vmatpush2.bf16.msra.mxu0 %v3328
        %3388 = vmatprep.subr.bf16.mxu0 0
        %3389 = vmatpush2.bf16.msra.mxu0 %v3327
        %3390 = vmatprep.subr.bf16.mxu0 0
        %3391 = vmatpush2.bf16.msra.mxu0 %v3326
        %3392 = vmatprep.subr.bf16.mxu0 0
        %3393 = vmatpush2.bf16.msra.mxu0 %v3325
        %3394 = vmatprep.subr.bf16.mxu0 0
        %3395 = vmatpush2.bf16.msra.mxu0 %v3324
        %3396 = vmatprep.mubr.bf16.mxu0 %v3125
        %3397 = vmatmul.mubr.bf16.gmra.mxu0 %v3124
        %v3398 = vpop.f32.mrf.mxu0
        %v3399 = vadd.f32 0.0, %v3398
        %v3400 = vpop.f32.mrf.mxu0
        %v3401 = vpop.f32.mrf.mxu0
        %v3402 = vadd.f32 0.0, %v3401
        %v3403 = vpop.f32.mrf.mxu0
        %3404 = vmatprep.mubr.bf16.mxu0 %v3128
        %3405 = vmatmul.mubr.bf16.gmra.mxu0 %v3127
        %v3406 = vpop.f32.mrf.mxu0
        %v3407 = vadd.f32 0.0, %v3406
        %v3408 = vpop.f32.mrf.mxu0
        %v3409 = vpop.f32.mrf.mxu0
        %v3410 = vadd.f32 0.0, %v3409
        %v3411 = vpop.f32.mrf.mxu0
        %3412 = vmatprep.mubr.bf16.mxu0 %v3131
        %3413 = vmatmul.mubr.bf16.gmra.mxu0 %v3130
        %v3414 = vpop.f32.mrf.mxu0
        %v3415 = vadd.f32 0.0, %v3414
        %v3416 = vpop.f32.mrf.mxu0
        %v3417 = vpop.f32.mrf.mxu0
        %v3418 = vadd.f32 0.0, %v3417
        %v3419 = vpop.f32.mrf.mxu0
        %3420 = vmatprep.mubr.bf16.mxu0 %v3134
        %3421 = vmatmul.mubr.bf16.gmra.mxu0 %v3133
        %v3422 = vpop.f32.mrf.mxu0
        %v3423 = vadd.f32 0.0, %v3422
        %v3424 = vpop.f32.mrf.mxu0
        %v3425 = vpop.f32.mrf.mxu0
        %v3426 = vadd.f32 0.0, %v3425
        %v3427 = vpop.f32.mrf.mxu0
        %3428 = vmatprep.mubr.bf16.mxu0 %v3137
        %3429 = vmatmul.mubr.bf16.gmra.mxu0 %v3136
        %v3430 = vpop.f32.mrf.mxu0
        %v3431 = vadd.f32 0.0, %v3430
        %v3432 = vpop.f32.mrf.mxu0
        %v3433 = vpop.f32.mrf.mxu0
        %v3434 = vadd.f32 0.0, %v3433
        %v3435 = vpop.f32.mrf.mxu0
        %3436 = vmatprep.mubr.bf16.mxu0 %v3140
        %3437 = vmatmul.mubr.bf16.gmra.mxu0 %v3139
        %v3438 = vpop.f32.mrf.mxu0
        %v3439 = vadd.f32 0.0, %v3438
        %v3440 = vpop.f32.mrf.mxu0
        %v3441 = vpop.f32.mrf.mxu0
        %v3442 = vadd.f32 0.0, %v3441
        %v3443 = vpop.f32.mrf.mxu0
        %3444 = vmatprep.mubr.bf16.mxu0 %v3143
        %3445 = vmatmul.mubr.bf16.gmra.mxu0 %v3142
        %v3446 = vpop.f32.mrf.mxu0
        %v3447 = vadd.f32 0.0, %v3446
        %v3448 = vpop.f32.mrf.mxu0
        %v3449 = vpop.f32.mrf.mxu0
        %v3450 = vadd.f32 0.0, %v3449
        %v3451 = vpop.f32.mrf.mxu0
        %3452 = vmatprep.mubr.bf16.mxu0 %v3146
        %3453 = vmatmul.mubr.bf16.gmra.mxu0 %v3145
        %v3454 = vpop.f32.mrf.mxu0
        %v3455 = vadd.f32 0.0, %v3454
        %v3456 = vpop.f32.mrf.mxu0
        %v3457 = vpop.f32.mrf.mxu0
        %v3458 = vadd.f32 0.0, %v3457
        %v3459 = vpop.f32.mrf.mxu0
        %3460 = vmatprep.mubr.bf16.mxu0 %v3149
        %3461 = vmatmul.mubr.bf16.gmra.mxu0 %v3148
        %v3462 = vpop.f32.mrf.mxu0
        %v3463 = vadd.f32 0.0, %v3462
        %v3464 = vpop.f32.mrf.mxu0
        %v3465 = vpop.f32.mrf.mxu0
        %v3466 = vadd.f32 0.0, %v3465
        %v3467 = vpop.f32.mrf.mxu0
        %3468 = vmatprep.mubr.bf16.mxu0 %v3152
        %3469 = vmatmul.mubr.bf16.gmra.mxu0 %v3151
        %v3470 = vpop.f32.mrf.mxu0
        %v3471 = vadd.f32 0.0, %v3470
        %v3472 = vpop.f32.mrf.mxu0
        %v3473 = vpop.f32.mrf.mxu0
        %v3474 = vadd.f32 0.0, %v3473
        %v3475 = vpop.f32.mrf.mxu0
        %3476 = vmatprep.mubr.bf16.mxu0 %v3155
        %3477 = vmatmul.mubr.bf16.gmra.mxu0 %v3154
        %v3478 = vpop.f32.mrf.mxu0
        %v3479 = vadd.f32 0.0, %v3478
        %v3480 = vpop.f32.mrf.mxu0
        %v3481 = vpop.f32.mrf.mxu0
        %v3482 = vadd.f32 0.0, %v3481
        %v3483 = vpop.f32.mrf.mxu0
        %3484 = vmatprep.mubr.bf16.mxu0 %v3158
        %3485 = vmatmul.mubr.bf16.gmra.mxu0 %v3157
        %v3486 = vpop.f32.mrf.mxu0
        %v3487 = vadd.f32 0.0, %v3486
        %v3488 = vpop.f32.mrf.mxu0
        %v3489 = vpop.f32.mrf.mxu0
        %v3490 = vadd.f32 0.0, %v3489
        %v3491 = vpop.f32.mrf.mxu0
        %3492 = vmatprep.mubr.bf16.mxu0 %v3161
        %3493 = vmatmul.mubr.bf16.gmra.mxu0 %v3160
        %v3494 = vpop.f32.mrf.mxu0
        %v3495 = vadd.f32 0.0, %v3494
        %v3496 = vpop.f32.mrf.mxu0
        %v3497 = vpop.f32.mrf.mxu0
        %v3498 = vadd.f32 0.0, %v3497
        %v3499 = vpop.f32.mrf.mxu0
        %3500 = vmatprep.mubr.bf16.mxu0 %v3164
        %3501 = vmatmul.mubr.bf16.gmra.mxu0 %v3163
        %v3502 = vpop.f32.mrf.mxu0
        %v3503 = vadd.f32 0.0, %v3502
        %v3504 = vpop.f32.mrf.mxu0
        %v3505 = vpop.f32.mrf.mxu0
        %v3506 = vadd.f32 0.0, %v3505
        %v3507 = vpop.f32.mrf.mxu0
        %3508 = vmatprep.mubr.bf16.mxu0 %v3167
        %3509 = vmatmul.mubr.bf16.gmra.mxu0 %v3166
        %v3510 = vpop.f32.mrf.mxu0
        %v3511 = vadd.f32 0.0, %v3510
        %v3512 = vpop.f32.mrf.mxu0
        %v3513 = vpop.f32.mrf.mxu0
        %v3514 = vadd.f32 0.0, %v3513
        %v3515 = vpop.f32.mrf.mxu0
        %3516 = vmatprep.mubr.bf16.mxu0 %v3170
        %3517 = vmatmul.mubr.bf16.gmra.mxu0 %v3169
        %v3518 = vpop.f32.mrf.mxu0
        %v3519 = vadd.f32 0.0, %v3518
        %v3520 = vpop.f32.mrf.mxu0
        %v3521 = vpop.f32.mrf.mxu0
        %v3522 = vadd.f32 0.0, %v3521
        %v3523 = vpop.f32.mrf.mxu0
        %3524 = vdwg.mxu0
        %3525 = vmatprep.subr.bf16.mxu0 0
        %3526 = vmatpush1.bf16.msra.mxu0 %v3339
        %3527 = vmatprep.subr.bf16.mxu0 0
        %3528 = vmatpush1.bf16.msra.mxu0 %v3338
        %3529 = vmatprep.subr.bf16.mxu0 0
        %3530 = vmatpush1.bf16.msra.mxu0 %v3337
        %3531 = vmatprep.subr.bf16.mxu0 0
        %3532 = vmatpush1.bf16.msra.mxu0 %v3336
        %3533 = vmatprep.subr.bf16.mxu0 0
        %3534 = vmatpush1.bf16.msra.mxu0 %v3335
        %3535 = vmatprep.subr.bf16.mxu0 0
        %3536 = vmatpush1.bf16.msra.mxu0 %v3334
        %3537 = vmatprep.subr.bf16.mxu0 0
        %3538 = vmatpush1.bf16.msra.mxu0 %v3333
        %3539 = vmatprep.subr.bf16.mxu0 0
        %3540 = vmatpush1.bf16.msra.mxu0 %v3332
        %3541 = vmatprep.subr.bf16.mxu0 0
        %3542 = vmatpush2.bf16.msra.mxu0 0
        %3543 = vmatprep.subr.bf16.mxu0 0
        %3544 = vmatpush2.bf16.msra.mxu0 0
        %3545 = vmatprep.subr.bf16.mxu0 0
        %3546 = vmatpush2.bf16.msra.mxu0 0
        %3547 = vmatprep.subr.bf16.mxu0 0
        %3548 = vmatpush2.bf16.msra.mxu0 0
        %3549 = vmatprep.subr.bf16.mxu0 0
        %3550 = vmatpush2.bf16.msra.mxu0 0
        %3551 = vmatprep.subr.bf16.mxu0 0
        %3552 = vmatpush2.bf16.msra.mxu0 0
        %3553 = vmatprep.subr.bf16.mxu0 0
        %3554 = vmatpush2.bf16.msra.mxu0 0
        %3555 = vmatprep.subr.bf16.mxu0 0
        %3556 = vmatpush2.bf16.msra.mxu0 0
        %3557 = vmatprep.mubr.bf16.mxu0 0
        %3558 = vmatmul.mubr.bf16.gmra.mxu0 %v3126
        %v3559 = vpop.f32.mrf.mxu0
        %v3560 = vadd.f32 %v3399, %v3559
        %v3561 = vpop.f32.mrf.mxu0
        %v3562 = vpop.f32.mrf.mxu0
        %v3563 = vadd.f32 %v3402, %v3562
        %v3564 = vpop.f32.mrf.mxu0
        %3565 = vmatprep.mubr.bf16.mxu0 0
        %3566 = vmatmul.mubr.bf16.gmra.mxu0 %v3129
        %v3567 = vpop.f32.mrf.mxu0
        %v3568 = vadd.f32 %v3407, %v3567
        %v3569 = vpop.f32.mrf.mxu0
        %v3570 = vpop.f32.mrf.mxu0
        %v3571 = vadd.f32 %v3410, %v3570
        %v3572 = vpop.f32.mrf.mxu0
        %3573 = vmatprep.mubr.bf16.mxu0 0
        %3574 = vmatmul.mubr.bf16.gmra.mxu0 %v3132
        %v3575 = vpop.f32.mrf.mxu0
        %v3576 = vadd.f32 %v3415, %v3575
        %v3577 = vpop.f32.mrf.mxu0
        %v3578 = vpop.f32.mrf.mxu0
        %v3579 = vadd.f32 %v3418, %v3578
        %v3580 = vpop.f32.mrf.mxu0
        %3581 = vmatprep.mubr.bf16.mxu0 0
        %3582 = vmatmul.mubr.bf16.gmra.mxu0 %v3135
        %v3583 = vpop.f32.mrf.mxu0
        %v3584 = vadd.f32 %v3423, %v3583
        %v3585 = vpop.f32.mrf.mxu0
        %v3586 = vpop.f32.mrf.mxu0
        %v3587 = vadd.f32 %v3426, %v3586
        %v3588 = vpop.f32.mrf.mxu0
        %3589 = vmatprep.mubr.bf16.mxu0 0
        %3590 = vmatmul.mubr.bf16.gmra.mxu0 %v3138
        %v3591 = vpop.f32.mrf.mxu0
        %v3592 = vadd.f32 %v3431, %v3591
        %v3593 = vpop.f32.mrf.mxu0
        %v3594 = vpop.f32.mrf.mxu0
        %v3595 = vadd.f32 %v3434, %v3594
        %v3596 = vpop.f32.mrf.mxu0
        %3597 = vmatprep.mubr.bf16.mxu0 0
        %3598 = vmatmul.mubr.bf16.gmra.mxu0 %v3141
        %v3599 = vpop.f32.mrf.mxu0
        %v3600 = vadd.f32 %v3439, %v3599
        %v3601 = vpop.f32.mrf.mxu0
        %v3602 = vpop.f32.mrf.mxu0
        %v3603 = vadd.f32 %v3442, %v3602
        %v3604 = vpop.f32.mrf.mxu0
        %3605 = vmatprep.mubr.bf16.mxu0 0
        %3606 = vmatmul.mubr.bf16.gmra.mxu0 %v3144
        %v3607 = vpop.f32.mrf.mxu0
        %v3608 = vadd.f32 %v3447, %v3607
        %v3609 = vpop.f32.mrf.mxu0
        %v3610 = vpop.f32.mrf.mxu0
        %v3611 = vadd.f32 %v3450, %v3610
        %v3612 = vpop.f32.mrf.mxu0
        %3613 = vmatprep.mubr.bf16.mxu0 0
        %3614 = vmatmul.mubr.bf16.gmra.mxu0 %v3147
        %v3615 = vpop.f32.mrf.mxu0
        %v3616 = vadd.f32 %v3455, %v3615
        %v3617 = vpop.f32.mrf.mxu0
        %v3618 = vpop.f32.mrf.mxu0
        %v3619 = vadd.f32 %v3458, %v3618
        %v3620 = vpop.f32.mrf.mxu0
        %3621 = vmatprep.mubr.bf16.mxu0 0
        %3622 = vmatmul.mubr.bf16.gmra.mxu0 %v3150
        %v3623 = vpop.f32.mrf.mxu0
        %v3624 = vadd.f32 %v3463, %v3623
        %v3625 = vpop.f32.mrf.mxu0
        %v3626 = vpop.f32.mrf.mxu0
        %v3627 = vadd.f32 %v3466, %v3626
        %v3628 = vpop.f32.mrf.mxu0
        %3629 = vmatprep.mubr.bf16.mxu0 0
        %3630 = vmatmul.mubr.bf16.gmra.mxu0 %v3153
        %v3631 = vpop.f32.mrf.mxu0
        %v3632 = vadd.f32 %v3471, %v3631
        %v3633 = vpop.f32.mrf.mxu0
        %v3634 = vpop.f32.mrf.mxu0
        %v3635 = vadd.f32 %v3474, %v3634
        %v3636 = vpop.f32.mrf.mxu0
        %3637 = vmatprep.mubr.bf16.mxu0 0
        %3638 = vmatmul.mubr.bf16.gmra.mxu0 %v3156
        %v3639 = vpop.f32.mrf.mxu0
        %v3640 = vadd.f32 %v3479, %v3639
        %v3641 = vpop.f32.mrf.mxu0
        %v3642 = vpop.f32.mrf.mxu0
        %v3643 = vadd.f32 %v3482, %v3642
        %v3644 = vpop.f32.mrf.mxu0
        %3645 = vmatprep.mubr.bf16.mxu0 0
        %3646 = vmatmul.mubr.bf16.gmra.mxu0 %v3159
        %v3647 = vpop.f32.mrf.mxu0
        %v3648 = vadd.f32 %v3487, %v3647
        %v3649 = vpop.f32.mrf.mxu0
        %v3650 = vpop.f32.mrf.mxu0
        %v3651 = vadd.f32 %v3490, %v3650
        %v3652 = vpop.f32.mrf.mxu0
        %3653 = vmatprep.mubr.bf16.mxu0 0
        %3654 = vmatmul.mubr.bf16.gmra.mxu0 %v3162
        %v3655 = vpop.f32.mrf.mxu0
        %v3656 = vadd.f32 %v3495, %v3655
        %v3657 = vpop.f32.mrf.mxu0
        %v3658 = vpop.f32.mrf.mxu0
        %v3659 = vadd.f32 %v3498, %v3658
        %v3660 = vpop.f32.mrf.mxu0
        %3661 = vmatprep.mubr.bf16.mxu0 0
        %3662 = vmatmul.mubr.bf16.gmra.mxu0 %v3165
        %v3663 = vpop.f32.mrf.mxu0
        %v3664 = vadd.f32 %v3503, %v3663
        %v3665 = vpop.f32.mrf.mxu0
        %v3666 = vpop.f32.mrf.mxu0
        %v3667 = vadd.f32 %v3506, %v3666
        %v3668 = vpop.f32.mrf.mxu0
        %3669 = vmatprep.mubr.bf16.mxu0 0
        %3670 = vmatmul.mubr.bf16.gmra.mxu0 %v3168
        %v3671 = vpop.f32.mrf.mxu0
        %v3672 = vadd.f32 %v3511, %v3671
        %v3673 = vpop.f32.mrf.mxu0
        %v3674 = vpop.f32.mrf.mxu0
        %v3675 = vadd.f32 %v3514, %v3674
        %v3676 = vpop.f32.mrf.mxu0
        %3677 = vmatprep.mubr.bf16.mxu0 0
        %3678 = vmatmul.mubr.bf16.gmra.mxu0 %v3171
        %v3679 = vpop.f32.mrf.mxu0
        %v3680 = vadd.f32 %v3519, %v3679
        %v3681 = vpop.f32.mrf.mxu0
        %v3682 = vpop.f32.mrf.mxu0
        %v3683 = vadd.f32 %v3522, %v3682
        %v3684 = vpop.f32.mrf.mxu0
        %3685 = vdwg.mxu0
        %v3686 = vadd.f32 %v2725, %v3560
        %v3687 = vadd.f32 %v2728, %v3563
        %v3688 = vadd.f32 %v2733, %v3568
        %v3689 = vadd.f32 %v2736, %v3571
        %v3690 = vadd.f32 %v2741, %v3576
        %v3691 = vadd.f32 %v2744, %v3579
        %v3692 = vadd.f32 %v2749, %v3584
        %v3693 = vadd.f32 %v2752, %v3587
        %v3694 = vadd.f32 %v2757, %v3592
        %v3695 = vadd.f32 %v2760, %v3595
        %v3696 = vadd.f32 %v2765, %v3600
        %v3697 = vadd.f32 %v2768, %v3603
        %v3698 = vadd.f32 %v2773, %v3608
        %v3699 = vadd.f32 %v2776, %v3611
        %v3700 = vadd.f32 %v2781, %v3616
        %v3701 = vadd.f32 %v2784, %v3619
        %v3702 = vadd.f32 %v2789, %v3624
        %v3703 = vadd.f32 %v2792, %v3627
        %v3704 = vadd.f32 %v2797, %v3632
        %v3705 = vadd.f32 %v2800, %v3635
        %v3706 = vadd.f32 %v2805, %v3640
        %v3707 = vadd.f32 %v2808, %v3643
        %v3708 = vadd.f32 %v2813, %v3648
        %v3709 = vadd.f32 %v2816, %v3651
        %v3710 = vadd.f32 %v2821, %v3656
        %v3711 = vadd.f32 %v2824, %v3659
        %v3712 = vadd.f32 %v2829, %v3664
        %v3713 = vadd.f32 %v2832, %v3667
        %v3714 = vadd.f32 %v2837, %v3672
        %v3715 = vadd.f32 %v2840, %v3675
        %v3716 = vadd.f32 %v2845, %v3680
        %v3717 = vadd.f32 %v2848, %v3683
        %v3718 = vadd.f32 %v3686, %v3687
        %v3719 = vadd.f32 %v3718, %v3688
        %v3720 = vadd.f32 %v3719, %v3689
        %v3721 = vadd.f32 %v3720, %v3690
        %v3722 = vadd.f32 %v3721, %v3691
        %v3723 = vadd.f32 %v3722, %v3692
        %v3724 = vadd.f32 %v3723, %v3693
        %v3725 = vadd.f32 %v3724, %v3694
        %v3726 = vadd.f32 %v3725, %v3695
        %v3727 = vadd.f32 %v3726, %v3696
        %v3728 = vadd.f32 %v3727, %v3697
        %v3729 = vadd.f32 %v3728, %v3698
        %v3730 = vadd.f32 %v3729, %v3699
        %v3731 = vadd.f32 %v3730, %v3700
        %v3732 = vadd.f32 %v3731, %v3701
        %v3733 = vadd.f32 %v3732, %v3702
        %v3734 = vadd.f32 %v3733, %v3703
        %v3735 = vadd.f32 %v3734, %v3704
        %v3736 = vadd.f32 %v3735, %v3705
        %v3737 = vadd.f32 %v3736, %v3706
        %v3738 = vadd.f32 %v3737, %v3707
        %v3739 = vadd.f32 %v3738, %v3708
        %v3740 = vadd.f32 %v3739, %v3709
        %v3741 = vadd.f32 %v3740, %v3710
        %v3742 = vadd.f32 %v3741, %v3711
        %v3743 = vadd.f32 %v3742, %v3712
        %v3744 = vadd.f32 %v3743, %v3713
        %v3745 = vadd.f32 %v3744, %v3714
        %v3746 = vadd.f32 %v3745, %v3715
        %v3747 = vadd.f32 %v3746, %v3716
        %v3748 = vadd.f32 %v3747, %v3717
        %v3749 = vrot.slane %v3748, 4
        %v3750 = vadd.f32 %v3748, %v3749
        %v3751 = vrot.slane %v3750, 2
        %v3752 = vadd.f32 %v3750, %v3751
        %v3753 = vrot.slane %v3752, 1
        %v3754 = vadd.f32 %v3752, %v3753
        %v3755 = vmul.f32 %v3754, 0.00390625
        %v3756 = vsub.f32 %v3686, %v3755
        %v3757 = vsub.f32 %v3687, %v3755
        %v3758 = vsub.f32 %v3688, %v3755
        %v3759 = vsub.f32 %v3689, %v3755
        %v3760 = vsub.f32 %v3690, %v3755
        %v3761 = vsub.f32 %v3691, %v3755
        %v3762 = vsub.f32 %v3692, %v3755
        %v3763 = vsub.f32 %v3693, %v3755
        %v3764 = vsub.f32 %v3694, %v3755
        %v3765 = vsub.f32 %v3695, %v3755
        %v3766 = vsub.f32 %v3696, %v3755
        %v3767 = vsub.f32 %v3697, %v3755
        %v3768 = vsub.f32 %v3698, %v3755
        %v3769 = vsub.f32 %v3699, %v3755
        %v3770 = vsub.f32 %v3700, %v3755
        %v3771 = vsub.f32 %v3701, %v3755
        %v3772 = vsub.f32 %v3702, %v3755
        %v3773 = vsub.f32 %v3703, %v3755
        %v3774 = vsub.f32 %v3704, %v3755
        %v3775 = vsub.f32 %v3705, %v3755
        %v3776 = vsub.f32 %v3706, %v3755
        %v3777 = vsub.f32 %v3707, %v3755
        %v3778 = vsub.f32 %v3708, %v3755
        %v3779 = vsub.f32 %v3709, %v3755
        %v3780 = vsub.f32 %v3710, %v3755
        %v3781 = vsub.f32 %v3711, %v3755
        %v3782 = vsub.f32 %v3712, %v3755
        %v3783 = vsub.f32 %v3713, %v3755
        %v3784 = vsub.f32 %v3714, %v3755
        %v3785 = vsub.f32 %v3715, %v3755
        %v3786 = vsub.f32 %v3716, %v3755
        %v3787 = vsub.f32 %v3717, %v3755
        %v3788 = vmul.f32 %v3756, %v3756
        %v3789 = vmul.f32 %v3757, %v3757
        %v3790 = vmul.f32 %v3758, %v3758
        %v3791 = vmul.f32 %v3759, %v3759
        %v3792 = vmul.f32 %v3760, %v3760
        %v3793 = vmul.f32 %v3761, %v3761
        %v3794 = vmul.f32 %v3762, %v3762
        %v3795 = vmul.f32 %v3763, %v3763
        %v3796 = vmul.f32 %v3764, %v3764
        %v3797 = vmul.f32 %v3765, %v3765
        %v3798 = vmul.f32 %v3766, %v3766
        %v3799 = vmul.f32 %v3767, %v3767
        %v3800 = vmul.f32 %v3768, %v3768
        %v3801 = vmul.f32 %v3769, %v3769
        %v3802 = vmul.f32 %v3770, %v3770
        %v3803 = vmul.f32 %v3771, %v3771
        %v3804 = vmul.f32 %v3772, %v3772
        %v3805 = vmul.f32 %v3773, %v3773
        %v3806 = vmul.f32 %v3774, %v3774
        %v3807 = vmul.f32 %v3775, %v3775
        %v3808 = vmul.f32 %v3776, %v3776
        %v3809 = vmul.f32 %v3777, %v3777
        %v3810 = vmul.f32 %v3778, %v3778
        %v3811 = vmul.f32 %v3779, %v3779
        %v3812 = vmul.f32 %v3780, %v3780
        %v3813 = vmul.f32 %v3781, %v3781
        %v3814 = vmul.f32 %v3782, %v3782
        %v3815 = vmul.f32 %v3783, %v3783
        %v3816 = vmul.f32 %v3784, %v3784
        %v3817 = vmul.f32 %v3785, %v3785
        %v3818 = vmul.f32 %v3786, %v3786
        %v3819 = vmul.f32 %v3787, %v3787
        %v3820 = vadd.f32 %v3788, %v3789
        %v3821 = vadd.f32 %v3820, %v3790
        %v3822 = vadd.f32 %v3821, %v3791
        %v3823 = vadd.f32 %v3822, %v3792
        %v3824 = vadd.f32 %v3823, %v3793
        %v3825 = vadd.f32 %v3824, %v3794
        %v3826 = vadd.f32 %v3825, %v3795
        %v3827 = vadd.f32 %v3826, %v3796
        %v3828 = vadd.f32 %v3827, %v3797
        %v3829 = vadd.f32 %v3828, %v3798
        %v3830 = vadd.f32 %v3829, %v3799
        %v3831 = vadd.f32 %v3830, %v3800
        %v3832 = vadd.f32 %v3831, %v3801
        %v3833 = vadd.f32 %v3832, %v3802
        %v3834 = vadd.f32 %v3833, %v3803
        %v3835 = vadd.f32 %v3834, %v3804
        %v3836 = vadd.f32 %v3835, %v3805
        %v3837 = vadd.f32 %v3836, %v3806
        %v3838 = vadd.f32 %v3837, %v3807
        %v3839 = vadd.f32 %v3838, %v3808
        %v3840 = vadd.f32 %v3839, %v3809
        %v3841 = vadd.f32 %v3840, %v3810
        %v3842 = vadd.f32 %v3841, %v3811
        %v3843 = vadd.f32 %v3842, %v3812
        %v3844 = vadd.f32 %v3843, %v3813
        %v3845 = vadd.f32 %v3844, %v3814
        %v3846 = vadd.f32 %v3845, %v3815
        %v3847 = vadd.f32 %v3846, %v3816
        %v3848 = vadd.f32 %v3847, %v3817
        %v3849 = vadd.f32 %v3848, %v3818
        %v3850 = vadd.f32 %v3849, %v3819
        %v3851 = vrot.slane %v3850, 4
        %v3852 = vadd.f32 %v3850, %v3851
        %v3853 = vrot.slane %v3852, 2
        %v3854 = vadd.f32 %v3852, %v3853
        %v3855 = vrot.slane %v3854, 1
        %v3856 = vadd.f32 %v3854, %v3855
        %v3857 = vmul.f32 %v3856, 0.00390625
        %v3858 = vadd.f32 %v3857, 1e-05
        %v3859 = vrsqrt.pop %v3858
        %v3860 = vmul.f32 %v3756, %v3859
        %v3861 = vmul.f32 %v3757, %v3859
        %v3862 = vmul.f32 %v3758, %v3859
        %v3863 = vmul.f32 %v3759, %v3859
        %v3864 = vmul.f32 %v3760, %v3859
        %v3865 = vmul.f32 %v3761, %v3859
        %v3866 = vmul.f32 %v3762, %v3859
        %v3867 = vmul.f32 %v3763, %v3859
        %v3868 = vmul.f32 %v3764, %v3859
        %v3869 = vmul.f32 %v3765, %v3859
        %v3870 = vmul.f32 %v3766, %v3859
        %v3871 = vmul.f32 %v3767, %v3859
        %v3872 = vmul.f32 %v3768, %v3859
        %v3873 = vmul.f32 %v3769, %v3859
        %v3874 = vmul.f32 %v3770, %v3859
        %v3875 = vmul.f32 %v3771, %v3859
        %v3876 = vmul.f32 %v3772, %v3859
        %v3877 = vmul.f32 %v3773, %v3859
        %v3878 = vmul.f32 %v3774, %v3859
        %v3879 = vmul.f32 %v3775, %v3859
        %v3880 = vmul.f32 %v3776, %v3859
        %v3881 = vmul.f32 %v3777, %v3859
        %v3882 = vmul.f32 %v3778, %v3859
        %v3883 = vmul.f32 %v3779, %v3859
        %v3884 = vmul.f32 %v3780, %v3859
        %v3885 = vmul.f32 %v3781, %v3859
        %v3886 = vmul.f32 %v3782, %v3859
        %v3887 = vmul.f32 %v3783, %v3859
        %v3888 = vmul.f32 %v3784, %v3859
        %v3889 = vmul.f32 %v3785, %v3859
        %v3890 = vmul.f32 %v3786, %v3859
        %v3891 = vmul.f32 %v3787, %v3859
        %v3892 = vmax.f32 %v3860, 0.0
        %v3893 = vmax.f32 %v3861, 0.0
        %v3894 = vmax.f32 %v3862, 0.0
        %v3895 = vmax.f32 %v3863, 0.0
        %v3896 = vmax.f32 %v3864, 0.0
        %v3897 = vmax.f32 %v3865, 0.0
        %v3898 = vmax.f32 %v3866, 0.0
        %v3899 = vmax.f32 %v3867, 0.0
        %v3900 = vmax.f32 %v3868, 0.0
        %v3901 = vmax.f32 %v3869, 0.0
        %v3902 = vmax.f32 %v3870, 0.0
        %v3903 = vmax.f32 %v3871, 0.0
        %v3904 = vmax.f32 %v3872, 0.0
        %v3905 = vmax.f32 %v3873, 0.0
        %v3906 = vmax.f32 %v3874, 0.0
        %v3907 = vmax.f32 %v3875, 0.0
        %v3908 = vmax.f32 %v3876, 0.0
        %v3909 = vmax.f32 %v3877, 0.0
        %v3910 = vmax.f32 %v3878, 0.0
        %v3911 = vmax.f32 %v3879, 0.0
        %v3912 = vmax.f32 %v3880, 0.0
        %v3913 = vmax.f32 %v3881, 0.0
        %v3914 = vmax.f32 %v3882, 0.0
        %v3915 = vmax.f32 %v3883, 0.0
        %v3916 = vmax.f32 %v3884, 0.0
        %v3917 = vmax.f32 %v3885, 0.0
        %v3918 = vmax.f32 %v3886, 0.0
        %v3919 = vmax.f32 %v3887, 0.0
        %v3920 = vmax.f32 %v3888, 0.0
        %v3921 = vmax.f32 %v3889, 0.0
        %v3922 = vmax.f32 %v3890, 0.0
        %v3923 = vmax.f32 %v3891, 0.0
        %v3924 = vpack.c.bf16 %v3893, %v3892
        %v3925 = vpack.c.bf16 %v3895, %v3894
        %v3926 = vpack.c.bf16 %v3897, %v3896
        %v3927 = vpack.c.bf16 %v3899, %v3898
        %v3928 = vpack.c.bf16 %v3901, %v3900
        %v3929 = vpack.c.bf16 %v3903, %v3902
        %v3930 = vpack.c.bf16 %v3905, %v3904
        %v3931 = vpack.c.bf16 %v3907, %v3906
        %v3932 = vpack.c.bf16 %v3909, %v3908
        %v3933 = vpack.c.bf16 %v3911, %v3910
        %v3934 = vpack.c.bf16 %v3913, %v3912
        %v3935 = vpack.c.bf16 %v3915, %v3914
        %v3936 = vpack.c.bf16 %v3917, %v3916
        %v3937 = vpack.c.bf16 %v3919, %v3918
        %v3938 = vpack.c.bf16 %v3921, %v3920
        %v3939 = vpack.c.bf16 %v3923, %v3922
        %v3956 = vunpack.c.l.b16 %v3924
        %v3957 = vunpack.c.h.b16 %v3924
        %v3958 = vunpack.c.l.b16 %v3925
        %v3959 = vunpack.c.h.b16 %v3925
        %v3960 = vunpack.c.l.b16 %v3926
        %v3961 = vunpack.c.h.b16 %v3926
        %v3962 = vunpack.c.l.b16 %v3927
        %v3963 = vunpack.c.h.b16 %v3927
        %v3964 = vunpack.c.l.b16 %v3928
        %v3965 = vunpack.c.h.b16 %v3928
        %v3966 = vunpack.c.l.b16 %v3929
        %v3967 = vunpack.c.h.b16 %v3929
        %v3968 = vunpack.c.l.b16 %v3930
        %v3969 = vunpack.c.h.b16 %v3930
        %v3970 = vunpack.c.l.b16 %v3931
        %v3971 = vunpack.c.h.b16 %v3931
        %v3972 = vunpack.c.l.b16 %v3932
        %v3973 = vunpack.c.h.b16 %v3932
        %v3974 = vunpack.c.l.b16 %v3933
        %v3975 = vunpack.c.h.b16 %v3933
        %v3976 = vunpack.c.l.b16 %v3934
        %v3977 = vunpack.c.h.b16 %v3934
        %v3978 = vunpack.c.l.b16 %v3935
        %v3979 = vunpack.c.h.b16 %v3935
        %v3980 = vunpack.c.l.b16 %v3936
        %v3981 = vunpack.c.h.b16 %v3936
        %v3982 = vunpack.c.l.b16 %v3937
        %v3983 = vunpack.c.h.b16 %v3937
        %v3984 = vunpack.c.l.b16 %v3938
        %v3985 = vunpack.c.h.b16 %v3938
        %v3986 = vunpack.c.l.b16 %v3939
        %v3987 = vunpack.c.h.b16 %v3939
        %v3988 = vpack.c.b16 %v3956, %v3956
        %v3989 = vpack.c.b16 %v3957, %v3957
        %v3990 = vpack.c.b16 %v3958, %v3958
        %v3991 = vpack.c.b16 %v3959, %v3959
        %v3992 = vpack.c.b16 %v3960, %v3960
        %v3993 = vpack.c.b16 %v3961, %v3961
        %v3994 = vpack.c.b16 %v3962, %v3962
        %v3995 = vpack.c.b16 %v3963, %v3963
        %v3996 = vpack.c.b16 %v3964, %v3964
        %v3997 = vpack.c.b16 %v3965, %v3965
        %v3998 = vpack.c.b16 %v3966, %v3966
        %v3999 = vpack.c.b16 %v3967, %v3967
        %v4000 = vpack.c.b16 %v3968, %v3968
        %v4001 = vpack.c.b16 %v3969, %v3969
        %v4002 = vpack.c.b16 %v3970, %v3970
        %v4003 = vpack.c.b16 %v3971, %v3971
        %v4004 = vpack.c.b16 %v3972, %v3972
        %v4005 = vpack.c.b16 %v3973, %v3973
        %v4006 = vpack.c.b16 %v3974, %v3974
        %v4007 = vpack.c.b16 %v3975, %v3975
        %v4008 = vpack.c.b16 %v3976, %v3976
        %v4009 = vpack.c.b16 %v3977, %v3977
        %v4010 = vpack.c.b16 %v3978, %v3978
        %v4011 = vpack.c.b16 %v3979, %v3979
        %v4012 = vpack.c.b16 %v3980, %v3980
        %v4013 = vpack.c.b16 %v3981, %v3981
        %v4014 = vpack.c.b16 %v3982, %v3982
        %v4015 = vpack.c.b16 %v3983, %v3983
        %v4016 = vpack.c.b16 %v3984, %v3984
        %v4017 = vpack.c.b16 %v3985, %v3985
        %v4018 = vpack.c.b16 %v3986, %v3986
        %v4019 = vpack.c.b16 %v3987, %v3987
        %4052 = vst [vmem:[%s379 + $0x4] sm:$0xf] %v3988
        %4053 = vst [vmem:[%s379 + $0x10] sm:$0xf] %v3989
        %4054 = vst [vmem:[%s379 + $0x1c] sm:$0xf] %v3990
        %4055 = vst [vmem:[%s379 + $0x28] sm:$0xf] %v3991
        %4056 = vst [vmem:[%s379 + $0x34] sm:$0xf] %v3992
        %4057 = vst [vmem:[%s379 + $0x40] sm:$0xf] %v3993
        %4058 = vst [vmem:[%s379 + $0x4c] sm:$0xf] %v3994
        %4059 = vst [vmem:[%s379 + $0x58] sm:$0xf] %v3995
        %4060 = vst [vmem:[%s379 + $0x64] sm:$0xf] %v3996
        %4061 = vst [vmem:[%s379 + $0x70] sm:$0xf] %v3997
        %4062 = vst [vmem:[%s379 + $0x7c] sm:$0xf] %v3998
        %4063 = vst [vmem:[%s379 + $0x88] sm:$0xf] %v3999
        %4064 = vst [vmem:[%s379 + $0x94] sm:$0xf] %v4000
        %4065 = vst [vmem:[%s379 + $0xa0] sm:$0xf] %v4001
        %4066 = vst [vmem:[%s379 + $0xac] sm:$0xf] %v4002
        %4067 = vst [vmem:[%s379 + $0xb8] sm:$0xf] %v4003
        %4068 = vst [vmem:[%s379 + $0xc4] sm:$0xf] %v4004
        %4069 = vst [vmem:[%s379 + $0xd0] sm:$0xf] %v4005
        %4070 = vst [vmem:[%s379 + $0xdc] sm:$0xf] %v4006
        %4071 = vst [vmem:[%s379 + $0xe8] sm:$0xf] %v4007
        %4072 = vst [vmem:[%s379 + $0xf4] sm:$0xf] %v4008
        %4073 = vst [vmem:[%s379 + $0x100] sm:$0xf] %v4009
        %4074 = vst [vmem:[%s379 + $0x10c] sm:$0xf] %v4010
        %4075 = vst [vmem:[%s379 + $0x118] sm:$0xf] %v4011
        %4076 = vst [vmem:[%s379 + $0x124] sm:$0xf] %v4012
        %4077 = vst [vmem:[%s379 + $0x130] sm:$0xf] %v4013
        %4078 = vst [vmem:[%s379 + $0x13c] sm:$0xf] %v4014
        %4079 = vst [vmem:[%s379 + $0x148] sm:$0xf] %v4015
        %4080 = vst [vmem:[%s379 + $0x154] sm:$0xf] %v4016
        %4081 = vst [vmem:[%s379 + $0x160] sm:$0xf] %v4017
        %4082 = vst [vmem:[%s379 + $0x16c] sm:$0xf] %v4018
        %4083 = vst [vmem:[%s379 + $0x178] sm:$0xf] %v4019
        %v4085 = vshrl.u32 %v3988, 16
        %v4087 = vrot.slane %v4085, 7
        %v4088 = vshll.u32 %v3988, 16
        %v4090 = vor.u32 %v4087, %v4088
        %v4091 = vrot.slane %v4087, 4
        %v4093 = vshrl.u32 %v3989, 16
        %v4095 = vrot.slane %v4093, 7
        %v4096 = vshll.u32 %v3989, 16
        %v4098 = vor.u32 %v4095, %v4096
        %v4099 = vsel %vm414, %v4091, %v4098
        %v4101 = vshrl.u32 %v3990, 16
        %v4103 = vrot.slane %v4101, 7
        %v4104 = vshll.u32 %v3990, 16
        %v4106 = vor.u32 %v4103, %v4104
        %v4107 = vrot.slane %v4103, 4
        %v4109 = vshrl.u32 %v3991, 16
        %v4111 = vrot.slane %v4109, 7
        %v4112 = vshll.u32 %v3991, 16
        %v4114 = vor.u32 %v4111, %v4112
        %v4115 = vsel %vm414, %v4107, %v4114
        %v4117 = vshrl.u32 %v3992, 16
        %v4119 = vrot.slane %v4117, 7
        %v4120 = vshll.u32 %v3992, 16
        %v4122 = vor.u32 %v4119, %v4120
        %v4123 = vrot.slane %v4119, 4
        %v4125 = vshrl.u32 %v3993, 16
        %v4127 = vrot.slane %v4125, 7
        %v4128 = vshll.u32 %v3993, 16
        %v4130 = vor.u32 %v4127, %v4128
        %v4131 = vsel %vm414, %v4123, %v4130
        %v4133 = vshrl.u32 %v3994, 16
        %v4135 = vrot.slane %v4133, 7
        %v4136 = vshll.u32 %v3994, 16
        %v4138 = vor.u32 %v4135, %v4136
        %v4139 = vrot.slane %v4135, 4
        %v4141 = vshrl.u32 %v3995, 16
        %v4143 = vrot.slane %v4141, 7
        %v4144 = vshll.u32 %v3995, 16
        %v4146 = vor.u32 %v4143, %v4144
        %v4147 = vsel %vm414, %v4139, %v4146
        %v4149 = vshrl.u32 %v3996, 16
        %v4151 = vrot.slane %v4149, 7
        %v4152 = vshll.u32 %v3996, 16
        %v4154 = vor.u32 %v4151, %v4152
        %v4155 = vrot.slane %v4151, 4
        %v4157 = vshrl.u32 %v3997, 16
        %v4159 = vrot.slane %v4157, 7
        %v4160 = vshll.u32 %v3997, 16
        %v4162 = vor.u32 %v4159, %v4160
        %v4163 = vsel %vm414, %v4155, %v4162
        %v4165 = vshrl.u32 %v3998, 16
        %v4167 = vrot.slane %v4165, 7
        %v4168 = vshll.u32 %v3998, 16
        %v4170 = vor.u32 %v4167, %v4168
        %v4171 = vrot.slane %v4167, 4
        %v4173 = vshrl.u32 %v3999, 16
        %v4175 = vrot.slane %v4173, 7
        %v4176 = vshll.u32 %v3999, 16
        %v4178 = vor.u32 %v4175, %v4176
        %v4179 = vsel %vm414, %v4171, %v4178
        %v4181 = vshrl.u32 %v4000, 16
        %v4183 = vrot.slane %v4181, 7
        %v4184 = vshll.u32 %v4000, 16
        %v4186 = vor.u32 %v4183, %v4184
        %v4187 = vrot.slane %v4183, 4
        %v4189 = vshrl.u32 %v4001, 16
        %v4191 = vrot.slane %v4189, 7
        %v4192 = vshll.u32 %v4001, 16
        %v4194 = vor.u32 %v4191, %v4192
        %v4195 = vsel %vm414, %v4187, %v4194
        %v4197 = vshrl.u32 %v4002, 16
        %v4199 = vrot.slane %v4197, 7
        %v4200 = vshll.u32 %v4002, 16
        %v4202 = vor.u32 %v4199, %v4200
        %v4203 = vrot.slane %v4199, 4
        %v4205 = vshrl.u32 %v4003, 16
        %v4207 = vrot.slane %v4205, 7
        %v4208 = vshll.u32 %v4003, 16
        %v4210 = vor.u32 %v4207, %v4208
        %v4211 = vsel %vm414, %v4203, %v4210
        %v4213 = vshrl.u32 %v4004, 16
        %v4215 = vrot.slane %v4213, 7
        %v4216 = vshll.u32 %v4004, 16
        %v4218 = vor.u32 %v4215, %v4216
        %v4219 = vrot.slane %v4215, 4
        %v4221 = vshrl.u32 %v4005, 16
        %v4223 = vrot.slane %v4221, 7
        %v4224 = vshll.u32 %v4005, 16
        %v4226 = vor.u32 %v4223, %v4224
        %v4227 = vsel %vm414, %v4219, %v4226
        %v4229 = vshrl.u32 %v4006, 16
        %v4231 = vrot.slane %v4229, 7
        %v4232 = vshll.u32 %v4006, 16
        %v4234 = vor.u32 %v4231, %v4232
        %v4235 = vrot.slane %v4231, 4
        %v4237 = vshrl.u32 %v4007, 16
        %v4239 = vrot.slane %v4237, 7
        %v4240 = vshll.u32 %v4007, 16
        %v4242 = vor.u32 %v4239, %v4240
        %v4243 = vsel %vm414, %v4235, %v4242
        %v4245 = vshrl.u32 %v4008, 16
        %v4247 = vrot.slane %v4245, 7
        %v4248 = vshll.u32 %v4008, 16
        %v4250 = vor.u32 %v4247, %v4248
        %v4251 = vrot.slane %v4247, 4
        %v4253 = vshrl.u32 %v4009, 16
        %v4255 = vrot.slane %v4253, 7
        %v4256 = vshll.u32 %v4009, 16
        %v4258 = vor.u32 %v4255, %v4256
        %v4259 = vsel %vm414, %v4251, %v4258
        %v4261 = vshrl.u32 %v4010, 16
        %v4263 = vrot.slane %v4261, 7
        %v4264 = vshll.u32 %v4010, 16
        %v4266 = vor.u32 %v4263, %v4264
        %v4267 = vrot.slane %v4263, 4
        %v4269 = vshrl.u32 %v4011, 16
        %v4271 = vrot.slane %v4269, 7
        %v4272 = vshll.u32 %v4011, 16
        %v4274 = vor.u32 %v4271, %v4272
        %v4275 = vsel %vm414, %v4267, %v4274
        %v4277 = vshrl.u32 %v4012, 16
        %v4279 = vrot.slane %v4277, 7
        %v4280 = vshll.u32 %v4012, 16
        %v4282 = vor.u32 %v4279, %v4280
        %v4283 = vrot.slane %v4279, 4
        %v4285 = vshrl.u32 %v4013, 16
        %v4287 = vrot.slane %v4285, 7
        %v4288 = vshll.u32 %v4013, 16
        %v4290 = vor.u32 %v4287, %v4288
        %v4291 = vsel %vm414, %v4283, %v4290
        %v4293 = vshrl.u32 %v4014, 16
        %v4295 = vrot.slane %v4293, 7
        %v4296 = vshll.u32 %v4014, 16
        %v4298 = vor.u32 %v4295, %v4296
        %v4299 = vrot.slane %v4295, 4
        %v4301 = vshrl.u32 %v4015, 16
        %v4303 = vrot.slane %v4301, 7
        %v4304 = vshll.u32 %v4015, 16
        %v4306 = vor.u32 %v4303, %v4304
        %v4307 = vsel %vm414, %v4299, %v4306
        %v4309 = vshrl.u32 %v4016, 16
        %v4311 = vrot.slane %v4309, 7
        %v4312 = vshll.u32 %v4016, 16
        %v4314 = vor.u32 %v4311, %v4312
        %v4315 = vrot.slane %v4311, 4
        %v4317 = vshrl.u32 %v4017, 16
        %v4319 = vrot.slane %v4317, 7
        %v4320 = vshll.u32 %v4017, 16
        %v4322 = vor.u32 %v4319, %v4320
        %v4323 = vsel %vm414, %v4315, %v4322
        %v4325 = vshrl.u32 %v4018, 16
        %v4327 = vrot.slane %v4325, 7
        %v4328 = vshll.u32 %v4018, 16
        %v4330 = vor.u32 %v4327, %v4328
        %v4331 = vrot.slane %v4327, 4
        %v4333 = vshrl.u32 %v4019, 16
        %v4335 = vrot.slane %v4333, 7
        %v4336 = vshll.u32 %v4019, 16
        %v4338 = vor.u32 %v4335, %v4336
        %v4339 = vsel %vm414, %v4331, %v4338
        %v4372 = vld [vmem:[%s379] sm:$0xf]
        %v4373 = vsel %vm705, %v4090, %v4372
        %4374 = vst [vmem:[%s379] sm:$0xf] %v4373
        %4375 = vst [vmem:[%s379 + $0xc] sm:$0xf] %v4099
        %v4376 = vld [vmem:[%s379 + $0x18] sm:$0xf]
        %v4377 = vsel %vm705, %v4106, %v4376
        %4378 = vst [vmem:[%s379 + $0x18] sm:$0xf] %v4377
        %4379 = vst [vmem:[%s379 + $0x24] sm:$0xf] %v4115
        %v4380 = vld [vmem:[%s379 + $0x30] sm:$0xf]
        %v4381 = vsel %vm705, %v4122, %v4380
        %4382 = vst [vmem:[%s379 + $0x30] sm:$0xf] %v4381
        %4383 = vst [vmem:[%s379 + $0x3c] sm:$0xf] %v4131
        %v4384 = vld [vmem:[%s379 + $0x48] sm:$0xf]
        %v4385 = vsel %vm705, %v4138, %v4384
        %4386 = vst [vmem:[%s379 + $0x48] sm:$0xf] %v4385
        %4387 = vst [vmem:[%s379 + $0x54] sm:$0xf] %v4147
        %v4388 = vld [vmem:[%s379 + $0x60] sm:$0xf]
        %v4389 = vsel %vm705, %v4154, %v4388
        %4390 = vst [vmem:[%s379 + $0x60] sm:$0xf] %v4389
        %4391 = vst [vmem:[%s379 + $0x6c] sm:$0xf] %v4163
        %v4392 = vld [vmem:[%s379 + $0x78] sm:$0xf]
        %v4393 = vsel %vm705, %v4170, %v4392
        %4394 = vst [vmem:[%s379 + $0x78] sm:$0xf] %v4393
        %4395 = vst [vmem:[%s379 + $0x84] sm:$0xf] %v4179
        %v4396 = vld [vmem:[%s379 + $0x90] sm:$0xf]
        %v4397 = vsel %vm705, %v4186, %v4396
        %4398 = vst [vmem:[%s379 + $0x90] sm:$0xf] %v4397
        %4399 = vst [vmem:[%s379 + $0x9c] sm:$0xf] %v4195
        %v4400 = vld [vmem:[%s379 + $0xa8] sm:$0xf]
        %v4401 = vsel %vm705, %v4202, %v4400
        %4402 = vst [vmem:[%s379 + $0xa8] sm:$0xf] %v4401
        %4403 = vst [vmem:[%s379 + $0xb4] sm:$0xf] %v4211
        %v4404 = vld [vmem:[%s379 + $0xc0] sm:$0xf]
        %v4405 = vsel %vm705, %v4218, %v4404
        %4406 = vst [vmem:[%s379 + $0xc0] sm:$0xf] %v4405
        %4407 = vst [vmem:[%s379 + $0xcc] sm:$0xf] %v4227
        %v4408 = vld [vmem:[%s379 + $0xd8] sm:$0xf]
        %v4409 = vsel %vm705, %v4234, %v4408
        %4410 = vst [vmem:[%s379 + $0xd8] sm:$0xf] %v4409
        %4411 = vst [vmem:[%s379 + $0xe4] sm:$0xf] %v4243
        %v4412 = vld [vmem:[%s379 + $0xf0] sm:$0xf]
        %v4413 = vsel %vm705, %v4250, %v4412
        %4414 = vst [vmem:[%s379 + $0xf0] sm:$0xf] %v4413
        %4415 = vst [vmem:[%s379 + $0xfc] sm:$0xf] %v4259
        %v4416 = vld [vmem:[%s379 + $0x108] sm:$0xf]
        %v4417 = vsel %vm705, %v4266, %v4416
        %4418 = vst [vmem:[%s379 + $0x108] sm:$0xf] %v4417
        %4419 = vst [vmem:[%s379 + $0x114] sm:$0xf] %v4275
        %v4420 = vld [vmem:[%s379 + $0x120] sm:$0xf]
        %v4421 = vsel %vm705, %v4282, %v4420
        %4422 = vst [vmem:[%s379 + $0x120] sm:$0xf] %v4421
        %4423 = vst [vmem:[%s379 + $0x12c] sm:$0xf] %v4291
        %v4424 = vld [vmem:[%s379 + $0x138] sm:$0xf]
        %v4425 = vsel %vm705, %v4298, %v4424
        %4426 = vst [vmem:[%s379 + $0x138] sm:$0xf] %v4425
        %4427 = vst [vmem:[%s379 + $0x144] sm:$0xf] %v4307
        %v4428 = vld [vmem:[%s379 + $0x150] sm:$0xf]
        %v4429 = vsel %vm705, %v4314, %v4428
        %4430 = vst [vmem:[%s379 + $0x150] sm:$0xf] %v4429
        %4431 = vst [vmem:[%s379 + $0x15c] sm:$0xf] %v4323
        %v4432 = vld [vmem:[%s379 + $0x168] sm:$0xf]
        %v4433 = vsel %vm705, %v4330, %v4432
        %4434 = vst [vmem:[%s379 + $0x168] sm:$0xf] %v4433
        %4435 = vst [vmem:[%s379 + $0x174] sm:$0xf] %v4339
        %v4436 = vrot.slane %v4085, 4
        %v4437 = vrot.slane %v4088, 5
        %v4438 = vor.u32 %v4436, %v4437
        %v4439 = vrot.slane %v4438, 4
        %v4440 = vrot.slane %v4096, 5
        %v4441 = vsel %vm772, %v4439, %v4440
        %v4442 = vrot.slane %v4093, 4
        %v4443 = vor.u32 %v4442, %v4440
        %v4444 = vrot.slane %v4443, 4
        %v4445 = vrot.slane %v4101, 4
        %v4446 = vrot.slane %v4104, 5
        %v4447 = vor.u32 %v4445, %v4446
        %v4448 = vrot.slane %v4447, 4
        %v4449 = vrot.slane %v4112, 5
        %v4450 = vsel %vm772, %v4448, %v4449
        %v4451 = vrot.slane %v4109, 4
        %v4452 = vor.u32 %v4451, %v4449
        %v4453 = vrot.slane %v4452, 4
        %v4454 = vrot.slane %v4117, 4
        %v4455 = vrot.slane %v4120, 5
        %v4456 = vor.u32 %v4454, %v4455
        %v4457 = vrot.slane %v4456, 4
        %v4458 = vrot.slane %v4128, 5
        %v4459 = vsel %vm772, %v4457, %v4458
        %v4460 = vrot.slane %v4125, 4
        %v4461 = vor.u32 %v4460, %v4458
        %v4462 = vrot.slane %v4461, 4
        %v4463 = vrot.slane %v4133, 4
        %v4464 = vrot.slane %v4136, 5
        %v4465 = vor.u32 %v4463, %v4464
        %v4466 = vrot.slane %v4465, 4
        %v4467 = vrot.slane %v4144, 5
        %v4468 = vsel %vm772, %v4466, %v4467
        %v4469 = vrot.slane %v4141, 4
        %v4470 = vor.u32 %v4469, %v4467
        %v4471 = vrot.slane %v4470, 4
        %v4472 = vrot.slane %v4149, 4
        %v4473 = vrot.slane %v4152, 5
        %v4474 = vor.u32 %v4472, %v4473
        %v4475 = vrot.slane %v4474, 4
        %v4476 = vrot.slane %v4160, 5
        %v4477 = vsel %vm772, %v4475, %v4476
        %v4478 = vrot.slane %v4157, 4
        %v4479 = vor.u32 %v4478, %v4476
        %v4480 = vrot.slane %v4479, 4
        %v4481 = vrot.slane %v4165, 4
        %v4482 = vrot.slane %v4168, 5
        %v4483 = vor.u32 %v4481, %v4482
        %v4484 = vrot.slane %v4483, 4
        %v4485 = vrot.slane %v4176, 5
        %v4486 = vsel %vm772, %v4484, %v4485
        %v4487 = vrot.slane %v4173, 4
        %v4488 = vor.u32 %v4487, %v4485
        %v4489 = vrot.slane %v4488, 4
        %v4490 = vrot.slane %v4181, 4
        %v4491 = vrot.slane %v4184, 5
        %v4492 = vor.u32 %v4490, %v4491
        %v4493 = vrot.slane %v4492, 4
        %v4494 = vrot.slane %v4192, 5
        %v4495 = vsel %vm772, %v4493, %v4494
        %v4496 = vrot.slane %v4189, 4
        %v4497 = vor.u32 %v4496, %v4494
        %v4498 = vrot.slane %v4497, 4
        %v4499 = vrot.slane %v4197, 4
        %v4500 = vrot.slane %v4200, 5
        %v4501 = vor.u32 %v4499, %v4500
        %v4502 = vrot.slane %v4501, 4
        %v4503 = vrot.slane %v4208, 5
        %v4504 = vsel %vm772, %v4502, %v4503
        %v4505 = vrot.slane %v4205, 4
        %v4506 = vor.u32 %v4505, %v4503
        %v4507 = vrot.slane %v4506, 4
        %v4508 = vrot.slane %v4213, 4
        %v4509 = vrot.slane %v4216, 5
        %v4510 = vor.u32 %v4508, %v4509
        %v4511 = vrot.slane %v4510, 4
        %v4512 = vrot.slane %v4224, 5
        %v4513 = vsel %vm772, %v4511, %v4512
        %v4514 = vrot.slane %v4221, 4
        %v4515 = vor.u32 %v4514, %v4512
        %v4516 = vrot.slane %v4515, 4
        %v4517 = vrot.slane %v4229, 4
        %v4518 = vrot.slane %v4232, 5
        %v4519 = vor.u32 %v4517, %v4518
        %v4520 = vrot.slane %v4519, 4
        %v4521 = vrot.slane %v4240, 5
        %v4522 = vsel %vm772, %v4520, %v4521
        %v4523 = vrot.slane %v4237, 4
        %v4524 = vor.u32 %v4523, %v4521
        %v4525 = vrot.slane %v4524, 4
        %v4526 = vrot.slane %v4245, 4
        %v4527 = vrot.slane %v4248, 5
        %v4528 = vor.u32 %v4526, %v4527
        %v4529 = vrot.slane %v4528, 4
        %v4530 = vrot.slane %v4256, 5
        %v4531 = vsel %vm772, %v4529, %v4530
        %v4532 = vrot.slane %v4253, 4
        %v4533 = vor.u32 %v4532, %v4530
        %v4534 = vrot.slane %v4533, 4
        %v4535 = vrot.slane %v4261, 4
        %v4536 = vrot.slane %v4264, 5
        %v4537 = vor.u32 %v4535, %v4536
        %v4538 = vrot.slane %v4537, 4
        %v4539 = vrot.slane %v4272, 5
        %v4540 = vsel %vm772, %v4538, %v4539
        %v4541 = vrot.slane %v4269, 4
        %v4542 = vor.u32 %v4541, %v4539
        %v4543 = vrot.slane %v4542, 4
        %v4544 = vrot.slane %v4277, 4
        %v4545 = vrot.slane %v4280, 5
        %v4546 = vor.u32 %v4544, %v4545
        %v4547 = vrot.slane %v4546, 4
        %v4548 = vrot.slane %v4288, 5
        %v4549 = vsel %vm772, %v4547, %v4548
        %v4550 = vrot.slane %v4285, 4
        %v4551 = vor.u32 %v4550, %v4548
        %v4552 = vrot.slane %v4551, 4
        %v4553 = vrot.slane %v4293, 4
        %v4554 = vrot.slane %v4296, 5
        %v4555 = vor.u32 %v4553, %v4554
        %v4556 = vrot.slane %v4555, 4
        %v4557 = vrot.slane %v4304, 5
        %v4558 = vsel %vm772, %v4556, %v4557
        %v4559 = vrot.slane %v4301, 4
        %v4560 = vor.u32 %v4559, %v4557
        %v4561 = vrot.slane %v4560, 4
        %v4562 = vrot.slane %v4309, 4
        %v4563 = vrot.slane %v4312, 5
        %v4564 = vor.u32 %v4562, %v4563
        %v4565 = vrot.slane %v4564, 4
        %v4566 = vrot.slane %v4320, 5
        %v4567 = vsel %vm772, %v4565, %v4566
        %v4568 = vrot.slane %v4317, 4
        %v4569 = vor.u32 %v4568, %v4566
        %v4570 = vrot.slane %v4569, 4
        %v4571 = vrot.slane %v4325, 4
        %v4572 = vrot.slane %v4328, 5
        %v4573 = vor.u32 %v4571, %v4572
        %v4574 = vrot.slane %v4573, 4
        %v4575 = vrot.slane %v4336, 5
        %v4576 = vsel %vm772, %v4574, %v4575
        %v4577 = vrot.slane %v4333, 4
        %v4578 = vor.u32 %v4577, %v4575
        %v4579 = vrot.slane %v4578, 4
        %4612 = vst [vmem:[%s379 + $0x8] sm:$0xf] %v4441
        %v4613 = vld [vmem:[%s379 + $0x14] sm:$0xf]
        %v4614 = vsel %vm950, %v4444, %v4613
        %4615 = vst [vmem:[%s379 + $0x14] sm:$0xf] %v4614
        %4616 = vst [vmem:[%s379 + $0x20] sm:$0xf] %v4450
        %v4617 = vld [vmem:[%s379 + $0x2c] sm:$0xf]
        %v4618 = vsel %vm950, %v4453, %v4617
        %4619 = vst [vmem:[%s379 + $0x2c] sm:$0xf] %v4618
        %4620 = vst [vmem:[%s379 + $0x38] sm:$0xf] %v4459
        %v4621 = vld [vmem:[%s379 + $0x44] sm:$0xf]
        %v4622 = vsel %vm950, %v4462, %v4621
        %4623 = vst [vmem:[%s379 + $0x44] sm:$0xf] %v4622
        %4624 = vst [vmem:[%s379 + $0x50] sm:$0xf] %v4468
        %v4625 = vld [vmem:[%s379 + $0x5c] sm:$0xf]
        %v4626 = vsel %vm950, %v4471, %v4625
        %4627 = vst [vmem:[%s379 + $0x5c] sm:$0xf] %v4626
        %4628 = vst [vmem:[%s379 + $0x68] sm:$0xf] %v4477
        %v4629 = vld [vmem:[%s379 + $0x74] sm:$0xf]
        %v4630 = vsel %vm950, %v4480, %v4629
        %4631 = vst [vmem:[%s379 + $0x74] sm:$0xf] %v4630
        %4632 = vst [vmem:[%s379 + $0x80] sm:$0xf] %v4486
        %v4633 = vld [vmem:[%s379 + $0x8c] sm:$0xf]
        %v4634 = vsel %vm950, %v4489, %v4633
        %4635 = vst [vmem:[%s379 + $0x8c] sm:$0xf] %v4634
        %4636 = vst [vmem:[%s379 + $0x98] sm:$0xf] %v4495
        %v4637 = vld [vmem:[%s379 + $0xa4] sm:$0xf]
        %v4638 = vsel %vm950, %v4498, %v4637
        %4639 = vst [vmem:[%s379 + $0xa4] sm:$0xf] %v4638
        %4640 = vst [vmem:[%s379 + $0xb0] sm:$0xf] %v4504
        %v4641 = vld [vmem:[%s379 + $0xbc] sm:$0xf]
        %v4642 = vsel %vm950, %v4507, %v4641
        %4643 = vst [vmem:[%s379 + $0xbc] sm:$0xf] %v4642
        %4644 = vst [vmem:[%s379 + $0xc8] sm:$0xf] %v4513
        %v4645 = vld [vmem:[%s379 + $0xd4] sm:$0xf]
        %v4646 = vsel %vm950, %v4516, %v4645
        %4647 = vst [vmem:[%s379 + $0xd4] sm:$0xf] %v4646
        %4648 = vst [vmem:[%s379 + $0xe0] sm:$0xf] %v4522
        %v4649 = vld [vmem:[%s379 + $0xec] sm:$0xf]
        %v4650 = vsel %vm950, %v4525, %v4649
        %4651 = vst [vmem:[%s379 + $0xec] sm:$0xf] %v4650
        %4652 = vst [vmem:[%s379 + $0xf8] sm:$0xf] %v4531
        %v4653 = vld [vmem:[%s379 + $0x104] sm:$0xf]
        %v4654 = vsel %vm950, %v4534, %v4653
        %4655 = vst [vmem:[%s379 + $0x104] sm:$0xf] %v4654
        %4656 = vst [vmem:[%s379 + $0x110] sm:$0xf] %v4540
        %v4657 = vld [vmem:[%s379 + $0x11c] sm:$0xf]
        %v4658 = vsel %vm950, %v4543, %v4657
        %4659 = vst [vmem:[%s379 + $0x11c] sm:$0xf] %v4658
        %4660 = vst [vmem:[%s379 + $0x128] sm:$0xf] %v4549
        %v4661 = vld [vmem:[%s379 + $0x134] sm:$0xf]
        %v4662 = vsel %vm950, %v4552, %v4661
        %4663 = vst [vmem:[%s379 + $0x134] sm:$0xf] %v4662
        %4664 = vst [vmem:[%s379 + $0x140] sm:$0xf] %v4558
        %v4665 = vld [vmem:[%s379 + $0x14c] sm:$0xf]
        %v4666 = vsel %vm950, %v4561, %v4665
        %4667 = vst [vmem:[%s379 + $0x14c] sm:$0xf] %v4666
        %4668 = vst [vmem:[%s379 + $0x158] sm:$0xf] %v4567
        %v4669 = vld [vmem:[%s379 + $0x164] sm:$0xf]
        %v4670 = vsel %vm950, %v4570, %v4669
        %4671 = vst [vmem:[%s379 + $0x164] sm:$0xf] %v4670
        %4672 = vst [vmem:[%s379 + $0x170] sm:$0xf] %v4576
        %v4673 = vld [vmem:[%s379 + $0x17c] sm:$0xf]
        %v4674 = vsel %vm950, %v4579, %v4673
        %4675 = vst [vmem:[%s379 + $0x17c] sm:$0xf] %v4674
        %v4676 = vrot.slane %v4436, 4
        %v4677 = vrot.slane %v4445, 4
        %v4678 = vrot.slane %v4454, 4
        %v4679 = vrot.slane %v4463, 4
        %v4680 = vrot.slane %v4472, 4
        %v4681 = vrot.slane %v4481, 4
        %v4682 = vrot.slane %v4490, 4
        %v4683 = vrot.slane %v4499, 4
        %v4684 = vrot.slane %v4508, 4
        %v4685 = vrot.slane %v4517, 4
        %v4686 = vrot.slane %v4526, 4
        %v4687 = vrot.slane %v4535, 4
        %v4688 = vrot.slane %v4544, 4
        %v4689 = vrot.slane %v4553, 4
        %v4690 = vrot.slane %v4562, 4
        %v4691 = vrot.slane %v4571, 4
        %v4708 = vld [vmem:[%s379] sm:$0x1]
        %v4709 = vsel %vm1047, %v4676, %v4708
        %4710 = vst [vmem:[%s379] sm:$0x1] %v4709
        %v4711 = vld [vmem:[%s379 + $0x18] sm:$0x1]
        %v4712 = vsel %vm1047, %v4677, %v4711
        %4713 = vst [vmem:[%s379 + $0x18] sm:$0x1] %v4712
        %v4714 = vld [vmem:[%s379 + $0x30] sm:$0x1]
        %v4715 = vsel %vm1047, %v4678, %v4714
        %4716 = vst [vmem:[%s379 + $0x30] sm:$0x1] %v4715
        %v4717 = vld [vmem:[%s379 + $0x48] sm:$0x1]
        %v4718 = vsel %vm1047, %v4679, %v4717
        %4719 = vst [vmem:[%s379 + $0x48] sm:$0x1] %v4718
        %v4720 = vld [vmem:[%s379 + $0x60] sm:$0x1]
        %v4721 = vsel %vm1047, %v4680, %v4720
        %4722 = vst [vmem:[%s379 + $0x60] sm:$0x1] %v4721
        %v4723 = vld [vmem:[%s379 + $0x78] sm:$0x1]
        %v4724 = vsel %vm1047, %v4681, %v4723
        %4725 = vst [vmem:[%s379 + $0x78] sm:$0x1] %v4724
        %v4726 = vld [vmem:[%s379 + $0x90] sm:$0x1]
        %v4727 = vsel %vm1047, %v4682, %v4726
        %4728 = vst [vmem:[%s379 + $0x90] sm:$0x1] %v4727
        %v4729 = vld [vmem:[%s379 + $0xa8] sm:$0x1]
        %v4730 = vsel %vm1047, %v4683, %v4729
        %4731 = vst [vmem:[%s379 + $0xa8] sm:$0x1] %v4730
        %v4732 = vld [vmem:[%s379 + $0xc0] sm:$0x1]
        %v4733 = vsel %vm1047, %v4684, %v4732
        %4734 = vst [vmem:[%s379 + $0xc0] sm:$0x1] %v4733
        %v4735 = vld [vmem:[%s379 + $0xd8] sm:$0x1]
        %v4736 = vsel %vm1047, %v4685, %v4735
        %4737 = vst [vmem:[%s379 + $0xd8] sm:$0x1] %v4736
        %v4738 = vld [vmem:[%s379 + $0xf0] sm:$0x1]
        %v4739 = vsel %vm1047, %v4686, %v4738
        %4740 = vst [vmem:[%s379 + $0xf0] sm:$0x1] %v4739
        %v4741 = vld [vmem:[%s379 + $0x108] sm:$0x1]
        %v4742 = vsel %vm1047, %v4687, %v4741
        %4743 = vst [vmem:[%s379 + $0x108] sm:$0x1] %v4742
        %v4744 = vld [vmem:[%s379 + $0x120] sm:$0x1]
        %v4745 = vsel %vm1047, %v4688, %v4744
        %4746 = vst [vmem:[%s379 + $0x120] sm:$0x1] %v4745
        %v4747 = vld [vmem:[%s379 + $0x138] sm:$0x1]
        %v4748 = vsel %vm1047, %v4689, %v4747
        %4749 = vst [vmem:[%s379 + $0x138] sm:$0x1] %v4748
        %v4750 = vld [vmem:[%s379 + $0x150] sm:$0x1]
        %v4751 = vsel %vm1047, %v4690, %v4750
        %4752 = vst [vmem:[%s379 + $0x150] sm:$0x1] %v4751
        %v4753 = vld [vmem:[%s379 + $0x168] sm:$0x1]
        %v4754 = vsel %vm1047, %v4691, %v4753
        %4755 = vst [vmem:[%s379 + $0x168] sm:$0x1] %v4754
        %v4772 = vld [vmem:[%s379 + $0x14] sm:$0x8]
        %v4773 = vsel %vm1114, %v4096, %v4772
        %4774 = vst [vmem:[%s379 + $0x14] sm:$0x8] %v4773
        %v4775 = vld [vmem:[%s379 + $0x2c] sm:$0x8]
        %v4776 = vsel %vm1114, %v4112, %v4775
        %4777 = vst [vmem:[%s379 + $0x2c] sm:$0x8] %v4776
        %v4778 = vld [vmem:[%s379 + $0x44] sm:$0x8]
        %v4779 = vsel %vm1114, %v4128, %v4778
        %4780 = vst [vmem:[%s379 + $0x44] sm:$0x8] %v4779
        %v4781 = vld [vmem:[%s379 + $0x5c] sm:$0x8]
        %v4782 = vsel %vm1114, %v4144, %v4781
        %4783 = vst [vmem:[%s379 + $0x5c] sm:$0x8] %v4782
        %v4784 = vld [vmem:[%s379 + $0x74] sm:$0x8]
        %v4785 = vsel %vm1114, %v4160, %v4784
        %4786 = vst [vmem:[%s379 + $0x74] sm:$0x8] %v4785
        %v4787 = vld [vmem:[%s379 + $0x8c] sm:$0x8]
        %v4788 = vsel %vm1114, %v4176, %v4787
        %4789 = vst [vmem:[%s379 + $0x8c] sm:$0x8] %v4788
        %v4790 = vld [vmem:[%s379 + $0xa4] sm:$0x8]
        %v4791 = vsel %vm1114, %v4192, %v4790
        %4792 = vst [vmem:[%s379 + $0xa4] sm:$0x8] %v4791
        %v4793 = vld [vmem:[%s379 + $0xbc] sm:$0x8]
        %v4794 = vsel %vm1114, %v4208, %v4793
        %4795 = vst [vmem:[%s379 + $0xbc] sm:$0x8] %v4794
        %v4796 = vld [vmem:[%s379 + $0xd4] sm:$0x8]
        %v4797 = vsel %vm1114, %v4224, %v4796
        %4798 = vst [vmem:[%s379 + $0xd4] sm:$0x8] %v4797
        %v4799 = vld [vmem:[%s379 + $0xec] sm:$0x8]
        %v4800 = vsel %vm1114, %v4240, %v4799
        %4801 = vst [vmem:[%s379 + $0xec] sm:$0x8] %v4800
        %v4802 = vld [vmem:[%s379 + $0x104] sm:$0x8]
        %v4803 = vsel %vm1114, %v4256, %v4802
        %4804 = vst [vmem:[%s379 + $0x104] sm:$0x8] %v4803
        %v4805 = vld [vmem:[%s379 + $0x11c] sm:$0x8]
        %v4806 = vsel %vm1114, %v4272, %v4805
        %4807 = vst [vmem:[%s379 + $0x11c] sm:$0x8] %v4806
        %v4808 = vld [vmem:[%s379 + $0x134] sm:$0x8]
        %v4809 = vsel %vm1114, %v4288, %v4808
        %4810 = vst [vmem:[%s379 + $0x134] sm:$0x8] %v4809
        %v4811 = vld [vmem:[%s379 + $0x14c] sm:$0x8]
        %v4812 = vsel %vm1114, %v4304, %v4811
        %4813 = vst [vmem:[%s379 + $0x14c] sm:$0x8] %v4812
        %v4814 = vld [vmem:[%s379 + $0x164] sm:$0x8]
        %v4815 = vsel %vm1114, %v4320, %v4814
        %4816 = vst [vmem:[%s379 + $0x164] sm:$0x8] %v4815
        %v4817 = vld [vmem:[%s379 + $0x17c] sm:$0x8]
        %v4818 = vsel %vm1114, %v4336, %v4817
        %4819 = vst [vmem:[%s379 + $0x17c] sm:$0x8] %v4818
        %v4820 = vld [vmem:[%s1163] sm:$0xff]
        %v4821 = vld [vmem:[%s1163 + $0x8] sm:$0xf]
        %v4822 = vld [vmem:[%s1163 + $0xc] sm:$0xff]
        %v4823 = vld [vmem:[%s1163 + $0x14] sm:$0xf]
        %4824 = vst [vmem:[#allocation2] sm:$0xff] %v4820
        %4825 = vst [vmem:[#allocation2 + $0x8] sm:$0xf] %v4821
        %4826 = vst [vmem:[#allocation2 + $0xc] sm:$0xff] %v4822
        %4827 = vst [vmem:[#allocation2 + $0x14] sm:$0xf] %v4823
        %v4828 = vld [vmem:[%s1172] sm:$0xff]
        %v4829 = vld [vmem:[%s1172 + $0x8] sm:$0xf]
        %v4830 = vld [vmem:[%s1172 + $0xc] sm:$0xff]
        %v4831 = vld [vmem:[%s1172 + $0x14] sm:$0xf]
        %4832 = vst [vmem:[%s1177] sm:$0xff] %v4828
        %4833 = vst [vmem:[%s1177 + $0x8] sm:$0xf] %v4829
        %4834 = vst [vmem:[%s1177 + $0xc] sm:$0xff] %v4830
        %4835 = vst [vmem:[%s1177 + $0x14] sm:$0xf] %v4831
        %v4836 = vld [vmem:[#allocation2] sm:$0xff]
        %v4837 = vld [vmem:[#allocation2 + $0x8] sm:$0xf]
        %v4838 = vld [vmem:[#allocation2 + $0xc] sm:$0xff]
        %v4839 = vld [vmem:[#allocation2 + $0x14] sm:$0xf]
        %v4840 = vld [vmem:[#allocation2 + $0x18] sm:$0xff]
        %v4841 = vld [vmem:[#allocation2 + $0x20] sm:$0xf]
        %v4842 = vld [vmem:[#allocation2 + $0x24] sm:$0xff]
        %v4843 = vld [vmem:[#allocation2 + $0x2c] sm:$0xf]
        %v4844 = vld [vmem:[#allocation2 + $0x30] sm:$0xff]
        %v4845 = vld [vmem:[#allocation2 + $0x38] sm:$0xf]
        %v4846 = vld [vmem:[#allocation2 + $0x3c] sm:$0xff]
        %v4847 = vld [vmem:[#allocation2 + $0x44] sm:$0xf]
        %v4848 = vld [vmem:[#allocation2 + $0x48] sm:$0xff]
        %v4849 = vld [vmem:[#allocation2 + $0x50] sm:$0xf]
        %v4850 = vld [vmem:[#allocation2 + $0x54] sm:$0xff]
        %v4851 = vld [vmem:[#allocation2 + $0x5c] sm:$0xf]
        %v4852 = vld [vmem:[#allocation2 + $0x60] sm:$0xff]
        %v4853 = vld [vmem:[#allocation2 + $0x68] sm:$0xf]
        %v4854 = vld [vmem:[#allocation2 + $0x6c] sm:$0xff]
        %v4855 = vld [vmem:[#allocation2 + $0x74] sm:$0xf]
        %v4856 = vld [vmem:[#allocation2 + $0x78] sm:$0xff]
        %v4857 = vld [vmem:[#allocation2 + $0x80] sm:$0xf]
        %v4858 = vld [vmem:[#allocation2 + $0x84] sm:$0xff]
        %v4859 = vld [vmem:[#allocation2 + $0x8c] sm:$0xf]
        %v4860 = vld [vmem:[#allocation2 + $0x90] sm:$0xff]
        %v4861 = vld [vmem:[#allocation2 + $0x98] sm:$0xf]
        %v4862 = vld [vmem:[#allocation2 + $0x9c] sm:$0xff]
        %v4863 = vld [vmem:[#allocation2 + $0xa4] sm:$0xf]
        %v4864 = vld [vmem:[#allocation2 + $0xa8] sm:$0xff]
        %v4865 = vld [vmem:[#allocation2 + $0xb0] sm:$0xf]
        %v4866 = vld [vmem:[#allocation2 + $0xb4] sm:$0xff]
        %v4867 = vld [vmem:[#allocation2 + $0xbc] sm:$0xf]
        %v4868 = vld [vmem:[#allocation2 + $0xc0] sm:$0xff]
        %v4869 = vld [vmem:[#allocation2 + $0xc8] sm:$0xf]
        %v4870 = vld [vmem:[#allocation2 + $0xcc] sm:$0xff]
        %v4871 = vld [vmem:[#allocation2 + $0xd4] sm:$0xf]
        %v4872 = vld [vmem:[#allocation2 + $0xd8] sm:$0xff]
        %v4873 = vld [vmem:[#allocation2 + $0xe0] sm:$0xf]
        %v4874 = vld [vmem:[#allocation2 + $0xe4] sm:$0xff]
        %v4875 = vld [vmem:[#allocation2 + $0xec] sm:$0xf]
        %v4876 = vld [vmem:[#allocation2 + $0xf0] sm:$0xff]
        %v4877 = vld [vmem:[#allocation2 + $0xf8] sm:$0xf]
        %v4878 = vld [vmem:[#allocation2 + $0xfc] sm:$0xff]
        %v4879 = vld [vmem:[#allocation2 + $0x104] sm:$0xf]
        %v4880 = vld [vmem:[#allocation2 + $0x108] sm:$0xff]
        %v4881 = vld [vmem:[#allocation2 + $0x110] sm:$0xf]
        %v4882 = vld [vmem:[#allocation2 + $0x114] sm:$0xff]
        %v4883 = vld [vmem:[#allocation2 + $0x11c] sm:$0xf]
        %v4884 = vld [vmem:[#allocation2 + $0x120] sm:$0xff]
        %v4885 = vld [vmem:[#allocation2 + $0x128] sm:$0xf]
        %v4886 = vld [vmem:[#allocation2 + $0x12c] sm:$0xff]
        %v4887 = vld [vmem:[#allocation2 + $0x134] sm:$0xf]
        %v4888 = vld [vmem:[#allocation2 + $0x138] sm:$0xff]
        %v4889 = vld [vmem:[#allocation2 + $0x140] sm:$0xf]
        %v4890 = vld [vmem:[#allocation2 + $0x144] sm:$0xff]
        %v4891 = vld [vmem:[#allocation2 + $0x14c] sm:$0xf]
        %v4892 = vld [vmem:[#allocation2 + $0x150] sm:$0xff]
        %v4893 = vld [vmem:[#allocation2 + $0x158] sm:$0xf]
        %v4894 = vld [vmem:[#allocation2 + $0x15c] sm:$0xff]
        %v4895 = vld [vmem:[#allocation2 + $0x164] sm:$0xf]
        %v4896 = vld [vmem:[#allocation2 + $0x168] sm:$0xff]
        %v4897 = vld [vmem:[#allocation2 + $0x170] sm:$0xf]
        %v4898 = vld [vmem:[#allocation2 + $0x174] sm:$0xff]
        %v4899 = vld [vmem:[#allocation2 + $0x17c] sm:$0xf]
        %v4900 = vld [vmem:[#allocation8] sm:$0xf]
        %v4901 = vld [vmem:[#allocation8 + $0x4] sm:$0xf]
        %v4902 = vld [vmem:[#allocation8 + $0x8] sm:$0xf]
        %v4903 = vld [vmem:[#allocation8 + $0xc] sm:$0xf]
        %v4904 = vld [vmem:[#allocation8 + $0x10] sm:$0xf]
        %v4905 = vld [vmem:[#allocation8 + $0x14] sm:$0xf]
        %v4906 = vld [vmem:[#allocation8 + $0x18] sm:$0xf]
        %v4907 = vld [vmem:[#allocation8 + $0x1c] sm:$0xf]
        %v4908 = vld [vmem:[#allocation8 + $0x20] sm:$0xf]
        %v4909 = vld [vmem:[#allocation8 + $0x24] sm:$0xf]
        %v4910 = vld [vmem:[#allocation8 + $0x28] sm:$0xf]
        %v4911 = vld [vmem:[#allocation8 + $0x2c] sm:$0xf]
        %v4912 = vld [vmem:[#allocation8 + $0x30] sm:$0xf]
        %v4913 = vld [vmem:[#allocation8 + $0x34] sm:$0xf]
        %v4914 = vld [vmem:[#allocation8 + $0x38] sm:$0xf]
        %v4915 = vld [vmem:[#allocation8 + $0x3c] sm:$0xf]
        %v4916 = vld [vmem:[#allocation8 + $0x40] sm:$0xf]
        %v4917 = vld [vmem:[#allocation8 + $0x44] sm:$0xf]
        %v4918 = vld [vmem:[#allocation8 + $0x48] sm:$0xf]
        %v4919 = vld [vmem:[#allocation8 + $0x4c] sm:$0xf]
        %v4920 = vld [vmem:[#allocation8 + $0x50] sm:$0xf]
        %v4921 = vld [vmem:[#allocation8 + $0x54] sm:$0xf]
        %v4922 = vld [vmem:[#allocation8 + $0x58] sm:$0xf]
        %v4923 = vld [vmem:[#allocation8 + $0x5c] sm:$0xf]
        %v4924 = vld [vmem:[#allocation8 + $0x60] sm:$0xf]
        %v4925 = vld [vmem:[#allocation8 + $0x64] sm:$0xf]
        %v4926 = vld [vmem:[#allocation8 + $0x68] sm:$0xf]
        %v4927 = vld [vmem:[#allocation8 + $0x6c] sm:$0xf]
        %v4928 = vld [vmem:[#allocation8 + $0x70] sm:$0xf]
        %v4929 = vld [vmem:[#allocation8 + $0x74] sm:$0xf]
        %v4930 = vld [vmem:[#allocation8 + $0x78] sm:$0xf]
        %v4931 = vld [vmem:[#allocation8 + $0x7c] sm:$0xf]
        %v4932 = vld [vmem:[#allocation8 + $0x80] sm:$0xf]
        %v4933 = vld [vmem:[#allocation8 + $0x84] sm:$0xf]
        %v4934 = vld [vmem:[#allocation8 + $0x88] sm:$0xf]
        %v4935 = vld [vmem:[#allocation8 + $0x8c] sm:$0xf]
        %v4936 = vld [vmem:[#allocation8 + $0x90] sm:$0xf]
        %v4937 = vld [vmem:[#allocation8 + $0x94] sm:$0xf]
        %v4938 = vld [vmem:[#allocation8 + $0x98] sm:$0xf]
        %v4939 = vld [vmem:[#allocation8 + $0x9c] sm:$0xf]
        %v4940 = vld [vmem:[#allocation8 + $0xa0] sm:$0xf]
        %v4941 = vld [vmem:[#allocation8 + $0xa4] sm:$0xf]
        %v4942 = vld [vmem:[#allocation8 + $0xa8] sm:$0xf]
        %v4943 = vld [vmem:[#allocation8 + $0xac] sm:$0xf]
        %v4944 = vld [vmem:[#allocation8 + $0xb0] sm:$0xf]
        %v4945 = vld [vmem:[#allocation8 + $0xb4] sm:$0xf]
        %v4946 = vld [vmem:[#allocation8 + $0xb8] sm:$0xf]
        %v4947 = vld [vmem:[#allocation8 + $0xbc] sm:$0xf]
        %v4948 = vld [vmem:[%s379] sm:$0xff]
        %v4949 = vld [vmem:[%s379 + $0x8] sm:$0xf]
        %v4950 = vld [vmem:[%s379 + $0xc] sm:$0xff]
        %v4951 = vld [vmem:[%s379 + $0x14] sm:$0xf]
        %v4952 = vld [vmem:[%s379 + $0x18] sm:$0xff]
        %v4953 = vld [vmem:[%s379 + $0x20] sm:$0xf]
        %v4954 = vld [vmem:[%s379 + $0x24] sm:$0xff]
        %v4955 = vld [vmem:[%s379 + $0x2c] sm:$0xf]
        %v4956 = vld [vmem:[%s379 + $0x30] sm:$0xff]
        %v4957 = vld [vmem:[%s379 + $0x38] sm:$0xf]
        %v4958 = vld [vmem:[%s379 + $0x3c] sm:$0xff]
        %v4959 = vld [vmem:[%s379 + $0x44] sm:$0xf]
        %v4960 = vld [vmem:[%s379 + $0x48] sm:$0xff]
        %v4961 = vld [vmem:[%s379 + $0x50] sm:$0xf]
        %v4962 = vld [vmem:[%s379 + $0x54] sm:$0xff]
        %v4963 = vld [vmem:[%s379 + $0x5c] sm:$0xf]
        %v4964 = vld [vmem:[%s379 + $0x60] sm:$0xff]
        %v4965 = vld [vmem:[%s379 + $0x68] sm:$0xf]
        %v4966 = vld [vmem:[%s379 + $0x6c] sm:$0xff]
        %v4967 = vld [vmem:[%s379 + $0x74] sm:$0xf]
        %v4968 = vld [vmem:[%s379 + $0x78] sm:$0xff]
        %v4969 = vld [vmem:[%s379 + $0x80] sm:$0xf]
        %v4970 = vld [vmem:[%s379 + $0x84] sm:$0xff]
        %v4971 = vld [vmem:[%s379 + $0x8c] sm:$0xf]
        %v4972 = vld [vmem:[%s379 + $0x90] sm:$0xff]
        %v4973 = vld [vmem:[%s379 + $0x98] sm:$0xf]
        %v4974 = vld [vmem:[%s379 + $0x9c] sm:$0xff]
        %v4975 = vld [vmem:[%s379 + $0xa4] sm:$0xf]
        %v4976 = vld [vmem:[%s379 + $0xa8] sm:$0xff]
        %v4977 = vld [vmem:[%s379 + $0xb0] sm:$0xf]
        %v4978 = vld [vmem:[%s379 + $0xb4] sm:$0xff]
        %v4979 = vld [vmem:[%s379 + $0xbc] sm:$0xf]
        %v4980 = vld [vmem:[%s379 + $0xc0] sm:$0xff]
        %v4981 = vld [vmem:[%s379 + $0xc8] sm:$0xf]
        %v4982 = vld [vmem:[%s379 + $0xcc] sm:$0xff]
        %v4983 = vld [vmem:[%s379 + $0xd4] sm:$0xf]
        %v4984 = vld [vmem:[%s379 + $0xd8] sm:$0xff]
        %v4985 = vld [vmem:[%s379 + $0xe0] sm:$0xf]
        %v4986 = vld [vmem:[%s379 + $0xe4] sm:$0xff]
        %v4987 = vld [vmem:[%s379 + $0xec] sm:$0xf]
        %v4988 = vld [vmem:[%s379 + $0xf0] sm:$0xff]
        %v4989 = vld [vmem:[%s379 + $0xf8] sm:$0xf]
        %v4990 = vld [vmem:[%s379 + $0xfc] sm:$0xff]
        %v4991 = vld [vmem:[%s379 + $0x104] sm:$0xf]
        %v4992 = vld [vmem:[%s379 + $0x108] sm:$0xff]
        %v4993 = vld [vmem:[%s379 + $0x110] sm:$0xf]
        %v4994 = vld [vmem:[%s379 + $0x114] sm:$0xff]
        %v4995 = vld [vmem:[%s379 + $0x11c] sm:$0xf]
        %v4996 = vld [vmem:[%s379 + $0x120] sm:$0xff]
        %v4997 = vld [vmem:[%s379 + $0x128] sm:$0xf]
        %v4998 = vld [vmem:[%s379 + $0x12c] sm:$0xff]
        %v4999 = vld [vmem:[%s379 + $0x134] sm:$0xf]
        %v5000 = vld [vmem:[%s379 + $0x138] sm:$0xff]
        %v5001 = vld [vmem:[%s379 + $0x140] sm:$0xf]
        %v5002 = vld [vmem:[%s379 + $0x144] sm:$0xff]
        %v5003 = vld [vmem:[%s379 + $0x14c] sm:$0xf]
        %v5004 = vld [vmem:[%s379 + $0x150] sm:$0xff]
        %v5005 = vld [vmem:[%s379 + $0x158] sm:$0xf]
        %v5006 = vld [vmem:[%s379 + $0x15c] sm:$0xff]
        %v5007 = vld [vmem:[%s379 + $0x164] sm:$0xf]
        %v5008 = vld [vmem:[%s379 + $0x168] sm:$0xff]
        %v5009 = vld [vmem:[%s379 + $0x170] sm:$0xf]
        %v5010 = vld [vmem:[%s379 + $0x174] sm:$0xff]
        %v5011 = vld [vmem:[%s379 + $0x17c] sm:$0xf]
        %s5012 = scalar_lea.vmem [#allocation8], 192
        %v5013 = vld [vmem:[%s5012] sm:$0xf]
        %v5014 = vld [vmem:[%s5012 + $0x4] sm:$0xf]
        %v5015 = vld [vmem:[%s5012 + $0x8] sm:$0xf]
        %v5016 = vld [vmem:[%s5012 + $0xc] sm:$0xf]
        %v5017 = vld [vmem:[%s5012 + $0x10] sm:$0xf]
        %v5018 = vld [vmem:[%s5012 + $0x14] sm:$0xf]
        %v5019 = vld [vmem:[%s5012 + $0x18] sm:$0xf]
        %v5020 = vld [vmem:[%s5012 + $0x1c] sm:$0xf]
        %v5021 = vld [vmem:[%s5012 + $0x20] sm:$0xf]
        %v5022 = vld [vmem:[%s5012 + $0x24] sm:$0xf]
        %v5023 = vld [vmem:[%s5012 + $0x28] sm:$0xf]
        %v5024 = vld [vmem:[%s5012 + $0x2c] sm:$0xf]
        %v5025 = vld [vmem:[%s5012 + $0x30] sm:$0xf]
        %v5026 = vld [vmem:[%s5012 + $0x34] sm:$0xf]
        %v5027 = vld [vmem:[%s5012 + $0x38] sm:$0xf]
        %v5028 = vld [vmem:[%s5012 + $0x3c] sm:$0xf]
        %v5029 = vld [vmem:[%s5012 + $0x40] sm:$0xf]
        %v5030 = vld [vmem:[%s5012 + $0x44] sm:$0xf]
        %v5031 = vld [vmem:[%s5012 + $0x48] sm:$0xf]
        %v5032 = vld [vmem:[%s5012 + $0x4c] sm:$0xf]
        %v5033 = vld [vmem:[%s5012 + $0x50] sm:$0xf]
        %v5034 = vld [vmem:[%s5012 + $0x54] sm:$0xf]
        %v5035 = vld [vmem:[%s5012 + $0x58] sm:$0xf]
        %v5036 = vld [vmem:[%s5012 + $0x5c] sm:$0xf]
        %v5037 = vld [vmem:[%s5012 + $0x60] sm:$0xf]
        %v5038 = vld [vmem:[%s5012 + $0x64] sm:$0xf]
        %v5039 = vld [vmem:[%s5012 + $0x68] sm:$0xf]
        %v5040 = vld [vmem:[%s5012 + $0x6c] sm:$0xf]
        %v5041 = vld [vmem:[%s5012 + $0x70] sm:$0xf]
        %v5042 = vld [vmem:[%s5012 + $0x74] sm:$0xf]
        %v5043 = vld [vmem:[%s5012 + $0x78] sm:$0xf]
        %v5044 = vld [vmem:[%s5012 + $0x7c] sm:$0xf]
        %v5045 = vld [vmem:[%s5012 + $0x80] sm:$0xf]
        %v5046 = vld [vmem:[%s5012 + $0x84] sm:$0xf]
        %v5047 = vld [vmem:[%s5012 + $0x88] sm:$0xf]
        %v5048 = vld [vmem:[%s5012 + $0x8c] sm:$0xf]
        %v5049 = vld [vmem:[%s5012 + $0x90] sm:$0xf]
        %v5050 = vld [vmem:[%s5012 + $0x94] sm:$0xf]
        %v5051 = vld [vmem:[%s5012 + $0x98] sm:$0xf]
        %v5052 = vld [vmem:[%s5012 + $0x9c] sm:$0xf]
        %v5053 = vld [vmem:[%s5012 + $0xa0] sm:$0xf]
        %v5054 = vld [vmem:[%s5012 + $0xa4] sm:$0xf]
        %v5055 = vld [vmem:[%s5012 + $0xa8] sm:$0xf]
        %v5056 = vld [vmem:[%s5012 + $0xac] sm:$0xf]
        %v5057 = vld [vmem:[%s5012 + $0xb0] sm:$0xf]
        %v5058 = vld [vmem:[%s5012 + $0xb4] sm:$0xf]
        %v5059 = vld [vmem:[%s5012 + $0xb8] sm:$0xf]
        %v5060 = vld [vmem:[%s5012 + $0xbc] sm:$0xf]
        %v5125 = vunpack.c.l.b16 %v4948
        %v5126 = vunpack.c.h.b16 %v4948
        %v5127 = vunpack.c.l.b16 %v4949
        %v5128 = vunpack.c.l.b16 %v4950
        %v5129 = vunpack.c.h.b16 %v4950
        %v5130 = vunpack.c.l.b16 %v4951
        %v5131 = vunpack.c.l.b16 %v4952
        %v5132 = vunpack.c.h.b16 %v4952
        %v5133 = vunpack.c.l.b16 %v4953
        %v5134 = vunpack.c.l.b16 %v4954
        %v5135 = vunpack.c.h.b16 %v4954
        %v5136 = vunpack.c.l.b16 %v4955
        %v5137 = vunpack.c.l.b16 %v4956
        %v5138 = vunpack.c.h.b16 %v4956
        %v5139 = vunpack.c.l.b16 %v4957
        %v5140 = vunpack.c.l.b16 %v4958
        %v5141 = vunpack.c.h.b16 %v4958
        %v5142 = vunpack.c.l.b16 %v4959
        %v5143 = vunpack.c.l.b16 %v4960
        %v5144 = vunpack.c.h.b16 %v4960
        %v5145 = vunpack.c.l.b16 %v4961
        %v5146 = vunpack.c.l.b16 %v4962
        %v5147 = vunpack.c.h.b16 %v4962
        %v5148 = vunpack.c.l.b16 %v4963
        %v5149 = vunpack.c.l.b16 %v4964
        %v5150 = vunpack.c.h.b16 %v4964
        %v5151 = vunpack.c.l.b16 %v4965
        %v5152 = vunpack.c.l.b16 %v4966
        %v5153 = vunpack.c.h.b16 %v4966
        %v5154 = vunpack.c.l.b16 %v4967
        %v5155 = vunpack.c.l.b16 %v4968
        %v5156 = vunpack.c.h.b16 %v4968
        %v5157 = vunpack.c.l.b16 %v4969
        %v5158 = vunpack.c.l.b16 %v4970
        %v5159 = vunpack.c.h.b16 %v4970
        %v5160 = vunpack.c.l.b16 %v4971
        %v5161 = vunpack.c.l.b16 %v4972
        %v5162 = vunpack.c.h.b16 %v4972
        %v5163 = vunpack.c.l.b16 %v4973
        %v5164 = vunpack.c.l.b16 %v4974
        %v5165 = vunpack.c.h.b16 %v4974
        %v5166 = vunpack.c.l.b16 %v4975
        %v5167 = vunpack.c.l.b16 %v4976
        %v5168 = vunpack.c.h.b16 %v4976
        %v5169 = vunpack.c.l.b16 %v4977
        %v5170 = vunpack.c.l.b16 %v4978
        %v5171 = vunpack.c.h.b16 %v4978
        %v5172 = vunpack.c.l.b16 %v4979
        %v5173 = vunpack.c.l.b16 %v4980
        %v5174 = vunpack.c.h.b16 %v4980
        %v5175 = vunpack.c.l.b16 %v4981
        %v5176 = vunpack.c.l.b16 %v4982
        %v5177 = vunpack.c.h.b16 %v4982
        %v5178 = vunpack.c.l.b16 %v4983
        %v5179 = vunpack.c.l.b16 %v4984
        %v5180 = vunpack.c.h.b16 %v4984
        %v5181 = vunpack.c.l.b16 %v4985
        %v5182 = vunpack.c.l.b16 %v4986
        %v5183 = vunpack.c.h.b16 %v4986
        %v5184 = vunpack.c.l.b16 %v4987
        %v5185 = vunpack.c.l.b16 %v4988
        %v5186 = vunpack.c.h.b16 %v4988
        %v5187 = vunpack.c.l.b16 %v4989
        %v5188 = vunpack.c.l.b16 %v4990
        %v5189 = vunpack.c.h.b16 %v4990
        %v5190 = vunpack.c.l.b16 %v4991
        %v5191 = vunpack.c.l.b16 %v4992
        %v5192 = vunpack.c.h.b16 %v4992
        %v5193 = vunpack.c.l.b16 %v4993
        %v5194 = vunpack.c.l.b16 %v4994
        %v5195 = vunpack.c.h.b16 %v4994
        %v5196 = vunpack.c.l.b16 %v4995
        %v5197 = vunpack.c.l.b16 %v4996
        %v5198 = vunpack.c.h.b16 %v4996
        %v5199 = vunpack.c.l.b16 %v4997
        %v5200 = vunpack.c.l.b16 %v4998
        %v5201 = vunpack.c.h.b16 %v4998
        %v5202 = vunpack.c.l.b16 %v4999
        %v5203 = vunpack.c.l.b16 %v5000
        %v5204 = vunpack.c.h.b16 %v5000
        %v5205 = vunpack.c.l.b16 %v5001
        %v5206 = vunpack.c.l.b16 %v5002
        %v5207 = vunpack.c.h.b16 %v5002
        %v5208 = vunpack.c.l.b16 %v5003
        %v5209 = vunpack.c.l.b16 %v5004
        %v5210 = vunpack.c.h.b16 %v5004
        %v5211 = vunpack.c.l.b16 %v5005
        %v5212 = vunpack.c.l.b16 %v5006
        %v5213 = vunpack.c.h.b16 %v5006
        %v5214 = vunpack.c.l.b16 %v5007
        %v5215 = vunpack.c.l.b16 %v5008
        %v5216 = vunpack.c.h.b16 %v5008
        %v5217 = vunpack.c.l.b16 %v5009
        %v5218 = vunpack.c.l.b16 %v5010
        %v5219 = vunpack.c.h.b16 %v5010
        %v5220 = vunpack.c.l.b16 %v5011
        %v5221 = vpack.c.b16 %v5128, %v5125
        %v5222 = vpack.c.b16 %v5129, %v5126
        %v5223 = vpack.c.b16 %v5130, %v5127
        %v5224 = vpack.c.b16 %v5134, %v5131
        %v5225 = vpack.c.b16 %v5135, %v5132
        %v5226 = vpack.c.b16 %v5136, %v5133
        %v5227 = vpack.c.b16 %v5140, %v5137
        %v5228 = vpack.c.b16 %v5141, %v5138
        %v5229 = vpack.c.b16 %v5142, %v5139
        %v5230 = vpack.c.b16 %v5146, %v5143
        %v5231 = vpack.c.b16 %v5147, %v5144
        %v5232 = vpack.c.b16 %v5148, %v5145
        %v5233 = vpack.c.b16 %v5152, %v5149
        %v5234 = vpack.c.b16 %v5153, %v5150
        %v5235 = vpack.c.b16 %v5154, %v5151
        %v5236 = vpack.c.b16 %v5158, %v5155
        %v5237 = vpack.c.b16 %v5159, %v5156
        %v5238 = vpack.c.b16 %v5160, %v5157
        %v5239 = vpack.c.b16 %v5164, %v5161
        %v5240 = vpack.c.b16 %v5165, %v5162
        %v5241 = vpack.c.b16 %v5166, %v5163
        %v5242 = vpack.c.b16 %v5170, %v5167
        %v5243 = vpack.c.b16 %v5171, %v5168
        %v5244 = vpack.c.b16 %v5172, %v5169
        %v5245 = vpack.c.b16 %v5176, %v5173
        %v5246 = vpack.c.b16 %v5177, %v5174
        %v5247 = vpack.c.b16 %v5178, %v5175
        %v5248 = vpack.c.b16 %v5182, %v5179
        %v5249 = vpack.c.b16 %v5183, %v5180
        %v5250 = vpack.c.b16 %v5184, %v5181
        %v5251 = vpack.c.b16 %v5188, %v5185
        %v5252 = vpack.c.b16 %v5189, %v5186
        %v5253 = vpack.c.b16 %v5190, %v5187
        %v5254 = vpack.c.b16 %v5194, %v5191
        %v5255 = vpack.c.b16 %v5195, %v5192
        %v5256 = vpack.c.b16 %v5196, %v5193
        %v5257 = vpack.c.b16 %v5200, %v5197
        %v5258 = vpack.c.b16 %v5201, %v5198
        %v5259 = vpack.c.b16 %v5202, %v5199
        %v5260 = vpack.c.b16 %v5206, %v5203
        %v5261 = vpack.c.b16 %v5207, %v5204
        %v5262 = vpack.c.b16 %v5208, %v5205
        %v5263 = vpack.c.b16 %v5212, %v5209
        %v5264 = vpack.c.b16 %v5213, %v5210
        %v5265 = vpack.c.b16 %v5214, %v5211
        %v5266 = vpack.c.b16 %v5218, %v5215
        %v5267 = vpack.c.b16 %v5219, %v5216
        %v5268 = vpack.c.b16 %v5220, %v5217
        %v5365 = vunpack.c.l.b16 %v5013
        %v5366 = vunpack.c.l.b16 %v5014
        %v5367 = vunpack.c.l.b16 %v5015
        %v5368 = vunpack.c.l.b16 %v5016
        %v5369 = vunpack.c.l.b16 %v5017
        %v5370 = vunpack.c.l.b16 %v5018
        %v5371 = vunpack.c.l.b16 %v5019
        %v5372 = vunpack.c.l.b16 %v5020
        %v5373 = vunpack.c.l.b16 %v5021
        %v5374 = vunpack.c.l.b16 %v5022
        %v5375 = vunpack.c.l.b16 %v5023
        %v5376 = vunpack.c.l.b16 %v5024
        %v5377 = vunpack.c.l.b16 %v5025
        %v5378 = vunpack.c.l.b16 %v5026
        %v5379 = vunpack.c.l.b16 %v5027
        %v5380 = vunpack.c.l.b16 %v5028
        %v5381 = vunpack.c.l.b16 %v5029
        %v5382 = vunpack.c.l.b16 %v5030
        %v5383 = vunpack.c.l.b16 %v5031
        %v5384 = vunpack.c.l.b16 %v5032
        %v5385 = vunpack.c.l.b16 %v5033
        %v5386 = vunpack.c.l.b16 %v5034
        %v5387 = vunpack.c.l.b16 %v5035
        %v5388 = vunpack.c.l.b16 %v5036
        %v5389 = vunpack.c.l.b16 %v5037
        %v5390 = vunpack.c.l.b16 %v5038
        %v5391 = vunpack.c.l.b16 %v5039
        %v5392 = vunpack.c.l.b16 %v5040
        %v5393 = vunpack.c.l.b16 %v5041
        %v5394 = vunpack.c.l.b16 %v5042
        %v5395 = vunpack.c.l.b16 %v5043
        %v5396 = vunpack.c.l.b16 %v5044
        %v5397 = vunpack.c.l.b16 %v5045
        %v5398 = vunpack.c.l.b16 %v5046
        %v5399 = vunpack.c.l.b16 %v5047
        %v5400 = vunpack.c.l.b16 %v5048
        %v5401 = vunpack.c.l.b16 %v5049
        %v5402 = vunpack.c.l.b16 %v5050
        %v5403 = vunpack.c.l.b16 %v5051
        %v5404 = vunpack.c.l.b16 %v5052
        %v5405 = vunpack.c.l.b16 %v5053
        %v5406 = vunpack.c.l.b16 %v5054
        %v5407 = vunpack.c.l.b16 %v5055
        %v5408 = vunpack.c.l.b16 %v5056
        %v5409 = vunpack.c.l.b16 %v5057
        %v5410 = vunpack.c.l.b16 %v5058
        %v5411 = vunpack.c.l.b16 %v5059
        %v5412 = vunpack.c.l.b16 %v5060
        %v5413 = vpack.c.b16 %v5366, %v5365
        %v5414 = vpack.c.b16 %v5368, %v5367
        %v5415 = vpack.c.b16 %v5370, %v5369
        %v5416 = vpack.c.b16 %v5372, %v5371
        %v5417 = vpack.c.b16 %v5374, %v5373
        %v5418 = vpack.c.b16 %v5376, %v5375
        %v5419 = vpack.c.b16 %v5378, %v5377
        %v5420 = vpack.c.b16 %v5380, %v5379
        %v5421 = vpack.c.b16 %v5382, %v5381
        %v5422 = vpack.c.b16 %v5384, %v5383
        %v5423 = vpack.c.b16 %v5386, %v5385
        %v5424 = vpack.c.b16 %v5388, %v5387
        %v5425 = vpack.c.b16 %v5390, %v5389
        %v5426 = vpack.c.b16 %v5392, %v5391
        %v5427 = vpack.c.b16 %v5394, %v5393
        %v5428 = vpack.c.b16 %v5396, %v5395
        %v5429 = vpack.c.b16 %v5398, %v5397
        %v5430 = vpack.c.b16 %v5400, %v5399
        %v5431 = vpack.c.b16 %v5402, %v5401
        %v5432 = vpack.c.b16 %v5404, %v5403
        %v5433 = vpack.c.b16 %v5406, %v5405
        %v5434 = vpack.c.b16 %v5408, %v5407
        %v5435 = vpack.c.b16 %v5410, %v5409
        %v5436 = vpack.c.b16 %v5412, %v5411
        %5461 = vmatprep.subr.bf16.mxu0 0
        %5462 = vmatpush1.bf16.msra.mxu0 %v5420
        %5463 = vmatprep.subr.bf16.mxu0 0
        %5464 = vmatpush1.bf16.msra.mxu0 %v5419
        %5465 = vmatprep.subr.bf16.mxu0 0
        %5466 = vmatpush1.bf16.msra.mxu0 %v5418
        %5467 = vmatprep.subr.bf16.mxu0 0
        %5468 = vmatpush1.bf16.msra.mxu0 %v5417
        %5469 = vmatprep.subr.bf16.mxu0 0
        %5470 = vmatpush1.bf16.msra.mxu0 %v5416
        %5471 = vmatprep.subr.bf16.mxu0 0
        %5472 = vmatpush1.bf16.msra.mxu0 %v5415
        %5473 = vmatprep.subr.bf16.mxu0 0
        %5474 = vmatpush1.bf16.msra.mxu0 %v5414
        %5475 = vmatprep.subr.bf16.mxu0 0
        %5476 = vmatpush1.bf16.msra.mxu0 %v5413
        %5477 = vmatprep.subr.bf16.mxu0 0
        %5478 = vmatpush2.bf16.msra.mxu0 %v5428
        %5479 = vmatprep.subr.bf16.mxu0 0
        %5480 = vmatpush2.bf16.msra.mxu0 %v5427
        %5481 = vmatprep.subr.bf16.mxu0 0
        %5482 = vmatpush2.bf16.msra.mxu0 %v5426
        %5483 = vmatprep.subr.bf16.mxu0 0
        %5484 = vmatpush2.bf16.msra.mxu0 %v5425
        %5485 = vmatprep.subr.bf16.mxu0 0
        %5486 = vmatpush2.bf16.msra.mxu0 %v5424
        %5487 = vmatprep.subr.bf16.mxu0 0
        %5488 = vmatpush2.bf16.msra.mxu0 %v5423
        %5489 = vmatprep.subr.bf16.mxu0 0
        %5490 = vmatpush2.bf16.msra.mxu0 %v5422
        %5491 = vmatprep.subr.bf16.mxu0 0
        %5492 = vmatpush2.bf16.msra.mxu0 %v5421
        %5493 = vmatprep.mubr.bf16.mxu0 %v5222
        %5494 = vmatmul.mubr.bf16.gmra.mxu0 %v5221
        %v5495 = vpop.f32.mrf.mxu0
        %v5496 = vadd.f32 0.0, %v5495
        %v5497 = vpop.f32.mrf.mxu0
        %v5498 = vpop.f32.mrf.mxu0
        %v5499 = vadd.f32 0.0, %v5498
        %v5500 = vpop.f32.mrf.mxu0
        %5501 = vmatprep.mubr.bf16.mxu0 %v5225
        %5502 = vmatmul.mubr.bf16.gmra.mxu0 %v5224
        %v5503 = vpop.f32.mrf.mxu0
        %v5504 = vadd.f32 0.0, %v5503
        %v5505 = vpop.f32.mrf.mxu0
        %v5506 = vpop.f32.mrf.mxu0
        %v5507 = vadd.f32 0.0, %v5506
        %v5508 = vpop.f32.mrf.mxu0
        %5509 = vmatprep.mubr.bf16.mxu0 %v5228
        %5510 = vmatmul.mubr.bf16.gmra.mxu0 %v5227
        %v5511 = vpop.f32.mrf.mxu0
        %v5512 = vadd.f32 0.0, %v5511
        %v5513 = vpop.f32.mrf.mxu0
        %v5514 = vpop.f32.mrf.mxu0
        %v5515 = vadd.f32 0.0, %v5514
        %v5516 = vpop.f32.mrf.mxu0
        %5517 = vmatprep.mubr.bf16.mxu0 %v5231
        %5518 = vmatmul.mubr.bf16.gmra.mxu0 %v5230
        %v5519 = vpop.f32.mrf.mxu0
        %v5520 = vadd.f32 0.0, %v5519
        %v5521 = vpop.f32.mrf.mxu0
        %v5522 = vpop.f32.mrf.mxu0
        %v5523 = vadd.f32 0.0, %v5522
        %v5524 = vpop.f32.mrf.mxu0
        %5525 = vmatprep.mubr.bf16.mxu0 %v5234
        %5526 = vmatmul.mubr.bf16.gmra.mxu0 %v5233
        %v5527 = vpop.f32.mrf.mxu0
        %v5528 = vadd.f32 0.0, %v5527
        %v5529 = vpop.f32.mrf.mxu0
        %v5530 = vpop.f32.mrf.mxu0
        %v5531 = vadd.f32 0.0, %v5530
        %v5532 = vpop.f32.mrf.mxu0
        %5533 = vmatprep.mubr.bf16.mxu0 %v5237
        %5534 = vmatmul.mubr.bf16.gmra.mxu0 %v5236
        %v5535 = vpop.f32.mrf.mxu0
        %v5536 = vadd.f32 0.0, %v5535
        %v5537 = vpop.f32.mrf.mxu0
        %v5538 = vpop.f32.mrf.mxu0
        %v5539 = vadd.f32 0.0, %v5538
        %v5540 = vpop.f32.mrf.mxu0
        %5541 = vmatprep.mubr.bf16.mxu0 %v5240
        %5542 = vmatmul.mubr.bf16.gmra.mxu0 %v5239
        %v5543 = vpop.f32.mrf.mxu0
        %v5544 = vadd.f32 0.0, %v5543
        %v5545 = vpop.f32.mrf.mxu0
        %v5546 = vpop.f32.mrf.mxu0
        %v5547 = vadd.f32 0.0, %v5546
        %v5548 = vpop.f32.mrf.mxu0
        %5549 = vmatprep.mubr.bf16.mxu0 %v5243
        %5550 = vmatmul.mubr.bf16.gmra.mxu0 %v5242
        %v5551 = vpop.f32.mrf.mxu0
        %v5552 = vadd.f32 0.0, %v5551
        %v5553 = vpop.f32.mrf.mxu0
        %v5554 = vpop.f32.mrf.mxu0
        %v5555 = vadd.f32 0.0, %v5554
        %v5556 = vpop.f32.mrf.mxu0
        %5557 = vmatprep.mubr.bf16.mxu0 %v5246
        %5558 = vmatmul.mubr.bf16.gmra.mxu0 %v5245
        %v5559 = vpop.f32.mrf.mxu0
        %v5560 = vadd.f32 0.0, %v5559
        %v5561 = vpop.f32.mrf.mxu0
        %v5562 = vpop.f32.mrf.mxu0
        %v5563 = vadd.f32 0.0, %v5562
        %v5564 = vpop.f32.mrf.mxu0
        %5565 = vmatprep.mubr.bf16.mxu0 %v5249
        %5566 = vmatmul.mubr.bf16.gmra.mxu0 %v5248
        %v5567 = vpop.f32.mrf.mxu0
        %v5568 = vadd.f32 0.0, %v5567
        %v5569 = vpop.f32.mrf.mxu0
        %v5570 = vpop.f32.mrf.mxu0
        %v5571 = vadd.f32 0.0, %v5570
        %v5572 = vpop.f32.mrf.mxu0
        %5573 = vmatprep.mubr.bf16.mxu0 %v5252
        %5574 = vmatmul.mubr.bf16.gmra.mxu0 %v5251
        %v5575 = vpop.f32.mrf.mxu0
        %v5576 = vadd.f32 0.0, %v5575
        %v5577 = vpop.f32.mrf.mxu0
        %v5578 = vpop.f32.mrf.mxu0
        %v5579 = vadd.f32 0.0, %v5578
        %v5580 = vpop.f32.mrf.mxu0
        %5581 = vmatprep.mubr.bf16.mxu0 %v5255
        %5582 = vmatmul.mubr.bf16.gmra.mxu0 %v5254
        %v5583 = vpop.f32.mrf.mxu0
        %v5584 = vadd.f32 0.0, %v5583
        %v5585 = vpop.f32.mrf.mxu0
        %v5586 = vpop.f32.mrf.mxu0
        %v5587 = vadd.f32 0.0, %v5586
        %v5588 = vpop.f32.mrf.mxu0
        %5589 = vmatprep.mubr.bf16.mxu0 %v5258
        %5590 = vmatmul.mubr.bf16.gmra.mxu0 %v5257
        %v5591 = vpop.f32.mrf.mxu0
        %v5592 = vadd.f32 0.0, %v5591
        %v5593 = vpop.f32.mrf.mxu0
        %v5594 = vpop.f32.mrf.mxu0
        %v5595 = vadd.f32 0.0, %v5594
        %v5596 = vpop.f32.mrf.mxu0
        %5597 = vmatprep.mubr.bf16.mxu0 %v5261
        %5598 = vmatmul.mubr.bf16.gmra.mxu0 %v5260
        %v5599 = vpop.f32.mrf.mxu0
        %v5600 = vadd.f32 0.0, %v5599
        %v5601 = vpop.f32.mrf.mxu0
        %v5602 = vpop.f32.mrf.mxu0
        %v5603 = vadd.f32 0.0, %v5602
        %v5604 = vpop.f32.mrf.mxu0
        %5605 = vmatprep.mubr.bf16.mxu0 %v5264
        %5606 = vmatmul.mubr.bf16.gmra.mxu0 %v5263
        %v5607 = vpop.f32.mrf.mxu0
        %v5608 = vadd.f32 0.0, %v5607
        %v5609 = vpop.f32.mrf.mxu0
        %v5610 = vpop.f32.mrf.mxu0
        %v5611 = vadd.f32 0.0, %v5610
        %v5612 = vpop.f32.mrf.mxu0
        %5613 = vmatprep.mubr.bf16.mxu0 %v5267
        %5614 = vmatmul.mubr.bf16.gmra.mxu0 %v5266
        %v5615 = vpop.f32.mrf.mxu0
        %v5616 = vadd.f32 0.0, %v5615
        %v5617 = vpop.f32.mrf.mxu0
        %v5618 = vpop.f32.mrf.mxu0
        %v5619 = vadd.f32 0.0, %v5618
        %v5620 = vpop.f32.mrf.mxu0
        %5621 = vdwg.mxu0
        %5622 = vmatprep.subr.bf16.mxu0 0
        %5623 = vmatpush1.bf16.msra.mxu0 %v5436
        %5624 = vmatprep.subr.bf16.mxu0 0
        %5625 = vmatpush1.bf16.msra.mxu0 %v5435
        %5626 = vmatprep.subr.bf16.mxu0 0
        %5627 = vmatpush1.bf16.msra.mxu0 %v5434
        %5628 = vmatprep.subr.bf16.mxu0 0
        %5629 = vmatpush1.bf16.msra.mxu0 %v5433
        %5630 = vmatprep.subr.bf16.mxu0 0
        %5631 = vmatpush1.bf16.msra.mxu0 %v5432
        %5632 = vmatprep.subr.bf16.mxu0 0
        %5633 = vmatpush1.bf16.msra.mxu0 %v5431
        %5634 = vmatprep.subr.bf16.mxu0 0
        %5635 = vmatpush1.bf16.msra.mxu0 %v5430
        %5636 = vmatprep.subr.bf16.mxu0 0
        %5637 = vmatpush1.bf16.msra.mxu0 %v5429
        %5638 = vmatprep.subr.bf16.mxu0 0
        %5639 = vmatpush2.bf16.msra.mxu0 0
        %5640 = vmatprep.subr.bf16.mxu0 0
        %5641 = vmatpush2.bf16.msra.mxu0 0
        %5642 = vmatprep.subr.bf16.mxu0 0
        %5643 = vmatpush2.bf16.msra.mxu0 0
        %5644 = vmatprep.subr.bf16.mxu0 0
        %5645 = vmatpush2.bf16.msra.mxu0 0
        %5646 = vmatprep.subr.bf16.mxu0 0
        %5647 = vmatpush2.bf16.msra.mxu0 0
        %5648 = vmatprep.subr.bf16.mxu0 0
        %5649 = vmatpush2.bf16.msra.mxu0 0
        %5650 = vmatprep.subr.bf16.mxu0 0
        %5651 = vmatpush2.bf16.msra.mxu0 0
        %5652 = vmatprep.subr.bf16.mxu0 0
        %5653 = vmatpush2.bf16.msra.mxu0 0
        %5654 = vmatprep.mubr.bf16.mxu0 0
        %5655 = vmatmul.mubr.bf16.gmra.mxu0 %v5223
        %v5656 = vpop.f32.mrf.mxu0
        %v5657 = vadd.f32 %v5496, %v5656
        %v5658 = vpop.f32.mrf.mxu0
        %v5659 = vpop.f32.mrf.mxu0
        %v5660 = vadd.f32 %v5499, %v5659
        %v5661 = vpop.f32.mrf.mxu0
        %5662 = vmatprep.mubr.bf16.mxu0 0
        %5663 = vmatmul.mubr.bf16.gmra.mxu0 %v5226
        %v5664 = vpop.f32.mrf.mxu0
        %v5665 = vadd.f32 %v5504, %v5664
        %v5666 = vpop.f32.mrf.mxu0
        %v5667 = vpop.f32.mrf.mxu0
        %v5668 = vadd.f32 %v5507, %v5667
        %v5669 = vpop.f32.mrf.mxu0
        %5670 = vmatprep.mubr.bf16.mxu0 0
        %5671 = vmatmul.mubr.bf16.gmra.mxu0 %v5229
        %v5672 = vpop.f32.mrf.mxu0
        %v5673 = vadd.f32 %v5512, %v5672
        %v5674 = vpop.f32.mrf.mxu0
        %v5675 = vpop.f32.mrf.mxu0
        %v5676 = vadd.f32 %v5515, %v5675
        %v5677 = vpop.f32.mrf.mxu0
        %5678 = vmatprep.mubr.bf16.mxu0 0
        %5679 = vmatmul.mubr.bf16.gmra.mxu0 %v5232
        %v5680 = vpop.f32.mrf.mxu0
        %v5681 = vadd.f32 %v5520, %v5680
        %v5682 = vpop.f32.mrf.mxu0
        %v5683 = vpop.f32.mrf.mxu0
        %v5684 = vadd.f32 %v5523, %v5683
        %v5685 = vpop.f32.mrf.mxu0
        %5686 = vmatprep.mubr.bf16.mxu0 0
        %5687 = vmatmul.mubr.bf16.gmra.mxu0 %v5235
        %v5688 = vpop.f32.mrf.mxu0
        %v5689 = vadd.f32 %v5528, %v5688
        %v5690 = vpop.f32.mrf.mxu0
        %v5691 = vpop.f32.mrf.mxu0
        %v5692 = vadd.f32 %v5531, %v5691
        %v5693 = vpop.f32.mrf.mxu0
        %5694 = vmatprep.mubr.bf16.mxu0 0
        %5695 = vmatmul.mubr.bf16.gmra.mxu0 %v5238
        %v5696 = vpop.f32.mrf.mxu0
        %v5697 = vadd.f32 %v5536, %v5696
        %v5698 = vpop.f32.mrf.mxu0
        %v5699 = vpop.f32.mrf.mxu0
        %v5700 = vadd.f32 %v5539, %v5699
        %v5701 = vpop.f32.mrf.mxu0
        %5702 = vmatprep.mubr.bf16.mxu0 0
        %5703 = vmatmul.mubr.bf16.gmra.mxu0 %v5241
        %v5704 = vpop.f32.mrf.mxu0
        %v5705 = vadd.f32 %v5544, %v5704
        %v5706 = vpop.f32.mrf.mxu0
        %v5707 = vpop.f32.mrf.mxu0
        %v5708 = vadd.f32 %v5547, %v5707
        %v5709 = vpop.f32.mrf.mxu0
        %5710 = vmatprep.mubr.bf16.mxu0 0
        %5711 = vmatmul.mubr.bf16.gmra.mxu0 %v5244
        %v5712 = vpop.f32.mrf.mxu0
        %v5713 = vadd.f32 %v5552, %v5712
        %v5714 = vpop.f32.mrf.mxu0
        %v5715 = vpop.f32.mrf.mxu0
        %v5716 = vadd.f32 %v5555, %v5715
        %v5717 = vpop.f32.mrf.mxu0
        %5718 = vmatprep.mubr.bf16.mxu0 0
        %5719 = vmatmul.mubr.bf16.gmra.mxu0 %v5247
        %v5720 = vpop.f32.mrf.mxu0
        %v5721 = vadd.f32 %v5560, %v5720
        %v5722 = vpop.f32.mrf.mxu0
        %v5723 = vpop.f32.mrf.mxu0
        %v5724 = vadd.f32 %v5563, %v5723
        %v5725 = vpop.f32.mrf.mxu0
        %5726 = vmatprep.mubr.bf16.mxu0 0
        %5727 = vmatmul.mubr.bf16.gmra.mxu0 %v5250
        %v5728 = vpop.f32.mrf.mxu0
        %v5729 = vadd.f32 %v5568, %v5728
        %v5730 = vpop.f32.mrf.mxu0
        %v5731 = vpop.f32.mrf.mxu0
        %v5732 = vadd.f32 %v5571, %v5731
        %v5733 = vpop.f32.mrf.mxu0
        %5734 = vmatprep.mubr.bf16.mxu0 0
        %5735 = vmatmul.mubr.bf16.gmra.mxu0 %v5253
        %v5736 = vpop.f32.mrf.mxu0
        %v5737 = vadd.f32 %v5576, %v5736
        %v5738 = vpop.f32.mrf.mxu0
        %v5739 = vpop.f32.mrf.mxu0
        %v5740 = vadd.f32 %v5579, %v5739
        %v5741 = vpop.f32.mrf.mxu0
        %5742 = vmatprep.mubr.bf16.mxu0 0
        %5743 = vmatmul.mubr.bf16.gmra.mxu0 %v5256
        %v5744 = vpop.f32.mrf.mxu0
        %v5745 = vadd.f32 %v5584, %v5744
        %v5746 = vpop.f32.mrf.mxu0
        %v5747 = vpop.f32.mrf.mxu0
        %v5748 = vadd.f32 %v5587, %v5747
        %v5749 = vpop.f32.mrf.mxu0
        %5750 = vmatprep.mubr.bf16.mxu0 0
        %5751 = vmatmul.mubr.bf16.gmra.mxu0 %v5259
        %v5752 = vpop.f32.mrf.mxu0
        %v5753 = vadd.f32 %v5592, %v5752
        %v5754 = vpop.f32.mrf.mxu0
        %v5755 = vpop.f32.mrf.mxu0
        %v5756 = vadd.f32 %v5595, %v5755
        %v5757 = vpop.f32.mrf.mxu0
        %5758 = vmatprep.mubr.bf16.mxu0 0
        %5759 = vmatmul.mubr.bf16.gmra.mxu0 %v5262
        %v5760 = vpop.f32.mrf.mxu0
        %v5761 = vadd.f32 %v5600, %v5760
        %v5762 = vpop.f32.mrf.mxu0
        %v5763 = vpop.f32.mrf.mxu0
        %v5764 = vadd.f32 %v5603, %v5763
        %v5765 = vpop.f32.mrf.mxu0
        %5766 = vmatprep.mubr.bf16.mxu0 0
        %5767 = vmatmul.mubr.bf16.gmra.mxu0 %v5265
        %v5768 = vpop.f32.mrf.mxu0
        %v5769 = vadd.f32 %v5608, %v5768
        %v5770 = vpop.f32.mrf.mxu0
        %v5771 = vpop.f32.mrf.mxu0
        %v5772 = vadd.f32 %v5611, %v5771
        %v5773 = vpop.f32.mrf.mxu0
        %5774 = vmatprep.mubr.bf16.mxu0 0
        %5775 = vmatmul.mubr.bf16.gmra.mxu0 %v5268
        %v5776 = vpop.f32.mrf.mxu0
        %v5777 = vadd.f32 %v5616, %v5776
        %v5778 = vpop.f32.mrf.mxu0
        %v5779 = vpop.f32.mrf.mxu0
        %v5780 = vadd.f32 %v5619, %v5779
        %v5781 = vpop.f32.mrf.mxu0
        %5782 = vdwg.mxu0
        %v5847 = vunpack.c.l.b16 %v4836
        %v5848 = vunpack.c.h.b16 %v4836
        %v5849 = vunpack.c.l.b16 %v4837
        %v5850 = vunpack.c.l.b16 %v4838
        %v5851 = vunpack.c.h.b16 %v4838
        %v5852 = vunpack.c.l.b16 %v4839
        %v5853 = vunpack.c.l.b16 %v4840
        %v5854 = vunpack.c.h.b16 %v4840
        %v5855 = vunpack.c.l.b16 %v4841
        %v5856 = vunpack.c.l.b16 %v4842
        %v5857 = vunpack.c.h.b16 %v4842
        %v5858 = vunpack.c.l.b16 %v4843
        %v5859 = vunpack.c.l.b16 %v4844
        %v5860 = vunpack.c.h.b16 %v4844
        %v5861 = vunpack.c.l.b16 %v4845
        %v5862 = vunpack.c.l.b16 %v4846
        %v5863 = vunpack.c.h.b16 %v4846
        %v5864 = vunpack.c.l.b16 %v4847
        %v5865 = vunpack.c.l.b16 %v4848
        %v5866 = vunpack.c.h.b16 %v4848
        %v5867 = vunpack.c.l.b16 %v4849
        %v5868 = vunpack.c.l.b16 %v4850
        %v5869 = vunpack.c.h.b16 %v4850
        %v5870 = vunpack.c.l.b16 %v4851
        %v5871 = vunpack.c.l.b16 %v4852
        %v5872 = vunpack.c.h.b16 %v4852
        %v5873 = vunpack.c.l.b16 %v4853
        %v5874 = vunpack.c.l.b16 %v4854
        %v5875 = vunpack.c.h.b16 %v4854
        %v5876 = vunpack.c.l.b16 %v4855
        %v5877 = vunpack.c.l.b16 %v4856
        %v5878 = vunpack.c.h.b16 %v4856
        %v5879 = vunpack.c.l.b16 %v4857
        %v5880 = vunpack.c.l.b16 %v4858
        %v5881 = vunpack.c.h.b16 %v4858
        %v5882 = vunpack.c.l.b16 %v4859
        %v5883 = vunpack.c.l.b16 %v4860
        %v5884 = vunpack.c.h.b16 %v4860
        %v5885 = vunpack.c.l.b16 %v4861
        %v5886 = vunpack.c.l.b16 %v4862
        %v5887 = vunpack.c.h.b16 %v4862
        %v5888 = vunpack.c.l.b16 %v4863
        %v5889 = vunpack.c.l.b16 %v4864
        %v5890 = vunpack.c.h.b16 %v4864
        %v5891 = vunpack.c.l.b16 %v4865
        %v5892 = vunpack.c.l.b16 %v4866
        %v5893 = vunpack.c.h.b16 %v4866
        %v5894 = vunpack.c.l.b16 %v4867
        %v5895 = vunpack.c.l.b16 %v4868
        %v5896 = vunpack.c.h.b16 %v4868
        %v5897 = vunpack.c.l.b16 %v4869
        %v5898 = vunpack.c.l.b16 %v4870
        %v5899 = vunpack.c.h.b16 %v4870
        %v5900 = vunpack.c.l.b16 %v4871
        %v5901 = vunpack.c.l.b16 %v4872
        %v5902 = vunpack.c.h.b16 %v4872
        %v5903 = vunpack.c.l.b16 %v4873
        %v5904 = vunpack.c.l.b16 %v4874
        %v5905 = vunpack.c.h.b16 %v4874
        %v5906 = vunpack.c.l.b16 %v4875
        %v5907 = vunpack.c.l.b16 %v4876
        %v5908 = vunpack.c.h.b16 %v4876
        %v5909 = vunpack.c.l.b16 %v4877
        %v5910 = vunpack.c.l.b16 %v4878
        %v5911 = vunpack.c.h.b16 %v4878
        %v5912 = vunpack.c.l.b16 %v4879
        %v5913 = vunpack.c.l.b16 %v4880
        %v5914 = vunpack.c.h.b16 %v4880
        %v5915 = vunpack.c.l.b16 %v4881
        %v5916 = vunpack.c.l.b16 %v4882
        %v5917 = vunpack.c.h.b16 %v4882
        %v5918 = vunpack.c.l.b16 %v4883
        %v5919 = vunpack.c.l.b16 %v4884
        %v5920 = vunpack.c.h.b16 %v4884
        %v5921 = vunpack.c.l.b16 %v4885
        %v5922 = vunpack.c.l.b16 %v4886
        %v5923 = vunpack.c.h.b16 %v4886
        %v5924 = vunpack.c.l.b16 %v4887
        %v5925 = vunpack.c.l.b16 %v4888
        %v5926 = vunpack.c.h.b16 %v4888
        %v5927 = vunpack.c.l.b16 %v4889
        %v5928 = vunpack.c.l.b16 %v4890
        %v5929 = vunpack.c.h.b16 %v4890
        %v5930 = vunpack.c.l.b16 %v4891
        %v5931 = vunpack.c.l.b16 %v4892
        %v5932 = vunpack.c.h.b16 %v4892
        %v5933 = vunpack.c.l.b16 %v4893
        %v5934 = vunpack.c.l.b16 %v4894
        %v5935 = vunpack.c.h.b16 %v4894
        %v5936 = vunpack.c.l.b16 %v4895
        %v5937 = vunpack.c.l.b16 %v4896
        %v5938 = vunpack.c.h.b16 %v4896
        %v5939 = vunpack.c.l.b16 %v4897
        %v5940 = vunpack.c.l.b16 %v4898
        %v5941 = vunpack.c.h.b16 %v4898
        %v5942 = vunpack.c.l.b16 %v4899
        %v5943 = vpack.c.b16 %v5850, %v5847
        %v5944 = vpack.c.b16 %v5851, %v5848
        %v5945 = vpack.c.b16 %v5852, %v5849
        %v5946 = vpack.c.b16 %v5856, %v5853
        %v5947 = vpack.c.b16 %v5857, %v5854
        %v5948 = vpack.c.b16 %v5858, %v5855
        %v5949 = vpack.c.b16 %v5862, %v5859
        %v5950 = vpack.c.b16 %v5863, %v5860
        %v5951 = vpack.c.b16 %v5864, %v5861
        %v5952 = vpack.c.b16 %v5868, %v5865
        %v5953 = vpack.c.b16 %v5869, %v5866
        %v5954 = vpack.c.b16 %v5870, %v5867
        %v5955 = vpack.c.b16 %v5874, %v5871
        %v5956 = vpack.c.b16 %v5875, %v5872
        %v5957 = vpack.c.b16 %v5876, %v5873
        %v5958 = vpack.c.b16 %v5880, %v5877
        %v5959 = vpack.c.b16 %v5881, %v5878
        %v5960 = vpack.c.b16 %v5882, %v5879
        %v5961 = vpack.c.b16 %v5886, %v5883
        %v5962 = vpack.c.b16 %v5887, %v5884
        %v5963 = vpack.c.b16 %v5888, %v5885
        %v5964 = vpack.c.b16 %v5892, %v5889
        %v5965 = vpack.c.b16 %v5893, %v5890
        %v5966 = vpack.c.b16 %v5894, %v5891
        %v5967 = vpack.c.b16 %v5898, %v5895
        %v5968 = vpack.c.b16 %v5899, %v5896
        %v5969 = vpack.c.b16 %v5900, %v5897
        %v5970 = vpack.c.b16 %v5904, %v5901
        %v5971 = vpack.c.b16 %v5905, %v5902
        %v5972 = vpack.c.b16 %v5906, %v5903
        %v5973 = vpack.c.b16 %v5910, %v5907
        %v5974 = vpack.c.b16 %v5911, %v5908
        %v5975 = vpack.c.b16 %v5912, %v5909
        %v5976 = vpack.c.b16 %v5916, %v5913
        %v5977 = vpack.c.b16 %v5917, %v5914
        %v5978 = vpack.c.b16 %v5918, %v5915
        %v5979 = vpack.c.b16 %v5922, %v5919
        %v5980 = vpack.c.b16 %v5923, %v5920
        %v5981 = vpack.c.b16 %v5924, %v5921
        %v5982 = vpack.c.b16 %v5928, %v5925
        %v5983 = vpack.c.b16 %v5929, %v5926
        %v5984 = vpack.c.b16 %v5930, %v5927
        %v5985 = vpack.c.b16 %v5934, %v5931
        %v5986 = vpack.c.b16 %v5935, %v5932
        %v5987 = vpack.c.b16 %v5936, %v5933
        %v5988 = vpack.c.b16 %v5940, %v5937
        %v5989 = vpack.c.b16 %v5941, %v5938
        %v5990 = vpack.c.b16 %v5942, %v5939
        %v6087 = vunpack.c.l.b16 %v4900
        %v6088 = vunpack.c.l.b16 %v4901
        %v6089 = vunpack.c.l.b16 %v4902
        %v6090 = vunpack.c.l.b16 %v4903
        %v6091 = vunpack.c.l.b16 %v4904
        %v6092 = vunpack.c.l.b16 %v4905
        %v6093 = vunpack.c.l.b16 %v4906
        %v6094 = vunpack.c.l.b16 %v4907
        %v6095 = vunpack.c.l.b16 %v4908
        %v6096 = vunpack.c.l.b16 %v4909
        %v6097 = vunpack.c.l.b16 %v4910
        %v6098 = vunpack.c.l.b16 %v4911
        %v6099 = vunpack.c.l.b16 %v4912
        %v6100 = vunpack.c.l.b16 %v4913
        %v6101 = vunpack.c.l.b16 %v4914
        %v6102 = vunpack.c.l.b16 %v4915
        %v6103 = vunpack.c.l.b16 %v4916
        %v6104 = vunpack.c.l.b16 %v4917
        %v6105 = vunpack.c.l.b16 %v4918
        %v6106 = vunpack.c.l.b16 %v4919
        %v6107 = vunpack.c.l.b16 %v4920
        %v6108 = vunpack.c.l.b16 %v4921
        %v6109 = vunpack.c.l.b16 %v4922
        %v6110 = vunpack.c.l.b16 %v4923
        %v6111 = vunpack.c.l.b16 %v4924
        %v6112 = vunpack.c.l.b16 %v4925
        %v6113 = vunpack.c.l.b16 %v4926
        %v6114 = vunpack.c.l.b16 %v4927
        %v6115 = vunpack.c.l.b16 %v4928
        %v6116 = vunpack.c.l.b16 %v4929
        %v6117 = vunpack.c.l.b16 %v4930
        %v6118 = vunpack.c.l.b16 %v4931
        %v6119 = vunpack.c.l.b16 %v4932
        %v6120 = vunpack.c.l.b16 %v4933
        %v6121 = vunpack.c.l.b16 %v4934
        %v6122 = vunpack.c.l.b16 %v4935
        %v6123 = vunpack.c.l.b16 %v4936
        %v6124 = vunpack.c.l.b16 %v4937
        %v6125 = vunpack.c.l.b16 %v4938
        %v6126 = vunpack.c.l.b16 %v4939
        %v6127 = vunpack.c.l.b16 %v4940
        %v6128 = vunpack.c.l.b16 %v4941
        %v6129 = vunpack.c.l.b16 %v4942
        %v6130 = vunpack.c.l.b16 %v4943
        %v6131 = vunpack.c.l.b16 %v4944
        %v6132 = vunpack.c.l.b16 %v4945
        %v6133 = vunpack.c.l.b16 %v4946
        %v6134 = vunpack.c.l.b16 %v4947
        %v6135 = vpack.c.b16 %v6088, %v6087
        %v6136 = vpack.c.b16 %v6090, %v6089
        %v6137 = vpack.c.b16 %v6092, %v6091
        %v6138 = vpack.c.b16 %v6094, %v6093
        %v6139 = vpack.c.b16 %v6096, %v6095
        %v6140 = vpack.c.b16 %v6098, %v6097
        %v6141 = vpack.c.b16 %v6100, %v6099
        %v6142 = vpack.c.b16 %v6102, %v6101
        %v6143 = vpack.c.b16 %v6104, %v6103
        %v6144 = vpack.c.b16 %v6106, %v6105
        %v6145 = vpack.c.b16 %v6108, %v6107
        %v6146 = vpack.c.b16 %v6110, %v6109
        %v6147 = vpack.c.b16 %v6112, %v6111
        %v6148 = vpack.c.b16 %v6114, %v6113
        %v6149 = vpack.c.b16 %v6116, %v6115
        %v6150 = vpack.c.b16 %v6118, %v6117
        %v6151 = vpack.c.b16 %v6120, %v6119
        %v6152 = vpack.c.b16 %v6122, %v6121
        %v6153 = vpack.c.b16 %v6124, %v6123
        %v6154 = vpack.c.b16 %v6126, %v6125
        %v6155 = vpack.c.b16 %v6128, %v6127
        %v6156 = vpack.c.b16 %v6130, %v6129
        %v6157 = vpack.c.b16 %v6132, %v6131
        %v6158 = vpack.c.b16 %v6134, %v6133
        %6183 = vmatprep.subr.bf16.mxu0 0
        %6184 = vmatpush1.bf16.msra.mxu0 %v6142
        %6185 = vmatprep.subr.bf16.mxu0 0
        %6186 = vmatpush1.bf16.msra.mxu0 %v6141
        %6187 = vmatprep.subr.bf16.mxu0 0
        %6188 = vmatpush1.bf16.msra.mxu0 %v6140
        %6189 = vmatprep.subr.bf16.mxu0 0
        %6190 = vmatpush1.bf16.msra.mxu0 %v6139
        %6191 = vmatprep.subr.bf16.mxu0 0
        %6192 = vmatpush1.bf16.msra.mxu0 %v6138
        %6193 = vmatprep.subr.bf16.mxu0 0
        %6194 = vmatpush1.bf16.msra.mxu0 %v6137
        %6195 = vmatprep.subr.bf16.mxu0 0
        %6196 = vmatpush1.bf16.msra.mxu0 %v6136
        %6197 = vmatprep.subr.bf16.mxu0 0
        %6198 = vmatpush1.bf16.msra.mxu0 %v6135
        %6199 = vmatprep.subr.bf16.mxu0 0
        %6200 = vmatpush2.bf16.msra.mxu0 %v6150
        %6201 = vmatprep.subr.bf16.mxu0 0
        %6202 = vmatpush2.bf16.msra.mxu0 %v6149
        %6203 = vmatprep.subr.bf16.mxu0 0
        %6204 = vmatpush2.bf16.msra.mxu0 %v6148
        %6205 = vmatprep.subr.bf16.mxu0 0
        %6206 = vmatpush2.bf16.msra.mxu0 %v6147
        %6207 = vmatprep.subr.bf16.mxu0 0
        %6208 = vmatpush2.bf16.msra.mxu0 %v6146
        %6209 = vmatprep.subr.bf16.mxu0 0
        %6210 = vmatpush2.bf16.msra.mxu0 %v6145
        %6211 = vmatprep.subr.bf16.mxu0 0
        %6212 = vmatpush2.bf16.msra.mxu0 %v6144
        %6213 = vmatprep.subr.bf16.mxu0 0
        %6214 = vmatpush2.bf16.msra.mxu0 %v6143
        %6215 = vmatprep.mubr.bf16.mxu0 %v5944
        %6216 = vmatmul.mubr.bf16.gmra.mxu0 %v5943
        %v6217 = vpop.f32.mrf.mxu0
        %v6218 = vadd.f32 %v5657, %v6217
        %v6219 = vpop.f32.mrf.mxu0
        %v6220 = vpop.f32.mrf.mxu0
        %v6221 = vadd.f32 %v5660, %v6220
        %v6222 = vpop.f32.mrf.mxu0
        %6223 = vmatprep.mubr.bf16.mxu0 %v5947
        %6224 = vmatmul.mubr.bf16.gmra.mxu0 %v5946
        %v6225 = vpop.f32.mrf.mxu0
        %v6226 = vadd.f32 %v5665, %v6225
        %v6227 = vpop.f32.mrf.mxu0
        %v6228 = vpop.f32.mrf.mxu0
        %v6229 = vadd.f32 %v5668, %v6228
        %v6230 = vpop.f32.mrf.mxu0
        %6231 = vmatprep.mubr.bf16.mxu0 %v5950
        %6232 = vmatmul.mubr.bf16.gmra.mxu0 %v5949
        %v6233 = vpop.f32.mrf.mxu0
        %v6234 = vadd.f32 %v5673, %v6233
        %v6235 = vpop.f32.mrf.mxu0
        %v6236 = vpop.f32.mrf.mxu0
        %v6237 = vadd.f32 %v5676, %v6236
        %v6238 = vpop.f32.mrf.mxu0
        %6239 = vmatprep.mubr.bf16.mxu0 %v5953
        %6240 = vmatmul.mubr.bf16.gmra.mxu0 %v5952
        %v6241 = vpop.f32.mrf.mxu0
        %v6242 = vadd.f32 %v5681, %v6241
        %v6243 = vpop.f32.mrf.mxu0
        %v6244 = vpop.f32.mrf.mxu0
        %v6245 = vadd.f32 %v5684, %v6244
        %v6246 = vpop.f32.mrf.mxu0
        %6247 = vmatprep.mubr.bf16.mxu0 %v5956
        %6248 = vmatmul.mubr.bf16.gmra.mxu0 %v5955
        %v6249 = vpop.f32.mrf.mxu0
        %v6250 = vadd.f32 %v5689, %v6249
        %v6251 = vpop.f32.mrf.mxu0
        %v6252 = vpop.f32.mrf.mxu0
        %v6253 = vadd.f32 %v5692, %v6252
        %v6254 = vpop.f32.mrf.mxu0
        %6255 = vmatprep.mubr.bf16.mxu0 %v5959
        %6256 = vmatmul.mubr.bf16.gmra.mxu0 %v5958
        %v6257 = vpop.f32.mrf.mxu0
        %v6258 = vadd.f32 %v5697, %v6257
        %v6259 = vpop.f32.mrf.mxu0
        %v6260 = vpop.f32.mrf.mxu0
        %v6261 = vadd.f32 %v5700, %v6260
        %v6262 = vpop.f32.mrf.mxu0
        %6263 = vmatprep.mubr.bf16.mxu0 %v5962
        %6264 = vmatmul.mubr.bf16.gmra.mxu0 %v5961
        %v6265 = vpop.f32.mrf.mxu0
        %v6266 = vadd.f32 %v5705, %v6265
        %v6267 = vpop.f32.mrf.mxu0
        %v6268 = vpop.f32.mrf.mxu0
        %v6269 = vadd.f32 %v5708, %v6268
        %v6270 = vpop.f32.mrf.mxu0
        %6271 = vmatprep.mubr.bf16.mxu0 %v5965
        %6272 = vmatmul.mubr.bf16.gmra.mxu0 %v5964
        %v6273 = vpop.f32.mrf.mxu0
        %v6274 = vadd.f32 %v5713, %v6273
        %v6275 = vpop.f32.mrf.mxu0
        %v6276 = vpop.f32.mrf.mxu0
        %v6277 = vadd.f32 %v5716, %v6276
        %v6278 = vpop.f32.mrf.mxu0
        %6279 = vmatprep.mubr.bf16.mxu0 %v5968
        %6280 = vmatmul.mubr.bf16.gmra.mxu0 %v5967
        %v6281 = vpop.f32.mrf.mxu0
        %v6282 = vadd.f32 %v5721, %v6281
        %v6283 = vpop.f32.mrf.mxu0
        %v6284 = vpop.f32.mrf.mxu0
        %v6285 = vadd.f32 %v5724, %v6284
        %v6286 = vpop.f32.mrf.mxu0
        %6287 = vmatprep.mubr.bf16.mxu0 %v5971
        %6288 = vmatmul.mubr.bf16.gmra.mxu0 %v5970
        %v6289 = vpop.f32.mrf.mxu0
        %v6290 = vadd.f32 %v5729, %v6289
        %v6291 = vpop.f32.mrf.mxu0
        %v6292 = vpop.f32.mrf.mxu0
        %v6293 = vadd.f32 %v5732, %v6292
        %v6294 = vpop.f32.mrf.mxu0
        %6295 = vmatprep.mubr.bf16.mxu0 %v5974
        %6296 = vmatmul.mubr.bf16.gmra.mxu0 %v5973
        %v6297 = vpop.f32.mrf.mxu0
        %v6298 = vadd.f32 %v5737, %v6297
        %v6299 = vpop.f32.mrf.mxu0
        %v6300 = vpop.f32.mrf.mxu0
        %v6301 = vadd.f32 %v5740, %v6300
        %v6302 = vpop.f32.mrf.mxu0
        %6303 = vmatprep.mubr.bf16.mxu0 %v5977
        %6304 = vmatmul.mubr.bf16.gmra.mxu0 %v5976
        %v6305 = vpop.f32.mrf.mxu0
        %v6306 = vadd.f32 %v5745, %v6305
        %v6307 = vpop.f32.mrf.mxu0
        %v6308 = vpop.f32.mrf.mxu0
        %v6309 = vadd.f32 %v5748, %v6308
        %v6310 = vpop.f32.mrf.mxu0
        %6311 = vmatprep.mubr.bf16.mxu0 %v5980
        %6312 = vmatmul.mubr.bf16.gmra.mxu0 %v5979
        %v6313 = vpop.f32.mrf.mxu0
        %v6314 = vadd.f32 %v5753, %v6313
        %v6315 = vpop.f32.mrf.mxu0
        %v6316 = vpop.f32.mrf.mxu0
        %v6317 = vadd.f32 %v5756, %v6316
        %v6318 = vpop.f32.mrf.mxu0
        %6319 = vmatprep.mubr.bf16.mxu0 %v5983
        %6320 = vmatmul.mubr.bf16.gmra.mxu0 %v5982
        %v6321 = vpop.f32.mrf.mxu0
        %v6322 = vadd.f32 %v5761, %v6321
        %v6323 = vpop.f32.mrf.mxu0
        %v6324 = vpop.f32.mrf.mxu0
        %v6325 = vadd.f32 %v5764, %v6324
        %v6326 = vpop.f32.mrf.mxu0
        %6327 = vmatprep.mubr.bf16.mxu0 %v5986
        %6328 = vmatmul.mubr.bf16.gmra.mxu0 %v5985
        %v6329 = vpop.f32.mrf.mxu0
        %v6330 = vadd.f32 %v5769, %v6329
        %v6331 = vpop.f32.mrf.mxu0
        %v6332 = vpop.f32.mrf.mxu0
        %v6333 = vadd.f32 %v5772, %v6332
        %v6334 = vpop.f32.mrf.mxu0
        %6335 = vmatprep.mubr.bf16.mxu0 %v5989
        %6336 = vmatmul.mubr.bf16.gmra.mxu0 %v5988
        %v6337 = vpop.f32.mrf.mxu0
        %v6338 = vadd.f32 %v5777, %v6337
        %v6339 = vpop.f32.mrf.mxu0
        %v6340 = vpop.f32.mrf.mxu0
        %v6341 = vadd.f32 %v5780, %v6340
        %v6342 = vpop.f32.mrf.mxu0
        %6343 = vdwg.mxu0
        %6344 = vmatprep.subr.bf16.mxu0 0
        %6345 = vmatpush1.bf16.msra.mxu0 %v6158
        %6346 = vmatprep.subr.bf16.mxu0 0
        %6347 = vmatpush1.bf16.msra.mxu0 %v6157
        %6348 = vmatprep.subr.bf16.mxu0 0
        %6349 = vmatpush1.bf16.msra.mxu0 %v6156
        %6350 = vmatprep.subr.bf16.mxu0 0
        %6351 = vmatpush1.bf16.msra.mxu0 %v6155
        %6352 = vmatprep.subr.bf16.mxu0 0
        %6353 = vmatpush1.bf16.msra.mxu0 %v6154
        %6354 = vmatprep.subr.bf16.mxu0 0
        %6355 = vmatpush1.bf16.msra.mxu0 %v6153
        %6356 = vmatprep.subr.bf16.mxu0 0
        %6357 = vmatpush1.bf16.msra.mxu0 %v6152
        %6358 = vmatprep.subr.bf16.mxu0 0
        %6359 = vmatpush1.bf16.msra.mxu0 %v6151
        %6360 = vmatprep.subr.bf16.mxu0 0
        %6361 = vmatpush2.bf16.msra.mxu0 0
        %6362 = vmatprep.subr.bf16.mxu0 0
        %6363 = vmatpush2.bf16.msra.mxu0 0
        %6364 = vmatprep.subr.bf16.mxu0 0
        %6365 = vmatpush2.bf16.msra.mxu0 0
        %6366 = vmatprep.subr.bf16.mxu0 0
        %6367 = vmatpush2.bf16.msra.mxu0 0
        %6368 = vmatprep.subr.bf16.mxu0 0
        %6369 = vmatpush2.bf16.msra.mxu0 0
        %6370 = vmatprep.subr.bf16.mxu0 0
        %6371 = vmatpush2.bf16.msra.mxu0 0
        %6372 = vmatprep.subr.bf16.mxu0 0
        %6373 = vmatpush2.bf16.msra.mxu0 0
        %6374 = vmatprep.subr.bf16.mxu0 0
        %6375 = vmatpush2.bf16.msra.mxu0 0
        %6376 = vmatprep.mubr.bf16.mxu0 0
        %6377 = vmatmul.mubr.bf16.gmra.mxu0 %v5945
        %v6378 = vpop.f32.mrf.mxu0
        %v6379 = vadd.f32 %v6218, %v6378
        %v6380 = vpop.f32.mrf.mxu0
        %v6381 = vpop.f32.mrf.mxu0
        %v6382 = vadd.f32 %v6221, %v6381
        %v6383 = vpop.f32.mrf.mxu0
        %6384 = vmatprep.mubr.bf16.mxu0 0
        %6385 = vmatmul.mubr.bf16.gmra.mxu0 %v5948
        %v6386 = vpop.f32.mrf.mxu0
        %v6387 = vadd.f32 %v6226, %v6386
        %v6388 = vpop.f32.mrf.mxu0
        %v6389 = vpop.f32.mrf.mxu0
        %v6390 = vadd.f32 %v6229, %v6389
        %v6391 = vpop.f32.mrf.mxu0
        %6392 = vmatprep.mubr.bf16.mxu0 0
        %6393 = vmatmul.mubr.bf16.gmra.mxu0 %v5951
        %v6394 = vpop.f32.mrf.mxu0
        %v6395 = vadd.f32 %v6234, %v6394
        %v6396 = vpop.f32.mrf.mxu0
        %v6397 = vpop.f32.mrf.mxu0
        %v6398 = vadd.f32 %v6237, %v6397
        %v6399 = vpop.f32.mrf.mxu0
        %6400 = vmatprep.mubr.bf16.mxu0 0
        %6401 = vmatmul.mubr.bf16.gmra.mxu0 %v5954
        %v6402 = vpop.f32.mrf.mxu0
        %v6403 = vadd.f32 %v6242, %v6402
        %v6404 = vpop.f32.mrf.mxu0
        %v6405 = vpop.f32.mrf.mxu0
        %v6406 = vadd.f32 %v6245, %v6405
        %v6407 = vpop.f32.mrf.mxu0
        %6408 = vmatprep.mubr.bf16.mxu0 0
        %6409 = vmatmul.mubr.bf16.gmra.mxu0 %v5957
        %v6410 = vpop.f32.mrf.mxu0
        %v6411 = vadd.f32 %v6250, %v6410
        %v6412 = vpop.f32.mrf.mxu0
        %v6413 = vpop.f32.mrf.mxu0
        %v6414 = vadd.f32 %v6253, %v6413
        %v6415 = vpop.f32.mrf.mxu0
        %6416 = vmatprep.mubr.bf16.mxu0 0
        %6417 = vmatmul.mubr.bf16.gmra.mxu0 %v5960
        %v6418 = vpop.f32.mrf.mxu0
        %v6419 = vadd.f32 %v6258, %v6418
        %v6420 = vpop.f32.mrf.mxu0
        %v6421 = vpop.f32.mrf.mxu0
        %v6422 = vadd.f32 %v6261, %v6421
        %v6423 = vpop.f32.mrf.mxu0
        %6424 = vmatprep.mubr.bf16.mxu0 0
        %6425 = vmatmul.mubr.bf16.gmra.mxu0 %v5963
        %v6426 = vpop.f32.mrf.mxu0
        %v6427 = vadd.f32 %v6266, %v6426
        %v6428 = vpop.f32.mrf.mxu0
        %v6429 = vpop.f32.mrf.mxu0
        %v6430 = vadd.f32 %v6269, %v6429
        %v6431 = vpop.f32.mrf.mxu0
        %6432 = vmatprep.mubr.bf16.mxu0 0
        %6433 = vmatmul.mubr.bf16.gmra.mxu0 %v5966
        %v6434 = vpop.f32.mrf.mxu0
        %v6435 = vadd.f32 %v6274, %v6434
        %v6436 = vpop.f32.mrf.mxu0
        %v6437 = vpop.f32.mrf.mxu0
        %v6438 = vadd.f32 %v6277, %v6437
        %v6439 = vpop.f32.mrf.mxu0
        %6440 = vmatprep.mubr.bf16.mxu0 0
        %6441 = vmatmul.mubr.bf16.gmra.mxu0 %v5969
        %v6442 = vpop.f32.mrf.mxu0
        %v6443 = vadd.f32 %v6282, %v6442
        %v6444 = vpop.f32.mrf.mxu0
        %v6445 = vpop.f32.mrf.mxu0
        %v6446 = vadd.f32 %v6285, %v6445
        %v6447 = vpop.f32.mrf.mxu0
        %6448 = vmatprep.mubr.bf16.mxu0 0
        %6449 = vmatmul.mubr.bf16.gmra.mxu0 %v5972
        %v6450 = vpop.f32.mrf.mxu0
        %v6451 = vadd.f32 %v6290, %v6450
        %v6452 = vpop.f32.mrf.mxu0
        %v6453 = vpop.f32.mrf.mxu0
        %v6454 = vadd.f32 %v6293, %v6453
        %v6455 = vpop.f32.mrf.mxu0
        %6456 = vmatprep.mubr.bf16.mxu0 0
        %6457 = vmatmul.mubr.bf16.gmra.mxu0 %v5975
        %v6458 = vpop.f32.mrf.mxu0
        %v6459 = vadd.f32 %v6298, %v6458
        %v6460 = vpop.f32.mrf.mxu0
        %v6461 = vpop.f32.mrf.mxu0
        %v6462 = vadd.f32 %v6301, %v6461
        %v6463 = vpop.f32.mrf.mxu0
        %6464 = vmatprep.mubr.bf16.mxu0 0
        %6465 = vmatmul.mubr.bf16.gmra.mxu0 %v5978
        %v6466 = vpop.f32.mrf.mxu0
        %v6467 = vadd.f32 %v6306, %v6466
        %v6468 = vpop.f32.mrf.mxu0
        %v6469 = vpop.f32.mrf.mxu0
        %v6470 = vadd.f32 %v6309, %v6469
        %v6471 = vpop.f32.mrf.mxu0
        %6472 = vmatprep.mubr.bf16.mxu0 0
        %6473 = vmatmul.mubr.bf16.gmra.mxu0 %v5981
        %v6474 = vpop.f32.mrf.mxu0
        %v6475 = vadd.f32 %v6314, %v6474
        %v6476 = vpop.f32.mrf.mxu0
        %v6477 = vpop.f32.mrf.mxu0
        %v6478 = vadd.f32 %v6317, %v6477
        %v6479 = vpop.f32.mrf.mxu0
        %6480 = vmatprep.mubr.bf16.mxu0 0
        %6481 = vmatmul.mubr.bf16.gmra.mxu0 %v5984
        %v6482 = vpop.f32.mrf.mxu0
        %v6483 = vadd.f32 %v6322, %v6482
        %v6484 = vpop.f32.mrf.mxu0
        %v6485 = vpop.f32.mrf.mxu0
        %v6486 = vadd.f32 %v6325, %v6485
        %v6487 = vpop.f32.mrf.mxu0
        %6488 = vmatprep.mubr.bf16.mxu0 0
        %6489 = vmatmul.mubr.bf16.gmra.mxu0 %v5987
        %v6490 = vpop.f32.mrf.mxu0
        %v6491 = vadd.f32 %v6330, %v6490
        %v6492 = vpop.f32.mrf.mxu0
        %v6493 = vpop.f32.mrf.mxu0
        %v6494 = vadd.f32 %v6333, %v6493
        %v6495 = vpop.f32.mrf.mxu0
        %6496 = vmatprep.mubr.bf16.mxu0 0
        %6497 = vmatmul.mubr.bf16.gmra.mxu0 %v5990
        %v6498 = vpop.f32.mrf.mxu0
        %v6499 = vadd.f32 %v6338, %v6498
        %v6500 = vpop.f32.mrf.mxu0
        %v6501 = vpop.f32.mrf.mxu0
        %v6502 = vadd.f32 %v6341, %v6501
        %v6503 = vpop.f32.mrf.mxu0
        %6504 = vdwg.mxu0
        %v6505 = vld [vmem:[%s1163] sm:$0xff]
        %v6506 = vld [vmem:[%s1163 + $0x8] sm:$0xf]
        %v6507 = vld [vmem:[%s1163 + $0xc] sm:$0xff]
        %v6508 = vld [vmem:[%s1163 + $0x14] sm:$0xf]
        %v6509 = vld [vmem:[%s1163 + $0x18] sm:$0xff]
        %v6510 = vld [vmem:[%s1163 + $0x20] sm:$0xf]
        %v6511 = vld [vmem:[%s1163 + $0x24] sm:$0xff]
        %v6512 = vld [vmem:[%s1163 + $0x2c] sm:$0xf]
        %v6513 = vld [vmem:[%s1163 + $0x30] sm:$0xff]
        %v6514 = vld [vmem:[%s1163 + $0x38] sm:$0xf]
        %v6515 = vld [vmem:[%s1163 + $0x3c] sm:$0xff]
        %v6516 = vld [vmem:[%s1163 + $0x44] sm:$0xf]
        %v6517 = vld [vmem:[%s1163 + $0x48] sm:$0xff]
        %v6518 = vld [vmem:[%s1163 + $0x50] sm:$0xf]
        %v6519 = vld [vmem:[%s1163 + $0x54] sm:$0xff]
        %v6520 = vld [vmem:[%s1163 + $0x5c] sm:$0xf]
        %v6521 = vld [vmem:[%s1163 + $0x60] sm:$0xff]
        %v6522 = vld [vmem:[%s1163 + $0x68] sm:$0xf]
        %v6523 = vld [vmem:[%s1163 + $0x6c] sm:$0xff]
        %v6524 = vld [vmem:[%s1163 + $0x74] sm:$0xf]
        %v6525 = vld [vmem:[%s1163 + $0x78] sm:$0xff]
        %v6526 = vld [vmem:[%s1163 + $0x80] sm:$0xf]
        %v6527 = vld [vmem:[%s1163 + $0x84] sm:$0xff]
        %v6528 = vld [vmem:[%s1163 + $0x8c] sm:$0xf]
        %v6529 = vld [vmem:[%s1163 + $0x90] sm:$0xff]
        %v6530 = vld [vmem:[%s1163 + $0x98] sm:$0xf]
        %v6531 = vld [vmem:[%s1163 + $0x9c] sm:$0xff]
        %v6532 = vld [vmem:[%s1163 + $0xa4] sm:$0xf]
        %v6533 = vld [vmem:[%s1163 + $0xa8] sm:$0xff]
        %v6534 = vld [vmem:[%s1163 + $0xb0] sm:$0xf]
        %v6535 = vld [vmem:[%s1163 + $0xb4] sm:$0xff]
        %v6536 = vld [vmem:[%s1163 + $0xbc] sm:$0xf]
        %v6537 = vld [vmem:[%s1163 + $0xc0] sm:$0xff]
        %v6538 = vld [vmem:[%s1163 + $0xc8] sm:$0xf]
        %v6539 = vld [vmem:[%s1163 + $0xcc] sm:$0xff]
        %v6540 = vld [vmem:[%s1163 + $0xd4] sm:$0xf]
        %v6541 = vld [vmem:[%s1163 + $0xd8] sm:$0xff]
        %v6542 = vld [vmem:[%s1163 + $0xe0] sm:$0xf]
        %v6543 = vld [vmem:[%s1163 + $0xe4] sm:$0xff]
        %v6544 = vld [vmem:[%s1163 + $0xec] sm:$0xf]
        %v6545 = vld [vmem:[%s1163 + $0xf0] sm:$0xff]
        %v6546 = vld [vmem:[%s1163 + $0xf8] sm:$0xf]
        %v6547 = vld [vmem:[%s1163 + $0xfc] sm:$0xff]
        %v6548 = vld [vmem:[%s1163 + $0x104] sm:$0xf]
        %v6549 = vld [vmem:[%s1163 + $0x108] sm:$0xff]
        %v6550 = vld [vmem:[%s1163 + $0x110] sm:$0xf]
        %v6551 = vld [vmem:[%s1163 + $0x114] sm:$0xff]
        %v6552 = vld [vmem:[%s1163 + $0x11c] sm:$0xf]
        %v6553 = vld [vmem:[%s1163 + $0x120] sm:$0xff]
        %v6554 = vld [vmem:[%s1163 + $0x128] sm:$0xf]
        %v6555 = vld [vmem:[%s1163 + $0x12c] sm:$0xff]
        %v6556 = vld [vmem:[%s1163 + $0x134] sm:$0xf]
        %v6557 = vld [vmem:[%s1163 + $0x138] sm:$0xff]
        %v6558 = vld [vmem:[%s1163 + $0x140] sm:$0xf]
        %v6559 = vld [vmem:[%s1163 + $0x144] sm:$0xff]
        %v6560 = vld [vmem:[%s1163 + $0x14c] sm:$0xf]
        %v6561 = vld [vmem:[%s1163 + $0x150] sm:$0xff]
        %v6562 = vld [vmem:[%s1163 + $0x158] sm:$0xf]
        %v6563 = vld [vmem:[%s1163 + $0x15c] sm:$0xff]
        %v6564 = vld [vmem:[%s1163 + $0x164] sm:$0xf]
        %v6565 = vld [vmem:[%s1163 + $0x168] sm:$0xff]
        %v6566 = vld [vmem:[%s1163 + $0x170] sm:$0xf]
        %v6567 = vld [vmem:[%s1163 + $0x174] sm:$0xff]
        %v6568 = vld [vmem:[%s1163 + $0x17c] sm:$0xf]
        %s6569 = scalar_lea.vmem [#allocation8], 384
        %v6570 = vld [vmem:[%s6569] sm:$0xf]
        %v6571 = vld [vmem:[%s6569 + $0x4] sm:$0xf]
        %v6572 = vld [vmem:[%s6569 + $0x8] sm:$0xf]
        %v6573 = vld [vmem:[%s6569 + $0xc] sm:$0xf]
        %v6574 = vld [vmem:[%s6569 + $0x10] sm:$0xf]
        %v6575 = vld [vmem:[%s6569 + $0x14] sm:$0xf]
        %v6576 = vld [vmem:[%s6569 + $0x18] sm:$0xf]
        %v6577 = vld [vmem:[%s6569 + $0x1c] sm:$0xf]
        %v6578 = vld [vmem:[%s6569 + $0x20] sm:$0xf]
        %v6579 = vld [vmem:[%s6569 + $0x24] sm:$0xf]
        %v6580 = vld [vmem:[%s6569 + $0x28] sm:$0xf]
        %v6581 = vld [vmem:[%s6569 + $0x2c] sm:$0xf]
        %v6582 = vld [vmem:[%s6569 + $0x30] sm:$0xf]
        %v6583 = vld [vmem:[%s6569 + $0x34] sm:$0xf]
        %v6584 = vld [vmem:[%s6569 + $0x38] sm:$0xf]
        %v6585 = vld [vmem:[%s6569 + $0x3c] sm:$0xf]
        %v6586 = vld [vmem:[%s6569 + $0x40] sm:$0xf]
        %v6587 = vld [vmem:[%s6569 + $0x44] sm:$0xf]
        %v6588 = vld [vmem:[%s6569 + $0x48] sm:$0xf]
        %v6589 = vld [vmem:[%s6569 + $0x4c] sm:$0xf]
        %v6590 = vld [vmem:[%s6569 + $0x50] sm:$0xf]
        %v6591 = vld [vmem:[%s6569 + $0x54] sm:$0xf]
        %v6592 = vld [vmem:[%s6569 + $0x58] sm:$0xf]
        %v6593 = vld [vmem:[%s6569 + $0x5c] sm:$0xf]
        %v6594 = vld [vmem:[%s6569 + $0x60] sm:$0xf]
        %v6595 = vld [vmem:[%s6569 + $0x64] sm:$0xf]
        %v6596 = vld [vmem:[%s6569 + $0x68] sm:$0xf]
        %v6597 = vld [vmem:[%s6569 + $0x6c] sm:$0xf]
        %v6598 = vld [vmem:[%s6569 + $0x70] sm:$0xf]
        %v6599 = vld [vmem:[%s6569 + $0x74] sm:$0xf]
        %v6600 = vld [vmem:[%s6569 + $0x78] sm:$0xf]
        %v6601 = vld [vmem:[%s6569 + $0x7c] sm:$0xf]
        %v6602 = vld [vmem:[%s6569 + $0x80] sm:$0xf]
        %v6603 = vld [vmem:[%s6569 + $0x84] sm:$0xf]
        %v6604 = vld [vmem:[%s6569 + $0x88] sm:$0xf]
        %v6605 = vld [vmem:[%s6569 + $0x8c] sm:$0xf]
        %v6606 = vld [vmem:[%s6569 + $0x90] sm:$0xf]
        %v6607 = vld [vmem:[%s6569 + $0x94] sm:$0xf]
        %v6608 = vld [vmem:[%s6569 + $0x98] sm:$0xf]
        %v6609 = vld [vmem:[%s6569 + $0x9c] sm:$0xf]
        %v6610 = vld [vmem:[%s6569 + $0xa0] sm:$0xf]
        %v6611 = vld [vmem:[%s6569 + $0xa4] sm:$0xf]
        %v6612 = vld [vmem:[%s6569 + $0xa8] sm:$0xf]
        %v6613 = vld [vmem:[%s6569 + $0xac] sm:$0xf]
        %v6614 = vld [vmem:[%s6569 + $0xb0] sm:$0xf]
        %v6615 = vld [vmem:[%s6569 + $0xb4] sm:$0xf]
        %v6616 = vld [vmem:[%s6569 + $0xb8] sm:$0xf]
        %v6617 = vld [vmem:[%s6569 + $0xbc] sm:$0xf]
        %v6682 = vunpack.c.l.b16 %v6505
        %v6683 = vunpack.c.h.b16 %v6505
        %v6684 = vunpack.c.l.b16 %v6506
        %v6685 = vunpack.c.l.b16 %v6507
        %v6686 = vunpack.c.h.b16 %v6507
        %v6687 = vunpack.c.l.b16 %v6508
        %v6688 = vunpack.c.l.b16 %v6509
        %v6689 = vunpack.c.h.b16 %v6509
        %v6690 = vunpack.c.l.b16 %v6510
        %v6691 = vunpack.c.l.b16 %v6511
        %v6692 = vunpack.c.h.b16 %v6511
        %v6693 = vunpack.c.l.b16 %v6512
        %v6694 = vunpack.c.l.b16 %v6513
        %v6695 = vunpack.c.h.b16 %v6513
        %v6696 = vunpack.c.l.b16 %v6514
        %v6697 = vunpack.c.l.b16 %v6515
        %v6698 = vunpack.c.h.b16 %v6515
        %v6699 = vunpack.c.l.b16 %v6516
        %v6700 = vunpack.c.l.b16 %v6517
        %v6701 = vunpack.c.h.b16 %v6517
        %v6702 = vunpack.c.l.b16 %v6518
        %v6703 = vunpack.c.l.b16 %v6519
        %v6704 = vunpack.c.h.b16 %v6519
        %v6705 = vunpack.c.l.b16 %v6520
        %v6706 = vunpack.c.l.b16 %v6521
        %v6707 = vunpack.c.h.b16 %v6521
        %v6708 = vunpack.c.l.b16 %v6522
        %v6709 = vunpack.c.l.b16 %v6523
        %v6710 = vunpack.c.h.b16 %v6523
        %v6711 = vunpack.c.l.b16 %v6524
        %v6712 = vunpack.c.l.b16 %v6525
        %v6713 = vunpack.c.h.b16 %v6525
        %v6714 = vunpack.c.l.b16 %v6526
        %v6715 = vunpack.c.l.b16 %v6527
        %v6716 = vunpack.c.h.b16 %v6527
        %v6717 = vunpack.c.l.b16 %v6528
        %v6718 = vunpack.c.l.b16 %v6529
        %v6719 = vunpack.c.h.b16 %v6529
        %v6720 = vunpack.c.l.b16 %v6530
        %v6721 = vunpack.c.l.b16 %v6531
        %v6722 = vunpack.c.h.b16 %v6531
        %v6723 = vunpack.c.l.b16 %v6532
        %v6724 = vunpack.c.l.b16 %v6533
        %v6725 = vunpack.c.h.b16 %v6533
        %v6726 = vunpack.c.l.b16 %v6534
        %v6727 = vunpack.c.l.b16 %v6535
        %v6728 = vunpack.c.h.b16 %v6535
        %v6729 = vunpack.c.l.b16 %v6536
        %v6730 = vunpack.c.l.b16 %v6537
        %v6731 = vunpack.c.h.b16 %v6537
        %v6732 = vunpack.c.l.b16 %v6538
        %v6733 = vunpack.c.l.b16 %v6539
        %v6734 = vunpack.c.h.b16 %v6539
        %v6735 = vunpack.c.l.b16 %v6540
        %v6736 = vunpack.c.l.b16 %v6541
        %v6737 = vunpack.c.h.b16 %v6541
        %v6738 = vunpack.c.l.b16 %v6542
        %v6739 = vunpack.c.l.b16 %v6543
        %v6740 = vunpack.c.h.b16 %v6543
        %v6741 = vunpack.c.l.b16 %v6544
        %v6742 = vunpack.c.l.b16 %v6545
        %v6743 = vunpack.c.h.b16 %v6545
        %v6744 = vunpack.c.l.b16 %v6546
        %v6745 = vunpack.c.l.b16 %v6547
        %v6746 = vunpack.c.h.b16 %v6547
        %v6747 = vunpack.c.l.b16 %v6548
        %v6748 = vunpack.c.l.b16 %v6549
        %v6749 = vunpack.c.h.b16 %v6549
        %v6750 = vunpack.c.l.b16 %v6550
        %v6751 = vunpack.c.l.b16 %v6551
        %v6752 = vunpack.c.h.b16 %v6551
        %v6753 = vunpack.c.l.b16 %v6552
        %v6754 = vunpack.c.l.b16 %v6553
        %v6755 = vunpack.c.h.b16 %v6553
        %v6756 = vunpack.c.l.b16 %v6554
        %v6757 = vunpack.c.l.b16 %v6555
        %v6758 = vunpack.c.h.b16 %v6555
        %v6759 = vunpack.c.l.b16 %v6556
        %v6760 = vunpack.c.l.b16 %v6557
        %v6761 = vunpack.c.h.b16 %v6557
        %v6762 = vunpack.c.l.b16 %v6558
        %v6763 = vunpack.c.l.b16 %v6559
        %v6764 = vunpack.c.h.b16 %v6559
        %v6765 = vunpack.c.l.b16 %v6560
        %v6766 = vunpack.c.l.b16 %v6561
        %v6767 = vunpack.c.h.b16 %v6561
        %v6768 = vunpack.c.l.b16 %v6562
        %v6769 = vunpack.c.l.b16 %v6563
        %v6770 = vunpack.c.h.b16 %v6563
        %v6771 = vunpack.c.l.b16 %v6564
        %v6772 = vunpack.c.l.b16 %v6565
        %v6773 = vunpack.c.h.b16 %v6565
        %v6774 = vunpack.c.l.b16 %v6566
        %v6775 = vunpack.c.l.b16 %v6567
        %v6776 = vunpack.c.h.b16 %v6567
        %v6777 = vunpack.c.l.b16 %v6568
        %v6778 = vpack.c.b16 %v6685, %v6682
        %v6779 = vpack.c.b16 %v6686, %v6683
        %v6780 = vpack.c.b16 %v6687, %v6684
        %v6781 = vpack.c.b16 %v6691, %v6688
        %v6782 = vpack.c.b16 %v6692, %v6689
        %v6783 = vpack.c.b16 %v6693, %v6690
        %v6784 = vpack.c.b16 %v6697, %v6694
        %v6785 = vpack.c.b16 %v6698, %v6695
        %v6786 = vpack.c.b16 %v6699, %v6696
        %v6787 = vpack.c.b16 %v6703, %v6700
        %v6788 = vpack.c.b16 %v6704, %v6701
        %v6789 = vpack.c.b16 %v6705, %v6702
        %v6790 = vpack.c.b16 %v6709, %v6706
        %v6791 = vpack.c.b16 %v6710, %v6707
        %v6792 = vpack.c.b16 %v6711, %v6708
        %v6793 = vpack.c.b16 %v6715, %v6712
        %v6794 = vpack.c.b16 %v6716, %v6713
        %v6795 = vpack.c.b16 %v6717, %v6714
        %v6796 = vpack.c.b16 %v6721, %v6718
        %v6797 = vpack.c.b16 %v6722, %v6719
        %v6798 = vpack.c.b16 %v6723, %v6720
        %v6799 = vpack.c.b16 %v6727, %v6724
        %v6800 = vpack.c.b16 %v6728, %v6725
        %v6801 = vpack.c.b16 %v6729, %v6726
        %v6802 = vpack.c.b16 %v6733, %v6730
        %v6803 = vpack.c.b16 %v6734, %v6731
        %v6804 = vpack.c.b16 %v6735, %v6732
        %v6805 = vpack.c.b16 %v6739, %v6736
        %v6806 = vpack.c.b16 %v6740, %v6737
        %v6807 = vpack.c.b16 %v6741, %v6738
        %v6808 = vpack.c.b16 %v6745, %v6742
        %v6809 = vpack.c.b16 %v6746, %v6743
        %v6810 = vpack.c.b16 %v6747, %v6744
        %v6811 = vpack.c.b16 %v6751, %v6748
        %v6812 = vpack.c.b16 %v6752, %v6749
        %v6813 = vpack.c.b16 %v6753, %v6750
        %v6814 = vpack.c.b16 %v6757, %v6754
        %v6815 = vpack.c.b16 %v6758, %v6755
        %v6816 = vpack.c.b16 %v6759, %v6756
        %v6817 = vpack.c.b16 %v6763, %v6760
        %v6818 = vpack.c.b16 %v6764, %v6761
        %v6819 = vpack.c.b16 %v6765, %v6762
        %v6820 = vpack.c.b16 %v6769, %v6766
        %v6821 = vpack.c.b16 %v6770, %v6767
        %v6822 = vpack.c.b16 %v6771, %v6768
        %v6823 = vpack.c.b16 %v6775, %v6772
        %v6824 = vpack.c.b16 %v6776, %v6773
        %v6825 = vpack.c.b16 %v6777, %v6774
        %v6922 = vunpack.c.l.b16 %v6570
        %v6923 = vunpack.c.l.b16 %v6571
        %v6924 = vunpack.c.l.b16 %v6572
        %v6925 = vunpack.c.l.b16 %v6573
        %v6926 = vunpack.c.l.b16 %v6574
        %v6927 = vunpack.c.l.b16 %v6575
        %v6928 = vunpack.c.l.b16 %v6576
        %v6929 = vunpack.c.l.b16 %v6577
        %v6930 = vunpack.c.l.b16 %v6578
        %v6931 = vunpack.c.l.b16 %v6579
        %v6932 = vunpack.c.l.b16 %v6580
        %v6933 = vunpack.c.l.b16 %v6581
        %v6934 = vunpack.c.l.b16 %v6582
        %v6935 = vunpack.c.l.b16 %v6583
        %v6936 = vunpack.c.l.b16 %v6584
        %v6937 = vunpack.c.l.b16 %v6585
        %v6938 = vunpack.c.l.b16 %v6586
        %v6939 = vunpack.c.l.b16 %v6587
        %v6940 = vunpack.c.l.b16 %v6588
        %v6941 = vunpack.c.l.b16 %v6589
        %v6942 = vunpack.c.l.b16 %v6590
        %v6943 = vunpack.c.l.b16 %v6591
        %v6944 = vunpack.c.l.b16 %v6592
        %v6945 = vunpack.c.l.b16 %v6593
        %v6946 = vunpack.c.l.b16 %v6594
        %v6947 = vunpack.c.l.b16 %v6595
        %v6948 = vunpack.c.l.b16 %v6596
        %v6949 = vunpack.c.l.b16 %v6597
        %v6950 = vunpack.c.l.b16 %v6598
        %v6951 = vunpack.c.l.b16 %v6599
        %v6952 = vunpack.c.l.b16 %v6600
        %v6953 = vunpack.c.l.b16 %v6601
        %v6954 = vunpack.c.l.b16 %v6602
        %v6955 = vunpack.c.l.b16 %v6603
        %v6956 = vunpack.c.l.b16 %v6604
        %v6957 = vunpack.c.l.b16 %v6605
        %v6958 = vunpack.c.l.b16 %v6606
        %v6959 = vunpack.c.l.b16 %v6607
        %v6960 = vunpack.c.l.b16 %v6608
        %v6961 = vunpack.c.l.b16 %v6609
        %v6962 = vunpack.c.l.b16 %v6610
        %v6963 = vunpack.c.l.b16 %v6611
        %v6964 = vunpack.c.l.b16 %v6612
        %v6965 = vunpack.c.l.b16 %v6613
        %v6966 = vunpack.c.l.b16 %v6614
        %v6967 = vunpack.c.l.b16 %v6615
        %v6968 = vunpack.c.l.b16 %v6616
        %v6969 = vunpack.c.l.b16 %v6617
        %v6970 = vpack.c.b16 %v6923, %v6922
        %v6971 = vpack.c.b16 %v6925, %v6924
        %v6972 = vpack.c.b16 %v6927, %v6926
        %v6973 = vpack.c.b16 %v6929, %v6928
        %v6974 = vpack.c.b16 %v6931, %v6930
        %v6975 = vpack.c.b16 %v6933, %v6932
        %v6976 = vpack.c.b16 %v6935, %v6934
        %v6977 = vpack.c.b16 %v6937, %v6936
        %v6978 = vpack.c.b16 %v6939, %v6938
        %v6979 = vpack.c.b16 %v6941, %v6940
        %v6980 = vpack.c.b16 %v6943, %v6942
        %v6981 = vpack.c.b16 %v6945, %v6944
        %v6982 = vpack.c.b16 %v6947, %v6946
        %v6983 = vpack.c.b16 %v6949, %v6948
        %v6984 = vpack.c.b16 %v6951, %v6950
        %v6985 = vpack.c.b16 %v6953, %v6952
        %v6986 = vpack.c.b16 %v6955, %v6954
        %v6987 = vpack.c.b16 %v6957, %v6956
        %v6988 = vpack.c.b16 %v6959, %v6958
        %v6989 = vpack.c.b16 %v6961, %v6960
        %v6990 = vpack.c.b16 %v6963, %v6962
        %v6991 = vpack.c.b16 %v6965, %v6964
        %v6992 = vpack.c.b16 %v6967, %v6966
        %v6993 = vpack.c.b16 %v6969, %v6968
        %7018 = vmatprep.subr.bf16.mxu0 0
        %7019 = vmatpush1.bf16.msra.mxu0 %v6977
        %7020 = vmatprep.subr.bf16.mxu0 0
        %7021 = vmatpush1.bf16.msra.mxu0 %v6976
        %7022 = vmatprep.subr.bf16.mxu0 0
        %7023 = vmatpush1.bf16.msra.mxu0 %v6975
        %7024 = vmatprep.subr.bf16.mxu0 0
        %7025 = vmatpush1.bf16.msra.mxu0 %v6974
        %7026 = vmatprep.subr.bf16.mxu0 0
        %7027 = vmatpush1.bf16.msra.mxu0 %v6973
        %7028 = vmatprep.subr.bf16.mxu0 0
        %7029 = vmatpush1.bf16.msra.mxu0 %v6972
        %7030 = vmatprep.subr.bf16.mxu0 0
        %7031 = vmatpush1.bf16.msra.mxu0 %v6971
        %7032 = vmatprep.subr.bf16.mxu0 0
        %7033 = vmatpush1.bf16.msra.mxu0 %v6970
        %7034 = vmatprep.subr.bf16.mxu0 0
        %7035 = vmatpush2.bf16.msra.mxu0 %v6985
        %7036 = vmatprep.subr.bf16.mxu0 0
        %7037 = vmatpush2.bf16.msra.mxu0 %v6984
        %7038 = vmatprep.subr.bf16.mxu0 0
        %7039 = vmatpush2.bf16.msra.mxu0 %v6983
        %7040 = vmatprep.subr.bf16.mxu0 0
        %7041 = vmatpush2.bf16.msra.mxu0 %v6982
        %7042 = vmatprep.subr.bf16.mxu0 0
        %7043 = vmatpush2.bf16.msra.mxu0 %v6981
        %7044 = vmatprep.subr.bf16.mxu0 0
        %7045 = vmatpush2.bf16.msra.mxu0 %v6980
        %7046 = vmatprep.subr.bf16.mxu0 0
        %7047 = vmatpush2.bf16.msra.mxu0 %v6979
        %7048 = vmatprep.subr.bf16.mxu0 0
        %7049 = vmatpush2.bf16.msra.mxu0 %v6978
        %7050 = vmatprep.mubr.bf16.mxu0 %v6779
        %7051 = vmatmul.mubr.bf16.gmra.mxu0 %v6778
        %v7052 = vpop.f32.mrf.mxu0
        %v7053 = vadd.f32 0.0, %v7052
        %v7054 = vpop.f32.mrf.mxu0
        %v7055 = vpop.f32.mrf.mxu0
        %v7056 = vadd.f32 0.0, %v7055
        %v7057 = vpop.f32.mrf.mxu0
        %7058 = vmatprep.mubr.bf16.mxu0 %v6782
        %7059 = vmatmul.mubr.bf16.gmra.mxu0 %v6781
        %v7060 = vpop.f32.mrf.mxu0
        %v7061 = vadd.f32 0.0, %v7060
        %v7062 = vpop.f32.mrf.mxu0
        %v7063 = vpop.f32.mrf.mxu0
        %v7064 = vadd.f32 0.0, %v7063
        %v7065 = vpop.f32.mrf.mxu0
        %7066 = vmatprep.mubr.bf16.mxu0 %v6785
        %7067 = vmatmul.mubr.bf16.gmra.mxu0 %v6784
        %v7068 = vpop.f32.mrf.mxu0
        %v7069 = vadd.f32 0.0, %v7068
        %v7070 = vpop.f32.mrf.mxu0
        %v7071 = vpop.f32.mrf.mxu0
        %v7072 = vadd.f32 0.0, %v7071
        %v7073 = vpop.f32.mrf.mxu0
        %7074 = vmatprep.mubr.bf16.mxu0 %v6788
        %7075 = vmatmul.mubr.bf16.gmra.mxu0 %v6787
        %v7076 = vpop.f32.mrf.mxu0
        %v7077 = vadd.f32 0.0, %v7076
        %v7078 = vpop.f32.mrf.mxu0
        %v7079 = vpop.f32.mrf.mxu0
        %v7080 = vadd.f32 0.0, %v7079
        %v7081 = vpop.f32.mrf.mxu0
        %7082 = vmatprep.mubr.bf16.mxu0 %v6791
        %7083 = vmatmul.mubr.bf16.gmra.mxu0 %v6790
        %v7084 = vpop.f32.mrf.mxu0
        %v7085 = vadd.f32 0.0, %v7084
        %v7086 = vpop.f32.mrf.mxu0
        %v7087 = vpop.f32.mrf.mxu0
        %v7088 = vadd.f32 0.0, %v7087
        %v7089 = vpop.f32.mrf.mxu0
        %7090 = vmatprep.mubr.bf16.mxu0 %v6794
        %7091 = vmatmul.mubr.bf16.gmra.mxu0 %v6793
        %v7092 = vpop.f32.mrf.mxu0
        %v7093 = vadd.f32 0.0, %v7092
        %v7094 = vpop.f32.mrf.mxu0
        %v7095 = vpop.f32.mrf.mxu0
        %v7096 = vadd.f32 0.0, %v7095
        %v7097 = vpop.f32.mrf.mxu0
        %7098 = vmatprep.mubr.bf16.mxu0 %v6797
        %7099 = vmatmul.mubr.bf16.gmra.mxu0 %v6796
        %v7100 = vpop.f32.mrf.mxu0
        %v7101 = vadd.f32 0.0, %v7100
        %v7102 = vpop.f32.mrf.mxu0
        %v7103 = vpop.f32.mrf.mxu0
        %v7104 = vadd.f32 0.0, %v7103
        %v7105 = vpop.f32.mrf.mxu0
        %7106 = vmatprep.mubr.bf16.mxu0 %v6800
        %7107 = vmatmul.mubr.bf16.gmra.mxu0 %v6799
        %v7108 = vpop.f32.mrf.mxu0
        %v7109 = vadd.f32 0.0, %v7108
        %v7110 = vpop.f32.mrf.mxu0
        %v7111 = vpop.f32.mrf.mxu0
        %v7112 = vadd.f32 0.0, %v7111
        %v7113 = vpop.f32.mrf.mxu0
        %7114 = vmatprep.mubr.bf16.mxu0 %v6803
        %7115 = vmatmul.mubr.bf16.gmra.mxu0 %v6802
        %v7116 = vpop.f32.mrf.mxu0
        %v7117 = vadd.f32 0.0, %v7116
        %v7118 = vpop.f32.mrf.mxu0
        %v7119 = vpop.f32.mrf.mxu0
        %v7120 = vadd.f32 0.0, %v7119
        %v7121 = vpop.f32.mrf.mxu0
        %7122 = vmatprep.mubr.bf16.mxu0 %v6806
        %7123 = vmatmul.mubr.bf16.gmra.mxu0 %v6805
        %v7124 = vpop.f32.mrf.mxu0
        %v7125 = vadd.f32 0.0, %v7124
        %v7126 = vpop.f32.mrf.mxu0
        %v7127 = vpop.f32.mrf.mxu0
        %v7128 = vadd.f32 0.0, %v7127
        %v7129 = vpop.f32.mrf.mxu0
        %7130 = vmatprep.mubr.bf16.mxu0 %v6809
        %7131 = vmatmul.mubr.bf16.gmra.mxu0 %v6808
        %v7132 = vpop.f32.mrf.mxu0
        %v7133 = vadd.f32 0.0, %v7132
        %v7134 = vpop.f32.mrf.mxu0
        %v7135 = vpop.f32.mrf.mxu0
        %v7136 = vadd.f32 0.0, %v7135
        %v7137 = vpop.f32.mrf.mxu0
        %7138 = vmatprep.mubr.bf16.mxu0 %v6812
        %7139 = vmatmul.mubr.bf16.gmra.mxu0 %v6811
        %v7140 = vpop.f32.mrf.mxu0
        %v7141 = vadd.f32 0.0, %v7140
        %v7142 = vpop.f32.mrf.mxu0
        %v7143 = vpop.f32.mrf.mxu0
        %v7144 = vadd.f32 0.0, %v7143
        %v7145 = vpop.f32.mrf.mxu0
        %7146 = vmatprep.mubr.bf16.mxu0 %v6815
        %7147 = vmatmul.mubr.bf16.gmra.mxu0 %v6814
        %v7148 = vpop.f32.mrf.mxu0
        %v7149 = vadd.f32 0.0, %v7148
        %v7150 = vpop.f32.mrf.mxu0
        %v7151 = vpop.f32.mrf.mxu0
        %v7152 = vadd.f32 0.0, %v7151
        %v7153 = vpop.f32.mrf.mxu0
        %7154 = vmatprep.mubr.bf16.mxu0 %v6818
        %7155 = vmatmul.mubr.bf16.gmra.mxu0 %v6817
        %v7156 = vpop.f32.mrf.mxu0
        %v7157 = vadd.f32 0.0, %v7156
        %v7158 = vpop.f32.mrf.mxu0
        %v7159 = vpop.f32.mrf.mxu0
        %v7160 = vadd.f32 0.0, %v7159
        %v7161 = vpop.f32.mrf.mxu0
        %7162 = vmatprep.mubr.bf16.mxu0 %v6821
        %7163 = vmatmul.mubr.bf16.gmra.mxu0 %v6820
        %v7164 = vpop.f32.mrf.mxu0
        %v7165 = vadd.f32 0.0, %v7164
        %v7166 = vpop.f32.mrf.mxu0
        %v7167 = vpop.f32.mrf.mxu0
        %v7168 = vadd.f32 0.0, %v7167
        %v7169 = vpop.f32.mrf.mxu0
        %7170 = vmatprep.mubr.bf16.mxu0 %v6824
        %7171 = vmatmul.mubr.bf16.gmra.mxu0 %v6823
        %v7172 = vpop.f32.mrf.mxu0
        %v7173 = vadd.f32 0.0, %v7172
        %v7174 = vpop.f32.mrf.mxu0
        %v7175 = vpop.f32.mrf.mxu0
        %v7176 = vadd.f32 0.0, %v7175
        %v7177 = vpop.f32.mrf.mxu0
        %7178 = vdwg.mxu0
        %7179 = vmatprep.subr.bf16.mxu0 0
        %7180 = vmatpush1.bf16.msra.mxu0 %v6993
        %7181 = vmatprep.subr.bf16.mxu0 0
        %7182 = vmatpush1.bf16.msra.mxu0 %v6992
        %7183 = vmatprep.subr.bf16.mxu0 0
        %7184 = vmatpush1.bf16.msra.mxu0 %v6991
        %7185 = vmatprep.subr.bf16.mxu0 0
        %7186 = vmatpush1.bf16.msra.mxu0 %v6990
        %7187 = vmatprep.subr.bf16.mxu0 0
        %7188 = vmatpush1.bf16.msra.mxu0 %v6989
        %7189 = vmatprep.subr.bf16.mxu0 0
        %7190 = vmatpush1.bf16.msra.mxu0 %v6988
        %7191 = vmatprep.subr.bf16.mxu0 0
        %7192 = vmatpush1.bf16.msra.mxu0 %v6987
        %7193 = vmatprep.subr.bf16.mxu0 0
        %7194 = vmatpush1.bf16.msra.mxu0 %v6986
        %7195 = vmatprep.subr.bf16.mxu0 0
        %7196 = vmatpush2.bf16.msra.mxu0 0
        %7197 = vmatprep.subr.bf16.mxu0 0
        %7198 = vmatpush2.bf16.msra.mxu0 0
        %7199 = vmatprep.subr.bf16.mxu0 0
        %7200 = vmatpush2.bf16.msra.mxu0 0
        %7201 = vmatprep.subr.bf16.mxu0 0
        %7202 = vmatpush2.bf16.msra.mxu0 0
        %7203 = vmatprep.subr.bf16.mxu0 0
        %7204 = vmatpush2.bf16.msra.mxu0 0
        %7205 = vmatprep.subr.bf16.mxu0 0
        %7206 = vmatpush2.bf16.msra.mxu0 0
        %7207 = vmatprep.subr.bf16.mxu0 0
        %7208 = vmatpush2.bf16.msra.mxu0 0
        %7209 = vmatprep.subr.bf16.mxu0 0
        %7210 = vmatpush2.bf16.msra.mxu0 0
        %7211 = vmatprep.mubr.bf16.mxu0 0
        %7212 = vmatmul.mubr.bf16.gmra.mxu0 %v6780
        %v7213 = vpop.f32.mrf.mxu0
        %v7214 = vadd.f32 %v7053, %v7213
        %v7215 = vpop.f32.mrf.mxu0
        %v7216 = vpop.f32.mrf.mxu0
        %v7217 = vadd.f32 %v7056, %v7216
        %v7218 = vpop.f32.mrf.mxu0
        %7219 = vmatprep.mubr.bf16.mxu0 0
        %7220 = vmatmul.mubr.bf16.gmra.mxu0 %v6783
        %v7221 = vpop.f32.mrf.mxu0
        %v7222 = vadd.f32 %v7061, %v7221
        %v7223 = vpop.f32.mrf.mxu0
        %v7224 = vpop.f32.mrf.mxu0
        %v7225 = vadd.f32 %v7064, %v7224
        %v7226 = vpop.f32.mrf.mxu0
        %7227 = vmatprep.mubr.bf16.mxu0 0
        %7228 = vmatmul.mubr.bf16.gmra.mxu0 %v6786
        %v7229 = vpop.f32.mrf.mxu0
        %v7230 = vadd.f32 %v7069, %v7229
        %v7231 = vpop.f32.mrf.mxu0
        %v7232 = vpop.f32.mrf.mxu0
        %v7233 = vadd.f32 %v7072, %v7232
        %v7234 = vpop.f32.mrf.mxu0
        %7235 = vmatprep.mubr.bf16.mxu0 0
        %7236 = vmatmul.mubr.bf16.gmra.mxu0 %v6789
        %v7237 = vpop.f32.mrf.mxu0
        %v7238 = vadd.f32 %v7077, %v7237
        %v7239 = vpop.f32.mrf.mxu0
        %v7240 = vpop.f32.mrf.mxu0
        %v7241 = vadd.f32 %v7080, %v7240
        %v7242 = vpop.f32.mrf.mxu0
        %7243 = vmatprep.mubr.bf16.mxu0 0
        %7244 = vmatmul.mubr.bf16.gmra.mxu0 %v6792
        %v7245 = vpop.f32.mrf.mxu0
        %v7246 = vadd.f32 %v7085, %v7245
        %v7247 = vpop.f32.mrf.mxu0
        %v7248 = vpop.f32.mrf.mxu0
        %v7249 = vadd.f32 %v7088, %v7248
        %v7250 = vpop.f32.mrf.mxu0
        %7251 = vmatprep.mubr.bf16.mxu0 0
        %7252 = vmatmul.mubr.bf16.gmra.mxu0 %v6795
        %v7253 = vpop.f32.mrf.mxu0
        %v7254 = vadd.f32 %v7093, %v7253
        %v7255 = vpop.f32.mrf.mxu0
        %v7256 = vpop.f32.mrf.mxu0
        %v7257 = vadd.f32 %v7096, %v7256
        %v7258 = vpop.f32.mrf.mxu0
        %7259 = vmatprep.mubr.bf16.mxu0 0
        %7260 = vmatmul.mubr.bf16.gmra.mxu0 %v6798
        %v7261 = vpop.f32.mrf.mxu0
        %v7262 = vadd.f32 %v7101, %v7261
        %v7263 = vpop.f32.mrf.mxu0
        %v7264 = vpop.f32.mrf.mxu0
        %v7265 = vadd.f32 %v7104, %v7264
        %v7266 = vpop.f32.mrf.mxu0
        %7267 = vmatprep.mubr.bf16.mxu0 0
        %7268 = vmatmul.mubr.bf16.gmra.mxu0 %v6801
        %v7269 = vpop.f32.mrf.mxu0
        %v7270 = vadd.f32 %v7109, %v7269
        %v7271 = vpop.f32.mrf.mxu0
        %v7272 = vpop.f32.mrf.mxu0
        %v7273 = vadd.f32 %v7112, %v7272
        %v7274 = vpop.f32.mrf.mxu0
        %7275 = vmatprep.mubr.bf16.mxu0 0
        %7276 = vmatmul.mubr.bf16.gmra.mxu0 %v6804
        %v7277 = vpop.f32.mrf.mxu0
        %v7278 = vadd.f32 %v7117, %v7277
        %v7279 = vpop.f32.mrf.mxu0
        %v7280 = vpop.f32.mrf.mxu0
        %v7281 = vadd.f32 %v7120, %v7280
        %v7282 = vpop.f32.mrf.mxu0
        %7283 = vmatprep.mubr.bf16.mxu0 0
        %7284 = vmatmul.mubr.bf16.gmra.mxu0 %v6807
        %v7285 = vpop.f32.mrf.mxu0
        %v7286 = vadd.f32 %v7125, %v7285
        %v7287 = vpop.f32.mrf.mxu0
        %v7288 = vpop.f32.mrf.mxu0
        %v7289 = vadd.f32 %v7128, %v7288
        %v7290 = vpop.f32.mrf.mxu0
        %7291 = vmatprep.mubr.bf16.mxu0 0
        %7292 = vmatmul.mubr.bf16.gmra.mxu0 %v6810
        %v7293 = vpop.f32.mrf.mxu0
        %v7294 = vadd.f32 %v7133, %v7293
        %v7295 = vpop.f32.mrf.mxu0
        %v7296 = vpop.f32.mrf.mxu0
        %v7297 = vadd.f32 %v7136, %v7296
        %v7298 = vpop.f32.mrf.mxu0
        %7299 = vmatprep.mubr.bf16.mxu0 0
        %7300 = vmatmul.mubr.bf16.gmra.mxu0 %v6813
        %v7301 = vpop.f32.mrf.mxu0
        %v7302 = vadd.f32 %v7141, %v7301
        %v7303 = vpop.f32.mrf.mxu0
        %v7304 = vpop.f32.mrf.mxu0
        %v7305 = vadd.f32 %v7144, %v7304
        %v7306 = vpop.f32.mrf.mxu0
        %7307 = vmatprep.mubr.bf16.mxu0 0
        %7308 = vmatmul.mubr.bf16.gmra.mxu0 %v6816
        %v7309 = vpop.f32.mrf.mxu0
        %v7310 = vadd.f32 %v7149, %v7309
        %v7311 = vpop.f32.mrf.mxu0
        %v7312 = vpop.f32.mrf.mxu0
        %v7313 = vadd.f32 %v7152, %v7312
        %v7314 = vpop.f32.mrf.mxu0
        %7315 = vmatprep.mubr.bf16.mxu0 0
        %7316 = vmatmul.mubr.bf16.gmra.mxu0 %v6819
        %v7317 = vpop.f32.mrf.mxu0
        %v7318 = vadd.f32 %v7157, %v7317
        %v7319 = vpop.f32.mrf.mxu0
        %v7320 = vpop.f32.mrf.mxu0
        %v7321 = vadd.f32 %v7160, %v7320
        %v7322 = vpop.f32.mrf.mxu0
        %7323 = vmatprep.mubr.bf16.mxu0 0
        %7324 = vmatmul.mubr.bf16.gmra.mxu0 %v6822
        %v7325 = vpop.f32.mrf.mxu0
        %v7326 = vadd.f32 %v7165, %v7325
        %v7327 = vpop.f32.mrf.mxu0
        %v7328 = vpop.f32.mrf.mxu0
        %v7329 = vadd.f32 %v7168, %v7328
        %v7330 = vpop.f32.mrf.mxu0
        %7331 = vmatprep.mubr.bf16.mxu0 0
        %7332 = vmatmul.mubr.bf16.gmra.mxu0 %v6825
        %v7333 = vpop.f32.mrf.mxu0
        %v7334 = vadd.f32 %v7173, %v7333
        %v7335 = vpop.f32.mrf.mxu0
        %v7336 = vpop.f32.mrf.mxu0
        %v7337 = vadd.f32 %v7176, %v7336
        %v7338 = vpop.f32.mrf.mxu0
        %7339 = vdwg.mxu0
        %v7340 = vadd.f32 %v6379, %v7214
        %v7341 = vadd.f32 %v6382, %v7217
        %v7342 = vadd.f32 %v6387, %v7222
        %v7343 = vadd.f32 %v6390, %v7225
        %v7344 = vadd.f32 %v6395, %v7230
        %v7345 = vadd.f32 %v6398, %v7233
        %v7346 = vadd.f32 %v6403, %v7238
        %v7347 = vadd.f32 %v6406, %v7241
        %v7348 = vadd.f32 %v6411, %v7246
        %v7349 = vadd.f32 %v6414, %v7249
        %v7350 = vadd.f32 %v6419, %v7254
        %v7351 = vadd.f32 %v6422, %v7257
        %v7352 = vadd.f32 %v6427, %v7262
        %v7353 = vadd.f32 %v6430, %v7265
        %v7354 = vadd.f32 %v6435, %v7270
        %v7355 = vadd.f32 %v6438, %v7273
        %v7356 = vadd.f32 %v6443, %v7278
        %v7357 = vadd.f32 %v6446, %v7281
        %v7358 = vadd.f32 %v6451, %v7286
        %v7359 = vadd.f32 %v6454, %v7289
        %v7360 = vadd.f32 %v6459, %v7294
        %v7361 = vadd.f32 %v6462, %v7297
        %v7362 = vadd.f32 %v6467, %v7302
        %v7363 = vadd.f32 %v6470, %v7305
        %v7364 = vadd.f32 %v6475, %v7310
        %v7365 = vadd.f32 %v6478, %v7313
        %v7366 = vadd.f32 %v6483, %v7318
        %v7367 = vadd.f32 %v6486, %v7321
        %v7368 = vadd.f32 %v6491, %v7326
        %v7369 = vadd.f32 %v6494, %v7329
        %v7370 = vadd.f32 %v6499, %v7334
        %v7371 = vadd.f32 %v6502, %v7337
        %v7372 = vadd.f32 %v7340, %v7341
        %v7373 = vadd.f32 %v7372, %v7342
        %v7374 = vadd.f32 %v7373, %v7343
        %v7375 = vadd.f32 %v7374, %v7344
        %v7376 = vadd.f32 %v7375, %v7345
        %v7377 = vadd.f32 %v7376, %v7346
        %v7378 = vadd.f32 %v7377, %v7347
        %v7379 = vadd.f32 %v7378, %v7348
        %v7380 = vadd.f32 %v7379, %v7349
        %v7381 = vadd.f32 %v7380, %v7350
        %v7382 = vadd.f32 %v7381, %v7351
        %v7383 = vadd.f32 %v7382, %v7352
        %v7384 = vadd.f32 %v7383, %v7353
        %v7385 = vadd.f32 %v7384, %v7354
        %v7386 = vadd.f32 %v7385, %v7355
        %v7387 = vadd.f32 %v7386, %v7356
        %v7388 = vadd.f32 %v7387, %v7357
        %v7389 = vadd.f32 %v7388, %v7358
        %v7390 = vadd.f32 %v7389, %v7359
        %v7391 = vadd.f32 %v7390, %v7360
        %v7392 = vadd.f32 %v7391, %v7361
        %v7393 = vadd.f32 %v7392, %v7362
        %v7394 = vadd.f32 %v7393, %v7363
        %v7395 = vadd.f32 %v7394, %v7364
        %v7396 = vadd.f32 %v7395, %v7365
        %v7397 = vadd.f32 %v7396, %v7366
        %v7398 = vadd.f32 %v7397, %v7367
        %v7399 = vadd.f32 %v7398, %v7368
        %v7400 = vadd.f32 %v7399, %v7369
        %v7401 = vadd.f32 %v7400, %v7370
        %v7402 = vadd.f32 %v7401, %v7371
        %v7403 = vrot.slane %v7402, 4
        %v7404 = vadd.f32 %v7402, %v7403
        %v7405 = vrot.slane %v7404, 2
        %v7406 = vadd.f32 %v7404, %v7405
        %v7407 = vrot.slane %v7406, 1
        %v7408 = vadd.f32 %v7406, %v7407
        %v7409 = vmul.f32 %v7408, 0.00390625
        %v7410 = vsub.f32 %v7340, %v7409
        %v7411 = vsub.f32 %v7341, %v7409
        %v7412 = vsub.f32 %v7342, %v7409
        %v7413 = vsub.f32 %v7343, %v7409
        %v7414 = vsub.f32 %v7344, %v7409
        %v7415 = vsub.f32 %v7345, %v7409
        %v7416 = vsub.f32 %v7346, %v7409
        %v7417 = vsub.f32 %v7347, %v7409
        %v7418 = vsub.f32 %v7348, %v7409
        %v7419 = vsub.f32 %v7349, %v7409
        %v7420 = vsub.f32 %v7350, %v7409
        %v7421 = vsub.f32 %v7351, %v7409
        %v7422 = vsub.f32 %v7352, %v7409
        %v7423 = vsub.f32 %v7353, %v7409
        %v7424 = vsub.f32 %v7354, %v7409
        %v7425 = vsub.f32 %v7355, %v7409
        %v7426 = vsub.f32 %v7356, %v7409
        %v7427 = vsub.f32 %v7357, %v7409
        %v7428 = vsub.f32 %v7358, %v7409
        %v7429 = vsub.f32 %v7359, %v7409
        %v7430 = vsub.f32 %v7360, %v7409
        %v7431 = vsub.f32 %v7361, %v7409
        %v7432 = vsub.f32 %v7362, %v7409
        %v7433 = vsub.f32 %v7363, %v7409
        %v7434 = vsub.f32 %v7364, %v7409
        %v7435 = vsub.f32 %v7365, %v7409
        %v7436 = vsub.f32 %v7366, %v7409
        %v7437 = vsub.f32 %v7367, %v7409
        %v7438 = vsub.f32 %v7368, %v7409
        %v7439 = vsub.f32 %v7369, %v7409
        %v7440 = vsub.f32 %v7370, %v7409
        %v7441 = vsub.f32 %v7371, %v7409
        %v7442 = vmul.f32 %v7410, %v7410
        %v7443 = vmul.f32 %v7411, %v7411
        %v7444 = vmul.f32 %v7412, %v7412
        %v7445 = vmul.f32 %v7413, %v7413
        %v7446 = vmul.f32 %v7414, %v7414
        %v7447 = vmul.f32 %v7415, %v7415
        %v7448 = vmul.f32 %v7416, %v7416
        %v7449 = vmul.f32 %v7417, %v7417
        %v7450 = vmul.f32 %v7418, %v7418
        %v7451 = vmul.f32 %v7419, %v7419
        %v7452 = vmul.f32 %v7420, %v7420
        %v7453 = vmul.f32 %v7421, %v7421
        %v7454 = vmul.f32 %v7422, %v7422
        %v7455 = vmul.f32 %v7423, %v7423
        %v7456 = vmul.f32 %v7424, %v7424
        %v7457 = vmul.f32 %v7425, %v7425
        %v7458 = vmul.f32 %v7426, %v7426
        %v7459 = vmul.f32 %v7427, %v7427
        %v7460 = vmul.f32 %v7428, %v7428
        %v7461 = vmul.f32 %v7429, %v7429
        %v7462 = vmul.f32 %v7430, %v7430
        %v7463 = vmul.f32 %v7431, %v7431
        %v7464 = vmul.f32 %v7432, %v7432
        %v7465 = vmul.f32 %v7433, %v7433
        %v7466 = vmul.f32 %v7434, %v7434
        %v7467 = vmul.f32 %v7435, %v7435
        %v7468 = vmul.f32 %v7436, %v7436
        %v7469 = vmul.f32 %v7437, %v7437
        %v7470 = vmul.f32 %v7438, %v7438
        %v7471 = vmul.f32 %v7439, %v7439
        %v7472 = vmul.f32 %v7440, %v7440
        %v7473 = vmul.f32 %v7441, %v7441
        %v7474 = vadd.f32 %v7442, %v7443
        %v7475 = vadd.f32 %v7474, %v7444
        %v7476 = vadd.f32 %v7475, %v7445
        %v7477 = vadd.f32 %v7476, %v7446
        %v7478 = vadd.f32 %v7477, %v7447
        %v7479 = vadd.f32 %v7478, %v7448
        %v7480 = vadd.f32 %v7479, %v7449
        %v7481 = vadd.f32 %v7480, %v7450
        %v7482 = vadd.f32 %v7481, %v7451
        %v7483 = vadd.f32 %v7482, %v7452
        %v7484 = vadd.f32 %v7483, %v7453
        %v7485 = vadd.f32 %v7484, %v7454
        %v7486 = vadd.f32 %v7485, %v7455
        %v7487 = vadd.f32 %v7486, %v7456
        %v7488 = vadd.f32 %v7487, %v7457
        %v7489 = vadd.f32 %v7488, %v7458
        %v7490 = vadd.f32 %v7489, %v7459
        %v7491 = vadd.f32 %v7490, %v7460
        %v7492 = vadd.f32 %v7491, %v7461
        %v7493 = vadd.f32 %v7492, %v7462
        %v7494 = vadd.f32 %v7493, %v7463
        %v7495 = vadd.f32 %v7494, %v7464
        %v7496 = vadd.f32 %v7495, %v7465
        %v7497 = vadd.f32 %v7496, %v7466
        %v7498 = vadd.f32 %v7497, %v7467
        %v7499 = vadd.f32 %v7498, %v7468
        %v7500 = vadd.f32 %v7499, %v7469
        %v7501 = vadd.f32 %v7500, %v7470
        %v7502 = vadd.f32 %v7501, %v7471
        %v7503 = vadd.f32 %v7502, %v7472
        %v7504 = vadd.f32 %v7503, %v7473
        %v7505 = vrot.slane %v7504, 4
        %v7506 = vadd.f32 %v7504, %v7505
        %v7507 = vrot.slane %v7506, 2
        %v7508 = vadd.f32 %v7506, %v7507
        %v7509 = vrot.slane %v7508, 1
        %v7510 = vadd.f32 %v7508, %v7509
        %v7511 = vmul.f32 %v7510, 0.00390625
        %v7512 = vadd.f32 %v7511, 1e-05
        %v7513 = vrsqrt.pop %v7512
        %v7514 = vmul.f32 %v7410, %v7513
        %v7515 = vmul.f32 %v7411, %v7513
        %v7516 = vmul.f32 %v7412, %v7513
        %v7517 = vmul.f32 %v7413, %v7513
        %v7518 = vmul.f32 %v7414, %v7513
        %v7519 = vmul.f32 %v7415, %v7513
        %v7520 = vmul.f32 %v7416, %v7513
        %v7521 = vmul.f32 %v7417, %v7513
        %v7522 = vmul.f32 %v7418, %v7513
        %v7523 = vmul.f32 %v7419, %v7513
        %v7524 = vmul.f32 %v7420, %v7513
        %v7525 = vmul.f32 %v7421, %v7513
        %v7526 = vmul.f32 %v7422, %v7513
        %v7527 = vmul.f32 %v7423, %v7513
        %v7528 = vmul.f32 %v7424, %v7513
        %v7529 = vmul.f32 %v7425, %v7513
        %v7530 = vmul.f32 %v7426, %v7513
        %v7531 = vmul.f32 %v7427, %v7513
        %v7532 = vmul.f32 %v7428, %v7513
        %v7533 = vmul.f32 %v7429, %v7513
        %v7534 = vmul.f32 %v7430, %v7513
        %v7535 = vmul.f32 %v7431, %v7513
        %v7536 = vmul.f32 %v7432, %v7513
        %v7537 = vmul.f32 %v7433, %v7513
        %v7538 = vmul.f32 %v7434, %v7513
        %v7539 = vmul.f32 %v7435, %v7513
        %v7540 = vmul.f32 %v7436, %v7513
        %v7541 = vmul.f32 %v7437, %v7513
        %v7542 = vmul.f32 %v7438, %v7513
        %v7543 = vmul.f32 %v7439, %v7513
        %v7544 = vmul.f32 %v7440, %v7513
        %v7545 = vmul.f32 %v7441, %v7513
        %v7546 = vld [vmem:[%s187] sm:$0xff]
        %v7547 = vld [vmem:[%s187 + $0x8] sm:$0xff]
        %v7548 = vld [vmem:[%s187 + $0x10] sm:$0xff]
        %v7549 = vld [vmem:[%s187 + $0x18] sm:$0xff]
        %v7550 = vld [vmem:[%s187 + $0x20] sm:$0xff]
        %v7551 = vld [vmem:[%s187 + $0x28] sm:$0xff]
        %v7552 = vld [vmem:[%s187 + $0x30] sm:$0xff]
        %v7553 = vld [vmem:[%s187 + $0x38] sm:$0xff]
        %v7554 = vld [vmem:[%s187 + $0x40] sm:$0xff]
        %v7555 = vld [vmem:[%s187 + $0x48] sm:$0xff]
        %v7556 = vld [vmem:[%s187 + $0x50] sm:$0xff]
        %v7557 = vld [vmem:[%s187 + $0x58] sm:$0xff]
        %v7558 = vld [vmem:[%s187 + $0x60] sm:$0xff]
        %v7559 = vld [vmem:[%s187 + $0x68] sm:$0xff]
        %v7560 = vld [vmem:[%s187 + $0x70] sm:$0xff]
        %v7561 = vld [vmem:[%s187 + $0x78] sm:$0xff]
        %v7562 = vld [vmem:[%s187 + $0x80] sm:$0xff]
        %v7563 = vld [vmem:[%s187 + $0x88] sm:$0xff]
        %v7564 = vld [vmem:[%s187 + $0x90] sm:$0xff]
        %v7565 = vld [vmem:[%s187 + $0x98] sm:$0xff]
        %v7566 = vld [vmem:[%s187 + $0xa0] sm:$0xff]
        %v7567 = vld [vmem:[%s187 + $0xa8] sm:$0xff]
        %v7568 = vld [vmem:[%s187 + $0xb0] sm:$0xff]
        %v7569 = vld [vmem:[%s187 + $0xb8] sm:$0xff]
        %v7570 = vld [vmem:[%s187 + $0xc0] sm:$0xff]
        %v7571 = vld [vmem:[%s187 + $0xc8] sm:$0xff]
        %v7572 = vld [vmem:[%s187 + $0xd0] sm:$0xff]
        %v7573 = vld [vmem:[%s187 + $0xd8] sm:$0xff]
        %v7574 = vld [vmem:[%s187 + $0xe0] sm:$0xff]
        %v7575 = vld [vmem:[%s187 + $0xe8] sm:$0xff]
        %v7576 = vld [vmem:[%s187 + $0xf0] sm:$0xff]
        %v7577 = vld [vmem:[%s187 + $0xf8] sm:$0xff]
        %v7578 = vadd.f32 %v7546, %v7514
        %v7579 = vadd.f32 %v7547, %v7515
        %v7580 = vadd.f32 %v7548, %v7516
        %v7581 = vadd.f32 %v7549, %v7517
        %v7582 = vadd.f32 %v7550, %v7518
        %v7583 = vadd.f32 %v7551, %v7519
        %v7584 = vadd.f32 %v7552, %v7520
        %v7585 = vadd.f32 %v7553, %v7521
        %v7586 = vadd.f32 %v7554, %v7522
        %v7587 = vadd.f32 %v7555, %v7523
        %v7588 = vadd.f32 %v7556, %v7524
        %v7589 = vadd.f32 %v7557, %v7525
        %v7590 = vadd.f32 %v7558, %v7526
        %v7591 = vadd.f32 %v7559, %v7527
        %v7592 = vadd.f32 %v7560, %v7528
        %v7593 = vadd.f32 %v7561, %v7529
        %v7594 = vadd.f32 %v7562, %v7530
        %v7595 = vadd.f32 %v7563, %v7531
        %v7596 = vadd.f32 %v7564, %v7532
        %v7597 = vadd.f32 %v7565, %v7533
        %v7598 = vadd.f32 %v7566, %v7534
        %v7599 = vadd.f32 %v7567, %v7535
        %v7600 = vadd.f32 %v7568, %v7536
        %v7601 = vadd.f32 %v7569, %v7537
        %v7602 = vadd.f32 %v7570, %v7538
        %v7603 = vadd.f32 %v7571, %v7539
        %v7604 = vadd.f32 %v7572, %v7540
        %v7605 = vadd.f32 %v7573, %v7541
        %v7606 = vadd.f32 %v7574, %v7542
        %v7607 = vadd.f32 %v7575, %v7543
        %v7608 = vadd.f32 %v7576, %v7544
        %v7609 = vadd.f32 %v7577, %v7545
        %7610 = vst [vmem:[%s217] sm:$0xff] %v7578
        %7611 = vst [vmem:[%s217 + $0x8] sm:$0xff] %v7579
        %7612 = vst [vmem:[%s217 + $0x10] sm:$0xff] %v7580
        %7613 = vst [vmem:[%s217 + $0x18] sm:$0xff] %v7581
        %7614 = vst [vmem:[%s217 + $0x20] sm:$0xff] %v7582
        %7615 = vst [vmem:[%s217 + $0x28] sm:$0xff] %v7583
        %7616 = vst [vmem:[%s217 + $0x30] sm:$0xff] %v7584
        %7617 = vst [vmem:[%s217 + $0x38] sm:$0xff] %v7585
        %7618 = vst [vmem:[%s217 + $0x40] sm:$0xff] %v7586
        %7619 = vst [vmem:[%s217 + $0x48] sm:$0xff] %v7587
        %7620 = vst [vmem:[%s217 + $0x50] sm:$0xff] %v7588
        %7621 = vst [vmem:[%s217 + $0x58] sm:$0xff] %v7589
        %7622 = vst [vmem:[%s217 + $0x60] sm:$0xff] %v7590
        %7623 = vst [vmem:[%s217 + $0x68] sm:$0xff] %v7591
        %7624 = vst [vmem:[%s217 + $0x70] sm:$0xff] %v7592
        %7625 = vst [vmem:[%s217 + $0x78] sm:$0xff] %v7593
        %7626 = vst [vmem:[%s217 + $0x80] sm:$0xff] %v7594
        %7627 = vst [vmem:[%s217 + $0x88] sm:$0xff] %v7595
        %7628 = vst [vmem:[%s217 + $0x90] sm:$0xff] %v7596
        %7629 = vst [vmem:[%s217 + $0x98] sm:$0xff] %v7597
        %7630 = vst [vmem:[%s217 + $0xa0] sm:$0xff] %v7598
        %7631 = vst [vmem:[%s217 + $0xa8] sm:$0xff] %v7599
        %7632 = vst [vmem:[%s217 + $0xb0] sm:$0xff] %v7600
        %7633 = vst [vmem:[%s217 + $0xb8] sm:$0xff] %v7601
        %7634 = vst [vmem:[%s217 + $0xc0] sm:$0xff] %v7602
        %7635 = vst [vmem:[%s217 + $0xc8] sm:$0xff] %v7603
        %7636 = vst [vmem:[%s217 + $0xd0] sm:$0xff] %v7604
        %7637 = vst [vmem:[%s217 + $0xd8] sm:$0xff] %v7605
        %7638 = vst [vmem:[%s217 + $0xe0] sm:$0xff] %v7606
        %7639 = vst [vmem:[%s217 + $0xe8] sm:$0xff] %v7607
        %7640 = vst [vmem:[%s217 + $0xf0] sm:$0xff] %v7608
        %7641 = vst [vmem:[%s217 + $0xf8] sm:$0xff] %v7609
        %s7642 = sand.u32 %s97, 1
        %s7643 = scalar_lea.sflag [#allocation5], %s7642
        %s7644 = sand.u32 %s97, 1
        %s7645 = smul.addr %s7644, 256
        %s7646 = scalar_lea.vmem [#allocation9], %s7645
        // Predicated region
        $region45: #{tpu_custom_call.1} parent=31 // pred_check
          %p7647 = pneg %p107
        $region46: #{tpu_custom_call.1} parent=31 // pred_check_branch
          %7649 = sbr.rel (%p7647) target = $region48
        $region47: #{tpu_custom_call.1} parent=31 // pred_region
          %s7651 = ssub.s32 4096, 4096
          %7652 = vsyncadd %s7643, %s7651
          %s7653 = smul.addr %s21, 32
          %s7654 = smul.addr %s7653, 128
          %s7655 = scalar_lea.hbm %s3, %s7654
          %s7656 = sshll.u32 %s7646, 4
          %s7657 = int_to_ptr.vmem [resolvable:$true] %s7656
          %7662 = dma.vmem_to_hbm [thread:$0]  %s7657, 4096, %s7655, %s7643, 128, 128, 8
        $region48: #{tpu_custom_call.1} parent=31 // pred_fallthru
          _
      $region32: #{tpu_custom_call.1} parent=5 // pred_fallthru
        _
      %p7663 = scmp.le.s32.totalorder 2, %s16
      // Predicated region
      $region49: #{tpu_custom_call.1} parent=5 // pred_check
        %p7664 = pneg %p7663
      $region50: #{tpu_custom_call.1} parent=5 // pred_check_branch
        %7666 = sbr.rel (%p7664) target = $region52
      $region51: #{tpu_custom_call.1} parent=5 // pred_region
        %s7667 = ssub.s32 %s16, 2
        // Predicated region
        $region53: #{tpu_custom_call.1} parent=51 // pred_check
          %p7668 = pneg %p113
        $region54: #{tpu_custom_call.1} parent=51 // pred_check_branch
          %7670 = sbr.rel (%p7668) target = $region56
        $region55: #{tpu_custom_call.1} parent=51 // pred_region
          %s7671 = sand.u32 %s98, 1
          %s7672 = scalar_lea.sflag [#allocation5], %s7671
          %s7673 = sand.u32 %s98, 1
          %s7674 = smul.addr %s7673, 256
          %s7675 = scalar_lea.vmem [#allocation9], %s7674
          %7676 = dma.done %s7672, 4096
        $region56: #{tpu_custom_call.1} parent=51 // pred_fallthru
          _
      $region52: #{tpu_custom_call.1} parent=5 // pred_fallthru
        _
    $region6: #{tpu_custom_call.1} parent=1 // loop_footer
      %s20 = sadd.s32 1, %s16
    $region7: #{tpu_custom_call.1} parent=1 // loop_footer_branch
      %15 = sbr.rel target = $region3
    $region8: #{tpu_custom_call.1} parent=1 // loop_exit
      _
    %7677 = vsyncpa [#allocation4], 1
    %s7678 = scalar_lea.sflag [#allocation4], 1
    %7679 = vsyncpa %s7678, 1
    %7680 = vsyncpa [#allocation7], 1
    %7681 = vsyncpa [#allocation5], 1
    %s7682 = scalar_lea.sflag [#allocation5], 1
    %7683 = vsyncpa %s7682, 1

</llo_original>
